<compile_context>
chip_gen: v5e
topology: v5e:2x2
jax: 0.10.0
libtpu: 0.0.40
codegen_flags: <defaults>
</compile_context>

<pallas_src>
import jax
import jax.numpy as jnp
from jax.experimental import pallas as pl
from jax.experimental.pallas import tpu as pltpu

LANE = 128


def _round_up(x, m):
    return ((x + m - 1) // m) * m


def _model_kernel(xd_ref, xs_ref,
                  w1d_ref, b1d_ref, w2d_ref, b2d_ref,
                  w1s_ref, b1s_ref, w2s_ref, b2s_ref,
                  wih_d_ref, wih_s_ref, whh_ref, bih_ref, bhh_ref,
                  wo1_ref, bo1_ref, wo2_ref, bo2_ref,
                  out_ref):
    f32 = jnp.float32
    bf16 = jnp.bfloat16

    BP = xs_ref.shape[0]             # padded batch (multiple of 8 sublanes)
    T = xd_ref.shape[0] // BP        # timesteps (time-major rows)
    HP = whh_ref.shape[0]            # lane-padded hidden size (multiple of 128)
    HP2 = 2 * HP

    # ---- dynamic embedding MLP: Linear -> tanh -> (dropout: identity) -> Linear ----
    h1 = jnp.tanh(jnp.dot(xd_ref[...].astype(bf16), w1d_ref[...],
                          preferred_element_type=f32) + b1d_ref[...])
    ed = jnp.dot(h1.astype(bf16), w2d_ref[...],
                 preferred_element_type=f32) + b2d_ref[...]                     # (T*BP, De)

    # ---- static embedding MLP ----
    s1 = jnp.tanh(jnp.dot(xs_ref[...].astype(bf16), w1s_ref[...],
                          preferred_element_type=f32) + b1s_ref[...])
    es = jnp.dot(s1.astype(bf16), w2s_ref[...],
                 preferred_element_type=f32) + b2s_ref[...]                     # (BP, Se)

    # ---- GRU input-side gate pre-activations, [r|z|n] blocks each HP lanes wide ----
    # concat([ed, es_bcast]) @ W_ih^T == ed @ W_ih_dyn + es @ W_ih_stat (column split).
    gx = jnp.dot(ed.astype(bf16), wih_d_ref[...],
                 preferred_element_type=f32)                                    # (T*BP, 3HP)
    gxs = jnp.dot(es.astype(bf16), wih_s_ref[...],
                  preferred_element_type=f32) + bih_ref[...]                    # (BP, 3HP)

    whh = whh_ref[...]               # (HP, 3HP) bf16, hoisted out of the loop
    bhh = bhh_ref[...]               # (1, 3HP) f32

    h = jnp.zeros((BP, HP), f32)
    hs = []
    for t in range(T):               # T is small & static (num_timestep=8): fully unrolled
        lo = t * BP                  # static, sublane-aligned
        gt = gx[lo:lo + BP, :] + gxs                                            # (BP, 3HP)
        # single fused recurrent matmul per step
        gh = jnp.dot(h.astype(bf16), whh, preferred_element_type=f32) + bhh     # (BP, 3HP)
        rz = jax.nn.sigmoid(gt[:, :HP2] + gh[:, :HP2])    # r,z share one sigmoid; 128-aligned
        r = rz[:, :HP]
        z = rz[:, HP:]
        n = jnp.tanh(gt[:, HP2:] + r * gh[:, HP2:])
        h = (1.0 - z) * n + z * h    # padded columns stay exactly 0
        hs.append(h.astype(bf16))

    # ---- flatten(1) + first output Linear as ONE matmul, off the recurrent chain ----
    flat = jnp.concatenate(hs, axis=1)                     # (BP, T*HP), lane-aligned concat
    y = jnp.dot(flat, wo1_ref[...], preferred_element_type=f32) + bo1_ref[...]  # (BP, 64)
    y = jnp.where(y >= 0.0, y, 0.1 * y)                    # LeakyReLU(0.1)
    out = jnp.dot(y.astype(bf16), wo2_ref[...],
                  preferred_element_type=f32) + bo2_ref[...]
    out_ref[...] = out.astype(out_ref.dtype)


# ---------------- one-time parameter packing (layout + padding + bf16, no per-call cost) ----
def pack_params(params, T):
    bf = jnp.bfloat16
    f32 = jnp.float32
    De = params["W1d"].shape[0]
    Se = params["W1s"].shape[0]
    H = De + Se
    HP = _round_up(H, LANE)          # per-gate lane-padded hidden
    O1 = params["Wo1"].shape[0]      # 64

    def gate_pad_cols(w):
        # w: (rows, 3H) columns [r|z|n] -> (rows, 3HP), each H-block placed at k*HP, rest 0
        rows = w.shape[0]
        out = jnp.zeros((rows, 3 * HP), jnp.float32)
        for k in range(3):
            out = out.at[:, k * HP:k * HP + H].set(w[:, k * H:(k + 1) * H])
        return out

    pk = {}
    pk["w1d"] = params["W1d"].T.astype(bf)
    pk["b1d"] = params["b1d"][None, :].astype(f32)
    pk["w2d"] = params["W2d"].T.astype(bf)
    pk["b2d"] = params["b2d"][None, :].astype(f32)
    pk["w1s"] = params["W1s"].T.astype(bf)
    pk["b1s"] = params["b1s"][None, :].astype(f32)
    pk["w2s"] = params["W2s"].T.astype(bf)
    pk["b2s"] = params["b2s"][None, :].astype(f32)

    # PyTorch GRU weights: W_ih/W_hh are (3H, H_in) row-blocked [r; z; n].
    # x @ W^T needs (H_in, 3H) column-blocked [r|z|n] -> transpose, then lane-pad each gate.
    wih = params["W_ih"].T                                   # (H, 3H)
    pk["wih_d"] = gate_pad_cols(wih[:De, :]).astype(bf)      # (De, 3HP)
    pk["wih_s"] = gate_pad_cols(wih[De:, :]).astype(bf)      # (Se, 3HP)

    whh = gate_pad_cols(params["W_hh"].T)                    # (H, 3HP)
    whh_p = jnp.zeros((HP, 3 * HP), jnp.float32).at[:H, :].set(whh)
    pk["whh"] = whh_p.astype(bf)                             # (HP, 3HP)

    pk["bih"] = gate_pad_cols(params["b_ih"][None, :]).astype(f32)   # (1, 3HP)
    pk["bhh"] = gate_pad_cols(params["b_hh"][None, :]).astype(f32)   # (1, 3HP)

    # Wo1: (64, T*H); flatten order is time-major then hidden -> row blocks of size H.
    wo1t = params["Wo1"].T                                   # (T*H, 64)
    wo1_p = jnp.zeros((T * HP, O1), jnp.float32)
    for t in range(T):
        wo1_p = wo1_p.at[t * HP:t * HP + H, :].set(wo1t[t * H:(t + 1) * H, :])
    pk["wo1"] = wo1_p.astype(bf)                             # (T*HP, 64)
    pk["bo1"] = params["bo1"][None, :].astype(f32)
    pk["wo2"] = params["Wo2"].T.astype(bf)
    pk["bo2"] = params["bo2"][None, :].astype(f32)
    return pk


def my_model_forward(x_d, x_s, pk):
    B, T, Dd = x_d.shape
    lead = pk["wo2"].shape[1]
    BP = max(8, ((B + 7) // 8) * 8)            # sublane-aligned padded batch

    # ------ per-call glue: time-major layout + batch padding (data only, tiny) ------
    xd_tb = jnp.transpose(x_d, (1, 0, 2))      # (T, B, Dd)
    if BP != B:
        xd_tb = jnp.pad(xd_tb, ((0, 0), (0, BP - B), (0, 0)))
        xs_p = jnp.pad(x_s, ((0, BP - B), (0, 0)))
    else:
        xs_p = x_s
    xd_tb = xd_tb.reshape(T * BP, Dd)

    args = (xd_tb, xs_p,
            pk["w1d"], pk["b1d"], pk["w2d"], pk["b2d"],
            pk["w1s"], pk["b1s"], pk["w2s"], pk["b2s"],
            pk["wih_d"], pk["wih_s"], pk["whh"], pk["bih"], pk["bhh"],
            pk["wo1"], pk["bo1"], pk["wo2"], pk["bo2"])

    out = pl.pallas_call(
        _model_kernel,
        out_shape=jax.ShapeDtypeStruct((BP, lead), jnp.float32),
        in_specs=[pl.BlockSpec(memory_space=pltpu.MemorySpace.VMEM)] * len(args),
        out_specs=pl.BlockSpec(memory_space=pltpu.MemorySpace.VMEM),
    )(*args)
    return out[:B]


# ---------------- deterministic parameter init (PyTorch-shaped) ----------------
def _uniform(key, shape, bound):
    return jax.random.uniform(key, shape, jnp.float32, -bound, bound)


def init_params(key, Dd, Ds, De, Se, T, lead):
    H = De + Se
    ks = jax.random.split(key, 20)
    p = {}
    p["W1d"] = _uniform(ks[0], (De, Dd), 1.0 / Dd ** 0.5)
    p["b1d"] = _uniform(ks[1], (De,), 1.0 / Dd ** 0.5)
    p["W2d"] = _uniform(ks[2], (De, De), 1.0 / De ** 0.5)
    p["b2d"] = _uniform(ks[3], (De,), 1.0 / De ** 0.5)
    p["W1s"] = _uniform(ks[4], (Se, Ds), 1.0 / Ds ** 0.5)
    p["b1s"] = _uniform(ks[5], (Se,), 1.0 / Ds ** 0.5)
    p["W2s"] = _uniform(ks[6], (Se, Se), 1.0 / Se ** 0.5)
    p["b2s"] = _uniform(ks[7], (Se,), 1.0 / Se ** 0.5)
    gb = 1.0 / H ** 0.5
    p["W_ih"] = _uniform(ks[8], (3 * H, H), gb)
    p["W_hh"] = _uniform(ks[9], (3 * H, H), gb)
    p["b_ih"] = _uniform(ks[10], (3 * H,), gb)
    p["b_hh"] = _uniform(ks[11], (3 * H,), gb)
    p["Wo1"] = _uniform(ks[12], (64, H * T), 1.0 / (H * T) ** 0.5)
    p["bo1"] = _uniform(ks[13], (64,), 1.0 / (H * T) ** 0.5)
    p["Wo2"] = _uniform(ks[14], (lead, 64), 1.0 / 64 ** 0.5)
    p["bo2"] = _uniform(ks[15], (lead,), 1.0 / 64 ** 0.5)
    return p


# ---------------- pure-JAX f32 reference (mirrors the PyTorch forward) ----------------
def ref_forward(x_d, x_s, params):
    B, T, _ = x_d.shape
    De = params["W1d"].shape[0]
    Se = params["W1s"].shape[0]
    H = De + Se
    ed = jnp.tanh(x_d @ params["W1d"].T + params["b1d"]) @ params["W2d"].T + params["b2d"]
    es = jnp.tanh(x_s @ params["W1s"].T + params["b1s"]) @ params["W2s"].T + params["b2s"]
    es = jnp.broadcast_to(es[:, None, :], (B, T, Se))
    x = jnp.concatenate([ed, es], axis=-1)
    Wih, Whh, bih, bhh = params["W_ih"], params["W_hh"], params["b_ih"], params["b_hh"]
    h = jnp.zeros((B, H), jnp.float32)
    hs = []
    for t in range(T):
        gi = x[:, t] @ Wih.T + bih
        gh = h @ Whh.T + bhh
        r = jax.nn.sigmoid(gi[:, :H] + gh[:, :H])
        z = jax.nn.sigmoid(gi[:, H:2 * H] + gh[:, H:2 * H])
        n = jnp.tanh(gi[:, 2 * H:] + r * gh[:, 2 * H:])
        h = (1.0 - z) * n + z * h
        hs.append(h)
    flat = jnp.stack(hs, axis=1).reshape(B, T * H)
    y = flat @ params["Wo1"].T + params["bo1"]
    y = jnp.where(y >= 0.0, y, 0.1 * y)
    return y @ params["Wo2"].T + params["bo2"]


if __name__ == "__main__":
    B, T = 2, 8                 # batch, num_timestep
    Dd, Ds = 16, 8              # dynamic_input_dim, static_input_dim
    De, Se = 256, 32            # dynamic_embd_dim, static_embd_dim
    lead = 6                    # lead_time

    key = jax.random.PRNGKey(0)
    kp, kd, ks = jax.random.split(key, 3)
    params = init_params(kp, Dd, Ds, De, Se, T, lead)
    pk = pack_params(params, T)                     # one-time weight layout / padding / bf16
    x_d = jax.random.normal(kd, (B, T, Dd), jnp.float32)
    x_s = jax.random.normal(ks, (B, Ds), jnp.float32)

    fwd = jax.jit(my_model_forward)
    out = fwd(x_d, x_s, pk)
    out = jax.block_until_ready(out)
    assert out.shape == (B, lead), out.shape

    ref = ref_forward(x_d, x_s, params)
    max_err = float(jnp.max(jnp.abs(out - ref)))
    # bf16 matmul operands with f32 accumulation: loosen the f32 tolerance.
    assert max_err < 5e-2, f"max abs err {max_err}"

    print("KERNEL_OK")
</pallas_src>

<mosaic_0001>
module attributes {stable_mosaic.version = 11 : i64} {
  func.func @_model_kernel(%arg0: memref<64x16xf32, #tpu.memory_space<vmem>>, %arg1: memref<8x8xf32, #tpu.memory_space<vmem>>, %arg2: memref<16x256xbf16, #tpu.memory_space<vmem>>, %arg3: memref<1x256xf32, #tpu.memory_space<vmem>>, %arg4: memref<256x256xbf16, #tpu.memory_space<vmem>>, %arg5: memref<1x256xf32, #tpu.memory_space<vmem>>, %arg6: memref<8x32xbf16, #tpu.memory_space<vmem>>, %arg7: memref<1x32xf32, #tpu.memory_space<vmem>>, %arg8: memref<32x32xbf16, #tpu.memory_space<vmem>>, %arg9: memref<1x32xf32, #tpu.memory_space<vmem>>, %arg10: memref<256x1152xbf16, #tpu.memory_space<vmem>>, %arg11: memref<32x1152xbf16, #tpu.memory_space<vmem>>, %arg12: memref<384x1152xbf16, #tpu.memory_space<vmem>>, %arg13: memref<1x1152xf32, #tpu.memory_space<vmem>>, %arg14: memref<1x1152xf32, #tpu.memory_space<vmem>>, %arg15: memref<3072x64xbf16, #tpu.memory_space<vmem>>, %arg16: memref<1x64xf32, #tpu.memory_space<vmem>>, %arg17: memref<64x6xbf16, #tpu.memory_space<vmem>>, %arg18: memref<1x6xf32, #tpu.memory_space<vmem>>, %arg19: memref<8x6xf32, #tpu.memory_space<vmem>>) attributes {dimension_semantics = [], scalar_prefetch = 0 : i64, scratch_operands = 0 : i64, tpu.core_type = #tpu.core_type<tc>} {
    %c0 = arith.constant 0 : index
    %c0_0 = arith.constant 0 : index
    %0 = vector.load %arg0[%c0, %c0_0] : memref<64x16xf32, #tpu.memory_space<vmem>>, vector<64x16xf32>
    %1 = arith.truncf %0 : vector<64x16xf32> to vector<64x16xbf16>
    %c0_1 = arith.constant 0 : index
    %c0_2 = arith.constant 0 : index
    %2 = vector.load %arg2[%c0_1, %c0_2] : memref<16x256xbf16, #tpu.memory_space<vmem>>, vector<16x256xbf16>
    %cst = arith.constant dense<0.000000e+00> : vector<64x256xf32>
    %3 = tpu.matmul %1, %2, %cst {dimension_numbers = #tpu.dot_dimension_numbers<[1], [0], [0], [1], [0, 0, 1, 1], [], []>} : vector<64x16xbf16>, vector<16x256xbf16>, vector<64x256xf32> -> vector<64x256xf32>
    %c0_3 = arith.constant 0 : index
    %c0_4 = arith.constant 0 : index
    %4 = vector.load %arg3[%c0_3, %c0_4] : memref<1x256xf32, #tpu.memory_space<vmem>>, vector<1x256xf32>
    %5 = vector.broadcast %4 : vector<1x256xf32> to vector<64x256xf32>
    %6 = arith.addf %3, %5 : vector<64x256xf32>
    %7 = math.tanh %6 : vector<64x256xf32>
    %8 = arith.truncf %7 : vector<64x256xf32> to vector<64x256xbf16>
    %c0_5 = arith.constant 0 : index
    %c0_6 = arith.constant 0 : index
    %9 = vector.load %arg4[%c0_5, %c0_6] : memref<256x256xbf16, #tpu.memory_space<vmem>>, vector<256x256xbf16>
    %cst_7 = arith.constant dense<0.000000e+00> : vector<64x256xf32>
    %10 = tpu.matmul %8, %9, %cst_7 {dimension_numbers = #tpu.dot_dimension_numbers<[1], [0], [0], [1], [0, 0, 1, 1], [], []>} : vector<64x256xbf16>, vector<256x256xbf16>, vector<64x256xf32> -> vector<64x256xf32>
    %c0_8 = arith.constant 0 : index
    %c0_9 = arith.constant 0 : index
    %11 = vector.load %arg5[%c0_8, %c0_9] : memref<1x256xf32, #tpu.memory_space<vmem>>, vector<1x256xf32>
    %12 = vector.broadcast %11 : vector<1x256xf32> to vector<64x256xf32>
    %13 = arith.addf %10, %12 : vector<64x256xf32>
    %c0_10 = arith.constant 0 : index
    %c0_11 = arith.constant 0 : index
    %14 = vector.load %arg1[%c0_10, %c0_11] : memref<8x8xf32, #tpu.memory_space<vmem>>, vector<8x8xf32>
    %15 = arith.truncf %14 : vector<8x8xf32> to vector<8x8xbf16>
    %c0_12 = arith.constant 0 : index
    %c0_13 = arith.constant 0 : index
    %16 = vector.load %arg6[%c0_12, %c0_13] : memref<8x32xbf16, #tpu.memory_space<vmem>>, vector<8x32xbf16>
    %cst_14 = arith.constant dense<0.000000e+00> : vector<8x32xf32>
    %17 = tpu.matmul %15, %16, %cst_14 {dimension_numbers = #tpu.dot_dimension_numbers<[1], [0], [0], [1], [0, 0, 1, 1], [], []>} : vector<8x8xbf16>, vector<8x32xbf16>, vector<8x32xf32> -> vector<8x32xf32>
    %c0_15 = arith.constant 0 : index
    %c0_16 = arith.constant 0 : index
    %18 = vector.load %arg7[%c0_15, %c0_16] : memref<1x32xf32, #tpu.memory_space<vmem>>, vector<1x32xf32>
    %19 = vector.broadcast %18 : vector<1x32xf32> to vector<8x32xf32>
    %20 = arith.addf %17, %19 : vector<8x32xf32>
    %21 = math.tanh %20 : vector<8x32xf32>
    %22 = arith.truncf %21 : vector<8x32xf32> to vector<8x32xbf16>
    %c0_17 = arith.constant 0 : index
    %c0_18 = arith.constant 0 : index
    %23 = vector.load %arg8[%c0_17, %c0_18] : memref<32x32xbf16, #tpu.memory_space<vmem>>, vector<32x32xbf16>
    %cst_19 = arith.constant dense<0.000000e+00> : vector<8x32xf32>
    %24 = tpu.matmul %22, %23, %cst_19 {dimension_numbers = #tpu.dot_dimension_numbers<[1], [0], [0], [1], [0, 0, 1, 1], [], []>} : vector<8x32xbf16>, vector<32x32xbf16>, vector<8x32xf32> -> vector<8x32xf32>
    %c0_20 = arith.constant 0 : index
    %c0_21 = arith.constant 0 : index
    %25 = vector.load %arg9[%c0_20, %c0_21] : memref<1x32xf32, #tpu.memory_space<vmem>>, vector<1x32xf32>
    %26 = vector.broadcast %25 : vector<1x32xf32> to vector<8x32xf32>
    %27 = arith.addf %24, %26 : vector<8x32xf32>
    %28 = arith.truncf %13 : vector<64x256xf32> to vector<64x256xbf16>
    %c0_22 = arith.constant 0 : index
    %c0_23 = arith.constant 0 : index
    %29 = vector.load %arg10[%c0_22, %c0_23] : memref<256x1152xbf16, #tpu.memory_space<vmem>>, vector<256x1152xbf16>
    %cst_24 = arith.constant dense<0.000000e+00> : vector<64x1152xf32>
    %30 = tpu.matmul %28, %29, %cst_24 {dimension_numbers = #tpu.dot_dimension_numbers<[1], [0], [0], [1], [0, 0, 1, 1], [], []>} : vector<64x256xbf16>, vector<256x1152xbf16>, vector<64x1152xf32> -> vector<64x1152xf32>
    %31 = arith.truncf %27 : vector<8x32xf32> to vector<8x32xbf16>
    %c0_25 = arith.constant 0 : index
    %c0_26 = arith.constant 0 : index
    %32 = vector.load %arg11[%c0_25, %c0_26] : memref<32x1152xbf16, #tpu.memory_space<vmem>>, vector<32x1152xbf16>
    %cst_27 = arith.constant dense<0.000000e+00> : vector<8x1152xf32>
    %33 = tpu.matmul %31, %32, %cst_27 {dimension_numbers = #tpu.dot_dimension_numbers<[1], [0], [0], [1], [0, 0, 1, 1], [], []>} : vector<8x32xbf16>, vector<32x1152xbf16>, vector<8x1152xf32> -> vector<8x1152xf32>
    %c0_28 = arith.constant 0 : index
    %c0_29 = arith.constant 0 : index
    %34 = vector.load %arg13[%c0_28, %c0_29] : memref<1x1152xf32, #tpu.memory_space<vmem>>, vector<1x1152xf32>
    %35 = vector.broadcast %34 : vector<1x1152xf32> to vector<8x1152xf32>
    %36 = arith.addf %33, %35 : vector<8x1152xf32>
    %c0_30 = arith.constant 0 : index
    %c0_31 = arith.constant 0 : index
    %37 = vector.load %arg12[%c0_30, %c0_31] : memref<384x1152xbf16, #tpu.memory_space<vmem>>, vector<384x1152xbf16>
    %c0_32 = arith.constant 0 : index
    %c0_33 = arith.constant 0 : index
    %38 = vector.load %arg14[%c0_32, %c0_33] : memref<1x1152xf32, #tpu.memory_space<vmem>>, vector<1x1152xf32>
    %cst_34 = arith.constant 0.000000e+00 : f32
    %39 = vector.broadcast %cst_34 : f32 to vector<8x384xf32>
    %40 = vector.extract_strided_slice %30 {offsets = [0, 0], sizes = [8, 1152], strides = [1, 1]} : vector<64x1152xf32> to vector<8x1152xf32>
    %41 = arith.addf %40, %36 : vector<8x1152xf32>
    %42 = arith.truncf %39 : vector<8x384xf32> to vector<8x384xbf16>
    %cst_35 = arith.constant dense<0.000000e+00> : vector<8x1152xf32>
    %43 = tpu.matmul %42, %37, %cst_35 {dimension_numbers = #tpu.dot_dimension_numbers<[1], [0], [0], [1], [0, 0, 1, 1], [], []>} : vector<8x384xbf16>, vector<384x1152xbf16>, vector<8x1152xf32> -> vector<8x1152xf32>
    %44 = vector.broadcast %38 : vector<1x1152xf32> to vector<8x1152xf32>
    %45 = arith.addf %43, %44 : vector<8x1152xf32>
    %46 = vector.extract_strided_slice %41 {offsets = [0, 0], sizes = [8, 768], strides = [1, 1]} : vector<8x1152xf32> to vector<8x768xf32>
    %47 = vector.extract_strided_slice %45 {offsets = [0, 0], sizes = [8, 768], strides = [1, 1]} : vector<8x1152xf32> to vector<8x768xf32>
    %48 = arith.addf %46, %47 : vector<8x768xf32>
    %49 = arith.negf %48 : vector<8x768xf32>
    %50 = math.exp %49 : vector<8x768xf32>
    %cst_36 = arith.constant 1.000000e+00 : f32
    %51 = vector.broadcast %cst_36 : f32 to vector<8x768xf32>
    %52 = arith.addf %51, %50 : vector<8x768xf32>
    %53 = arith.divf %51, %52 : vector<8x768xf32>
    %54 = vector.extract_strided_slice %53 {offsets = [0, 0], sizes = [8, 384], strides = [1, 1]} : vector<8x768xf32> to vector<8x384xf32>
    %55 = vector.extract_strided_slice %53 {offsets = [0, 384], sizes = [8, 384], strides = [1, 1]} : vector<8x768xf32> to vector<8x384xf32>
    %56 = vector.extract_strided_slice %41 {offsets = [0, 768], sizes = [8, 384], strides = [1, 1]} : vector<8x1152xf32> to vector<8x384xf32>
    %57 = vector.extract_strided_slice %45 {offsets = [0, 768], sizes = [8, 384], strides = [1, 1]} : vector<8x1152xf32> to vector<8x384xf32>
    %58 = arith.mulf %54, %57 : vector<8x384xf32>
    %59 = arith.addf %56, %58 : vector<8x384xf32>
    %60 = math.tanh %59 : vector<8x384xf32>
    %cst_37 = arith.constant 1.000000e+00 : f32
    %61 = vector.broadcast %cst_37 : f32 to vector<8x384xf32>
    %62 = arith.subf %61, %55 : vector<8x384xf32>
    %63 = arith.mulf %62, %60 : vector<8x384xf32>
    %64 = arith.mulf %55, %39 : vector<8x384xf32>
    %65 = arith.addf %63, %64 : vector<8x384xf32>
    %66 = arith.truncf %65 : vector<8x384xf32> to vector<8x384xbf16>
    %67 = vector.extract_strided_slice %30 {offsets = [8, 0], sizes = [8, 1152], strides = [1, 1]} : vector<64x1152xf32> to vector<8x1152xf32>
    %68 = arith.addf %67, %36 : vector<8x1152xf32>
    %69 = arith.truncf %65 : vector<8x384xf32> to vector<8x384xbf16>
    %cst_38 = arith.constant dense<0.000000e+00> : vector<8x1152xf32>
    %70 = tpu.matmul %69, %37, %cst_38 {dimension_numbers = #tpu.dot_dimension_numbers<[1], [0], [0], [1], [0, 0, 1, 1], [], []>} : vector<8x384xbf16>, vector<384x1152xbf16>, vector<8x1152xf32> -> vector<8x1152xf32>
    %71 = vector.broadcast %38 : vector<1x1152xf32> to vector<8x1152xf32>
    %72 = arith.addf %70, %71 : vector<8x1152xf32>
    %73 = vector.extract_strided_slice %68 {offsets = [0, 0], sizes = [8, 768], strides = [1, 1]} : vector<8x1152xf32> to vector<8x768xf32>
    %74 = vector.extract_strided_slice %72 {offsets = [0, 0], sizes = [8, 768], strides = [1, 1]} : vector<8x1152xf32> to vector<8x768xf32>
    %75 = arith.addf %73, %74 : vector<8x768xf32>
    %76 = arith.negf %75 : vector<8x768xf32>
    %77 = math.exp %76 : vector<8x768xf32>
    %cst_39 = arith.constant 1.000000e+00 : f32
    %78 = vector.broadcast %cst_39 : f32 to vector<8x768xf32>
    %79 = arith.addf %78, %77 : vector<8x768xf32>
    %80 = arith.divf %78, %79 : vector<8x768xf32>
    %81 = vector.extract_strided_slice %80 {offsets = [0, 0], sizes = [8, 384], strides = [1, 1]} : vector<8x768xf32> to vector<8x384xf32>
    %82 = vector.extract_strided_slice %80 {offsets = [0, 384], sizes = [8, 384], strides = [1, 1]} : vector<8x768xf32> to vector<8x384xf32>
    %83 = vector.extract_strided_slice %68 {offsets = [0, 768], sizes = [8, 384], strides = [1, 1]} : vector<8x1152xf32> to vector<8x384xf32>
    %84 = vector.extract_strided_slice %72 {offsets = [0, 768], sizes = [8, 384], strides = [1, 1]} : vector<8x1152xf32> to vector<8x384xf32>
    %85 = arith.mulf %81, %84 : vector<8x384xf32>
    %86 = arith.addf %83, %85 : vector<8x384xf32>
    %87 = math.tanh %86 : vector<8x384xf32>
    %cst_40 = arith.constant 1.000000e+00 : f32
    %88 = vector.broadcast %cst_40 : f32 to vector<8x384xf32>
    %89 = arith.subf %88, %82 : vector<8x384xf32>
    %90 = arith.mulf %89, %87 : vector<8x384xf32>
    %91 = arith.mulf %82, %65 : vector<8x384xf32>
    %92 = arith.addf %90, %91 : vector<8x384xf32>
    %93 = arith.truncf %92 : vector<8x384xf32> to vector<8x384xbf16>
    %94 = vector.extract_strided_slice %30 {offsets = [16, 0], sizes = [8, 1152], strides = [1, 1]} : vector<64x1152xf32> to vector<8x1152xf32>
    %95 = arith.addf %94, %36 : vector<8x1152xf32>
    %96 = arith.truncf %92 : vector<8x384xf32> to vector<8x384xbf16>
    %cst_41 = arith.constant dense<0.000000e+00> : vector<8x1152xf32>
    %97 = tpu.matmul %96, %37, %cst_41 {dimension_numbers = #tpu.dot_dimension_numbers<[1], [0], [0], [1], [0, 0, 1, 1], [], []>} : vector<8x384xbf16>, vector<384x1152xbf16>, vector<8x1152xf32> -> vector<8x1152xf32>
    %98 = vector.broadcast %38 : vector<1x1152xf32> to vector<8x1152xf32>
    %99 = arith.addf %97, %98 : vector<8x1152xf32>
    %100 = vector.extract_strided_slice %95 {offsets = [0, 0], sizes = [8, 768], strides = [1, 1]} : vector<8x1152xf32> to vector<8x768xf32>
    %101 = vector.extract_strided_slice %99 {offsets = [0, 0], sizes = [8, 768], strides = [1, 1]} : vector<8x1152xf32> to vector<8x768xf32>
    %102 = arith.addf %100, %101 : vector<8x768xf32>
    %103 = arith.negf %102 : vector<8x768xf32>
    %104 = math.exp %103 : vector<8x768xf32>
    %cst_42 = arith.constant 1.000000e+00 : f32
    %105 = vector.broadcast %cst_42 : f32 to vector<8x768xf32>
    %106 = arith.addf %105, %104 : vector<8x768xf32>
    %107 = arith.divf %105, %106 : vector<8x768xf32>
    %108 = vector.extract_strided_slice %107 {offsets = [0, 0], sizes = [8, 384], strides = [1, 1]} : vector<8x768xf32> to vector<8x384xf32>
    %109 = vector.extract_strided_slice %107 {offsets = [0, 384], sizes = [8, 384], strides = [1, 1]} : vector<8x768xf32> to vector<8x384xf32>
    %110 = vector.extract_strided_slice %95 {offsets = [0, 768], sizes = [8, 384], strides = [1, 1]} : vector<8x1152xf32> to vector<8x384xf32>
    %111 = vector.extract_strided_slice %99 {offsets = [0, 768], sizes = [8, 384], strides = [1, 1]} : vector<8x1152xf32> to vector<8x384xf32>
    %112 = arith.mulf %108, %111 : vector<8x384xf32>
    %113 = arith.addf %110, %112 : vector<8x384xf32>
    %114 = math.tanh %113 : vector<8x384xf32>
    %cst_43 = arith.constant 1.000000e+00 : f32
    %115 = vector.broadcast %cst_43 : f32 to vector<8x384xf32>
    %116 = arith.subf %115, %109 : vector<8x384xf32>
    %117 = arith.mulf %116, %114 : vector<8x384xf32>
    %118 = arith.mulf %109, %92 : vector<8x384xf32>
    %119 = arith.addf %117, %118 : vector<8x384xf32>
    %120 = arith.truncf %119 : vector<8x384xf32> to vector<8x384xbf16>
    %121 = vector.extract_strided_slice %30 {offsets = [24, 0], sizes = [8, 1152], strides = [1, 1]} : vector<64x1152xf32> to vector<8x1152xf32>
    %122 = arith.addf %121, %36 : vector<8x1152xf32>
    %123 = arith.truncf %119 : vector<8x384xf32> to vector<8x384xbf16>
    %cst_44 = arith.constant dense<0.000000e+00> : vector<8x1152xf32>
    %124 = tpu.matmul %123, %37, %cst_44 {dimension_numbers = #tpu.dot_dimension_numbers<[1], [0], [0], [1], [0, 0, 1, 1], [], []>} : vector<8x384xbf16>, vector<384x1152xbf16>, vector<8x1152xf32> -> vector<8x1152xf32>
    %125 = vector.broadcast %38 : vector<1x1152xf32> to vector<8x1152xf32>
    %126 = arith.addf %124, %125 : vector<8x1152xf32>
    %127 = vector.extract_strided_slice %122 {offsets = [0, 0], sizes = [8, 768], strides = [1, 1]} : vector<8x1152xf32> to vector<8x768xf32>
    %128 = vector.extract_strided_slice %126 {offsets = [0, 0], sizes = [8, 768], strides = [1, 1]} : vector<8x1152xf32> to vector<8x768xf32>
    %129 = arith.addf %127, %128 : vector<8x768xf32>
    %130 = arith.negf %129 : vector<8x768xf32>
    %131 = math.exp %130 : vector<8x768xf32>
    %cst_45 = arith.constant 1.000000e+00 : f32
    %132 = vector.broadcast %cst_45 : f32 to vector<8x768xf32>
    %133 = arith.addf %132, %131 : vector<8x768xf32>
    %134 = arith.divf %132, %133 : vector<8x768xf32>
    %135 = vector.extract_strided_slice %134 {offsets = [0, 0], sizes = [8, 384], strides = [1, 1]} : vector<8x768xf32> to vector<8x384xf32>
    %136 = vector.extract_strided_slice %134 {offsets = [0, 384], sizes = [8, 384], strides = [1, 1]} : vector<8x768xf32> to vector<8x384xf32>
    %137 = vector.extract_strided_slice %122 {offsets = [0, 768], sizes = [8, 384], strides = [1, 1]} : vector<8x1152xf32> to vector<8x384xf32>
    %138 = vector.extract_strided_slice %126 {offsets = [0, 768], sizes = [8, 384], strides = [1, 1]} : vector<8x1152xf32> to vector<8x384xf32>
    %139 = arith.mulf %135, %138 : vector<8x384xf32>
    %140 = arith.addf %137, %139 : vector<8x384xf32>
    %141 = math.tanh %140 : vector<8x384xf32>
    %cst_46 = arith.constant 1.000000e+00 : f32
    %142 = vector.broadcast %cst_46 : f32 to vector<8x384xf32>
    %143 = arith.subf %142, %136 : vector<8x384xf32>
    %144 = arith.mulf %143, %141 : vector<8x384xf32>
    %145 = arith.mulf %136, %119 : vector<8x384xf32>
    %146 = arith.addf %144, %145 : vector<8x384xf32>
    %147 = arith.truncf %146 : vector<8x384xf32> to vector<8x384xbf16>
    %148 = vector.extract_strided_slice %30 {offsets = [32, 0], sizes = [8, 1152], strides = [1, 1]} : vector<64x1152xf32> to vector<8x1152xf32>
    %149 = arith.addf %148, %36 : vector<8x1152xf32>
    %150 = arith.truncf %146 : vector<8x384xf32> to vector<8x384xbf16>
    %cst_47 = arith.constant dense<0.000000e+00> : vector<8x1152xf32>
    %151 = tpu.matmul %150, %37, %cst_47 {dimension_numbers = #tpu.dot_dimension_numbers<[1], [0], [0], [1], [0, 0, 1, 1], [], []>} : vector<8x384xbf16>, vector<384x1152xbf16>, vector<8x1152xf32> -> vector<8x1152xf32>
    %152 = vector.broadcast %38 : vector<1x1152xf32> to vector<8x1152xf32>
    %153 = arith.addf %151, %152 : vector<8x1152xf32>
    %154 = vector.extract_strided_slice %149 {offsets = [0, 0], sizes = [8, 768], strides = [1, 1]} : vector<8x1152xf32> to vector<8x768xf32>
    %155 = vector.extract_strided_slice %153 {offsets = [0, 0], sizes = [8, 768], strides = [1, 1]} : vector<8x1152xf32> to vector<8x768xf32>
    %156 = arith.addf %154, %155 : vector<8x768xf32>
    %157 = arith.negf %156 : vector<8x768xf32>
    %158 = math.exp %157 : vector<8x768xf32>
    %cst_48 = arith.constant 1.000000e+00 : f32
    %159 = vector.broadcast %cst_48 : f32 to vector<8x768xf32>
    %160 = arith.addf %159, %158 : vector<8x768xf32>
    %161 = arith.divf %159, %160 : vector<8x768xf32>
    %162 = vector.extract_strided_slice %161 {offsets = [0, 0], sizes = [8, 384], strides = [1, 1]} : vector<8x768xf32> to vector<8x384xf32>
    %163 = vector.extract_strided_slice %161 {offsets = [0, 384], sizes = [8, 384], strides = [1, 1]} : vector<8x768xf32> to vector<8x384xf32>
    %164 = vector.extract_strided_slice %149 {offsets = [0, 768], sizes = [8, 384], strides = [1, 1]} : vector<8x1152xf32> to vector<8x384xf32>
    %165 = vector.extract_strided_slice %153 {offsets = [0, 768], sizes = [8, 384], strides = [1, 1]} : vector<8x1152xf32> to vector<8x384xf32>
    %166 = arith.mulf %162, %165 : vector<8x384xf32>
    %167 = arith.addf %164, %166 : vector<8x384xf32>
    %168 = math.tanh %167 : vector<8x384xf32>
    %cst_49 = arith.constant 1.000000e+00 : f32
    %169 = vector.broadcast %cst_49 : f32 to vector<8x384xf32>
    %170 = arith.subf %169, %163 : vector<8x384xf32>
    %171 = arith.mulf %170, %168 : vector<8x384xf32>
    %172 = arith.mulf %163, %146 : vector<8x384xf32>
    %173 = arith.addf %171, %172 : vector<8x384xf32>
    %174 = arith.truncf %173 : vector<8x384xf32> to vector<8x384xbf16>
    %175 = vector.extract_strided_slice %30 {offsets = [40, 0], sizes = [8, 1152], strides = [1, 1]} : vector<64x1152xf32> to vector<8x1152xf32>
    %176 = arith.addf %175, %36 : vector<8x1152xf32>
    %177 = arith.truncf %173 : vector<8x384xf32> to vector<8x384xbf16>
    %cst_50 = arith.constant dense<0.000000e+00> : vector<8x1152xf32>
    %178 = tpu.matmul %177, %37, %cst_50 {dimension_numbers = #tpu.dot_dimension_numbers<[1], [0], [0], [1], [0, 0, 1, 1], [], []>} : vector<8x384xbf16>, vector<384x1152xbf16>, vector<8x1152xf32> -> vector<8x1152xf32>
    %179 = vector.broadcast %38 : vector<1x1152xf32> to vector<8x1152xf32>
    %180 = arith.addf %178, %179 : vector<8x1152xf32>
    %181 = vector.extract_strided_slice %176 {offsets = [0, 0], sizes = [8, 768], strides = [1, 1]} : vector<8x1152xf32> to vector<8x768xf32>
    %182 = vector.extract_strided_slice %180 {offsets = [0, 0], sizes = [8, 768], strides = [1, 1]} : vector<8x1152xf32> to vector<8x768xf32>
    %183 = arith.addf %181, %182 : vector<8x768xf32>
    %184 = arith.negf %183 : vector<8x768xf32>
    %185 = math.exp %184 : vector<8x768xf32>
    %cst_51 = arith.constant 1.000000e+00 : f32
    %186 = vector.broadcast %cst_51 : f32 to vector<8x768xf32>
    %187 = arith.addf %186, %185 : vector<8x768xf32>
    %188 = arith.divf %186, %187 : vector<8x768xf32>
    %189 = vector.extract_strided_slice %188 {offsets = [0, 0], sizes = [8, 384], strides = [1, 1]} : vector<8x768xf32> to vector<8x384xf32>
    %190 = vector.extract_strided_slice %188 {offsets = [0, 384], sizes = [8, 384], strides = [1, 1]} : vector<8x768xf32> to vector<8x384xf32>
    %191 = vector.extract_strided_slice %176 {offsets = [0, 768], sizes = [8, 384], strides = [1, 1]} : vector<8x1152xf32> to vector<8x384xf32>
    %192 = vector.extract_strided_slice %180 {offsets = [0, 768], sizes = [8, 384], strides = [1, 1]} : vector<8x1152xf32> to vector<8x384xf32>
    %193 = arith.mulf %189, %192 : vector<8x384xf32>
    %194 = arith.addf %191, %193 : vector<8x384xf32>
    %195 = math.tanh %194 : vector<8x384xf32>
    %cst_52 = arith.constant 1.000000e+00 : f32
    %196 = vector.broadcast %cst_52 : f32 to vector<8x384xf32>
    %197 = arith.subf %196, %190 : vector<8x384xf32>
    %198 = arith.mulf %197, %195 : vector<8x384xf32>
    %199 = arith.mulf %190, %173 : vector<8x384xf32>
    %200 = arith.addf %198, %199 : vector<8x384xf32>
    %201 = arith.truncf %200 : vector<8x384xf32> to vector<8x384xbf16>
    %202 = vector.extract_strided_slice %30 {offsets = [48, 0], sizes = [8, 1152], strides = [1, 1]} : vector<64x1152xf32> to vector<8x1152xf32>
    %203 = arith.addf %202, %36 : vector<8x1152xf32>
    %204 = arith.truncf %200 : vector<8x384xf32> to vector<8x384xbf16>
    %cst_53 = arith.constant dense<0.000000e+00> : vector<8x1152xf32>
    %205 = tpu.matmul %204, %37, %cst_53 {dimension_numbers = #tpu.dot_dimension_numbers<[1], [0], [0], [1], [0, 0, 1, 1], [], []>} : vector<8x384xbf16>, vector<384x1152xbf16>, vector<8x1152xf32> -> vector<8x1152xf32>
    %206 = vector.broadcast %38 : vector<1x1152xf32> to vector<8x1152xf32>
    %207 = arith.addf %205, %206 : vector<8x1152xf32>
    %208 = vector.extract_strided_slice %203 {offsets = [0, 0], sizes = [8, 768], strides = [1, 1]} : vector<8x1152xf32> to vector<8x768xf32>
    %209 = vector.extract_strided_slice %207 {offsets = [0, 0], sizes = [8, 768], strides = [1, 1]} : vector<8x1152xf32> to vector<8x768xf32>
    %210 = arith.addf %208, %209 : vector<8x768xf32>
    %211 = arith.negf %210 : vector<8x768xf32>
    %212 = math.exp %211 : vector<8x768xf32>
    %cst_54 = arith.constant 1.000000e+00 : f32
    %213 = vector.broadcast %cst_54 : f32 to vector<8x768xf32>
    %214 = arith.addf %213, %212 : vector<8x768xf32>
    %215 = arith.divf %213, %214 : vector<8x768xf32>
    %216 = vector.extract_strided_slice %215 {offsets = [0, 0], sizes = [8, 384], strides = [1, 1]} : vector<8x768xf32> to vector<8x384xf32>
    %217 = vector.extract_strided_slice %215 {offsets = [0, 384], sizes = [8, 384], strides = [1, 1]} : vector<8x768xf32> to vector<8x384xf32>
    %218 = vector.extract_strided_slice %203 {offsets = [0, 768], sizes = [8, 384], strides = [1, 1]} : vector<8x1152xf32> to vector<8x384xf32>
    %219 = vector.extract_strided_slice %207 {offsets = [0, 768], sizes = [8, 384], strides = [1, 1]} : vector<8x1152xf32> to vector<8x384xf32>
    %220 = arith.mulf %216, %219 : vector<8x384xf32>
    %221 = arith.addf %218, %220 : vector<8x384xf32>
    %222 = math.tanh %221 : vector<8x384xf32>
    %cst_55 = arith.constant 1.000000e+00 : f32
    %223 = vector.broadcast %cst_55 : f32 to vector<8x384xf32>
    %224 = arith.subf %223, %217 : vector<8x384xf32>
    %225 = arith.mulf %224, %222 : vector<8x384xf32>
    %226 = arith.mulf %217, %200 : vector<8x384xf32>
    %227 = arith.addf %225, %226 : vector<8x384xf32>
    %228 = arith.truncf %227 : vector<8x384xf32> to vector<8x384xbf16>
    %229 = vector.extract_strided_slice %30 {offsets = [56, 0], sizes = [8, 1152], strides = [1, 1]} : vector<64x1152xf32> to vector<8x1152xf32>
    %230 = arith.addf %229, %36 : vector<8x1152xf32>
    %231 = arith.truncf %227 : vector<8x384xf32> to vector<8x384xbf16>
    %cst_56 = arith.constant dense<0.000000e+00> : vector<8x1152xf32>
    %232 = tpu.matmul %231, %37, %cst_56 {dimension_numbers = #tpu.dot_dimension_numbers<[1], [0], [0], [1], [0, 0, 1, 1], [], []>} : vector<8x384xbf16>, vector<384x1152xbf16>, vector<8x1152xf32> -> vector<8x1152xf32>
    %233 = vector.broadcast %38 : vector<1x1152xf32> to vector<8x1152xf32>
    %234 = arith.addf %232, %233 : vector<8x1152xf32>
    %235 = vector.extract_strided_slice %230 {offsets = [0, 0], sizes = [8, 768], strides = [1, 1]} : vector<8x1152xf32> to vector<8x768xf32>
    %236 = vector.extract_strided_slice %234 {offsets = [0, 0], sizes = [8, 768], strides = [1, 1]} : vector<8x1152xf32> to vector<8x768xf32>
    %237 = arith.addf %235, %236 : vector<8x768xf32>
    %238 = arith.negf %237 : vector<8x768xf32>
    %239 = math.exp %238 : vector<8x768xf32>
    %cst_57 = arith.constant 1.000000e+00 : f32
    %240 = vector.broadcast %cst_57 : f32 to vector<8x768xf32>
    %241 = arith.addf %240, %239 : vector<8x768xf32>
    %242 = arith.divf %240, %241 : vector<8x768xf32>
    %243 = vector.extract_strided_slice %242 {offsets = [0, 0], sizes = [8, 384], strides = [1, 1]} : vector<8x768xf32> to vector<8x384xf32>
    %244 = vector.extract_strided_slice %242 {offsets = [0, 384], sizes = [8, 384], strides = [1, 1]} : vector<8x768xf32> to vector<8x384xf32>
    %245 = vector.extract_strided_slice %230 {offsets = [0, 768], sizes = [8, 384], strides = [1, 1]} : vector<8x1152xf32> to vector<8x384xf32>
    %246 = vector.extract_strided_slice %234 {offsets = [0, 768], sizes = [8, 384], strides = [1, 1]} : vector<8x1152xf32> to vector<8x384xf32>
    %247 = arith.mulf %243, %246 : vector<8x384xf32>
    %248 = arith.addf %245, %247 : vector<8x384xf32>
    %249 = math.tanh %248 : vector<8x384xf32>
    %cst_58 = arith.constant 1.000000e+00 : f32
    %250 = vector.broadcast %cst_58 : f32 to vector<8x384xf32>
    %251 = arith.subf %250, %244 : vector<8x384xf32>
    %252 = arith.mulf %251, %249 : vector<8x384xf32>
    %253 = arith.mulf %244, %227 : vector<8x384xf32>
    %254 = arith.addf %252, %253 : vector<8x384xf32>
    %255 = arith.truncf %254 : vector<8x384xf32> to vector<8x384xbf16>
    %256 = tpu.concatenate %66, %93, %120, %147, %174, %201, %228, %255 in 1 : vector<8x384xbf16>, vector<8x384xbf16>, vector<8x384xbf16>, vector<8x384xbf16>, vector<8x384xbf16>, vector<8x384xbf16>, vector<8x384xbf16>, vector<8x384xbf16> -> vector<8x3072xbf16>
    %c0_59 = arith.constant 0 : index
    %c0_60 = arith.constant 0 : index
    %257 = vector.load %arg15[%c0_59, %c0_60] : memref<3072x64xbf16, #tpu.memory_space<vmem>>, vector<3072x64xbf16>
    %cst_61 = arith.constant dense<0.000000e+00> : vector<8x64xf32>
    %258 = tpu.matmul %256, %257, %cst_61 {dimension_numbers = #tpu.dot_dimension_numbers<[1], [0], [0], [1], [0, 0, 1, 1], [], []>} : vector<8x3072xbf16>, vector<3072x64xbf16>, vector<8x64xf32> -> vector<8x64xf32>
    %c0_62 = arith.constant 0 : index
    %c0_63 = arith.constant 0 : index
    %259 = vector.load %arg16[%c0_62, %c0_63] : memref<1x64xf32, #tpu.memory_space<vmem>>, vector<1x64xf32>
    %260 = vector.broadcast %259 : vector<1x64xf32> to vector<8x64xf32>
    %261 = arith.addf %258, %260 : vector<8x64xf32>
    %cst_64 = arith.constant 0.000000e+00 : f32
    %262 = vector.broadcast %cst_64 : f32 to vector<8x64xf32>
    %263 = arith.cmpf oge, %261, %262 : vector<8x64xf32>
    %cst_65 = arith.constant 1.000000e-01 : f32
    %264 = vector.broadcast %cst_65 : f32 to vector<8x64xf32>
    %265 = arith.mulf %264, %261 : vector<8x64xf32>
    %266 = arith.select %263, %261, %265 : vector<8x64xi1>, vector<8x64xf32>
    %267 = arith.truncf %266 : vector<8x64xf32> to vector<8x64xbf16>
    %c0_66 = arith.constant 0 : index
    %c0_67 = arith.constant 0 : index
    %268 = vector.load %arg17[%c0_66, %c0_67] : memref<64x6xbf16, #tpu.memory_space<vmem>>, vector<64x6xbf16>
    %cst_68 = arith.constant dense<0.000000e+00> : vector<8x6xf32>
    %269 = tpu.matmul %267, %268, %cst_68 {dimension_numbers = #tpu.dot_dimension_numbers<[1], [0], [0], [1], [0, 0, 1, 1], [], []>} : vector<8x64xbf16>, vector<64x6xbf16>, vector<8x6xf32> -> vector<8x6xf32>
    %c0_69 = arith.constant 0 : index
    %c0_70 = arith.constant 0 : index
    %270 = vector.load %arg18[%c0_69, %c0_70] : memref<1x6xf32, #tpu.memory_space<vmem>>, vector<1x6xf32>
    %271 = vector.broadcast %270 : vector<1x6xf32> to vector<8x6xf32>
    %272 = arith.addf %269, %271 : vector<8x6xf32>
    %c0_71 = arith.constant 0 : index
    %c0_72 = arith.constant 0 : index
    %273 = vector.load %arg19[%c0_71, %c0_72] : memref<8x6xf32, #tpu.memory_space<vmem>>, vector<8x6xf32>
    tpu.vector_store %arg19[%c0_71, %c0_72], %272 {strides = array<i32>} : memref<8x6xf32, #tpu.memory_space<vmem>>, vector<8x6xf32>,
    return
  }
}

</mosaic_0001>

<llo_original>
// kernel: my_model_forward.1
$region0: #{my_model_forward.1}
  #allocation0 [shape = 'u32[]', space=smem, size = 0x4, offset = 0x4, fixed_abs, tag = 'smem constant byte address 0x4 - core index']
  #allocation1 [shape = 'u32[72,128]{1,0:T(1,128)}', space=vmem, size = 0x9000, scoped, tag = 'internal scratch']
  %s0 = inlined_call_operand.vmem [shape: f32[64,16], index: 0, kind: input, shape index: {}]
  %s1 = inlined_call_operand.vmem [shape: f32[8,8], index: 1, kind: input, shape index: {}]
  %s2 = inlined_call_operand.vmem [shape: bf16[16,256], index: 2, kind: input, shape index: {}]
  %s3 = inlined_call_operand.vmem [shape: f32[1,256], index: 3, kind: input, shape index: {}]
  %s4 = inlined_call_operand.vmem [shape: bf16[256,256], index: 4, kind: input, shape index: {}]
  %s5 = inlined_call_operand.vmem [shape: f32[1,256], index: 5, kind: input, shape index: {}]
  %s6 = inlined_call_operand.vmem [shape: bf16[8,32], index: 6, kind: input, shape index: {}]
  %s7 = inlined_call_operand.vmem [shape: f32[1,32], index: 7, kind: input, shape index: {}]
  %s8 = inlined_call_operand.vmem [shape: bf16[32,32], index: 8, kind: input, shape index: {}]
  %s9 = inlined_call_operand.vmem [shape: f32[1,32], index: 9, kind: input, shape index: {}]
  %s10 = inlined_call_operand.hbm [shape: bf16[256,1152], index: 10, kind: input, shape index: {}]
  %s11 = inlined_call_operand.vmem [shape: bf16[32,1152], index: 11, kind: input, shape index: {}]
  %s12 = inlined_call_operand.vmem [shape: bf16[384,1152], index: 12, kind: input, shape index: {}]
  %s13 = inlined_call_operand.vmem [shape: f32[1,1152], index: 13, kind: input, shape index: {}]
  %s14 = inlined_call_operand.vmem [shape: f32[1,1152], index: 14, kind: input, shape index: {}]
  %s15 = inlined_call_operand.vmem [shape: bf16[3072,64], index: 15, kind: input, shape index: {}]
  %s16 = inlined_call_operand.vmem [shape: f32[1,64], index: 16, kind: input, shape index: {}]
  %s17 = inlined_call_operand.vmem [shape: bf16[64,6], index: 17, kind: input, shape index: {}]
  %s18 = inlined_call_operand.vmem [shape: f32[1,6], index: 18, kind: input, shape index: {}]
  %s19 = inlined_call_operand.vmem [shape: f32[8,6], index: 19, kind: output, shape index: {}]
  %s20 = sld [smem:[#allocation0]]
  $region90: #{my_model_forward.1} parent=0
    _
  %s22 = ssub.s32 1, %s20
  %s23 = scalar_select 0, %s22, %s20
  $region1: #{my_model_forward.1} parent=0
    #allocation2 [shape = 'u8[589824]{0}', space=vmem, size = 0x90000, scoped, tag = 'input window, operand 10, single buffered']
    #allocation3 [shape = 's32[1]{0}', space=sflag, size = 0x4, scoped, tag = 'scoped memory for my_model_forward.1']
    %24 = vsyncpa [#allocation3], 0
    // Predicated region
    $region2: #{my_model_forward.1} parent=1 // pred_check
      _
    $region3: #{my_model_forward.1} parent=1 // pred_check_branch
      %26 = sbr.rel (0) target = $region5
    $region4: #{my_model_forward.1} parent=1 // pred_region
      _
    $region5: #{my_model_forward.1} parent=1 // pred_fallthru
      _
    // Predicated region
    $region6: #{my_model_forward.1} parent=1 // pred_check
      _
    $region7: #{my_model_forward.1} parent=1 // pred_check_branch
      %28 = sbr.rel (0) target = $region9
    $region8: #{my_model_forward.1} parent=1 // pred_region
      _
    $region9: #{my_model_forward.1} parent=1 // pred_fallthru
      _
    // Predicated region
    $region10: #{my_model_forward.1} parent=1 // pred_check
      _
    $region11: #{my_model_forward.1} parent=1 // pred_check_branch
      %30 = sbr.rel (0) target = $region13
    $region12: #{my_model_forward.1} parent=1 // pred_region
      _
    $region13: #{my_model_forward.1} parent=1 // pred_fallthru
      _
    // Predicated region
    $region14: #{my_model_forward.1} parent=1 // pred_check
      _
    $region15: #{my_model_forward.1} parent=1 // pred_check_branch
      %32 = sbr.rel (0) target = $region17
    $region16: #{my_model_forward.1} parent=1 // pred_region
      _
    $region17: #{my_model_forward.1} parent=1 // pred_fallthru
      _
    // Predicated region
    $region18: #{my_model_forward.1} parent=1 // pred_check
      _
    $region19: #{my_model_forward.1} parent=1 // pred_check_branch
      %34 = sbr.rel (0) target = $region21
    $region20: #{my_model_forward.1} parent=1 // pred_region
      _
    $region21: #{my_model_forward.1} parent=1 // pred_fallthru
      _
    // Predicated region
    $region22: #{my_model_forward.1} parent=1 // pred_check
      _
    $region23: #{my_model_forward.1} parent=1 // pred_check_branch
      %36 = sbr.rel (0) target = $region25
    $region24: #{my_model_forward.1} parent=1 // pred_region
      _
    $region25: #{my_model_forward.1} parent=1 // pred_fallthru
      _
    // Predicated region
    $region26: #{my_model_forward.1} parent=1 // pred_check
      _
    $region27: #{my_model_forward.1} parent=1 // pred_check_branch
      %38 = sbr.rel (0) target = $region29
    $region28: #{my_model_forward.1} parent=1 // pred_region
      _
    $region29: #{my_model_forward.1} parent=1 // pred_fallthru
      _
    // Predicated region
    $region30: #{my_model_forward.1} parent=1 // pred_check
      _
    $region31: #{my_model_forward.1} parent=1 // pred_check_branch
      %40 = sbr.rel (0) target = $region33
    $region32: #{my_model_forward.1} parent=1 // pred_region
      _
    $region33: #{my_model_forward.1} parent=1 // pred_fallthru
      _
    // Predicated region
    $region34: #{my_model_forward.1} parent=1 // pred_check
      _
    $region35: #{my_model_forward.1} parent=1 // pred_check_branch
      %42 = sbr.rel (0) target = $region37
    $region36: #{my_model_forward.1} parent=1 // pred_region
      _
    $region37: #{my_model_forward.1} parent=1 // pred_fallthru
      _
    // Predicated region
    $region38: #{my_model_forward.1} parent=1 // pred_check
      _
    $region39: #{my_model_forward.1} parent=1 // pred_check_branch
      %44 = sbr.rel (0) target = $region41
    $region40: #{my_model_forward.1} parent=1 // pred_region
      _
    $region41: #{my_model_forward.1} parent=1 // pred_fallthru
      _
    // Predicated region
    $region42: #{my_model_forward.1} parent=1 // pred_check
      _
    $region43: #{my_model_forward.1} parent=1 // pred_check_branch
      %46 = sbr.rel (0) target = $region45
    $region44: #{my_model_forward.1} parent=1 // pred_region
      %48 = vsyncadd [#allocation3], 0
      %s49 = sshll.u32 %s10, 4
      %s50 = int_to_ptr.hbm [resolvable:$true] %s49
      %s51 = sshll.u32 [#allocation2], 4
      %s52 = int_to_ptr.vmem [resolvable:$true] %s51
      %57 = dma.hbm_to_vmem [thread:$0]  %s50, 18432, %s52, [#allocation3], 576, 576, 36
    $region45: #{my_model_forward.1} parent=1 // pred_fallthru
      _
    // Predicated region
    $region46: #{my_model_forward.1} parent=1 // pred_check
      _
    $region47: #{my_model_forward.1} parent=1 // pred_check_branch
      %59 = sbr.rel (0) target = $region49
    $region48: #{my_model_forward.1} parent=1 // pred_region
      _
    $region49: #{my_model_forward.1} parent=1 // pred_fallthru
      _
    // Predicated region
    $region50: #{my_model_forward.1} parent=1 // pred_check
      _
    $region51: #{my_model_forward.1} parent=1 // pred_check_branch
      %61 = sbr.rel (0) target = $region53
    $region52: #{my_model_forward.1} parent=1 // pred_region
      _
    $region53: #{my_model_forward.1} parent=1 // pred_fallthru
      _
    // Predicated region
    $region54: #{my_model_forward.1} parent=1 // pred_check
      _
    $region55: #{my_model_forward.1} parent=1 // pred_check_branch
      %63 = sbr.rel (0) target = $region57
    $region56: #{my_model_forward.1} parent=1 // pred_region
      _
    $region57: #{my_model_forward.1} parent=1 // pred_fallthru
      _
    // Predicated region
    $region58: #{my_model_forward.1} parent=1 // pred_check
      _
    $region59: #{my_model_forward.1} parent=1 // pred_check_branch
      %65 = sbr.rel (0) target = $region61
    $region60: #{my_model_forward.1} parent=1 // pred_region
      _
    $region61: #{my_model_forward.1} parent=1 // pred_fallthru
      _
    // Predicated region
    $region62: #{my_model_forward.1} parent=1 // pred_check
      _
    $region63: #{my_model_forward.1} parent=1 // pred_check_branch
      %67 = sbr.rel (0) target = $region65
    $region64: #{my_model_forward.1} parent=1 // pred_region
      _
    $region65: #{my_model_forward.1} parent=1 // pred_fallthru
      _
    // Predicated region
    $region66: #{my_model_forward.1} parent=1 // pred_check
      _
    $region67: #{my_model_forward.1} parent=1 // pred_check_branch
      %69 = sbr.rel (0) target = $region69
    $region68: #{my_model_forward.1} parent=1 // pred_region
      _
    $region69: #{my_model_forward.1} parent=1 // pred_fallthru
      _
    // Predicated region
    $region70: #{my_model_forward.1} parent=1 // pred_check
      _
    $region71: #{my_model_forward.1} parent=1 // pred_check_branch
      %71 = sbr.rel (0) target = $region73
    $region72: #{my_model_forward.1} parent=1 // pred_region
      _
    $region73: #{my_model_forward.1} parent=1 // pred_fallthru
      _
    // Predicated region
    $region74: #{my_model_forward.1} parent=1 // pred_check
      _
    $region75: #{my_model_forward.1} parent=1 // pred_check_branch
      %73 = sbr.rel (0) target = $region77
    $region76: #{my_model_forward.1} parent=1 // pred_region
      _
    $region77: #{my_model_forward.1} parent=1 // pred_fallthru
      _
    // Predicated region
    $region78: #{my_model_forward.1} parent=1 // pred_check
      _
    $region79: #{my_model_forward.1} parent=1 // pred_check_branch
      %75 = sbr.rel (0) target = $region81
    $region80: #{my_model_forward.1} parent=1 // pred_region
      %77 = dma.done [#allocation3], 18432
    $region81: #{my_model_forward.1} parent=1 // pred_fallthru
      _
    %v79 = vld [vmem:[%s0] sm:$0xff]
    %v80 = vld [vmem:[%s0 + $0x8] sm:$0xff]
    %v81 = vld [vmem:[%s0 + $0x10] sm:$0xff]
    %v82 = vld [vmem:[%s0 + $0x18] sm:$0xff]
    %v83 = vld [vmem:[%s0 + $0x20] sm:$0xff]
    %v84 = vld [vmem:[%s0 + $0x28] sm:$0xff]
    %v85 = vld [vmem:[%s0 + $0x30] sm:$0xff]
    %v86 = vld [vmem:[%s0 + $0x38] sm:$0xff]
    %v87 = vpack.c.bf16 %v80, %v79
    %v88 = vpack.c.bf16 %v82, %v81
    %v89 = vpack.c.bf16 %v84, %v83
    %v90 = vpack.c.bf16 %v86, %v85
    %v91 = vld [vmem:[%s2] sm:$0xff]
    %v92 = vld [vmem:[%s2 + $0x8] sm:$0xff]
    %v93 = vld [vmem:[%s3] sm:$0x3]
    %v95 = vperm.slane %v93, 0
    %v96 = vperm.slane %v93, 1
    %v101 = vunpack.c.l.b16 %v91
    %v102 = vunpack.c.h.b16 %v91
    %v103 = vunpack.c.l.b16 %v92
    %v104 = vunpack.c.h.b16 %v92
    %v105 = vpack.c.b16 %v103, %v101
    %v106 = vpack.c.b16 %v104, %v102
    %vm109 = vcmask 130048
    %v111 = vsel %vm109, %v87, 0
    %v114 = vsel %vm109, %v88, 0
    %v117 = vsel %vm109, %v89, 0
    %v120 = vsel %vm109, %v90, 0
    %122 = vmatpush.bf16.msra.mxu0 0
    %123 = vmatpush.bf16.msra.mxu0 0
    %124 = vmatpush.bf16.msra.mxu0 0
    %125 = vmatpush.bf16.msra.mxu0 0
    %126 = vmatpush.bf16.msra.mxu0 0
    %127 = vmatpush.bf16.msra.mxu0 0
    %128 = vmatpush.bf16.msra.mxu0 0
    %129 = vmatpush.bf16.msra.mxu0 %v105
    %130 = vmatmul.bf16.gmra.mxu0 %v111
    %v131 = vpop.f32.mrf.mxu0
    %v132 = vadd.f32 %v95, %v131
    %v133 = vpop.f32.mrf.mxu0
    %v134 = vadd.f32 %v95, %v133
    %135 = vmatmul.bf16.gmra.mxu0 %v114
    %v136 = vpop.f32.mrf.mxu0
    %v137 = vadd.f32 %v95, %v136
    %v138 = vpop.f32.mrf.mxu0
    %v139 = vadd.f32 %v95, %v138
    %140 = vmatmul.bf16.gmra.mxu0 %v117
    %v141 = vpop.f32.mrf.mxu0
    %v142 = vadd.f32 %v95, %v141
    %v143 = vpop.f32.mrf.mxu0
    %v144 = vadd.f32 %v95, %v143
    %145 = vmatmul.bf16.gmra.mxu0 %v120
    %v146 = vpop.f32.mrf.mxu0
    %v147 = vadd.f32 %v95, %v146
    %v148 = vpop.f32.mrf.mxu0
    %v149 = vadd.f32 %v95, %v148
    %150 = vdwg.mxu0
    %151 = vmatpush.bf16.msra.mxu0 0
    %152 = vmatpush.bf16.msra.mxu0 0
    %153 = vmatpush.bf16.msra.mxu0 0
    %154 = vmatpush.bf16.msra.mxu0 0
    %155 = vmatpush.bf16.msra.mxu0 0
    %156 = vmatpush.bf16.msra.mxu0 0
    %157 = vmatpush.bf16.msra.mxu0 0
    %158 = vmatpush.bf16.msra.mxu0 %v106
    %159 = vmatmul.bf16.gmra.mxu0 %v111
    %v160 = vpop.f32.mrf.mxu0
    %v161 = vadd.f32 %v96, %v160
    %v162 = vpop.f32.mrf.mxu0
    %v163 = vadd.f32 %v96, %v162
    %164 = vmatmul.bf16.gmra.mxu0 %v114
    %v165 = vpop.f32.mrf.mxu0
    %v166 = vadd.f32 %v96, %v165
    %v167 = vpop.f32.mrf.mxu0
    %v168 = vadd.f32 %v96, %v167
    %169 = vmatmul.bf16.gmra.mxu0 %v117
    %v170 = vpop.f32.mrf.mxu0
    %v171 = vadd.f32 %v96, %v170
    %v172 = vpop.f32.mrf.mxu0
    %v173 = vadd.f32 %v96, %v172
    %174 = vmatmul.bf16.gmra.mxu0 %v120
    %v175 = vpop.f32.mrf.mxu0
    %v176 = vadd.f32 %v96, %v175
    %v177 = vpop.f32.mrf.mxu0
    %v178 = vadd.f32 %v96, %v177
    %179 = vdwg.mxu0
    %v180 = vtanh.pop %v132
    %v181 = vtanh.pop %v161
    %v182 = vtanh.pop %v134
    %v183 = vtanh.pop %v163
    %v184 = vtanh.pop %v137
    %v185 = vtanh.pop %v166
    %v186 = vtanh.pop %v139
    %v187 = vtanh.pop %v168
    %v188 = vtanh.pop %v142
    %v189 = vtanh.pop %v171
    %v190 = vtanh.pop %v144
    %v191 = vtanh.pop %v173
    %v192 = vtanh.pop %v147
    %v193 = vtanh.pop %v176
    %v194 = vtanh.pop %v149
    %v195 = vtanh.pop %v178
    %v196 = vpack.c.bf16 %v182, %v180
    %v197 = vpack.c.bf16 %v183, %v181
    %v198 = vpack.c.bf16 %v186, %v184
    %v199 = vpack.c.bf16 %v187, %v185
    %v200 = vpack.c.bf16 %v190, %v188
    %v201 = vpack.c.bf16 %v191, %v189
    %v202 = vpack.c.bf16 %v194, %v192
    %v203 = vpack.c.bf16 %v195, %v193
    %v204 = vld [vmem:[%s4] sm:$0xff]
    %v205 = vld [vmem:[%s4 + $0x8] sm:$0xff]
    %v206 = vld [vmem:[%s4 + $0x10] sm:$0xff]
    %v207 = vld [vmem:[%s4 + $0x18] sm:$0xff]
    %v208 = vld [vmem:[%s4 + $0x20] sm:$0xff]
    %v209 = vld [vmem:[%s4 + $0x28] sm:$0xff]
    %v210 = vld [vmem:[%s4 + $0x30] sm:$0xff]
    %v211 = vld [vmem:[%s4 + $0x38] sm:$0xff]
    %v212 = vld [vmem:[%s4 + $0x40] sm:$0xff]
    %v213 = vld [vmem:[%s4 + $0x48] sm:$0xff]
    %v214 = vld [vmem:[%s4 + $0x50] sm:$0xff]
    %v215 = vld [vmem:[%s4 + $0x58] sm:$0xff]
    %v216 = vld [vmem:[%s4 + $0x60] sm:$0xff]
    %v217 = vld [vmem:[%s4 + $0x68] sm:$0xff]
    %v218 = vld [vmem:[%s4 + $0x70] sm:$0xff]
    %v219 = vld [vmem:[%s4 + $0x78] sm:$0xff]
    %v220 = vld [vmem:[%s4 + $0x80] sm:$0xff]
    %v221 = vld [vmem:[%s4 + $0x88] sm:$0xff]
    %v222 = vld [vmem:[%s4 + $0x90] sm:$0xff]
    %v223 = vld [vmem:[%s4 + $0x98] sm:$0xff]
    %v224 = vld [vmem:[%s4 + $0xa0] sm:$0xff]
    %v225 = vld [vmem:[%s4 + $0xa8] sm:$0xff]
    %v226 = vld [vmem:[%s4 + $0xb0] sm:$0xff]
    %v227 = vld [vmem:[%s4 + $0xb8] sm:$0xff]
    %v228 = vld [vmem:[%s4 + $0xc0] sm:$0xff]
    %v229 = vld [vmem:[%s4 + $0xc8] sm:$0xff]
    %v230 = vld [vmem:[%s4 + $0xd0] sm:$0xff]
    %v231 = vld [vmem:[%s4 + $0xd8] sm:$0xff]
    %v232 = vld [vmem:[%s4 + $0xe0] sm:$0xff]
    %v233 = vld [vmem:[%s4 + $0xe8] sm:$0xff]
    %v234 = vld [vmem:[%s4 + $0xf0] sm:$0xff]
    %v235 = vld [vmem:[%s4 + $0xf8] sm:$0xff]
    %v236 = vld [vmem:[%s5] sm:$0x3]
    %v238 = vperm.slane %v236, 0
    %v239 = vperm.slane %v236, 1
    %v274 = vunpack.c.l.b16 %v204
    %v275 = vunpack.c.h.b16 %v204
    %v276 = vunpack.c.l.b16 %v205
    %v277 = vunpack.c.h.b16 %v205
    %v278 = vunpack.c.l.b16 %v206
    %v279 = vunpack.c.h.b16 %v206
    %v280 = vunpack.c.l.b16 %v207
    %v281 = vunpack.c.h.b16 %v207
    %v282 = vunpack.c.l.b16 %v208
    %v283 = vunpack.c.h.b16 %v208
    %v284 = vunpack.c.l.b16 %v209
    %v285 = vunpack.c.h.b16 %v209
    %v286 = vunpack.c.l.b16 %v210
    %v287 = vunpack.c.h.b16 %v210
    %v288 = vunpack.c.l.b16 %v211
    %v289 = vunpack.c.h.b16 %v211
    %v290 = vunpack.c.l.b16 %v212
    %v291 = vunpack.c.h.b16 %v212
    %v292 = vunpack.c.l.b16 %v213
    %v293 = vunpack.c.h.b16 %v213
    %v294 = vunpack.c.l.b16 %v214
    %v295 = vunpack.c.h.b16 %v214
    %v296 = vunpack.c.l.b16 %v215
    %v297 = vunpack.c.h.b16 %v215
    %v298 = vunpack.c.l.b16 %v216
    %v299 = vunpack.c.h.b16 %v216
    %v300 = vunpack.c.l.b16 %v217
    %v301 = vunpack.c.h.b16 %v217
    %v302 = vunpack.c.l.b16 %v218
    %v303 = vunpack.c.h.b16 %v218
    %v304 = vunpack.c.l.b16 %v219
    %v305 = vunpack.c.h.b16 %v219
    %v306 = vunpack.c.l.b16 %v220
    %v307 = vunpack.c.h.b16 %v220
    %v308 = vunpack.c.l.b16 %v221
    %v309 = vunpack.c.h.b16 %v221
    %v310 = vunpack.c.l.b16 %v222
    %v311 = vunpack.c.h.b16 %v222
    %v312 = vunpack.c.l.b16 %v223
    %v313 = vunpack.c.h.b16 %v223
    %v314 = vunpack.c.l.b16 %v224
    %v315 = vunpack.c.h.b16 %v224
    %v316 = vunpack.c.l.b16 %v225
    %v317 = vunpack.c.h.b16 %v225
    %v318 = vunpack.c.l.b16 %v226
    %v319 = vunpack.c.h.b16 %v226
    %v320 = vunpack.c.l.b16 %v227
    %v321 = vunpack.c.h.b16 %v227
    %v322 = vunpack.c.l.b16 %v228
    %v323 = vunpack.c.h.b16 %v228
    %v324 = vunpack.c.l.b16 %v229
    %v325 = vunpack.c.h.b16 %v229
    %v326 = vunpack.c.l.b16 %v230
    %v327 = vunpack.c.h.b16 %v230
    %v328 = vunpack.c.l.b16 %v231
    %v329 = vunpack.c.h.b16 %v231
    %v330 = vunpack.c.l.b16 %v232
    %v331 = vunpack.c.h.b16 %v232
    %v332 = vunpack.c.l.b16 %v233
    %v333 = vunpack.c.h.b16 %v233
    %v334 = vunpack.c.l.b16 %v234
    %v335 = vunpack.c.h.b16 %v234
    %v336 = vunpack.c.l.b16 %v235
    %v337 = vunpack.c.h.b16 %v235
    %v338 = vpack.c.b16 %v276, %v274
    %v339 = vpack.c.b16 %v277, %v275
    %v340 = vpack.c.b16 %v280, %v278
    %v341 = vpack.c.b16 %v281, %v279
    %v342 = vpack.c.b16 %v284, %v282
    %v343 = vpack.c.b16 %v285, %v283
    %v344 = vpack.c.b16 %v288, %v286
    %v345 = vpack.c.b16 %v289, %v287
    %v346 = vpack.c.b16 %v292, %v290
    %v347 = vpack.c.b16 %v293, %v291
    %v348 = vpack.c.b16 %v296, %v294
    %v349 = vpack.c.b16 %v297, %v295
    %v350 = vpack.c.b16 %v300, %v298
    %v351 = vpack.c.b16 %v301, %v299
    %v352 = vpack.c.b16 %v304, %v302
    %v353 = vpack.c.b16 %v305, %v303
    %v354 = vpack.c.b16 %v308, %v306
    %v355 = vpack.c.b16 %v309, %v307
    %v356 = vpack.c.b16 %v312, %v310
    %v357 = vpack.c.b16 %v313, %v311
    %v358 = vpack.c.b16 %v316, %v314
    %v359 = vpack.c.b16 %v317, %v315
    %v360 = vpack.c.b16 %v320, %v318
    %v361 = vpack.c.b16 %v321, %v319
    %v362 = vpack.c.b16 %v324, %v322
    %v363 = vpack.c.b16 %v325, %v323
    %v364 = vpack.c.b16 %v328, %v326
    %v365 = vpack.c.b16 %v329, %v327
    %v366 = vpack.c.b16 %v332, %v330
    %v367 = vpack.c.b16 %v333, %v331
    %v368 = vpack.c.b16 %v336, %v334
    %v369 = vpack.c.b16 %v337, %v335
    %402 = vmatpush.bf16.msra.mxu0 %v352
    %403 = vmatpush.bf16.msra.mxu0 %v350
    %404 = vmatpush.bf16.msra.mxu0 %v348
    %405 = vmatpush.bf16.msra.mxu0 %v346
    %406 = vmatpush.bf16.msra.mxu0 %v344
    %407 = vmatpush.bf16.msra.mxu0 %v342
    %408 = vmatpush.bf16.msra.mxu0 %v340
    %409 = vmatpush.bf16.msra.mxu0 %v338
    %410 = vmatmul.bf16.gmra.mxu0 %v196
    %v411 = vpop.f32.mrf.mxu0
    %v412 = vadd.f32 %v238, %v411
    %v413 = vpop.f32.mrf.mxu0
    %v414 = vadd.f32 %v238, %v413
    %415 = vmatmul.bf16.gmra.mxu0 %v198
    %v416 = vpop.f32.mrf.mxu0
    %v417 = vadd.f32 %v238, %v416
    %v418 = vpop.f32.mrf.mxu0
    %v419 = vadd.f32 %v238, %v418
    %420 = vmatmul.bf16.gmra.mxu0 %v200
    %v421 = vpop.f32.mrf.mxu0
    %v422 = vadd.f32 %v238, %v421
    %v423 = vpop.f32.mrf.mxu0
    %v424 = vadd.f32 %v238, %v423
    %425 = vmatmul.bf16.gmra.mxu0 %v202
    %v426 = vpop.f32.mrf.mxu0
    %v427 = vadd.f32 %v238, %v426
    %v428 = vpop.f32.mrf.mxu0
    %v429 = vadd.f32 %v238, %v428
    %430 = vdwg.mxu0
    %431 = vmatpush.bf16.msra.mxu0 %v368
    %432 = vmatpush.bf16.msra.mxu0 %v366
    %433 = vmatpush.bf16.msra.mxu0 %v364
    %434 = vmatpush.bf16.msra.mxu0 %v362
    %435 = vmatpush.bf16.msra.mxu0 %v360
    %436 = vmatpush.bf16.msra.mxu0 %v358
    %437 = vmatpush.bf16.msra.mxu0 %v356
    %438 = vmatpush.bf16.msra.mxu0 %v354
    %439 = vmatmul.bf16.gmra.mxu0 %v197
    %v440 = vpop.f32.mrf.mxu0
    %v441 = vadd.f32 %v412, %v440
    %v442 = vpop.f32.mrf.mxu0
    %v443 = vadd.f32 %v414, %v442
    %444 = vmatmul.bf16.gmra.mxu0 %v199
    %v445 = vpop.f32.mrf.mxu0
    %v446 = vadd.f32 %v417, %v445
    %v447 = vpop.f32.mrf.mxu0
    %v448 = vadd.f32 %v419, %v447
    %449 = vmatmul.bf16.gmra.mxu0 %v201
    %v450 = vpop.f32.mrf.mxu0
    %v451 = vadd.f32 %v422, %v450
    %v452 = vpop.f32.mrf.mxu0
    %v453 = vadd.f32 %v424, %v452
    %454 = vmatmul.bf16.gmra.mxu0 %v203
    %v455 = vpop.f32.mrf.mxu0
    %v456 = vadd.f32 %v427, %v455
    %v457 = vpop.f32.mrf.mxu0
    %v458 = vadd.f32 %v429, %v457
    %459 = vdwg.mxu0
    %460 = vmatpush.bf16.msra.mxu0 %v353
    %461 = vmatpush.bf16.msra.mxu0 %v351
    %462 = vmatpush.bf16.msra.mxu0 %v349
    %463 = vmatpush.bf16.msra.mxu0 %v347
    %464 = vmatpush.bf16.msra.mxu0 %v345
    %465 = vmatpush.bf16.msra.mxu0 %v343
    %466 = vmatpush.bf16.msra.mxu0 %v341
    %467 = vmatpush.bf16.msra.mxu0 %v339
    %468 = vmatmul.bf16.gmra.mxu0 %v196
    %v469 = vpop.f32.mrf.mxu0
    %v470 = vadd.f32 %v239, %v469
    %v471 = vpop.f32.mrf.mxu0
    %v472 = vadd.f32 %v239, %v471
    %473 = vmatmul.bf16.gmra.mxu0 %v198
    %v474 = vpop.f32.mrf.mxu0
    %v475 = vadd.f32 %v239, %v474
    %v476 = vpop.f32.mrf.mxu0
    %v477 = vadd.f32 %v239, %v476
    %478 = vmatmul.bf16.gmra.mxu0 %v200
    %v479 = vpop.f32.mrf.mxu0
    %v480 = vadd.f32 %v239, %v479
    %v481 = vpop.f32.mrf.mxu0
    %v482 = vadd.f32 %v239, %v481
    %483 = vmatmul.bf16.gmra.mxu0 %v202
    %v484 = vpop.f32.mrf.mxu0
    %v485 = vadd.f32 %v239, %v484
    %v486 = vpop.f32.mrf.mxu0
    %v487 = vadd.f32 %v239, %v486
    %488 = vdwg.mxu0
    %489 = vmatpush.bf16.msra.mxu0 %v369
    %490 = vmatpush.bf16.msra.mxu0 %v367
    %491 = vmatpush.bf16.msra.mxu0 %v365
    %492 = vmatpush.bf16.msra.mxu0 %v363
    %493 = vmatpush.bf16.msra.mxu0 %v361
    %494 = vmatpush.bf16.msra.mxu0 %v359
    %495 = vmatpush.bf16.msra.mxu0 %v357
    %496 = vmatpush.bf16.msra.mxu0 %v355
    %497 = vmatmul.bf16.gmra.mxu0 %v197
    %v498 = vpop.f32.mrf.mxu0
    %v499 = vadd.f32 %v470, %v498
    %v500 = vpop.f32.mrf.mxu0
    %v501 = vadd.f32 %v472, %v500
    %502 = vmatmul.bf16.gmra.mxu0 %v199
    %v503 = vpop.f32.mrf.mxu0
    %v504 = vadd.f32 %v475, %v503
    %v505 = vpop.f32.mrf.mxu0
    %v506 = vadd.f32 %v477, %v505
    %507 = vmatmul.bf16.gmra.mxu0 %v201
    %v508 = vpop.f32.mrf.mxu0
    %v509 = vadd.f32 %v480, %v508
    %v510 = vpop.f32.mrf.mxu0
    %v511 = vadd.f32 %v482, %v510
    %512 = vmatmul.bf16.gmra.mxu0 %v203
    %v513 = vpop.f32.mrf.mxu0
    %v514 = vadd.f32 %v485, %v513
    %v515 = vpop.f32.mrf.mxu0
    %v516 = vadd.f32 %v487, %v515
    %517 = vdwg.mxu0
    %v518 = vld [vmem:[%s1] sm:$0xff]
    %v519 = vpack.c.bf16 %v518, %v518
    %v520 = vld [vmem:[%s6] sm:$0xf]
    %v521 = vld [vmem:[%s7] sm:$0x1]
    %v523 = vperm.slane %v521, 0
    %vm525 = vcmask 64512
    %v527 = vsel %vm525, %v519, 0
    %vm529 = vcmask 1043456
    %v531 = vsel %vm529, %v520, 0
    %533 = vmatpush.bf16.msra.mxu0 0
    %534 = vmatpush.bf16.msra.mxu0 0
    %535 = vmatpush.bf16.msra.mxu0 0
    %536 = vmatpush.bf16.msra.mxu0 0
    %537 = vmatpush.bf16.msra.mxu0 0
    %538 = vmatpush.bf16.msra.mxu0 0
    %539 = vmatpush.bf16.msra.mxu0 0
    %540 = vmatpush.bf16.msra.mxu0 %v531
    %541 = vmatmul.bf16.gmra.mxu0 %v527
    %v542 = vpop.f32.mrf.mxu0
    %v543 = vadd.f32 %v523, %v542
    %v544 = vpop.f32.mrf.mxu0
    %545 = vdwg.mxu0
    %v546 = vtanh.pop %v543
    %v547 = vpack.c.bf16 %v546, %v546
    %v548 = vld [vmem:[%s8] sm:$0xf]
    %v549 = vld [vmem:[%s8 + $0x4] sm:$0xf]
    %v550 = vld [vmem:[%s8 + $0x8] sm:$0xf]
    %v551 = vld [vmem:[%s8 + $0xc] sm:$0xf]
    %v552 = vld [vmem:[%s9] sm:$0x1]
    %v554 = vperm.slane %v552, 0
    %v560 = vunpack.c.l.b16 %v548
    %v561 = vunpack.c.l.b16 %v549
    %v562 = vunpack.c.l.b16 %v550
    %v563 = vunpack.c.l.b16 %v551
    %v564 = vpack.c.b16 %v561, %v560
    %v565 = vpack.c.b16 %v563, %v562
    %vm568 = vcmask 261120
    %v570 = vsel %vm568, %v547, 0
    %572 = vmatpush.bf16.msra.mxu0 0
    %573 = vmatpush.bf16.msra.mxu0 0
    %574 = vmatpush.bf16.msra.mxu0 0
    %575 = vmatpush.bf16.msra.mxu0 0
    %576 = vmatpush.bf16.msra.mxu0 0
    %577 = vmatpush.bf16.msra.mxu0 0
    %578 = vmatpush.bf16.msra.mxu0 %v565
    %579 = vmatpush.bf16.msra.mxu0 %v564
    %580 = vmatmul.bf16.gmra.mxu0 %v570
    %v581 = vpop.f32.mrf.mxu0
    %v582 = vadd.f32 %v554, %v581
    %v583 = vpop.f32.mrf.mxu0
    %584 = vdwg.mxu0
    %v585 = vpack.c.bf16 %v443, %v441
    %v586 = vpack.c.bf16 %v501, %v499
    %v587 = vpack.c.bf16 %v448, %v446
    %v588 = vpack.c.bf16 %v506, %v504
    %v589 = vpack.c.bf16 %v453, %v451
    %v590 = vpack.c.bf16 %v511, %v509
    %v591 = vpack.c.bf16 %v458, %v456
    %v592 = vpack.c.bf16 %v516, %v514
    %v593 = vld [vmem:[#allocation2] sm:$0xff]
    %v594 = vld [vmem:[#allocation2 + $0x8] sm:$0xff]
    %v595 = vld [vmem:[#allocation2 + $0x10] sm:$0xff]
    %v596 = vld [vmem:[#allocation2 + $0x18] sm:$0xff]
    %v597 = vld [vmem:[#allocation2 + $0x20] sm:$0xf]
    %v598 = vld [vmem:[#allocation2 + $0x24] sm:$0xff]
    %v599 = vld [vmem:[#allocation2 + $0x2c] sm:$0xff]
    %v600 = vld [vmem:[#allocation2 + $0x34] sm:$0xff]
    %v601 = vld [vmem:[#allocation2 + $0x3c] sm:$0xff]
    %v602 = vld [vmem:[#allocation2 + $0x44] sm:$0xf]
    %v603 = vld [vmem:[#allocation2 + $0x48] sm:$0xff]
    %v604 = vld [vmem:[#allocation2 + $0x50] sm:$0xff]
    %v605 = vld [vmem:[#allocation2 + $0x58] sm:$0xff]
    %v606 = vld [vmem:[#allocation2 + $0x60] sm:$0xff]
    %v607 = vld [vmem:[#allocation2 + $0x68] sm:$0xf]
    %v608 = vld [vmem:[#allocation2 + $0x6c] sm:$0xff]
    %v609 = vld [vmem:[#allocation2 + $0x74] sm:$0xff]
    %v610 = vld [vmem:[#allocation2 + $0x7c] sm:$0xff]
    %v611 = vld [vmem:[#allocation2 + $0x84] sm:$0xff]
    %v612 = vld [vmem:[#allocation2 + $0x8c] sm:$0xf]
    %v613 = vld [vmem:[#allocation2 + $0x90] sm:$0xff]
    %v614 = vld [vmem:[#allocation2 + $0x98] sm:$0xff]
    %v615 = vld [vmem:[#allocation2 + $0xa0] sm:$0xff]
    %v616 = vld [vmem:[#allocation2 + $0xa8] sm:$0xff]
    %v617 = vld [vmem:[#allocation2 + $0xb0] sm:$0xf]
    %v618 = vld [vmem:[#allocation2 + $0xb4] sm:$0xff]
    %v619 = vld [vmem:[#allocation2 + $0xbc] sm:$0xff]
    %v620 = vld [vmem:[#allocation2 + $0xc4] sm:$0xff]
    %v621 = vld [vmem:[#allocation2 + $0xcc] sm:$0xff]
    %v622 = vld [vmem:[#allocation2 + $0xd4] sm:$0xf]
    %v623 = vld [vmem:[#allocation2 + $0xd8] sm:$0xff]
    %v624 = vld [vmem:[#allocation2 + $0xe0] sm:$0xff]
    %v625 = vld [vmem:[#allocation2 + $0xe8] sm:$0xff]
    %v626 = vld [vmem:[#allocation2 + $0xf0] sm:$0xff]
    %v627 = vld [vmem:[#allocation2 + $0xf8] sm:$0xf]
    %v628 = vld [vmem:[#allocation2 + $0xfc] sm:$0xff]
    %v629 = vld [vmem:[#allocation2 + $0x104] sm:$0xff]
    %v630 = vld [vmem:[#allocation2 + $0x10c] sm:$0xff]
    %v631 = vld [vmem:[#allocation2 + $0x114] sm:$0xff]
    %v632 = vld [vmem:[#allocation2 + $0x11c] sm:$0xf]
    %v633 = vld [vmem:[#allocation2 + $0x120] sm:$0xff]
    %v634 = vld [vmem:[#allocation2 + $0x128] sm:$0xff]
    %v635 = vld [vmem:[#allocation2 + $0x130] sm:$0xff]
    %v636 = vld [vmem:[#allocation2 + $0x138] sm:$0xff]
    %v637 = vld [vmem:[#allocation2 + $0x140] sm:$0xf]
    %v638 = vld [vmem:[#allocation2 + $0x144] sm:$0xff]
    %v639 = vld [vmem:[#allocation2 + $0x14c] sm:$0xff]
    %v640 = vld [vmem:[#allocation2 + $0x154] sm:$0xff]
    %v641 = vld [vmem:[#allocation2 + $0x15c] sm:$0xff]
    %v642 = vld [vmem:[#allocation2 + $0x164] sm:$0xf]
    %v643 = vld [vmem:[#allocation2 + $0x168] sm:$0xff]
    %v644 = vld [vmem:[#allocation2 + $0x170] sm:$0xff]
    %v645 = vld [vmem:[#allocation2 + $0x178] sm:$0xff]
    %v646 = vld [vmem:[#allocation2 + $0x180] sm:$0xff]
    %v647 = vld [vmem:[#allocation2 + $0x188] sm:$0xf]
    %v648 = vld [vmem:[#allocation2 + $0x18c] sm:$0xff]
    %v649 = vld [vmem:[#allocation2 + $0x194] sm:$0xff]
    %v650 = vld [vmem:[#allocation2 + $0x19c] sm:$0xff]
    %v651 = vld [vmem:[#allocation2 + $0x1a4] sm:$0xff]
    %v652 = vld [vmem:[#allocation2 + $0x1ac] sm:$0xf]
    %v653 = vld [vmem:[#allocation2 + $0x1b0] sm:$0xff]
    %v654 = vld [vmem:[#allocation2 + $0x1b8] sm:$0xff]
    %v655 = vld [vmem:[#allocation2 + $0x1c0] sm:$0xff]
    %v656 = vld [vmem:[#allocation2 + $0x1c8] sm:$0xff]
    %v657 = vld [vmem:[#allocation2 + $0x1d0] sm:$0xf]
    %v658 = vld [vmem:[#allocation2 + $0x1d4] sm:$0xff]
    %v659 = vld [vmem:[#allocation2 + $0x1dc] sm:$0xff]
    %v660 = vld [vmem:[#allocation2 + $0x1e4] sm:$0xff]
    %v661 = vld [vmem:[#allocation2 + $0x1ec] sm:$0xff]
    %v662 = vld [vmem:[#allocation2 + $0x1f4] sm:$0xf]
    %v663 = vld [vmem:[#allocation2 + $0x1f8] sm:$0xff]
    %v664 = vld [vmem:[#allocation2 + $0x200] sm:$0xff]
    %v665 = vld [vmem:[#allocation2 + $0x208] sm:$0xff]
    %v666 = vld [vmem:[#allocation2 + $0x210] sm:$0xff]
    %v667 = vld [vmem:[#allocation2 + $0x218] sm:$0xf]
    %v668 = vld [vmem:[#allocation2 + $0x21c] sm:$0xff]
    %v669 = vld [vmem:[#allocation2 + $0x224] sm:$0xff]
    %v670 = vld [vmem:[#allocation2 + $0x22c] sm:$0xff]
    %v671 = vld [vmem:[#allocation2 + $0x234] sm:$0xff]
    %v672 = vld [vmem:[#allocation2 + $0x23c] sm:$0xf]
    %v673 = vld [vmem:[#allocation2 + $0x240] sm:$0xff]
    %v674 = vld [vmem:[#allocation2 + $0x248] sm:$0xff]
    %v675 = vld [vmem:[#allocation2 + $0x250] sm:$0xff]
    %v676 = vld [vmem:[#allocation2 + $0x258] sm:$0xff]
    %v677 = vld [vmem:[#allocation2 + $0x260] sm:$0xf]
    %v678 = vld [vmem:[#allocation2 + $0x264] sm:$0xff]
    %v679 = vld [vmem:[#allocation2 + $0x26c] sm:$0xff]
    %v680 = vld [vmem:[#allocation2 + $0x274] sm:$0xff]
    %v681 = vld [vmem:[#allocation2 + $0x27c] sm:$0xff]
    %v682 = vld [vmem:[#allocation2 + $0x284] sm:$0xf]
    %v683 = vld [vmem:[#allocation2 + $0x288] sm:$0xff]
    %v684 = vld [vmem:[#allocation2 + $0x290] sm:$0xff]
    %v685 = vld [vmem:[#allocation2 + $0x298] sm:$0xff]
    %v686 = vld [vmem:[#allocation2 + $0x2a0] sm:$0xff]
    %v687 = vld [vmem:[#allocation2 + $0x2a8] sm:$0xf]
    %v688 = vld [vmem:[#allocation2 + $0x2ac] sm:$0xff]
    %v689 = vld [vmem:[#allocation2 + $0x2b4] sm:$0xff]
    %v690 = vld [vmem:[#allocation2 + $0x2bc] sm:$0xff]
    %v691 = vld [vmem:[#allocation2 + $0x2c4] sm:$0xff]
    %v692 = vld [vmem:[#allocation2 + $0x2cc] sm:$0xf]
    %v693 = vld [vmem:[#allocation2 + $0x2d0] sm:$0xff]
    %v694 = vld [vmem:[#allocation2 + $0x2d8] sm:$0xff]
    %v695 = vld [vmem:[#allocation2 + $0x2e0] sm:$0xff]
    %v696 = vld [vmem:[#allocation2 + $0x2e8] sm:$0xff]
    %v697 = vld [vmem:[#allocation2 + $0x2f0] sm:$0xf]
    %v698 = vld [vmem:[#allocation2 + $0x2f4] sm:$0xff]
    %v699 = vld [vmem:[#allocation2 + $0x2fc] sm:$0xff]
    %v700 = vld [vmem:[#allocation2 + $0x304] sm:$0xff]
    %v701 = vld [vmem:[#allocation2 + $0x30c] sm:$0xff]
    %v702 = vld [vmem:[#allocation2 + $0x314] sm:$0xf]
    %v703 = vld [vmem:[#allocation2 + $0x318] sm:$0xff]
    %v704 = vld [vmem:[#allocation2 + $0x320] sm:$0xff]
    %v705 = vld [vmem:[#allocation2 + $0x328] sm:$0xff]
    %v706 = vld [vmem:[#allocation2 + $0x330] sm:$0xff]
    %v707 = vld [vmem:[#allocation2 + $0x338] sm:$0xf]
    %v708 = vld [vmem:[#allocation2 + $0x33c] sm:$0xff]
    %v709 = vld [vmem:[#allocation2 + $0x344] sm:$0xff]
    %v710 = vld [vmem:[#allocation2 + $0x34c] sm:$0xff]
    %v711 = vld [vmem:[#allocation2 + $0x354] sm:$0xff]
    %v712 = vld [vmem:[#allocation2 + $0x35c] sm:$0xf]
    %v713 = vld [vmem:[#allocation2 + $0x360] sm:$0xff]
    %v714 = vld [vmem:[#allocation2 + $0x368] sm:$0xff]
    %v715 = vld [vmem:[#allocation2 + $0x370] sm:$0xff]
    %v716 = vld [vmem:[#allocation2 + $0x378] sm:$0xff]
    %v717 = vld [vmem:[#allocation2 + $0x380] sm:$0xf]
    %v718 = vld [vmem:[#allocation2 + $0x384] sm:$0xff]
    %v719 = vld [vmem:[#allocation2 + $0x38c] sm:$0xff]
    %v720 = vld [vmem:[#allocation2 + $0x394] sm:$0xff]
    %v721 = vld [vmem:[#allocation2 + $0x39c] sm:$0xff]
    %v722 = vld [vmem:[#allocation2 + $0x3a4] sm:$0xf]
    %v723 = vld [vmem:[#allocation2 + $0x3a8] sm:$0xff]
    %v724 = vld [vmem:[#allocation2 + $0x3b0] sm:$0xff]
    %v725 = vld [vmem:[#allocation2 + $0x3b8] sm:$0xff]
    %v726 = vld [vmem:[#allocation2 + $0x3c0] sm:$0xff]
    %v727 = vld [vmem:[#allocation2 + $0x3c8] sm:$0xf]
    %v728 = vld [vmem:[#allocation2 + $0x3cc] sm:$0xff]
    %v729 = vld [vmem:[#allocation2 + $0x3d4] sm:$0xff]
    %v730 = vld [vmem:[#allocation2 + $0x3dc] sm:$0xff]
    %v731 = vld [vmem:[#allocation2 + $0x3e4] sm:$0xff]
    %v732 = vld [vmem:[#allocation2 + $0x3ec] sm:$0xf]
    %v733 = vld [vmem:[#allocation2 + $0x3f0] sm:$0xff]
    %v734 = vld [vmem:[#allocation2 + $0x3f8] sm:$0xff]
    %v735 = vld [vmem:[#allocation2 + $0x400] sm:$0xff]
    %v736 = vld [vmem:[#allocation2 + $0x408] sm:$0xff]
    %v737 = vld [vmem:[#allocation2 + $0x410] sm:$0xf]
    %v738 = vld [vmem:[#allocation2 + $0x414] sm:$0xff]
    %v739 = vld [vmem:[#allocation2 + $0x41c] sm:$0xff]
    %v740 = vld [vmem:[#allocation2 + $0x424] sm:$0xff]
    %v741 = vld [vmem:[#allocation2 + $0x42c] sm:$0xff]
    %v742 = vld [vmem:[#allocation2 + $0x434] sm:$0xf]
    %v743 = vld [vmem:[#allocation2 + $0x438] sm:$0xff]
    %v744 = vld [vmem:[#allocation2 + $0x440] sm:$0xff]
    %v745 = vld [vmem:[#allocation2 + $0x448] sm:$0xff]
    %v746 = vld [vmem:[#allocation2 + $0x450] sm:$0xff]
    %v747 = vld [vmem:[#allocation2 + $0x458] sm:$0xf]
    %v748 = vld [vmem:[#allocation2 + $0x45c] sm:$0xff]
    %v749 = vld [vmem:[#allocation2 + $0x464] sm:$0xff]
    %v750 = vld [vmem:[#allocation2 + $0x46c] sm:$0xff]
    %v751 = vld [vmem:[#allocation2 + $0x474] sm:$0xff]
    %v752 = vld [vmem:[#allocation2 + $0x47c] sm:$0xf]
    %v913 = vunpack.c.l.b16 %v593
    %v914 = vunpack.c.h.b16 %v593
    %v915 = vunpack.c.l.b16 %v594
    %v916 = vunpack.c.h.b16 %v594
    %v917 = vunpack.c.l.b16 %v595
    %v918 = vunpack.c.h.b16 %v595
    %v919 = vunpack.c.l.b16 %v596
    %v920 = vunpack.c.h.b16 %v596
    %v921 = vunpack.c.l.b16 %v597
    %v922 = vunpack.c.l.b16 %v598
    %v923 = vunpack.c.h.b16 %v598
    %v924 = vunpack.c.l.b16 %v599
    %v925 = vunpack.c.h.b16 %v599
    %v926 = vunpack.c.l.b16 %v600
    %v927 = vunpack.c.h.b16 %v600
    %v928 = vunpack.c.l.b16 %v601
    %v929 = vunpack.c.h.b16 %v601
    %v930 = vunpack.c.l.b16 %v602
    %v931 = vunpack.c.l.b16 %v603
    %v932 = vunpack.c.h.b16 %v603
    %v933 = vunpack.c.l.b16 %v604
    %v934 = vunpack.c.h.b16 %v604
    %v935 = vunpack.c.l.b16 %v605
    %v936 = vunpack.c.h.b16 %v605
    %v937 = vunpack.c.l.b16 %v606
    %v938 = vunpack.c.h.b16 %v606
    %v939 = vunpack.c.l.b16 %v607
    %v940 = vunpack.c.l.b16 %v608
    %v941 = vunpack.c.h.b16 %v608
    %v942 = vunpack.c.l.b16 %v609
    %v943 = vunpack.c.h.b16 %v609
    %v944 = vunpack.c.l.b16 %v610
    %v945 = vunpack.c.h.b16 %v610
    %v946 = vunpack.c.l.b16 %v611
    %v947 = vunpack.c.h.b16 %v611
    %v948 = vunpack.c.l.b16 %v612
    %v949 = vunpack.c.l.b16 %v613
    %v950 = vunpack.c.h.b16 %v613
    %v951 = vunpack.c.l.b16 %v614
    %v952 = vunpack.c.h.b16 %v614
    %v953 = vunpack.c.l.b16 %v615
    %v954 = vunpack.c.h.b16 %v615
    %v955 = vunpack.c.l.b16 %v616
    %v956 = vunpack.c.h.b16 %v616
    %v957 = vunpack.c.l.b16 %v617
    %v958 = vunpack.c.l.b16 %v618
    %v959 = vunpack.c.h.b16 %v618
    %v960 = vunpack.c.l.b16 %v619
    %v961 = vunpack.c.h.b16 %v619
    %v962 = vunpack.c.l.b16 %v620
    %v963 = vunpack.c.h.b16 %v620
    %v964 = vunpack.c.l.b16 %v621
    %v965 = vunpack.c.h.b16 %v621
    %v966 = vunpack.c.l.b16 %v622
    %v967 = vunpack.c.l.b16 %v623
    %v968 = vunpack.c.h.b16 %v623
    %v969 = vunpack.c.l.b16 %v624
    %v970 = vunpack.c.h.b16 %v624
    %v971 = vunpack.c.l.b16 %v625
    %v972 = vunpack.c.h.b16 %v625
    %v973 = vunpack.c.l.b16 %v626
    %v974 = vunpack.c.h.b16 %v626
    %v975 = vunpack.c.l.b16 %v627
    %v976 = vunpack.c.l.b16 %v628
    %v977 = vunpack.c.h.b16 %v628
    %v978 = vunpack.c.l.b16 %v629
    %v979 = vunpack.c.h.b16 %v629
    %v980 = vunpack.c.l.b16 %v630
    %v981 = vunpack.c.h.b16 %v630
    %v982 = vunpack.c.l.b16 %v631
    %v983 = vunpack.c.h.b16 %v631
    %v984 = vunpack.c.l.b16 %v632
    %v985 = vunpack.c.l.b16 %v633
    %v986 = vunpack.c.h.b16 %v633
    %v987 = vunpack.c.l.b16 %v634
    %v988 = vunpack.c.h.b16 %v634
    %v989 = vunpack.c.l.b16 %v635
    %v990 = vunpack.c.h.b16 %v635
    %v991 = vunpack.c.l.b16 %v636
    %v992 = vunpack.c.h.b16 %v636
    %v993 = vunpack.c.l.b16 %v637
    %v994 = vunpack.c.l.b16 %v638
    %v995 = vunpack.c.h.b16 %v638
    %v996 = vunpack.c.l.b16 %v639
    %v997 = vunpack.c.h.b16 %v639
    %v998 = vunpack.c.l.b16 %v640
    %v999 = vunpack.c.h.b16 %v640
    %v1000 = vunpack.c.l.b16 %v641
    %v1001 = vunpack.c.h.b16 %v641
    %v1002 = vunpack.c.l.b16 %v642
    %v1003 = vunpack.c.l.b16 %v643
    %v1004 = vunpack.c.h.b16 %v643
    %v1005 = vunpack.c.l.b16 %v644
    %v1006 = vunpack.c.h.b16 %v644
    %v1007 = vunpack.c.l.b16 %v645
    %v1008 = vunpack.c.h.b16 %v645
    %v1009 = vunpack.c.l.b16 %v646
    %v1010 = vunpack.c.h.b16 %v646
    %v1011 = vunpack.c.l.b16 %v647
    %v1012 = vunpack.c.l.b16 %v648
    %v1013 = vunpack.c.h.b16 %v648
    %v1014 = vunpack.c.l.b16 %v649
    %v1015 = vunpack.c.h.b16 %v649
    %v1016 = vunpack.c.l.b16 %v650
    %v1017 = vunpack.c.h.b16 %v650
    %v1018 = vunpack.c.l.b16 %v651
    %v1019 = vunpack.c.h.b16 %v651
    %v1020 = vunpack.c.l.b16 %v652
    %v1021 = vunpack.c.l.b16 %v653
    %v1022 = vunpack.c.h.b16 %v653
    %v1023 = vunpack.c.l.b16 %v654
    %v1024 = vunpack.c.h.b16 %v654
    %v1025 = vunpack.c.l.b16 %v655
    %v1026 = vunpack.c.h.b16 %v655
    %v1027 = vunpack.c.l.b16 %v656
    %v1028 = vunpack.c.h.b16 %v656
    %v1029 = vunpack.c.l.b16 %v657
    %v1030 = vunpack.c.l.b16 %v658
    %v1031 = vunpack.c.h.b16 %v658
    %v1032 = vunpack.c.l.b16 %v659
    %v1033 = vunpack.c.h.b16 %v659
    %v1034 = vunpack.c.l.b16 %v660
    %v1035 = vunpack.c.h.b16 %v660
    %v1036 = vunpack.c.l.b16 %v661
    %v1037 = vunpack.c.h.b16 %v661
    %v1038 = vunpack.c.l.b16 %v662
    %v1039 = vunpack.c.l.b16 %v663
    %v1040 = vunpack.c.h.b16 %v663
    %v1041 = vunpack.c.l.b16 %v664
    %v1042 = vunpack.c.h.b16 %v664
    %v1043 = vunpack.c.l.b16 %v665
    %v1044 = vunpack.c.h.b16 %v665
    %v1045 = vunpack.c.l.b16 %v666
    %v1046 = vunpack.c.h.b16 %v666
    %v1047 = vunpack.c.l.b16 %v667
    %v1048 = vunpack.c.l.b16 %v668
    %v1049 = vunpack.c.h.b16 %v668
    %v1050 = vunpack.c.l.b16 %v669
    %v1051 = vunpack.c.h.b16 %v669
    %v1052 = vunpack.c.l.b16 %v670
    %v1053 = vunpack.c.h.b16 %v670
    %v1054 = vunpack.c.l.b16 %v671
    %v1055 = vunpack.c.h.b16 %v671
    %v1056 = vunpack.c.l.b16 %v672
    %v1057 = vunpack.c.l.b16 %v673
    %v1058 = vunpack.c.h.b16 %v673
    %v1059 = vunpack.c.l.b16 %v674
    %v1060 = vunpack.c.h.b16 %v674
    %v1061 = vunpack.c.l.b16 %v675
    %v1062 = vunpack.c.h.b16 %v675
    %v1063 = vunpack.c.l.b16 %v676
    %v1064 = vunpack.c.h.b16 %v676
    %v1065 = vunpack.c.l.b16 %v677
    %v1066 = vunpack.c.l.b16 %v678
    %v1067 = vunpack.c.h.b16 %v678
    %v1068 = vunpack.c.l.b16 %v679
    %v1069 = vunpack.c.h.b16 %v679
    %v1070 = vunpack.c.l.b16 %v680
    %v1071 = vunpack.c.h.b16 %v680
    %v1072 = vunpack.c.l.b16 %v681
    %v1073 = vunpack.c.h.b16 %v681
    %v1074 = vunpack.c.l.b16 %v682
    %v1075 = vunpack.c.l.b16 %v683
    %v1076 = vunpack.c.h.b16 %v683
    %v1077 = vunpack.c.l.b16 %v684
    %v1078 = vunpack.c.h.b16 %v684
    %v1079 = vunpack.c.l.b16 %v685
    %v1080 = vunpack.c.h.b16 %v685
    %v1081 = vunpack.c.l.b16 %v686
    %v1082 = vunpack.c.h.b16 %v686
    %v1083 = vunpack.c.l.b16 %v687
    %v1084 = vunpack.c.l.b16 %v688
    %v1085 = vunpack.c.h.b16 %v688
    %v1086 = vunpack.c.l.b16 %v689
    %v1087 = vunpack.c.h.b16 %v689
    %v1088 = vunpack.c.l.b16 %v690
    %v1089 = vunpack.c.h.b16 %v690
    %v1090 = vunpack.c.l.b16 %v691
    %v1091 = vunpack.c.h.b16 %v691
    %v1092 = vunpack.c.l.b16 %v692
    %v1093 = vunpack.c.l.b16 %v693
    %v1094 = vunpack.c.h.b16 %v693
    %v1095 = vunpack.c.l.b16 %v694
    %v1096 = vunpack.c.h.b16 %v694
    %v1097 = vunpack.c.l.b16 %v695
    %v1098 = vunpack.c.h.b16 %v695
    %v1099 = vunpack.c.l.b16 %v696
    %v1100 = vunpack.c.h.b16 %v696
    %v1101 = vunpack.c.l.b16 %v697
    %v1102 = vunpack.c.l.b16 %v698
    %v1103 = vunpack.c.h.b16 %v698
    %v1104 = vunpack.c.l.b16 %v699
    %v1105 = vunpack.c.h.b16 %v699
    %v1106 = vunpack.c.l.b16 %v700
    %v1107 = vunpack.c.h.b16 %v700
    %v1108 = vunpack.c.l.b16 %v701
    %v1109 = vunpack.c.h.b16 %v701
    %v1110 = vunpack.c.l.b16 %v702
    %v1111 = vunpack.c.l.b16 %v703
    %v1112 = vunpack.c.h.b16 %v703
    %v1113 = vunpack.c.l.b16 %v704
    %v1114 = vunpack.c.h.b16 %v704
    %v1115 = vunpack.c.l.b16 %v705
    %v1116 = vunpack.c.h.b16 %v705
    %v1117 = vunpack.c.l.b16 %v706
    %v1118 = vunpack.c.h.b16 %v706
    %v1119 = vunpack.c.l.b16 %v707
    %v1120 = vunpack.c.l.b16 %v708
    %v1121 = vunpack.c.h.b16 %v708
    %v1122 = vunpack.c.l.b16 %v709
    %v1123 = vunpack.c.h.b16 %v709
    %v1124 = vunpack.c.l.b16 %v710
    %v1125 = vunpack.c.h.b16 %v710
    %v1126 = vunpack.c.l.b16 %v711
    %v1127 = vunpack.c.h.b16 %v711
    %v1128 = vunpack.c.l.b16 %v712
    %v1129 = vunpack.c.l.b16 %v713
    %v1130 = vunpack.c.h.b16 %v713
    %v1131 = vunpack.c.l.b16 %v714
    %v1132 = vunpack.c.h.b16 %v714
    %v1133 = vunpack.c.l.b16 %v715
    %v1134 = vunpack.c.h.b16 %v715
    %v1135 = vunpack.c.l.b16 %v716
    %v1136 = vunpack.c.h.b16 %v716
    %v1137 = vunpack.c.l.b16 %v717
    %v1138 = vunpack.c.l.b16 %v718
    %v1139 = vunpack.c.h.b16 %v718
    %v1140 = vunpack.c.l.b16 %v719
    %v1141 = vunpack.c.h.b16 %v719
    %v1142 = vunpack.c.l.b16 %v720
    %v1143 = vunpack.c.h.b16 %v720
    %v1144 = vunpack.c.l.b16 %v721
    %v1145 = vunpack.c.h.b16 %v721
    %v1146 = vunpack.c.l.b16 %v722
    %v1147 = vunpack.c.l.b16 %v723
    %v1148 = vunpack.c.h.b16 %v723
    %v1149 = vunpack.c.l.b16 %v724
    %v1150 = vunpack.c.h.b16 %v724
    %v1151 = vunpack.c.l.b16 %v725
    %v1152 = vunpack.c.h.b16 %v725
    %v1153 = vunpack.c.l.b16 %v726
    %v1154 = vunpack.c.h.b16 %v726
    %v1155 = vunpack.c.l.b16 %v727
    %v1156 = vunpack.c.l.b16 %v728
    %v1157 = vunpack.c.h.b16 %v728
    %v1158 = vunpack.c.l.b16 %v729
    %v1159 = vunpack.c.h.b16 %v729
    %v1160 = vunpack.c.l.b16 %v730
    %v1161 = vunpack.c.h.b16 %v730
    %v1162 = vunpack.c.l.b16 %v731
    %v1163 = vunpack.c.h.b16 %v731
    %v1164 = vunpack.c.l.b16 %v732
    %v1165 = vunpack.c.l.b16 %v733
    %v1166 = vunpack.c.h.b16 %v733
    %v1167 = vunpack.c.l.b16 %v734
    %v1168 = vunpack.c.h.b16 %v734
    %v1169 = vunpack.c.l.b16 %v735
    %v1170 = vunpack.c.h.b16 %v735
    %v1171 = vunpack.c.l.b16 %v736
    %v1172 = vunpack.c.h.b16 %v736
    %v1173 = vunpack.c.l.b16 %v737
    %v1174 = vunpack.c.l.b16 %v738
    %v1175 = vunpack.c.h.b16 %v738
    %v1176 = vunpack.c.l.b16 %v739
    %v1177 = vunpack.c.h.b16 %v739
    %v1178 = vunpack.c.l.b16 %v740
    %v1179 = vunpack.c.h.b16 %v740
    %v1180 = vunpack.c.l.b16 %v741
    %v1181 = vunpack.c.h.b16 %v741
    %v1182 = vunpack.c.l.b16 %v742
    %v1183 = vunpack.c.l.b16 %v743
    %v1184 = vunpack.c.h.b16 %v743
    %v1185 = vunpack.c.l.b16 %v744
    %v1186 = vunpack.c.h.b16 %v744
    %v1187 = vunpack.c.l.b16 %v745
    %v1188 = vunpack.c.h.b16 %v745
    %v1189 = vunpack.c.l.b16 %v746
    %v1190 = vunpack.c.h.b16 %v746
    %v1191 = vunpack.c.l.b16 %v747
    %v1192 = vunpack.c.l.b16 %v748
    %v1193 = vunpack.c.h.b16 %v748
    %v1194 = vunpack.c.l.b16 %v749
    %v1195 = vunpack.c.h.b16 %v749
    %v1196 = vunpack.c.l.b16 %v750
    %v1197 = vunpack.c.h.b16 %v750
    %v1198 = vunpack.c.l.b16 %v751
    %v1199 = vunpack.c.h.b16 %v751
    %v1200 = vunpack.c.l.b16 %v752
    %v1201 = vpack.c.b16 %v922, %v913
    %v1202 = vpack.c.b16 %v923, %v914
    %v1203 = vpack.c.b16 %v924, %v915
    %v1204 = vpack.c.b16 %v925, %v916
    %v1205 = vpack.c.b16 %v926, %v917
    %v1206 = vpack.c.b16 %v927, %v918
    %v1207 = vpack.c.b16 %v928, %v919
    %v1208 = vpack.c.b16 %v929, %v920
    %v1209 = vpack.c.b16 %v930, %v921
    %v1210 = vpack.c.b16 %v940, %v931
    %v1211 = vpack.c.b16 %v941, %v932
    %v1212 = vpack.c.b16 %v942, %v933
    %v1213 = vpack.c.b16 %v943, %v934
    %v1214 = vpack.c.b16 %v944, %v935
    %v1215 = vpack.c.b16 %v945, %v936
    %v1216 = vpack.c.b16 %v946, %v937
    %v1217 = vpack.c.b16 %v947, %v938
    %v1218 = vpack.c.b16 %v948, %v939
    %v1219 = vpack.c.b16 %v958, %v949
    %v1220 = vpack.c.b16 %v959, %v950
    %v1221 = vpack.c.b16 %v960, %v951
    %v1222 = vpack.c.b16 %v961, %v952
    %v1223 = vpack.c.b16 %v962, %v953
    %v1224 = vpack.c.b16 %v963, %v954
    %v1225 = vpack.c.b16 %v964, %v955
    %v1226 = vpack.c.b16 %v965, %v956
    %v1227 = vpack.c.b16 %v966, %v957
    %v1228 = vpack.c.b16 %v976, %v967
    %v1229 = vpack.c.b16 %v977, %v968
    %v1230 = vpack.c.b16 %v978, %v969
    %v1231 = vpack.c.b16 %v979, %v970
    %v1232 = vpack.c.b16 %v980, %v971
    %v1233 = vpack.c.b16 %v981, %v972
    %v1234 = vpack.c.b16 %v982, %v973
    %v1235 = vpack.c.b16 %v983, %v974
    %v1236 = vpack.c.b16 %v984, %v975
    %v1237 = vpack.c.b16 %v994, %v985
    %v1238 = vpack.c.b16 %v995, %v986
    %v1239 = vpack.c.b16 %v996, %v987
    %v1240 = vpack.c.b16 %v997, %v988
    %v1241 = vpack.c.b16 %v998, %v989
    %v1242 = vpack.c.b16 %v999, %v990
    %v1243 = vpack.c.b16 %v1000, %v991
    %v1244 = vpack.c.b16 %v1001, %v992
    %v1245 = vpack.c.b16 %v1002, %v993
    %v1246 = vpack.c.b16 %v1012, %v1003
    %v1247 = vpack.c.b16 %v1013, %v1004
    %v1248 = vpack.c.b16 %v1014, %v1005
    %v1249 = vpack.c.b16 %v1015, %v1006
    %v1250 = vpack.c.b16 %v1016, %v1007
    %v1251 = vpack.c.b16 %v1017, %v1008
    %v1252 = vpack.c.b16 %v1018, %v1009
    %v1253 = vpack.c.b16 %v1019, %v1010
    %v1254 = vpack.c.b16 %v1020, %v1011
    %v1255 = vpack.c.b16 %v1030, %v1021
    %v1256 = vpack.c.b16 %v1031, %v1022
    %v1257 = vpack.c.b16 %v1032, %v1023
    %v1258 = vpack.c.b16 %v1033, %v1024
    %v1259 = vpack.c.b16 %v1034, %v1025
    %v1260 = vpack.c.b16 %v1035, %v1026
    %v1261 = vpack.c.b16 %v1036, %v1027
    %v1262 = vpack.c.b16 %v1037, %v1028
    %v1263 = vpack.c.b16 %v1038, %v1029
    %v1264 = vpack.c.b16 %v1048, %v1039
    %v1265 = vpack.c.b16 %v1049, %v1040
    %v1266 = vpack.c.b16 %v1050, %v1041
    %v1267 = vpack.c.b16 %v1051, %v1042
    %v1268 = vpack.c.b16 %v1052, %v1043
    %v1269 = vpack.c.b16 %v1053, %v1044
    %v1270 = vpack.c.b16 %v1054, %v1045
    %v1271 = vpack.c.b16 %v1055, %v1046
    %v1272 = vpack.c.b16 %v1056, %v1047
    %v1273 = vpack.c.b16 %v1066, %v1057
    %v1274 = vpack.c.b16 %v1067, %v1058
    %v1275 = vpack.c.b16 %v1068, %v1059
    %v1276 = vpack.c.b16 %v1069, %v1060
    %v1277 = vpack.c.b16 %v1070, %v1061
    %v1278 = vpack.c.b16 %v1071, %v1062
    %v1279 = vpack.c.b16 %v1072, %v1063
    %v1280 = vpack.c.b16 %v1073, %v1064
    %v1281 = vpack.c.b16 %v1074, %v1065
    %v1282 = vpack.c.b16 %v1084, %v1075
    %v1283 = vpack.c.b16 %v1085, %v1076
    %v1284 = vpack.c.b16 %v1086, %v1077
    %v1285 = vpack.c.b16 %v1087, %v1078
    %v1286 = vpack.c.b16 %v1088, %v1079
    %v1287 = vpack.c.b16 %v1089, %v1080
    %v1288 = vpack.c.b16 %v1090, %v1081
    %v1289 = vpack.c.b16 %v1091, %v1082
    %v1290 = vpack.c.b16 %v1092, %v1083
    %v1291 = vpack.c.b16 %v1102, %v1093
    %v1292 = vpack.c.b16 %v1103, %v1094
    %v1293 = vpack.c.b16 %v1104, %v1095
    %v1294 = vpack.c.b16 %v1105, %v1096
    %v1295 = vpack.c.b16 %v1106, %v1097
    %v1296 = vpack.c.b16 %v1107, %v1098
    %v1297 = vpack.c.b16 %v1108, %v1099
    %v1298 = vpack.c.b16 %v1109, %v1100
    %v1299 = vpack.c.b16 %v1110, %v1101
    %v1300 = vpack.c.b16 %v1120, %v1111
    %v1301 = vpack.c.b16 %v1121, %v1112
    %v1302 = vpack.c.b16 %v1122, %v1113
    %v1303 = vpack.c.b16 %v1123, %v1114
    %v1304 = vpack.c.b16 %v1124, %v1115
    %v1305 = vpack.c.b16 %v1125, %v1116
    %v1306 = vpack.c.b16 %v1126, %v1117
    %v1307 = vpack.c.b16 %v1127, %v1118
    %v1308 = vpack.c.b16 %v1128, %v1119
    %v1309 = vpack.c.b16 %v1138, %v1129
    %v1310 = vpack.c.b16 %v1139, %v1130
    %v1311 = vpack.c.b16 %v1140, %v1131
    %v1312 = vpack.c.b16 %v1141, %v1132
    %v1313 = vpack.c.b16 %v1142, %v1133
    %v1314 = vpack.c.b16 %v1143, %v1134
    %v1315 = vpack.c.b16 %v1144, %v1135
    %v1316 = vpack.c.b16 %v1145, %v1136
    %v1317 = vpack.c.b16 %v1146, %v1137
    %v1318 = vpack.c.b16 %v1156, %v1147
    %v1319 = vpack.c.b16 %v1157, %v1148
    %v1320 = vpack.c.b16 %v1158, %v1149
    %v1321 = vpack.c.b16 %v1159, %v1150
    %v1322 = vpack.c.b16 %v1160, %v1151
    %v1323 = vpack.c.b16 %v1161, %v1152
    %v1324 = vpack.c.b16 %v1162, %v1153
    %v1325 = vpack.c.b16 %v1163, %v1154
    %v1326 = vpack.c.b16 %v1164, %v1155
    %v1327 = vpack.c.b16 %v1174, %v1165
    %v1328 = vpack.c.b16 %v1175, %v1166
    %v1329 = vpack.c.b16 %v1176, %v1167
    %v1330 = vpack.c.b16 %v1177, %v1168
    %v1331 = vpack.c.b16 %v1178, %v1169
    %v1332 = vpack.c.b16 %v1179, %v1170
    %v1333 = vpack.c.b16 %v1180, %v1171
    %v1334 = vpack.c.b16 %v1181, %v1172
    %v1335 = vpack.c.b16 %v1182, %v1173
    %v1336 = vpack.c.b16 %v1192, %v1183
    %v1337 = vpack.c.b16 %v1193, %v1184
    %v1338 = vpack.c.b16 %v1194, %v1185
    %v1339 = vpack.c.b16 %v1195, %v1186
    %v1340 = vpack.c.b16 %v1196, %v1187
    %v1341 = vpack.c.b16 %v1197, %v1188
    %v1342 = vpack.c.b16 %v1198, %v1189
    %v1343 = vpack.c.b16 %v1199, %v1190
    %v1344 = vpack.c.b16 %v1200, %v1191
    %1489 = vmatpush.bf16.msra.mxu0 %v1264
    %1490 = vmatpush.bf16.msra.mxu0 %v1255
    %1491 = vmatpush.bf16.msra.mxu0 %v1246
    %1492 = vmatpush.bf16.msra.mxu0 %v1237
    %1493 = vmatpush.bf16.msra.mxu0 %v1228
    %1494 = vmatpush.bf16.msra.mxu0 %v1219
    %1495 = vmatpush.bf16.msra.mxu0 %v1210
    %1496 = vmatpush.bf16.msra.mxu0 %v1201
    %1497 = vmatmul.bf16.gmra.mxu0 %v585
    %v1498 = vpop.f32.mrf.mxu0
    %v1499 = vadd.f32 0.0, %v1498
    %v1500 = vpop.f32.mrf.mxu0
    %v1501 = vadd.f32 0.0, %v1500
    %1502 = vmatmul.bf16.gmra.mxu0 %v587
    %v1503 = vpop.f32.mrf.mxu0
    %v1504 = vadd.f32 0.0, %v1503
    %v1505 = vpop.f32.mrf.mxu0
    %v1506 = vadd.f32 0.0, %v1505
    %1507 = vmatmul.bf16.gmra.mxu0 %v589
    %v1508 = vpop.f32.mrf.mxu0
    %v1509 = vadd.f32 0.0, %v1508
    %v1510 = vpop.f32.mrf.mxu0
    %v1511 = vadd.f32 0.0, %v1510
    %1512 = vmatmul.bf16.gmra.mxu0 %v591
    %v1513 = vpop.f32.mrf.mxu0
    %v1514 = vadd.f32 0.0, %v1513
    %v1515 = vpop.f32.mrf.mxu0
    %v1516 = vadd.f32 0.0, %v1515
    %1517 = vdwg.mxu0
    %1518 = vmatpush.bf16.msra.mxu0 %v1336
    %1519 = vmatpush.bf16.msra.mxu0 %v1327
    %1520 = vmatpush.bf16.msra.mxu0 %v1318
    %1521 = vmatpush.bf16.msra.mxu0 %v1309
    %1522 = vmatpush.bf16.msra.mxu0 %v1300
    %1523 = vmatpush.bf16.msra.mxu0 %v1291
    %1524 = vmatpush.bf16.msra.mxu0 %v1282
    %1525 = vmatpush.bf16.msra.mxu0 %v1273
    %1526 = vmatmul.bf16.gmra.mxu0 %v586
    %v1527 = vpop.f32.mrf.mxu0
    %v1528 = vadd.f32 %v1499, %v1527
    %v1529 = vpop.f32.mrf.mxu0
    %v1530 = vadd.f32 %v1501, %v1529
    %1531 = vmatmul.bf16.gmra.mxu0 %v588
    %v1532 = vpop.f32.mrf.mxu0
    %v1533 = vadd.f32 %v1504, %v1532
    %v1534 = vpop.f32.mrf.mxu0
    %v1535 = vadd.f32 %v1506, %v1534
    %1536 = vmatmul.bf16.gmra.mxu0 %v590
    %v1537 = vpop.f32.mrf.mxu0
    %v1538 = vadd.f32 %v1509, %v1537
    %v1539 = vpop.f32.mrf.mxu0
    %v1540 = vadd.f32 %v1511, %v1539
    %1541 = vmatmul.bf16.gmra.mxu0 %v592
    %v1542 = vpop.f32.mrf.mxu0
    %v1543 = vadd.f32 %v1514, %v1542
    %v1544 = vpop.f32.mrf.mxu0
    %v1545 = vadd.f32 %v1516, %v1544
    %1546 = vdwg.mxu0
    %1547 = vmatpush.bf16.msra.mxu0 %v1265
    %1548 = vmatpush.bf16.msra.mxu0 %v1256
    %1549 = vmatpush.bf16.msra.mxu0 %v1247
    %1550 = vmatpush.bf16.msra.mxu0 %v1238
    %1551 = vmatpush.bf16.msra.mxu0 %v1229
    %1552 = vmatpush.bf16.msra.mxu0 %v1220
    %1553 = vmatpush.bf16.msra.mxu0 %v1211
    %1554 = vmatpush.bf16.msra.mxu0 %v1202
    %1555 = vmatmul.bf16.gmra.mxu0 %v585
    %v1556 = vpop.f32.mrf.mxu0
    %v1557 = vadd.f32 0.0, %v1556
    %v1558 = vpop.f32.mrf.mxu0
    %v1559 = vadd.f32 0.0, %v1558
    %1560 = vmatmul.bf16.gmra.mxu0 %v587
    %v1561 = vpop.f32.mrf.mxu0
    %v1562 = vadd.f32 0.0, %v1561
    %v1563 = vpop.f32.mrf.mxu0
    %v1564 = vadd.f32 0.0, %v1563
    %1565 = vmatmul.bf16.gmra.mxu0 %v589
    %v1566 = vpop.f32.mrf.mxu0
    %v1567 = vadd.f32 0.0, %v1566
    %v1568 = vpop.f32.mrf.mxu0
    %v1569 = vadd.f32 0.0, %v1568
    %1570 = vmatmul.bf16.gmra.mxu0 %v591
    %v1571 = vpop.f32.mrf.mxu0
    %v1572 = vadd.f32 0.0, %v1571
    %v1573 = vpop.f32.mrf.mxu0
    %v1574 = vadd.f32 0.0, %v1573
    %1575 = vdwg.mxu0
    %1576 = vmatpush.bf16.msra.mxu0 %v1337
    %1577 = vmatpush.bf16.msra.mxu0 %v1328
    %1578 = vmatpush.bf16.msra.mxu0 %v1319
    %1579 = vmatpush.bf16.msra.mxu0 %v1310
    %1580 = vmatpush.bf16.msra.mxu0 %v1301
    %1581 = vmatpush.bf16.msra.mxu0 %v1292
    %1582 = vmatpush.bf16.msra.mxu0 %v1283
    %1583 = vmatpush.bf16.msra.mxu0 %v1274
    %1584 = vmatmul.bf16.gmra.mxu0 %v586
    %v1585 = vpop.f32.mrf.mxu0
    %v1586 = vadd.f32 %v1557, %v1585
    %v1587 = vpop.f32.mrf.mxu0
    %v1588 = vadd.f32 %v1559, %v1587
    %1589 = vmatmul.bf16.gmra.mxu0 %v588
    %v1590 = vpop.f32.mrf.mxu0
    %v1591 = vadd.f32 %v1562, %v1590
    %v1592 = vpop.f32.mrf.mxu0
    %v1593 = vadd.f32 %v1564, %v1592
    %1594 = vmatmul.bf16.gmra.mxu0 %v590
    %v1595 = vpop.f32.mrf.mxu0
    %v1596 = vadd.f32 %v1567, %v1595
    %v1597 = vpop.f32.mrf.mxu0
    %v1598 = vadd.f32 %v1569, %v1597
    %1599 = vmatmul.bf16.gmra.mxu0 %v592
    %v1600 = vpop.f32.mrf.mxu0
    %v1601 = vadd.f32 %v1572, %v1600
    %v1602 = vpop.f32.mrf.mxu0
    %v1603 = vadd.f32 %v1574, %v1602
    %1604 = vdwg.mxu0
    %1605 = vmatpush.bf16.msra.mxu0 %v1266
    %1606 = vmatpush.bf16.msra.mxu0 %v1257
    %1607 = vmatpush.bf16.msra.mxu0 %v1248
    %1608 = vmatpush.bf16.msra.mxu0 %v1239
    %1609 = vmatpush.bf16.msra.mxu0 %v1230
    %1610 = vmatpush.bf16.msra.mxu0 %v1221
    %1611 = vmatpush.bf16.msra.mxu0 %v1212
    %1612 = vmatpush.bf16.msra.mxu0 %v1203
    %1613 = vmatmul.bf16.gmra.mxu0 %v585
    %v1614 = vpop.f32.mrf.mxu0
    %v1615 = vadd.f32 0.0, %v1614
    %v1616 = vpop.f32.mrf.mxu0
    %v1617 = vadd.f32 0.0, %v1616
    %1618 = vmatmul.bf16.gmra.mxu0 %v587
    %v1619 = vpop.f32.mrf.mxu0
    %v1620 = vadd.f32 0.0, %v1619
    %v1621 = vpop.f32.mrf.mxu0
    %v1622 = vadd.f32 0.0, %v1621
    %1623 = vmatmul.bf16.gmra.mxu0 %v589
    %v1624 = vpop.f32.mrf.mxu0
    %v1625 = vadd.f32 0.0, %v1624
    %v1626 = vpop.f32.mrf.mxu0
    %v1627 = vadd.f32 0.0, %v1626
    %1628 = vmatmul.bf16.gmra.mxu0 %v591
    %v1629 = vpop.f32.mrf.mxu0
    %v1630 = vadd.f32 0.0, %v1629
    %v1631 = vpop.f32.mrf.mxu0
    %v1632 = vadd.f32 0.0, %v1631
    %1633 = vdwg.mxu0
    %1634 = vmatpush.bf16.msra.mxu0 %v1338
    %1635 = vmatpush.bf16.msra.mxu0 %v1329
    %1636 = vmatpush.bf16.msra.mxu0 %v1320
    %1637 = vmatpush.bf16.msra.mxu0 %v1311
    %1638 = vmatpush.bf16.msra.mxu0 %v1302
    %1639 = vmatpush.bf16.msra.mxu0 %v1293
    %1640 = vmatpush.bf16.msra.mxu0 %v1284
    %1641 = vmatpush.bf16.msra.mxu0 %v1275
    %1642 = vmatmul.bf16.gmra.mxu0 %v586
    %v1643 = vpop.f32.mrf.mxu0
    %v1644 = vadd.f32 %v1615, %v1643
    %v1645 = vpop.f32.mrf.mxu0
    %v1646 = vadd.f32 %v1617, %v1645
    %1647 = vmatmul.bf16.gmra.mxu0 %v588
    %v1648 = vpop.f32.mrf.mxu0
    %v1649 = vadd.f32 %v1620, %v1648
    %v1650 = vpop.f32.mrf.mxu0
    %v1651 = vadd.f32 %v1622, %v1650
    %1652 = vmatmul.bf16.gmra.mxu0 %v590
    %v1653 = vpop.f32.mrf.mxu0
    %v1654 = vadd.f32 %v1625, %v1653
    %v1655 = vpop.f32.mrf.mxu0
    %v1656 = vadd.f32 %v1627, %v1655
    %1657 = vmatmul.bf16.gmra.mxu0 %v592
    %v1658 = vpop.f32.mrf.mxu0
    %v1659 = vadd.f32 %v1630, %v1658
    %v1660 = vpop.f32.mrf.mxu0
    %v1661 = vadd.f32 %v1632, %v1660
    %1662 = vdwg.mxu0
    %1663 = vmatpush.bf16.msra.mxu0 %v1267
    %1664 = vmatpush.bf16.msra.mxu0 %v1258
    %1665 = vmatpush.bf16.msra.mxu0 %v1249
    %1666 = vmatpush.bf16.msra.mxu0 %v1240
    %1667 = vmatpush.bf16.msra.mxu0 %v1231
    %1668 = vmatpush.bf16.msra.mxu0 %v1222
    %1669 = vmatpush.bf16.msra.mxu0 %v1213
    %1670 = vmatpush.bf16.msra.mxu0 %v1204
    %1671 = vmatmul.bf16.gmra.mxu0 %v585
    %v1672 = vpop.f32.mrf.mxu0
    %v1673 = vadd.f32 0.0, %v1672
    %v1674 = vpop.f32.mrf.mxu0
    %v1675 = vadd.f32 0.0, %v1674
    %1676 = vmatmul.bf16.gmra.mxu0 %v587
    %v1677 = vpop.f32.mrf.mxu0
    %v1678 = vadd.f32 0.0, %v1677
    %v1679 = vpop.f32.mrf.mxu0
    %v1680 = vadd.f32 0.0, %v1679
    %1681 = vmatmul.bf16.gmra.mxu0 %v589
    %v1682 = vpop.f32.mrf.mxu0
    %v1683 = vadd.f32 0.0, %v1682
    %v1684 = vpop.f32.mrf.mxu0
    %v1685 = vadd.f32 0.0, %v1684
    %1686 = vmatmul.bf16.gmra.mxu0 %v591
    %v1687 = vpop.f32.mrf.mxu0
    %v1688 = vadd.f32 0.0, %v1687
    %v1689 = vpop.f32.mrf.mxu0
    %v1690 = vadd.f32 0.0, %v1689
    %1691 = vdwg.mxu0
    %1692 = vmatpush.bf16.msra.mxu0 %v1339
    %1693 = vmatpush.bf16.msra.mxu0 %v1330
    %1694 = vmatpush.bf16.msra.mxu0 %v1321
    %1695 = vmatpush.bf16.msra.mxu0 %v1312
    %1696 = vmatpush.bf16.msra.mxu0 %v1303
    %1697 = vmatpush.bf16.msra.mxu0 %v1294
    %1698 = vmatpush.bf16.msra.mxu0 %v1285
    %1699 = vmatpush.bf16.msra.mxu0 %v1276
    %1700 = vmatmul.bf16.gmra.mxu0 %v586
    %v1701 = vpop.f32.mrf.mxu0
    %v1702 = vadd.f32 %v1673, %v1701
    %v1703 = vpop.f32.mrf.mxu0
    %v1704 = vadd.f32 %v1675, %v1703
    %1705 = vmatmul.bf16.gmra.mxu0 %v588
    %v1706 = vpop.f32.mrf.mxu0
    %v1707 = vadd.f32 %v1678, %v1706
    %v1708 = vpop.f32.mrf.mxu0
    %v1709 = vadd.f32 %v1680, %v1708
    %1710 = vmatmul.bf16.gmra.mxu0 %v590
    %v1711 = vpop.f32.mrf.mxu0
    %v1712 = vadd.f32 %v1683, %v1711
    %v1713 = vpop.f32.mrf.mxu0
    %v1714 = vadd.f32 %v1685, %v1713
    %1715 = vmatmul.bf16.gmra.mxu0 %v592
    %v1716 = vpop.f32.mrf.mxu0
    %v1717 = vadd.f32 %v1688, %v1716
    %v1718 = vpop.f32.mrf.mxu0
    %v1719 = vadd.f32 %v1690, %v1718
    %1720 = vdwg.mxu0
    %1721 = vmatpush.bf16.msra.mxu0 %v1268
    %1722 = vmatpush.bf16.msra.mxu0 %v1259
    %1723 = vmatpush.bf16.msra.mxu0 %v1250
    %1724 = vmatpush.bf16.msra.mxu0 %v1241
    %1725 = vmatpush.bf16.msra.mxu0 %v1232
    %1726 = vmatpush.bf16.msra.mxu0 %v1223
    %1727 = vmatpush.bf16.msra.mxu0 %v1214
    %1728 = vmatpush.bf16.msra.mxu0 %v1205
    %1729 = vmatmul.bf16.gmra.mxu0 %v585
    %v1730 = vpop.f32.mrf.mxu0
    %v1731 = vadd.f32 0.0, %v1730
    %v1732 = vpop.f32.mrf.mxu0
    %v1733 = vadd.f32 0.0, %v1732
    %1734 = vmatmul.bf16.gmra.mxu0 %v587
    %v1735 = vpop.f32.mrf.mxu0
    %v1736 = vadd.f32 0.0, %v1735
    %v1737 = vpop.f32.mrf.mxu0
    %v1738 = vadd.f32 0.0, %v1737
    %1739 = vmatmul.bf16.gmra.mxu0 %v589
    %v1740 = vpop.f32.mrf.mxu0
    %v1741 = vadd.f32 0.0, %v1740
    %v1742 = vpop.f32.mrf.mxu0
    %v1743 = vadd.f32 0.0, %v1742
    %1744 = vmatmul.bf16.gmra.mxu0 %v591
    %v1745 = vpop.f32.mrf.mxu0
    %v1746 = vadd.f32 0.0, %v1745
    %v1747 = vpop.f32.mrf.mxu0
    %v1748 = vadd.f32 0.0, %v1747
    %1749 = vdwg.mxu0
    %1750 = vmatpush.bf16.msra.mxu0 %v1340
    %1751 = vmatpush.bf16.msra.mxu0 %v1331
    %1752 = vmatpush.bf16.msra.mxu0 %v1322
    %1753 = vmatpush.bf16.msra.mxu0 %v1313
    %1754 = vmatpush.bf16.msra.mxu0 %v1304
    %1755 = vmatpush.bf16.msra.mxu0 %v1295
    %1756 = vmatpush.bf16.msra.mxu0 %v1286
    %1757 = vmatpush.bf16.msra.mxu0 %v1277
    %1758 = vmatmul.bf16.gmra.mxu0 %v586
    %v1759 = vpop.f32.mrf.mxu0
    %v1760 = vadd.f32 %v1731, %v1759
    %v1761 = vpop.f32.mrf.mxu0
    %v1762 = vadd.f32 %v1733, %v1761
    %1763 = vmatmul.bf16.gmra.mxu0 %v588
    %v1764 = vpop.f32.mrf.mxu0
    %v1765 = vadd.f32 %v1736, %v1764
    %v1766 = vpop.f32.mrf.mxu0
    %v1767 = vadd.f32 %v1738, %v1766
    %1768 = vmatmul.bf16.gmra.mxu0 %v590
    %v1769 = vpop.f32.mrf.mxu0
    %v1770 = vadd.f32 %v1741, %v1769
    %v1771 = vpop.f32.mrf.mxu0
    %v1772 = vadd.f32 %v1743, %v1771
    %1773 = vmatmul.bf16.gmra.mxu0 %v592
    %v1774 = vpop.f32.mrf.mxu0
    %v1775 = vadd.f32 %v1746, %v1774
    %v1776 = vpop.f32.mrf.mxu0
    %v1777 = vadd.f32 %v1748, %v1776
    %1778 = vdwg.mxu0
    %1779 = vmatpush.bf16.msra.mxu0 %v1269
    %1780 = vmatpush.bf16.msra.mxu0 %v1260
    %1781 = vmatpush.bf16.msra.mxu0 %v1251
    %1782 = vmatpush.bf16.msra.mxu0 %v1242
    %1783 = vmatpush.bf16.msra.mxu0 %v1233
    %1784 = vmatpush.bf16.msra.mxu0 %v1224
    %1785 = vmatpush.bf16.msra.mxu0 %v1215
    %1786 = vmatpush.bf16.msra.mxu0 %v1206
    %1787 = vmatmul.bf16.gmra.mxu0 %v585
    %v1788 = vpop.f32.mrf.mxu0
    %v1789 = vadd.f32 0.0, %v1788
    %v1790 = vpop.f32.mrf.mxu0
    %v1791 = vadd.f32 0.0, %v1790
    %1792 = vmatmul.bf16.gmra.mxu0 %v587
    %v1793 = vpop.f32.mrf.mxu0
    %v1794 = vadd.f32 0.0, %v1793
    %v1795 = vpop.f32.mrf.mxu0
    %v1796 = vadd.f32 0.0, %v1795
    %1797 = vmatmul.bf16.gmra.mxu0 %v589
    %v1798 = vpop.f32.mrf.mxu0
    %v1799 = vadd.f32 0.0, %v1798
    %v1800 = vpop.f32.mrf.mxu0
    %v1801 = vadd.f32 0.0, %v1800
    %1802 = vmatmul.bf16.gmra.mxu0 %v591
    %v1803 = vpop.f32.mrf.mxu0
    %v1804 = vadd.f32 0.0, %v1803
    %v1805 = vpop.f32.mrf.mxu0
    %v1806 = vadd.f32 0.0, %v1805
    %1807 = vdwg.mxu0
    %1808 = vmatpush.bf16.msra.mxu0 %v1341
    %1809 = vmatpush.bf16.msra.mxu0 %v1332
    %1810 = vmatpush.bf16.msra.mxu0 %v1323
    %1811 = vmatpush.bf16.msra.mxu0 %v1314
    %1812 = vmatpush.bf16.msra.mxu0 %v1305
    %1813 = vmatpush.bf16.msra.mxu0 %v1296
    %1814 = vmatpush.bf16.msra.mxu0 %v1287
    %1815 = vmatpush.bf16.msra.mxu0 %v1278
    %1816 = vmatmul.bf16.gmra.mxu0 %v586
    %v1817 = vpop.f32.mrf.mxu0
    %v1818 = vadd.f32 %v1789, %v1817
    %v1819 = vpop.f32.mrf.mxu0
    %v1820 = vadd.f32 %v1791, %v1819
    %1821 = vmatmul.bf16.gmra.mxu0 %v588
    %v1822 = vpop.f32.mrf.mxu0
    %v1823 = vadd.f32 %v1794, %v1822
    %v1824 = vpop.f32.mrf.mxu0
    %v1825 = vadd.f32 %v1796, %v1824
    %1826 = vmatmul.bf16.gmra.mxu0 %v590
    %v1827 = vpop.f32.mrf.mxu0
    %v1828 = vadd.f32 %v1799, %v1827
    %v1829 = vpop.f32.mrf.mxu0
    %v1830 = vadd.f32 %v1801, %v1829
    %1831 = vmatmul.bf16.gmra.mxu0 %v592
    %v1832 = vpop.f32.mrf.mxu0
    %v1833 = vadd.f32 %v1804, %v1832
    %v1834 = vpop.f32.mrf.mxu0
    %v1835 = vadd.f32 %v1806, %v1834
    %1836 = vdwg.mxu0
    %1837 = vmatpush.bf16.msra.mxu0 %v1270
    %1838 = vmatpush.bf16.msra.mxu0 %v1261
    %1839 = vmatpush.bf16.msra.mxu0 %v1252
    %1840 = vmatpush.bf16.msra.mxu0 %v1243
    %1841 = vmatpush.bf16.msra.mxu0 %v1234
    %1842 = vmatpush.bf16.msra.mxu0 %v1225
    %1843 = vmatpush.bf16.msra.mxu0 %v1216
    %1844 = vmatpush.bf16.msra.mxu0 %v1207
    %1845 = vmatmul.bf16.gmra.mxu0 %v585
    %v1846 = vpop.f32.mrf.mxu0
    %v1847 = vadd.f32 0.0, %v1846
    %v1848 = vpop.f32.mrf.mxu0
    %v1849 = vadd.f32 0.0, %v1848
    %1850 = vmatmul.bf16.gmra.mxu0 %v587
    %v1851 = vpop.f32.mrf.mxu0
    %v1852 = vadd.f32 0.0, %v1851
    %v1853 = vpop.f32.mrf.mxu0
    %v1854 = vadd.f32 0.0, %v1853
    %1855 = vmatmul.bf16.gmra.mxu0 %v589
    %v1856 = vpop.f32.mrf.mxu0
    %v1857 = vadd.f32 0.0, %v1856
    %v1858 = vpop.f32.mrf.mxu0
    %v1859 = vadd.f32 0.0, %v1858
    %1860 = vmatmul.bf16.gmra.mxu0 %v591
    %v1861 = vpop.f32.mrf.mxu0
    %v1862 = vadd.f32 0.0, %v1861
    %v1863 = vpop.f32.mrf.mxu0
    %v1864 = vadd.f32 0.0, %v1863
    %1865 = vdwg.mxu0
    %1866 = vmatpush.bf16.msra.mxu0 %v1342
    %1867 = vmatpush.bf16.msra.mxu0 %v1333
    %1868 = vmatpush.bf16.msra.mxu0 %v1324
    %1869 = vmatpush.bf16.msra.mxu0 %v1315
    %1870 = vmatpush.bf16.msra.mxu0 %v1306
    %1871 = vmatpush.bf16.msra.mxu0 %v1297
    %1872 = vmatpush.bf16.msra.mxu0 %v1288
    %1873 = vmatpush.bf16.msra.mxu0 %v1279
    %1874 = vmatmul.bf16.gmra.mxu0 %v586
    %v1875 = vpop.f32.mrf.mxu0
    %v1876 = vadd.f32 %v1847, %v1875
    %v1877 = vpop.f32.mrf.mxu0
    %v1878 = vadd.f32 %v1849, %v1877
    %1879 = vmatmul.bf16.gmra.mxu0 %v588
    %v1880 = vpop.f32.mrf.mxu0
    %v1881 = vadd.f32 %v1852, %v1880
    %v1882 = vpop.f32.mrf.mxu0
    %v1883 = vadd.f32 %v1854, %v1882
    %1884 = vmatmul.bf16.gmra.mxu0 %v590
    %v1885 = vpop.f32.mrf.mxu0
    %v1886 = vadd.f32 %v1857, %v1885
    %v1887 = vpop.f32.mrf.mxu0
    %v1888 = vadd.f32 %v1859, %v1887
    %1889 = vmatmul.bf16.gmra.mxu0 %v592
    %v1890 = vpop.f32.mrf.mxu0
    %v1891 = vadd.f32 %v1862, %v1890
    %v1892 = vpop.f32.mrf.mxu0
    %v1893 = vadd.f32 %v1864, %v1892
    %1894 = vdwg.mxu0
    %1895 = vmatpush.bf16.msra.mxu0 %v1271
    %1896 = vmatpush.bf16.msra.mxu0 %v1262
    %1897 = vmatpush.bf16.msra.mxu0 %v1253
    %1898 = vmatpush.bf16.msra.mxu0 %v1244
    %1899 = vmatpush.bf16.msra.mxu0 %v1235
    %1900 = vmatpush.bf16.msra.mxu0 %v1226
    %1901 = vmatpush.bf16.msra.mxu0 %v1217
    %1902 = vmatpush.bf16.msra.mxu0 %v1208
    %1903 = vmatmul.bf16.gmra.mxu0 %v585
    %v1904 = vpop.f32.mrf.mxu0
    %v1905 = vadd.f32 0.0, %v1904
    %v1906 = vpop.f32.mrf.mxu0
    %v1907 = vadd.f32 0.0, %v1906
    %1908 = vmatmul.bf16.gmra.mxu0 %v587
    %v1909 = vpop.f32.mrf.mxu0
    %v1910 = vadd.f32 0.0, %v1909
    %v1911 = vpop.f32.mrf.mxu0
    %v1912 = vadd.f32 0.0, %v1911
    %1913 = vmatmul.bf16.gmra.mxu0 %v589
    %v1914 = vpop.f32.mrf.mxu0
    %v1915 = vadd.f32 0.0, %v1914
    %v1916 = vpop.f32.mrf.mxu0
    %v1917 = vadd.f32 0.0, %v1916
    %1918 = vmatmul.bf16.gmra.mxu0 %v591
    %v1919 = vpop.f32.mrf.mxu0
    %v1920 = vadd.f32 0.0, %v1919
    %v1921 = vpop.f32.mrf.mxu0
    %v1922 = vadd.f32 0.0, %v1921
    %1923 = vdwg.mxu0
    %1924 = vmatpush.bf16.msra.mxu0 %v1343
    %1925 = vmatpush.bf16.msra.mxu0 %v1334
    %1926 = vmatpush.bf16.msra.mxu0 %v1325
    %1927 = vmatpush.bf16.msra.mxu0 %v1316
    %1928 = vmatpush.bf16.msra.mxu0 %v1307
    %1929 = vmatpush.bf16.msra.mxu0 %v1298
    %1930 = vmatpush.bf16.msra.mxu0 %v1289
    %1931 = vmatpush.bf16.msra.mxu0 %v1280
    %1932 = vmatmul.bf16.gmra.mxu0 %v586
    %v1933 = vpop.f32.mrf.mxu0
    %v1934 = vadd.f32 %v1905, %v1933
    %v1935 = vpop.f32.mrf.mxu0
    %v1936 = vadd.f32 %v1907, %v1935
    %1937 = vmatmul.bf16.gmra.mxu0 %v588
    %v1938 = vpop.f32.mrf.mxu0
    %v1939 = vadd.f32 %v1910, %v1938
    %v1940 = vpop.f32.mrf.mxu0
    %v1941 = vadd.f32 %v1912, %v1940
    %1942 = vmatmul.bf16.gmra.mxu0 %v590
    %v1943 = vpop.f32.mrf.mxu0
    %v1944 = vadd.f32 %v1915, %v1943
    %v1945 = vpop.f32.mrf.mxu0
    %v1946 = vadd.f32 %v1917, %v1945
    %1947 = vmatmul.bf16.gmra.mxu0 %v592
    %v1948 = vpop.f32.mrf.mxu0
    %v1949 = vadd.f32 %v1920, %v1948
    %v1950 = vpop.f32.mrf.mxu0
    %v1951 = vadd.f32 %v1922, %v1950
    %1952 = vdwg.mxu0
    %1953 = vmatpush.bf16.msra.mxu0 %v1272
    %1954 = vmatpush.bf16.msra.mxu0 %v1263
    %1955 = vmatpush.bf16.msra.mxu0 %v1254
    %1956 = vmatpush.bf16.msra.mxu0 %v1245
    %1957 = vmatpush.bf16.msra.mxu0 %v1236
    %1958 = vmatpush.bf16.msra.mxu0 %v1227
    %1959 = vmatpush.bf16.msra.mxu0 %v1218
    %1960 = vmatpush.bf16.msra.mxu0 %v1209
    %1961 = vmatmul.bf16.gmra.mxu0 %v585
    %v1962 = vpop.f32.mrf.mxu0
    %v1963 = vadd.f32 0.0, %v1962
    %v1964 = vpop.f32.mrf.mxu0
    %v1965 = vadd.f32 0.0, %v1964
    %1966 = vmatmul.bf16.gmra.mxu0 %v587
    %v1967 = vpop.f32.mrf.mxu0
    %v1968 = vadd.f32 0.0, %v1967
    %v1969 = vpop.f32.mrf.mxu0
    %v1970 = vadd.f32 0.0, %v1969
    %1971 = vmatmul.bf16.gmra.mxu0 %v589
    %v1972 = vpop.f32.mrf.mxu0
    %v1973 = vadd.f32 0.0, %v1972
    %v1974 = vpop.f32.mrf.mxu0
    %v1975 = vadd.f32 0.0, %v1974
    %1976 = vmatmul.bf16.gmra.mxu0 %v591
    %v1977 = vpop.f32.mrf.mxu0
    %v1978 = vadd.f32 0.0, %v1977
    %v1979 = vpop.f32.mrf.mxu0
    %v1980 = vadd.f32 0.0, %v1979
    %1981 = vdwg.mxu0
    %1982 = vmatpush.bf16.msra.mxu0 %v1344
    %1983 = vmatpush.bf16.msra.mxu0 %v1335
    %1984 = vmatpush.bf16.msra.mxu0 %v1326
    %1985 = vmatpush.bf16.msra.mxu0 %v1317
    %1986 = vmatpush.bf16.msra.mxu0 %v1308
    %1987 = vmatpush.bf16.msra.mxu0 %v1299
    %1988 = vmatpush.bf16.msra.mxu0 %v1290
    %1989 = vmatpush.bf16.msra.mxu0 %v1281
    %1990 = vmatmul.bf16.gmra.mxu0 %v586
    %v1991 = vpop.f32.mrf.mxu0
    %v1992 = vadd.f32 %v1963, %v1991
    %v1993 = vpop.f32.mrf.mxu0
    %v1994 = vadd.f32 %v1965, %v1993
    %1995 = vmatmul.bf16.gmra.mxu0 %v588
    %v1996 = vpop.f32.mrf.mxu0
    %v1997 = vadd.f32 %v1968, %v1996
    %v1998 = vpop.f32.mrf.mxu0
    %v1999 = vadd.f32 %v1970, %v1998
    %2000 = vmatmul.bf16.gmra.mxu0 %v590
    %v2001 = vpop.f32.mrf.mxu0
    %v2002 = vadd.f32 %v1973, %v2001
    %v2003 = vpop.f32.mrf.mxu0
    %v2004 = vadd.f32 %v1975, %v2003
    %2005 = vmatmul.bf16.gmra.mxu0 %v592
    %v2006 = vpop.f32.mrf.mxu0
    %v2007 = vadd.f32 %v1978, %v2006
    %v2008 = vpop.f32.mrf.mxu0
    %v2009 = vadd.f32 %v1980, %v2008
    %2010 = vdwg.mxu0
    %v2011 = vpack.c.bf16 %v582, %v582
    %v2012 = vld [vmem:[%s11] sm:$0xff]
    %v2013 = vld [vmem:[%s11 + $0x8] sm:$0xff]
    %v2014 = vld [vmem:[%s11 + $0x10] sm:$0xff]
    %v2015 = vld [vmem:[%s11 + $0x18] sm:$0xff]
    %v2016 = vld [vmem:[%s11 + $0x20] sm:$0xf]
    %v2017 = vld [vmem:[%s11 + $0x24] sm:$0xff]
    %v2018 = vld [vmem:[%s11 + $0x2c] sm:$0xff]
    %v2019 = vld [vmem:[%s11 + $0x34] sm:$0xff]
    %v2020 = vld [vmem:[%s11 + $0x3c] sm:$0xff]
    %v2021 = vld [vmem:[%s11 + $0x44] sm:$0xf]
    %v2022 = vld [vmem:[%s11 + $0x48] sm:$0xff]
    %v2023 = vld [vmem:[%s11 + $0x50] sm:$0xff]
    %v2024 = vld [vmem:[%s11 + $0x58] sm:$0xff]
    %v2025 = vld [vmem:[%s11 + $0x60] sm:$0xff]
    %v2026 = vld [vmem:[%s11 + $0x68] sm:$0xf]
    %v2027 = vld [vmem:[%s11 + $0x6c] sm:$0xff]
    %v2028 = vld [vmem:[%s11 + $0x74] sm:$0xff]
    %v2029 = vld [vmem:[%s11 + $0x7c] sm:$0xff]
    %v2030 = vld [vmem:[%s11 + $0x84] sm:$0xff]
    %v2031 = vld [vmem:[%s11 + $0x8c] sm:$0xf]
    %v2032 = vld [vmem:[%s13] sm:$0xff]
    %v2033 = vld [vmem:[%s13 + $0x8] sm:$0x1]
    %v2036 = vperm.slane %v2032, 0
    %v2037 = vperm.slane %v2032, 1
    %v2038 = vperm.slane %v2032, 2
    %v2039 = vperm.slane %v2032, 3
    %v2040 = vperm.slane %v2032, 4
    %v2041 = vperm.slane %v2032, 5
    %v2042 = vperm.slane %v2032, 6
    %v2043 = vperm.slane %v2032, 7
    %v2044 = vperm.slane %v2033, 0
    %v2074 = vunpack.c.l.b16 %v2012
    %v2075 = vunpack.c.h.b16 %v2012
    %v2076 = vunpack.c.l.b16 %v2013
    %v2077 = vunpack.c.h.b16 %v2013
    %v2078 = vunpack.c.l.b16 %v2014
    %v2079 = vunpack.c.h.b16 %v2014
    %v2080 = vunpack.c.l.b16 %v2015
    %v2081 = vunpack.c.h.b16 %v2015
    %v2082 = vunpack.c.l.b16 %v2016
    %v2083 = vunpack.c.l.b16 %v2017
    %v2084 = vunpack.c.h.b16 %v2017
    %v2085 = vunpack.c.l.b16 %v2018
    %v2086 = vunpack.c.h.b16 %v2018
    %v2087 = vunpack.c.l.b16 %v2019
    %v2088 = vunpack.c.h.b16 %v2019
    %v2089 = vunpack.c.l.b16 %v2020
    %v2090 = vunpack.c.h.b16 %v2020
    %v2091 = vunpack.c.l.b16 %v2021
    %v2092 = vunpack.c.l.b16 %v2022
    %v2093 = vunpack.c.h.b16 %v2022
    %v2094 = vunpack.c.l.b16 %v2023
    %v2095 = vunpack.c.h.b16 %v2023
    %v2096 = vunpack.c.l.b16 %v2024
    %v2097 = vunpack.c.h.b16 %v2024
    %v2098 = vunpack.c.l.b16 %v2025
    %v2099 = vunpack.c.h.b16 %v2025
    %v2100 = vunpack.c.l.b16 %v2026
    %v2101 = vunpack.c.l.b16 %v2027
    %v2102 = vunpack.c.h.b16 %v2027
    %v2103 = vunpack.c.l.b16 %v2028
    %v2104 = vunpack.c.h.b16 %v2028
    %v2105 = vunpack.c.l.b16 %v2029
    %v2106 = vunpack.c.h.b16 %v2029
    %v2107 = vunpack.c.l.b16 %v2030
    %v2108 = vunpack.c.h.b16 %v2030
    %v2109 = vunpack.c.l.b16 %v2031
    %v2110 = vpack.c.b16 %v2083, %v2074
    %v2111 = vpack.c.b16 %v2084, %v2075
    %v2112 = vpack.c.b16 %v2085, %v2076
    %v2113 = vpack.c.b16 %v2086, %v2077
    %v2114 = vpack.c.b16 %v2087, %v2078
    %v2115 = vpack.c.b16 %v2088, %v2079
    %v2116 = vpack.c.b16 %v2089, %v2080
    %v2117 = vpack.c.b16 %v2090, %v2081
    %v2118 = vpack.c.b16 %v2091, %v2082
    %v2119 = vpack.c.b16 %v2101, %v2092
    %v2120 = vpack.c.b16 %v2102, %v2093
    %v2121 = vpack.c.b16 %v2103, %v2094
    %v2122 = vpack.c.b16 %v2104, %v2095
    %v2123 = vpack.c.b16 %v2105, %v2096
    %v2124 = vpack.c.b16 %v2106, %v2097
    %v2125 = vpack.c.b16 %v2107, %v2098
    %v2126 = vpack.c.b16 %v2108, %v2099
    %v2127 = vpack.c.b16 %v2109, %v2100
    %v2147 = vsel %vm568, %v2011, 0
    %2149 = vmatpush.bf16.msra.mxu0 0
    %2150 = vmatpush.bf16.msra.mxu0 0
    %2151 = vmatpush.bf16.msra.mxu0 0
    %2152 = vmatpush.bf16.msra.mxu0 0
    %2153 = vmatpush.bf16.msra.mxu0 0
    %2154 = vmatpush.bf16.msra.mxu0 0
    %2155 = vmatpush.bf16.msra.mxu0 %v2119
    %2156 = vmatpush.bf16.msra.mxu0 %v2110
    %2157 = vmatmul.bf16.gmra.mxu0 %v2147
    %v2158 = vpop.f32.mrf.mxu0
    %v2159 = vadd.f32 %v2036, %v2158
    %v2160 = vpop.f32.mrf.mxu0
    %2161 = vdwg.mxu0
    %2162 = vmatpush.bf16.msra.mxu0 0
    %2163 = vmatpush.bf16.msra.mxu0 0
    %2164 = vmatpush.bf16.msra.mxu0 0
    %2165 = vmatpush.bf16.msra.mxu0 0
    %2166 = vmatpush.bf16.msra.mxu0 0
    %2167 = vmatpush.bf16.msra.mxu0 0
    %2168 = vmatpush.bf16.msra.mxu0 %v2120
    %2169 = vmatpush.bf16.msra.mxu0 %v2111
    %2170 = vmatmul.bf16.gmra.mxu0 %v2147
    %v2171 = vpop.f32.mrf.mxu0
    %v2172 = vadd.f32 %v2037, %v2171
    %v2173 = vpop.f32.mrf.mxu0
    %2174 = vdwg.mxu0
    %2175 = vmatpush.bf16.msra.mxu0 0
    %2176 = vmatpush.bf16.msra.mxu0 0
    %2177 = vmatpush.bf16.msra.mxu0 0
    %2178 = vmatpush.bf16.msra.mxu0 0
    %2179 = vmatpush.bf16.msra.mxu0 0
    %2180 = vmatpush.bf16.msra.mxu0 0
    %2181 = vmatpush.bf16.msra.mxu0 %v2121
    %2182 = vmatpush.bf16.msra.mxu0 %v2112
    %2183 = vmatmul.bf16.gmra.mxu0 %v2147
    %v2184 = vpop.f32.mrf.mxu0
    %v2185 = vadd.f32 %v2038, %v2184
    %v2186 = vpop.f32.mrf.mxu0
    %2187 = vdwg.mxu0
    %2188 = vmatpush.bf16.msra.mxu0 0
    %2189 = vmatpush.bf16.msra.mxu0 0
    %2190 = vmatpush.bf16.msra.mxu0 0
    %2191 = vmatpush.bf16.msra.mxu0 0
    %2192 = vmatpush.bf16.msra.mxu0 0
    %2193 = vmatpush.bf16.msra.mxu0 0
    %2194 = vmatpush.bf16.msra.mxu0 %v2122
    %2195 = vmatpush.bf16.msra.mxu0 %v2113
    %2196 = vmatmul.bf16.gmra.mxu0 %v2147
    %v2197 = vpop.f32.mrf.mxu0
    %v2198 = vadd.f32 %v2039, %v2197
    %v2199 = vpop.f32.mrf.mxu0
    %2200 = vdwg.mxu0
    %2201 = vmatpush.bf16.msra.mxu0 0
    %2202 = vmatpush.bf16.msra.mxu0 0
    %2203 = vmatpush.bf16.msra.mxu0 0
    %2204 = vmatpush.bf16.msra.mxu0 0
    %2205 = vmatpush.bf16.msra.mxu0 0
    %2206 = vmatpush.bf16.msra.mxu0 0
    %2207 = vmatpush.bf16.msra.mxu0 %v2123
    %2208 = vmatpush.bf16.msra.mxu0 %v2114
    %2209 = vmatmul.bf16.gmra.mxu0 %v2147
    %v2210 = vpop.f32.mrf.mxu0
    %v2211 = vadd.f32 %v2040, %v2210
    %v2212 = vpop.f32.mrf.mxu0
    %2213 = vdwg.mxu0
    %2214 = vmatpush.bf16.msra.mxu0 0
    %2215 = vmatpush.bf16.msra.mxu0 0
    %2216 = vmatpush.bf16.msra.mxu0 0
    %2217 = vmatpush.bf16.msra.mxu0 0
    %2218 = vmatpush.bf16.msra.mxu0 0
    %2219 = vmatpush.bf16.msra.mxu0 0
    %2220 = vmatpush.bf16.msra.mxu0 %v2124
    %2221 = vmatpush.bf16.msra.mxu0 %v2115
    %2222 = vmatmul.bf16.gmra.mxu0 %v2147
    %v2223 = vpop.f32.mrf.mxu0
    %v2224 = vadd.f32 %v2041, %v2223
    %v2225 = vpop.f32.mrf.mxu0
    %2226 = vdwg.mxu0
    %2227 = vmatpush.bf16.msra.mxu0 0
    %2228 = vmatpush.bf16.msra.mxu0 0
    %2229 = vmatpush.bf16.msra.mxu0 0
    %2230 = vmatpush.bf16.msra.mxu0 0
    %2231 = vmatpush.bf16.msra.mxu0 0
    %2232 = vmatpush.bf16.msra.mxu0 0
    %2233 = vmatpush.bf16.msra.mxu0 %v2125
    %2234 = vmatpush.bf16.msra.mxu0 %v2116
    %2235 = vmatmul.bf16.gmra.mxu0 %v2147
    %v2236 = vpop.f32.mrf.mxu0
    %v2237 = vadd.f32 %v2042, %v2236
    %v2238 = vpop.f32.mrf.mxu0
    %2239 = vdwg.mxu0
    %2240 = vmatpush.bf16.msra.mxu0 0
    %2241 = vmatpush.bf16.msra.mxu0 0
    %2242 = vmatpush.bf16.msra.mxu0 0
    %2243 = vmatpush.bf16.msra.mxu0 0
    %2244 = vmatpush.bf16.msra.mxu0 0
    %2245 = vmatpush.bf16.msra.mxu0 0
    %2246 = vmatpush.bf16.msra.mxu0 %v2126
    %2247 = vmatpush.bf16.msra.mxu0 %v2117
    %2248 = vmatmul.bf16.gmra.mxu0 %v2147
    %v2249 = vpop.f32.mrf.mxu0
    %v2250 = vadd.f32 %v2043, %v2249
    %v2251 = vpop.f32.mrf.mxu0
    %2252 = vdwg.mxu0
    %2253 = vmatpush.bf16.msra.mxu0 0
    %2254 = vmatpush.bf16.msra.mxu0 0
    %2255 = vmatpush.bf16.msra.mxu0 0
    %2256 = vmatpush.bf16.msra.mxu0 0
    %2257 = vmatpush.bf16.msra.mxu0 0
    %2258 = vmatpush.bf16.msra.mxu0 0
    %2259 = vmatpush.bf16.msra.mxu0 %v2127
    %2260 = vmatpush.bf16.msra.mxu0 %v2118
    %2261 = vmatmul.bf16.gmra.mxu0 %v2147
    %v2262 = vpop.f32.mrf.mxu0
    %v2263 = vadd.f32 %v2044, %v2262
    %v2264 = vpop.f32.mrf.mxu0
    %2265 = vdwg.mxu0
    %v2266 = vld [vmem:[%s12] sm:$0xff]
    %v2267 = vld [vmem:[%s12 + $0x8] sm:$0xff]
    %v2268 = vld [vmem:[%s12 + $0x10] sm:$0xff]
    %v2269 = vld [vmem:[%s12 + $0x18] sm:$0xff]
    %v2270 = vld [vmem:[%s12 + $0x20] sm:$0xf]
    %v2271 = vld [vmem:[%s12 + $0x24] sm:$0xff]
    %v2272 = vld [vmem:[%s12 + $0x2c] sm:$0xff]
    %v2273 = vld [vmem:[%s12 + $0x34] sm:$0xff]
    %v2274 = vld [vmem:[%s12 + $0x3c] sm:$0xff]
    %v2275 = vld [vmem:[%s12 + $0x44] sm:$0xf]
    %v2276 = vld [vmem:[%s12 + $0x48] sm:$0xff]
    %v2277 = vld [vmem:[%s12 + $0x50] sm:$0xff]
    %v2278 = vld [vmem:[%s12 + $0x58] sm:$0xff]
    %v2279 = vld [vmem:[%s12 + $0x60] sm:$0xff]
    %v2280 = vld [vmem:[%s12 + $0x68] sm:$0xf]
    %v2281 = vld [vmem:[%s12 + $0x6c] sm:$0xff]
    %v2282 = vld [vmem:[%s12 + $0x74] sm:$0xff]
    %v2283 = vld [vmem:[%s12 + $0x7c] sm:$0xff]
    %v2284 = vld [vmem:[%s12 + $0x84] sm:$0xff]
    %v2285 = vld [vmem:[%s12 + $0x8c] sm:$0xf]
    %v2286 = vld [vmem:[%s12 + $0x90] sm:$0xff]
    %v2287 = vld [vmem:[%s12 + $0x98] sm:$0xff]
    %v2288 = vld [vmem:[%s12 + $0xa0] sm:$0xff]
    %v2289 = vld [vmem:[%s12 + $0xa8] sm:$0xff]
    %v2290 = vld [vmem:[%s12 + $0xb0] sm:$0xf]
    %v2291 = vld [vmem:[%s12 + $0xb4] sm:$0xff]
    %v2292 = vld [vmem:[%s12 + $0xbc] sm:$0xff]
    %v2293 = vld [vmem:[%s12 + $0xc4] sm:$0xff]
    %v2294 = vld [vmem:[%s12 + $0xcc] sm:$0xff]
    %v2295 = vld [vmem:[%s12 + $0xd4] sm:$0xf]
    %v2296 = vld [vmem:[%s12 + $0xd8] sm:$0xff]
    %v2297 = vld [vmem:[%s12 + $0xe0] sm:$0xff]
    %v2298 = vld [vmem:[%s12 + $0xe8] sm:$0xff]
    %v2299 = vld [vmem:[%s12 + $0xf0] sm:$0xff]
    %v2300 = vld [vmem:[%s12 + $0xf8] sm:$0xf]
    %v2301 = vld [vmem:[%s12 + $0xfc] sm:$0xff]
    %v2302 = vld [vmem:[%s12 + $0x104] sm:$0xff]
    %v2303 = vld [vmem:[%s12 + $0x10c] sm:$0xff]
    %v2304 = vld [vmem:[%s12 + $0x114] sm:$0xff]
    %v2305 = vld [vmem:[%s12 + $0x11c] sm:$0xf]
    %v2306 = vld [vmem:[%s12 + $0x120] sm:$0xff]
    %v2307 = vld [vmem:[%s12 + $0x128] sm:$0xff]
    %v2308 = vld [vmem:[%s12 + $0x130] sm:$0xff]
    %v2309 = vld [vmem:[%s12 + $0x138] sm:$0xff]
    %v2310 = vld [vmem:[%s12 + $0x140] sm:$0xf]
    %v2311 = vld [vmem:[%s12 + $0x144] sm:$0xff]
    %v2312 = vld [vmem:[%s12 + $0x14c] sm:$0xff]
    %v2313 = vld [vmem:[%s12 + $0x154] sm:$0xff]
    %v2314 = vld [vmem:[%s12 + $0x15c] sm:$0xff]
    %v2315 = vld [vmem:[%s12 + $0x164] sm:$0xf]
    %v2316 = vld [vmem:[%s12 + $0x168] sm:$0xff]
    %v2317 = vld [vmem:[%s12 + $0x170] sm:$0xff]
    %v2318 = vld [vmem:[%s12 + $0x178] sm:$0xff]
    %v2319 = vld [vmem:[%s12 + $0x180] sm:$0xff]
    %v2320 = vld [vmem:[%s12 + $0x188] sm:$0xf]
    %v2321 = vld [vmem:[%s12 + $0x18c] sm:$0xff]
    %v2322 = vld [vmem:[%s12 + $0x194] sm:$0xff]
    %v2323 = vld [vmem:[%s12 + $0x19c] sm:$0xff]
    %v2324 = vld [vmem:[%s12 + $0x1a4] sm:$0xff]
    %v2325 = vld [vmem:[%s12 + $0x1ac] sm:$0xf]
    %v2326 = vld [vmem:[%s12 + $0x1b0] sm:$0xff]
    %v2327 = vld [vmem:[%s12 + $0x1b8] sm:$0xff]
    %v2328 = vld [vmem:[%s12 + $0x1c0] sm:$0xff]
    %v2329 = vld [vmem:[%s12 + $0x1c8] sm:$0xff]
    %v2330 = vld [vmem:[%s12 + $0x1d0] sm:$0xf]
    %v2331 = vld [vmem:[%s12 + $0x1d4] sm:$0xff]
    %v2332 = vld [vmem:[%s12 + $0x1dc] sm:$0xff]
    %v2333 = vld [vmem:[%s12 + $0x1e4] sm:$0xff]
    %v2334 = vld [vmem:[%s12 + $0x1ec] sm:$0xff]
    %v2335 = vld [vmem:[%s12 + $0x1f4] sm:$0xf]
    %v2336 = vld [vmem:[%s12 + $0x1f8] sm:$0xff]
    %v2337 = vld [vmem:[%s12 + $0x200] sm:$0xff]
    %v2338 = vld [vmem:[%s12 + $0x208] sm:$0xff]
    %v2339 = vld [vmem:[%s12 + $0x210] sm:$0xff]
    %v2340 = vld [vmem:[%s12 + $0x218] sm:$0xf]
    %v2341 = vld [vmem:[%s12 + $0x21c] sm:$0xff]
    %v2342 = vld [vmem:[%s12 + $0x224] sm:$0xff]
    %v2343 = vld [vmem:[%s12 + $0x22c] sm:$0xff]
    %v2344 = vld [vmem:[%s12 + $0x234] sm:$0xff]
    %v2345 = vld [vmem:[%s12 + $0x23c] sm:$0xf]
    %v2346 = vld [vmem:[%s12 + $0x240] sm:$0xff]
    %v2347 = vld [vmem:[%s12 + $0x248] sm:$0xff]
    %v2348 = vld [vmem:[%s12 + $0x250] sm:$0xff]
    %v2349 = vld [vmem:[%s12 + $0x258] sm:$0xff]
    %v2350 = vld [vmem:[%s12 + $0x260] sm:$0xf]
    %v2351 = vld [vmem:[%s12 + $0x264] sm:$0xff]
    %v2352 = vld [vmem:[%s12 + $0x26c] sm:$0xff]
    %v2353 = vld [vmem:[%s12 + $0x274] sm:$0xff]
    %v2354 = vld [vmem:[%s12 + $0x27c] sm:$0xff]
    %v2355 = vld [vmem:[%s12 + $0x284] sm:$0xf]
    %v2356 = vld [vmem:[%s12 + $0x288] sm:$0xff]
    %v2357 = vld [vmem:[%s12 + $0x290] sm:$0xff]
    %v2358 = vld [vmem:[%s12 + $0x298] sm:$0xff]
    %v2359 = vld [vmem:[%s12 + $0x2a0] sm:$0xff]
    %v2360 = vld [vmem:[%s12 + $0x2a8] sm:$0xf]
    %v2361 = vld [vmem:[%s12 + $0x2ac] sm:$0xff]
    %v2362 = vld [vmem:[%s12 + $0x2b4] sm:$0xff]
    %v2363 = vld [vmem:[%s12 + $0x2bc] sm:$0xff]
    %v2364 = vld [vmem:[%s12 + $0x2c4] sm:$0xff]
    %v2365 = vld [vmem:[%s12 + $0x2cc] sm:$0xf]
    %v2366 = vld [vmem:[%s12 + $0x2d0] sm:$0xff]
    %v2367 = vld [vmem:[%s12 + $0x2d8] sm:$0xff]
    %v2368 = vld [vmem:[%s12 + $0x2e0] sm:$0xff]
    %v2369 = vld [vmem:[%s12 + $0x2e8] sm:$0xff]
    %v2370 = vld [vmem:[%s12 + $0x2f0] sm:$0xf]
    %v2371 = vld [vmem:[%s12 + $0x2f4] sm:$0xff]
    %v2372 = vld [vmem:[%s12 + $0x2fc] sm:$0xff]
    %v2373 = vld [vmem:[%s12 + $0x304] sm:$0xff]
    %v2374 = vld [vmem:[%s12 + $0x30c] sm:$0xff]
    %v2375 = vld [vmem:[%s12 + $0x314] sm:$0xf]
    %v2376 = vld [vmem:[%s12 + $0x318] sm:$0xff]
    %v2377 = vld [vmem:[%s12 + $0x320] sm:$0xff]
    %v2378 = vld [vmem:[%s12 + $0x328] sm:$0xff]
    %v2379 = vld [vmem:[%s12 + $0x330] sm:$0xff]
    %v2380 = vld [vmem:[%s12 + $0x338] sm:$0xf]
    %v2381 = vld [vmem:[%s12 + $0x33c] sm:$0xff]
    %v2382 = vld [vmem:[%s12 + $0x344] sm:$0xff]
    %v2383 = vld [vmem:[%s12 + $0x34c] sm:$0xff]
    %v2384 = vld [vmem:[%s12 + $0x354] sm:$0xff]
    %v2385 = vld [vmem:[%s12 + $0x35c] sm:$0xf]
    %v2386 = vld [vmem:[%s12 + $0x360] sm:$0xff]
    %v2387 = vld [vmem:[%s12 + $0x368] sm:$0xff]
    %v2388 = vld [vmem:[%s12 + $0x370] sm:$0xff]
    %v2389 = vld [vmem:[%s12 + $0x378] sm:$0xff]
    %v2390 = vld [vmem:[%s12 + $0x380] sm:$0xf]
    %v2391 = vld [vmem:[%s12 + $0x384] sm:$0xff]
    %v2392 = vld [vmem:[%s12 + $0x38c] sm:$0xff]
    %v2393 = vld [vmem:[%s12 + $0x394] sm:$0xff]
    %v2394 = vld [vmem:[%s12 + $0x39c] sm:$0xff]
    %v2395 = vld [vmem:[%s12 + $0x3a4] sm:$0xf]
    %v2396 = vld [vmem:[%s12 + $0x3a8] sm:$0xff]
    %v2397 = vld [vmem:[%s12 + $0x3b0] sm:$0xff]
    %v2398 = vld [vmem:[%s12 + $0x3b8] sm:$0xff]
    %v2399 = vld [vmem:[%s12 + $0x3c0] sm:$0xff]
    %v2400 = vld [vmem:[%s12 + $0x3c8] sm:$0xf]
    %v2401 = vld [vmem:[%s12 + $0x3cc] sm:$0xff]
    %v2402 = vld [vmem:[%s12 + $0x3d4] sm:$0xff]
    %v2403 = vld [vmem:[%s12 + $0x3dc] sm:$0xff]
    %v2404 = vld [vmem:[%s12 + $0x3e4] sm:$0xff]
    %v2405 = vld [vmem:[%s12 + $0x3ec] sm:$0xf]
    %v2406 = vld [vmem:[%s12 + $0x3f0] sm:$0xff]
    %v2407 = vld [vmem:[%s12 + $0x3f8] sm:$0xff]
    %v2408 = vld [vmem:[%s12 + $0x400] sm:$0xff]
    %v2409 = vld [vmem:[%s12 + $0x408] sm:$0xff]
    %v2410 = vld [vmem:[%s12 + $0x410] sm:$0xf]
    %v2411 = vld [vmem:[%s12 + $0x414] sm:$0xff]
    %v2412 = vld [vmem:[%s12 + $0x41c] sm:$0xff]
    %v2413 = vld [vmem:[%s12 + $0x424] sm:$0xff]
    %v2414 = vld [vmem:[%s12 + $0x42c] sm:$0xff]
    %v2415 = vld [vmem:[%s12 + $0x434] sm:$0xf]
    %v2416 = vld [vmem:[%s12 + $0x438] sm:$0xff]
    %v2417 = vld [vmem:[%s12 + $0x440] sm:$0xff]
    %v2418 = vld [vmem:[%s12 + $0x448] sm:$0xff]
    %v2419 = vld [vmem:[%s12 + $0x450] sm:$0xff]
    %v2420 = vld [vmem:[%s12 + $0x458] sm:$0xf]
    %v2421 = vld [vmem:[%s12 + $0x45c] sm:$0xff]
    %v2422 = vld [vmem:[%s12 + $0x464] sm:$0xff]
    %v2423 = vld [vmem:[%s12 + $0x46c] sm:$0xff]
    %v2424 = vld [vmem:[%s12 + $0x474] sm:$0xff]
    %v2425 = vld [vmem:[%s12 + $0x47c] sm:$0xf]
    %v2426 = vld [vmem:[%s12 + $0x480] sm:$0xff]
    %v2427 = vld [vmem:[%s12 + $0x488] sm:$0xff]
    %v2428 = vld [vmem:[%s12 + $0x490] sm:$0xff]
    %v2429 = vld [vmem:[%s12 + $0x498] sm:$0xff]
    %v2430 = vld [vmem:[%s12 + $0x4a0] sm:$0xf]
    %v2431 = vld [vmem:[%s12 + $0x4a4] sm:$0xff]
    %v2432 = vld [vmem:[%s12 + $0x4ac] sm:$0xff]
    %v2433 = vld [vmem:[%s12 + $0x4b4] sm:$0xff]
    %v2434 = vld [vmem:[%s12 + $0x4bc] sm:$0xff]
    %v2435 = vld [vmem:[%s12 + $0x4c4] sm:$0xf]
    %v2436 = vld [vmem:[%s12 + $0x4c8] sm:$0xff]
    %v2437 = vld [vmem:[%s12 + $0x4d0] sm:$0xff]
    %v2438 = vld [vmem:[%s12 + $0x4d8] sm:$0xff]
    %v2439 = vld [vmem:[%s12 + $0x4e0] sm:$0xff]
    %v2440 = vld [vmem:[%s12 + $0x4e8] sm:$0xf]
    %v2441 = vld [vmem:[%s12 + $0x4ec] sm:$0xff]
    %v2442 = vld [vmem:[%s12 + $0x4f4] sm:$0xff]
    %v2443 = vld [vmem:[%s12 + $0x4fc] sm:$0xff]
    %v2444 = vld [vmem:[%s12 + $0x504] sm:$0xff]
    %v2445 = vld [vmem:[%s12 + $0x50c] sm:$0xf]
    %v2446 = vld [vmem:[%s12 + $0x510] sm:$0xff]
    %v2447 = vld [vmem:[%s12 + $0x518] sm:$0xff]
    %v2448 = vld [vmem:[%s12 + $0x520] sm:$0xff]
    %v2449 = vld [vmem:[%s12 + $0x528] sm:$0xff]
    %v2450 = vld [vmem:[%s12 + $0x530] sm:$0xf]
    %v2451 = vld [vmem:[%s12 + $0x534] sm:$0xff]
    %v2452 = vld [vmem:[%s12 + $0x53c] sm:$0xff]
    %v2453 = vld [vmem:[%s12 + $0x544] sm:$0xff]
    %v2454 = vld [vmem:[%s12 + $0x54c] sm:$0xff]
    %v2455 = vld [vmem:[%s12 + $0x554] sm:$0xf]
    %v2456 = vld [vmem:[%s12 + $0x558] sm:$0xff]
    %v2457 = vld [vmem:[%s12 + $0x560] sm:$0xff]
    %v2458 = vld [vmem:[%s12 + $0x568] sm:$0xff]
    %v2459 = vld [vmem:[%s12 + $0x570] sm:$0xff]
    %v2460 = vld [vmem:[%s12 + $0x578] sm:$0xf]
    %v2461 = vld [vmem:[%s12 + $0x57c] sm:$0xff]
    %v2462 = vld [vmem:[%s12 + $0x584] sm:$0xff]
    %v2463 = vld [vmem:[%s12 + $0x58c] sm:$0xff]
    %v2464 = vld [vmem:[%s12 + $0x594] sm:$0xff]
    %v2465 = vld [vmem:[%s12 + $0x59c] sm:$0xf]
    %v2466 = vld [vmem:[%s12 + $0x5a0] sm:$0xff]
    %v2467 = vld [vmem:[%s12 + $0x5a8] sm:$0xff]
    %v2468 = vld [vmem:[%s12 + $0x5b0] sm:$0xff]
    %v2469 = vld [vmem:[%s12 + $0x5b8] sm:$0xff]
    %v2470 = vld [vmem:[%s12 + $0x5c0] sm:$0xf]
    %v2471 = vld [vmem:[%s12 + $0x5c4] sm:$0xff]
    %v2472 = vld [vmem:[%s12 + $0x5cc] sm:$0xff]
    %v2473 = vld [vmem:[%s12 + $0x5d4] sm:$0xff]
    %v2474 = vld [vmem:[%s12 + $0x5dc] sm:$0xff]
    %v2475 = vld [vmem:[%s12 + $0x5e4] sm:$0xf]
    %v2476 = vld [vmem:[%s12 + $0x5e8] sm:$0xff]
    %v2477 = vld [vmem:[%s12 + $0x5f0] sm:$0xff]
    %v2478 = vld [vmem:[%s12 + $0x5f8] sm:$0xff]
    %v2479 = vld [vmem:[%s12 + $0x600] sm:$0xff]
    %v2480 = vld [vmem:[%s12 + $0x608] sm:$0xf]
    %v2481 = vld [vmem:[%s12 + $0x60c] sm:$0xff]
    %v2482 = vld [vmem:[%s12 + $0x614] sm:$0xff]
    %v2483 = vld [vmem:[%s12 + $0x61c] sm:$0xff]
    %v2484 = vld [vmem:[%s12 + $0x624] sm:$0xff]
    %v2485 = vld [vmem:[%s12 + $0x62c] sm:$0xf]
    %v2486 = vld [vmem:[%s12 + $0x630] sm:$0xff]
    %v2487 = vld [vmem:[%s12 + $0x638] sm:$0xff]
    %v2488 = vld [vmem:[%s12 + $0x640] sm:$0xff]
    %v2489 = vld [vmem:[%s12 + $0x648] sm:$0xff]
    %v2490 = vld [vmem:[%s12 + $0x650] sm:$0xf]
    %v2491 = vld [vmem:[%s12 + $0x654] sm:$0xff]
    %v2492 = vld [vmem:[%s12 + $0x65c] sm:$0xff]
    %v2493 = vld [vmem:[%s12 + $0x664] sm:$0xff]
    %v2494 = vld [vmem:[%s12 + $0x66c] sm:$0xff]
    %v2495 = vld [vmem:[%s12 + $0x674] sm:$0xf]
    %v2496 = vld [vmem:[%s12 + $0x678] sm:$0xff]
    %v2497 = vld [vmem:[%s12 + $0x680] sm:$0xff]
    %v2498 = vld [vmem:[%s12 + $0x688] sm:$0xff]
    %v2499 = vld [vmem:[%s12 + $0x690] sm:$0xff]
    %v2500 = vld [vmem:[%s12 + $0x698] sm:$0xf]
    %v2501 = vld [vmem:[%s12 + $0x69c] sm:$0xff]
    %v2502 = vld [vmem:[%s12 + $0x6a4] sm:$0xff]
    %v2503 = vld [vmem:[%s12 + $0x6ac] sm:$0xff]
    %v2504 = vld [vmem:[%s12 + $0x6b4] sm:$0xff]
    %v2505 = vld [vmem:[%s12 + $0x6bc] sm:$0xf]
    %v2506 = vld [vmem:[%s14] sm:$0xff]
    %v2507 = vld [vmem:[%s14 + $0x8] sm:$0x1]
    %v2508 = vadd.f32 %v1528, %v2159
    %v2509 = vadd.f32 %v1586, %v2172
    %v2510 = vadd.f32 %v1644, %v2185
    %v2511 = vadd.f32 %v1702, %v2198
    %v2512 = vadd.f32 %v1760, %v2211
    %v2513 = vadd.f32 %v1818, %v2224
    %v2514 = vadd.f32 %v1876, %v2237
    %v2515 = vadd.f32 %v1934, %v2250
    %v2516 = vadd.f32 %v1992, %v2263
    %v2519 = vperm.slane %v2506, 0
    %v2520 = vperm.slane %v2506, 1
    %v2521 = vperm.slane %v2506, 2
    %v2522 = vperm.slane %v2506, 3
    %v2523 = vperm.slane %v2506, 4
    %v2524 = vperm.slane %v2506, 5
    %v2525 = vperm.slane %v2506, 6
    %v2526 = vperm.slane %v2506, 7
    %v2527 = vperm.slane %v2507, 0
    %v2777 = vunpack.c.l.b16 %v2266
    %v2778 = vunpack.c.h.b16 %v2266
    %v2779 = vunpack.c.l.b16 %v2267
    %v2780 = vunpack.c.h.b16 %v2267
    %v2781 = vunpack.c.l.b16 %v2268
    %v2782 = vunpack.c.h.b16 %v2268
    %v2783 = vunpack.c.l.b16 %v2269
    %v2784 = vunpack.c.h.b16 %v2269
    %v2785 = vunpack.c.l.b16 %v2270
    %v2786 = vunpack.c.l.b16 %v2271
    %v2787 = vunpack.c.h.b16 %v2271
    %v2788 = vunpack.c.l.b16 %v2272
    %v2789 = vunpack.c.h.b16 %v2272
    %v2790 = vunpack.c.l.b16 %v2273
    %v2791 = vunpack.c.h.b16 %v2273
    %v2792 = vunpack.c.l.b16 %v2274
    %v2793 = vunpack.c.h.b16 %v2274
    %v2794 = vunpack.c.l.b16 %v2275
    %v2795 = vunpack.c.l.b16 %v2276
    %v2796 = vunpack.c.h.b16 %v2276
    %v2797 = vunpack.c.l.b16 %v2277
    %v2798 = vunpack.c.h.b16 %v2277
    %v2799 = vunpack.c.l.b16 %v2278
    %v2800 = vunpack.c.h.b16 %v2278
    %v2801 = vunpack.c.l.b16 %v2279
    %v2802 = vunpack.c.h.b16 %v2279
    %v2803 = vunpack.c.l.b16 %v2280
    %v2804 = vunpack.c.l.b16 %v2281
    %v2805 = vunpack.c.h.b16 %v2281
    %v2806 = vunpack.c.l.b16 %v2282
    %v2807 = vunpack.c.h.b16 %v2282
    %v2808 = vunpack.c.l.b16 %v2283
    %v2809 = vunpack.c.h.b16 %v2283
    %v2810 = vunpack.c.l.b16 %v2284
    %v2811 = vunpack.c.h.b16 %v2284
    %v2812 = vunpack.c.l.b16 %v2285
    %v2813 = vunpack.c.l.b16 %v2286
    %v2814 = vunpack.c.h.b16 %v2286
    %v2815 = vunpack.c.l.b16 %v2287
    %v2816 = vunpack.c.h.b16 %v2287
    %v2817 = vunpack.c.l.b16 %v2288
    %v2818 = vunpack.c.h.b16 %v2288
    %v2819 = vunpack.c.l.b16 %v2289
    %v2820 = vunpack.c.h.b16 %v2289
    %v2821 = vunpack.c.l.b16 %v2290
    %v2822 = vunpack.c.l.b16 %v2291
    %v2823 = vunpack.c.h.b16 %v2291
    %v2824 = vunpack.c.l.b16 %v2292
    %v2825 = vunpack.c.h.b16 %v2292
    %v2826 = vunpack.c.l.b16 %v2293
    %v2827 = vunpack.c.h.b16 %v2293
    %v2828 = vunpack.c.l.b16 %v2294
    %v2829 = vunpack.c.h.b16 %v2294
    %v2830 = vunpack.c.l.b16 %v2295
    %v2831 = vunpack.c.l.b16 %v2296
    %v2832 = vunpack.c.h.b16 %v2296
    %v2833 = vunpack.c.l.b16 %v2297
    %v2834 = vunpack.c.h.b16 %v2297
    %v2835 = vunpack.c.l.b16 %v2298
    %v2836 = vunpack.c.h.b16 %v2298
    %v2837 = vunpack.c.l.b16 %v2299
    %v2838 = vunpack.c.h.b16 %v2299
    %v2839 = vunpack.c.l.b16 %v2300
    %v2840 = vunpack.c.l.b16 %v2301
    %v2841 = vunpack.c.h.b16 %v2301
    %v2842 = vunpack.c.l.b16 %v2302
    %v2843 = vunpack.c.h.b16 %v2302
    %v2844 = vunpack.c.l.b16 %v2303
    %v2845 = vunpack.c.h.b16 %v2303
    %v2846 = vunpack.c.l.b16 %v2304
    %v2847 = vunpack.c.h.b16 %v2304
    %v2848 = vunpack.c.l.b16 %v2305
    %v2849 = vunpack.c.l.b16 %v2306
    %v2850 = vunpack.c.h.b16 %v2306
    %v2851 = vunpack.c.l.b16 %v2307
    %v2852 = vunpack.c.h.b16 %v2307
    %v2853 = vunpack.c.l.b16 %v2308
    %v2854 = vunpack.c.h.b16 %v2308
    %v2855 = vunpack.c.l.b16 %v2309
    %v2856 = vunpack.c.h.b16 %v2309
    %v2857 = vunpack.c.l.b16 %v2310
    %v2858 = vunpack.c.l.b16 %v2311
    %v2859 = vunpack.c.h.b16 %v2311
    %v2860 = vunpack.c.l.b16 %v2312
    %v2861 = vunpack.c.h.b16 %v2312
    %v2862 = vunpack.c.l.b16 %v2313
    %v2863 = vunpack.c.h.b16 %v2313
    %v2864 = vunpack.c.l.b16 %v2314
    %v2865 = vunpack.c.h.b16 %v2314
    %v2866 = vunpack.c.l.b16 %v2315
    %v2867 = vunpack.c.l.b16 %v2316
    %v2868 = vunpack.c.h.b16 %v2316
    %v2869 = vunpack.c.l.b16 %v2317
    %v2870 = vunpack.c.h.b16 %v2317
    %v2871 = vunpack.c.l.b16 %v2318
    %v2872 = vunpack.c.h.b16 %v2318
    %v2873 = vunpack.c.l.b16 %v2319
    %v2874 = vunpack.c.h.b16 %v2319
    %v2875 = vunpack.c.l.b16 %v2320
    %v2876 = vunpack.c.l.b16 %v2321
    %v2877 = vunpack.c.h.b16 %v2321
    %v2878 = vunpack.c.l.b16 %v2322
    %v2879 = vunpack.c.h.b16 %v2322
    %v2880 = vunpack.c.l.b16 %v2323
    %v2881 = vunpack.c.h.b16 %v2323
    %v2882 = vunpack.c.l.b16 %v2324
    %v2883 = vunpack.c.h.b16 %v2324
    %v2884 = vunpack.c.l.b16 %v2325
    %v2885 = vunpack.c.l.b16 %v2326
    %v2886 = vunpack.c.h.b16 %v2326
    %v2887 = vunpack.c.l.b16 %v2327
    %v2888 = vunpack.c.h.b16 %v2327
    %v2889 = vunpack.c.l.b16 %v2328
    %v2890 = vunpack.c.h.b16 %v2328
    %v2891 = vunpack.c.l.b16 %v2329
    %v2892 = vunpack.c.h.b16 %v2329
    %v2893 = vunpack.c.l.b16 %v2330
    %v2894 = vunpack.c.l.b16 %v2331
    %v2895 = vunpack.c.h.b16 %v2331
    %v2896 = vunpack.c.l.b16 %v2332
    %v2897 = vunpack.c.h.b16 %v2332
    %v2898 = vunpack.c.l.b16 %v2333
    %v2899 = vunpack.c.h.b16 %v2333
    %v2900 = vunpack.c.l.b16 %v2334
    %v2901 = vunpack.c.h.b16 %v2334
    %v2902 = vunpack.c.l.b16 %v2335
    %v2903 = vunpack.c.l.b16 %v2336
    %v2904 = vunpack.c.h.b16 %v2336
    %v2905 = vunpack.c.l.b16 %v2337
    %v2906 = vunpack.c.h.b16 %v2337
    %v2907 = vunpack.c.l.b16 %v2338
    %v2908 = vunpack.c.h.b16 %v2338
    %v2909 = vunpack.c.l.b16 %v2339
    %v2910 = vunpack.c.h.b16 %v2339
    %v2911 = vunpack.c.l.b16 %v2340
    %v2912 = vunpack.c.l.b16 %v2341
    %v2913 = vunpack.c.h.b16 %v2341
    %v2914 = vunpack.c.l.b16 %v2342
    %v2915 = vunpack.c.h.b16 %v2342
    %v2916 = vunpack.c.l.b16 %v2343
    %v2917 = vunpack.c.h.b16 %v2343
    %v2918 = vunpack.c.l.b16 %v2344
    %v2919 = vunpack.c.h.b16 %v2344
    %v2920 = vunpack.c.l.b16 %v2345
    %v2921 = vunpack.c.l.b16 %v2346
    %v2922 = vunpack.c.h.b16 %v2346
    %v2923 = vunpack.c.l.b16 %v2347
    %v2924 = vunpack.c.h.b16 %v2347
    %v2925 = vunpack.c.l.b16 %v2348
    %v2926 = vunpack.c.h.b16 %v2348
    %v2927 = vunpack.c.l.b16 %v2349
    %v2928 = vunpack.c.h.b16 %v2349
    %v2929 = vunpack.c.l.b16 %v2350
    %v2930 = vunpack.c.l.b16 %v2351
    %v2931 = vunpack.c.h.b16 %v2351
    %v2932 = vunpack.c.l.b16 %v2352
    %v2933 = vunpack.c.h.b16 %v2352
    %v2934 = vunpack.c.l.b16 %v2353
    %v2935 = vunpack.c.h.b16 %v2353
    %v2936 = vunpack.c.l.b16 %v2354
    %v2937 = vunpack.c.h.b16 %v2354
    %v2938 = vunpack.c.l.b16 %v2355
    %v2939 = vunpack.c.l.b16 %v2356
    %v2940 = vunpack.c.h.b16 %v2356
    %v2941 = vunpack.c.l.b16 %v2357
    %v2942 = vunpack.c.h.b16 %v2357
    %v2943 = vunpack.c.l.b16 %v2358
    %v2944 = vunpack.c.h.b16 %v2358
    %v2945 = vunpack.c.l.b16 %v2359
    %v2946 = vunpack.c.h.b16 %v2359
    %v2947 = vunpack.c.l.b16 %v2360
    %v2948 = vunpack.c.l.b16 %v2361
    %v2949 = vunpack.c.h.b16 %v2361
    %v2950 = vunpack.c.l.b16 %v2362
    %v2951 = vunpack.c.h.b16 %v2362
    %v2952 = vunpack.c.l.b16 %v2363
    %v2953 = vunpack.c.h.b16 %v2363
    %v2954 = vunpack.c.l.b16 %v2364
    %v2955 = vunpack.c.h.b16 %v2364
    %v2956 = vunpack.c.l.b16 %v2365
    %v2957 = vunpack.c.l.b16 %v2366
    %v2958 = vunpack.c.h.b16 %v2366
    %v2959 = vunpack.c.l.b16 %v2367
    %v2960 = vunpack.c.h.b16 %v2367
    %v2961 = vunpack.c.l.b16 %v2368
    %v2962 = vunpack.c.h.b16 %v2368
    %v2963 = vunpack.c.l.b16 %v2369
    %v2964 = vunpack.c.h.b16 %v2369
    %v2965 = vunpack.c.l.b16 %v2370
    %v2966 = vunpack.c.l.b16 %v2371
    %v2967 = vunpack.c.h.b16 %v2371
    %v2968 = vunpack.c.l.b16 %v2372
    %v2969 = vunpack.c.h.b16 %v2372
    %v2970 = vunpack.c.l.b16 %v2373
    %v2971 = vunpack.c.h.b16 %v2373
    %v2972 = vunpack.c.l.b16 %v2374
    %v2973 = vunpack.c.h.b16 %v2374
    %v2974 = vunpack.c.l.b16 %v2375
    %v2975 = vunpack.c.l.b16 %v2376
    %v2976 = vunpack.c.h.b16 %v2376
    %v2977 = vunpack.c.l.b16 %v2377
    %v2978 = vunpack.c.h.b16 %v2377
    %v2979 = vunpack.c.l.b16 %v2378
    %v2980 = vunpack.c.h.b16 %v2378
    %v2981 = vunpack.c.l.b16 %v2379
    %v2982 = vunpack.c.h.b16 %v2379
    %v2983 = vunpack.c.l.b16 %v2380
    %v2984 = vunpack.c.l.b16 %v2381
    %v2985 = vunpack.c.h.b16 %v2381
    %v2986 = vunpack.c.l.b16 %v2382
    %v2987 = vunpack.c.h.b16 %v2382
    %v2988 = vunpack.c.l.b16 %v2383
    %v2989 = vunpack.c.h.b16 %v2383
    %v2990 = vunpack.c.l.b16 %v2384
    %v2991 = vunpack.c.h.b16 %v2384
    %v2992 = vunpack.c.l.b16 %v2385
    %v2993 = vunpack.c.l.b16 %v2386
    %v2994 = vunpack.c.h.b16 %v2386
    %v2995 = vunpack.c.l.b16 %v2387
    %v2996 = vunpack.c.h.b16 %v2387
    %v2997 = vunpack.c.l.b16 %v2388
    %v2998 = vunpack.c.h.b16 %v2388
    %v2999 = vunpack.c.l.b16 %v2389
    %v3000 = vunpack.c.h.b16 %v2389
    %v3001 = vunpack.c.l.b16 %v2390
    %v3002 = vunpack.c.l.b16 %v2391
    %v3003 = vunpack.c.h.b16 %v2391
    %v3004 = vunpack.c.l.b16 %v2392
    %v3005 = vunpack.c.h.b16 %v2392
    %v3006 = vunpack.c.l.b16 %v2393
    %v3007 = vunpack.c.h.b16 %v2393
    %v3008 = vunpack.c.l.b16 %v2394
    %v3009 = vunpack.c.h.b16 %v2394
    %v3010 = vunpack.c.l.b16 %v2395
    %v3011 = vunpack.c.l.b16 %v2396
    %v3012 = vunpack.c.h.b16 %v2396
    %v3013 = vunpack.c.l.b16 %v2397
    %v3014 = vunpack.c.h.b16 %v2397
    %v3015 = vunpack.c.l.b16 %v2398
    %v3016 = vunpack.c.h.b16 %v2398
    %v3017 = vunpack.c.l.b16 %v2399
    %v3018 = vunpack.c.h.b16 %v2399
    %v3019 = vunpack.c.l.b16 %v2400
    %v3020 = vunpack.c.l.b16 %v2401
    %v3021 = vunpack.c.h.b16 %v2401
    %v3022 = vunpack.c.l.b16 %v2402
    %v3023 = vunpack.c.h.b16 %v2402
    %v3024 = vunpack.c.l.b16 %v2403
    %v3025 = vunpack.c.h.b16 %v2403
    %v3026 = vunpack.c.l.b16 %v2404
    %v3027 = vunpack.c.h.b16 %v2404
    %v3028 = vunpack.c.l.b16 %v2405
    %v3029 = vunpack.c.l.b16 %v2406
    %v3030 = vunpack.c.h.b16 %v2406
    %v3031 = vunpack.c.l.b16 %v2407
    %v3032 = vunpack.c.h.b16 %v2407
    %v3033 = vunpack.c.l.b16 %v2408
    %v3034 = vunpack.c.h.b16 %v2408
    %v3035 = vunpack.c.l.b16 %v2409
    %v3036 = vunpack.c.h.b16 %v2409
    %v3037 = vunpack.c.l.b16 %v2410
    %v3038 = vunpack.c.l.b16 %v2411
    %v3039 = vunpack.c.h.b16 %v2411
    %v3040 = vunpack.c.l.b16 %v2412
    %v3041 = vunpack.c.h.b16 %v2412
    %v3042 = vunpack.c.l.b16 %v2413
    %v3043 = vunpack.c.h.b16 %v2413
    %v3044 = vunpack.c.l.b16 %v2414
    %v3045 = vunpack.c.h.b16 %v2414
    %v3046 = vunpack.c.l.b16 %v2415
    %v3047 = vunpack.c.l.b16 %v2416
    %v3048 = vunpack.c.h.b16 %v2416
    %v3049 = vunpack.c.l.b16 %v2417
    %v3050 = vunpack.c.h.b16 %v2417
    %v3051 = vunpack.c.l.b16 %v2418
    %v3052 = vunpack.c.h.b16 %v2418
    %v3053 = vunpack.c.l.b16 %v2419
    %v3054 = vunpack.c.h.b16 %v2419
    %v3055 = vunpack.c.l.b16 %v2420
    %v3056 = vunpack.c.l.b16 %v2421
    %v3057 = vunpack.c.h.b16 %v2421
    %v3058 = vunpack.c.l.b16 %v2422
    %v3059 = vunpack.c.h.b16 %v2422
    %v3060 = vunpack.c.l.b16 %v2423
    %v3061 = vunpack.c.h.b16 %v2423
    %v3062 = vunpack.c.l.b16 %v2424
    %v3063 = vunpack.c.h.b16 %v2424
    %v3064 = vunpack.c.l.b16 %v2425
    %v3065 = vunpack.c.l.b16 %v2426
    %v3066 = vunpack.c.h.b16 %v2426
    %v3067 = vunpack.c.l.b16 %v2427
    %v3068 = vunpack.c.h.b16 %v2427
    %v3069 = vunpack.c.l.b16 %v2428
    %v3070 = vunpack.c.h.b16 %v2428
    %v3071 = vunpack.c.l.b16 %v2429
    %v3072 = vunpack.c.h.b16 %v2429
    %v3073 = vunpack.c.l.b16 %v2430
    %v3074 = vunpack.c.l.b16 %v2431
    %v3075 = vunpack.c.h.b16 %v2431
    %v3076 = vunpack.c.l.b16 %v2432
    %v3077 = vunpack.c.h.b16 %v2432
    %v3078 = vunpack.c.l.b16 %v2433
    %v3079 = vunpack.c.h.b16 %v2433
    %v3080 = vunpack.c.l.b16 %v2434
    %v3081 = vunpack.c.h.b16 %v2434
    %v3082 = vunpack.c.l.b16 %v2435
    %v3083 = vunpack.c.l.b16 %v2436
    %v3084 = vunpack.c.h.b16 %v2436
    %v3085 = vunpack.c.l.b16 %v2437
    %v3086 = vunpack.c.h.b16 %v2437
    %v3087 = vunpack.c.l.b16 %v2438
    %v3088 = vunpack.c.h.b16 %v2438
    %v3089 = vunpack.c.l.b16 %v2439
    %v3090 = vunpack.c.h.b16 %v2439
    %v3091 = vunpack.c.l.b16 %v2440
    %v3092 = vunpack.c.l.b16 %v2441
    %v3093 = vunpack.c.h.b16 %v2441
    %v3094 = vunpack.c.l.b16 %v2442
    %v3095 = vunpack.c.h.b16 %v2442
    %v3096 = vunpack.c.l.b16 %v2443
    %v3097 = vunpack.c.h.b16 %v2443
    %v3098 = vunpack.c.l.b16 %v2444
    %v3099 = vunpack.c.h.b16 %v2444
    %v3100 = vunpack.c.l.b16 %v2445
    %v3101 = vunpack.c.l.b16 %v2446
    %v3102 = vunpack.c.h.b16 %v2446
    %v3103 = vunpack.c.l.b16 %v2447
    %v3104 = vunpack.c.h.b16 %v2447
    %v3105 = vunpack.c.l.b16 %v2448
    %v3106 = vunpack.c.h.b16 %v2448
    %v3107 = vunpack.c.l.b16 %v2449
    %v3108 = vunpack.c.h.b16 %v2449
    %v3109 = vunpack.c.l.b16 %v2450
    %v3110 = vunpack.c.l.b16 %v2451
    %v3111 = vunpack.c.h.b16 %v2451
    %v3112 = vunpack.c.l.b16 %v2452
    %v3113 = vunpack.c.h.b16 %v2452
    %v3114 = vunpack.c.l.b16 %v2453
    %v3115 = vunpack.c.h.b16 %v2453
    %v3116 = vunpack.c.l.b16 %v2454
    %v3117 = vunpack.c.h.b16 %v2454
    %v3118 = vunpack.c.l.b16 %v2455
    %v3119 = vunpack.c.l.b16 %v2456
    %v3120 = vunpack.c.h.b16 %v2456
    %v3121 = vunpack.c.l.b16 %v2457
    %v3122 = vunpack.c.h.b16 %v2457
    %v3123 = vunpack.c.l.b16 %v2458
    %v3124 = vunpack.c.h.b16 %v2458
    %v3125 = vunpack.c.l.b16 %v2459
    %v3126 = vunpack.c.h.b16 %v2459
    %v3127 = vunpack.c.l.b16 %v2460
    %v3128 = vunpack.c.l.b16 %v2461
    %v3129 = vunpack.c.h.b16 %v2461
    %v3130 = vunpack.c.l.b16 %v2462
    %v3131 = vunpack.c.h.b16 %v2462
    %v3132 = vunpack.c.l.b16 %v2463
    %v3133 = vunpack.c.h.b16 %v2463
    %v3134 = vunpack.c.l.b16 %v2464
    %v3135 = vunpack.c.h.b16 %v2464
    %v3136 = vunpack.c.l.b16 %v2465
    %v3137 = vunpack.c.l.b16 %v2466
    %v3138 = vunpack.c.h.b16 %v2466
    %v3139 = vunpack.c.l.b16 %v2467
    %v3140 = vunpack.c.h.b16 %v2467
    %v3141 = vunpack.c.l.b16 %v2468
    %v3142 = vunpack.c.h.b16 %v2468
    %v3143 = vunpack.c.l.b16 %v2469
    %v3144 = vunpack.c.h.b16 %v2469
    %v3145 = vunpack.c.l.b16 %v2470
    %v3146 = vunpack.c.l.b16 %v2471
    %v3147 = vunpack.c.h.b16 %v2471
    %v3148 = vunpack.c.l.b16 %v2472
    %v3149 = vunpack.c.h.b16 %v2472
    %v3150 = vunpack.c.l.b16 %v2473
    %v3151 = vunpack.c.h.b16 %v2473
    %v3152 = vunpack.c.l.b16 %v2474
    %v3153 = vunpack.c.h.b16 %v2474
    %v3154 = vunpack.c.l.b16 %v2475
    %v3155 = vunpack.c.l.b16 %v2476
    %v3156 = vunpack.c.h.b16 %v2476
    %v3157 = vunpack.c.l.b16 %v2477
    %v3158 = vunpack.c.h.b16 %v2477
    %v3159 = vunpack.c.l.b16 %v2478
    %v3160 = vunpack.c.h.b16 %v2478
    %v3161 = vunpack.c.l.b16 %v2479
    %v3162 = vunpack.c.h.b16 %v2479
    %v3163 = vunpack.c.l.b16 %v2480
    %v3164 = vunpack.c.l.b16 %v2481
    %v3165 = vunpack.c.h.b16 %v2481
    %v3166 = vunpack.c.l.b16 %v2482
    %v3167 = vunpack.c.h.b16 %v2482
    %v3168 = vunpack.c.l.b16 %v2483
    %v3169 = vunpack.c.h.b16 %v2483
    %v3170 = vunpack.c.l.b16 %v2484
    %v3171 = vunpack.c.h.b16 %v2484
    %v3172 = vunpack.c.l.b16 %v2485
    %v3173 = vunpack.c.l.b16 %v2486
    %v3174 = vunpack.c.h.b16 %v2486
    %v3175 = vunpack.c.l.b16 %v2487
    %v3176 = vunpack.c.h.b16 %v2487
    %v3177 = vunpack.c.l.b16 %v2488
    %v3178 = vunpack.c.h.b16 %v2488
    %v3179 = vunpack.c.l.b16 %v2489
    %v3180 = vunpack.c.h.b16 %v2489
    %v3181 = vunpack.c.l.b16 %v2490
    %v3182 = vunpack.c.l.b16 %v2491
    %v3183 = vunpack.c.h.b16 %v2491
    %v3184 = vunpack.c.l.b16 %v2492
    %v3185 = vunpack.c.h.b16 %v2492
    %v3186 = vunpack.c.l.b16 %v2493
    %v3187 = vunpack.c.h.b16 %v2493
    %v3188 = vunpack.c.l.b16 %v2494
    %v3189 = vunpack.c.h.b16 %v2494
    %v3190 = vunpack.c.l.b16 %v2495
    %v3191 = vunpack.c.l.b16 %v2496
    %v3192 = vunpack.c.h.b16 %v2496
    %v3193 = vunpack.c.l.b16 %v2497
    %v3194 = vunpack.c.h.b16 %v2497
    %v3195 = vunpack.c.l.b16 %v2498
    %v3196 = vunpack.c.h.b16 %v2498
    %v3197 = vunpack.c.l.b16 %v2499
    %v3198 = vunpack.c.h.b16 %v2499
    %v3199 = vunpack.c.l.b16 %v2500
    %v3200 = vunpack.c.l.b16 %v2501
    %v3201 = vunpack.c.h.b16 %v2501
    %v3202 = vunpack.c.l.b16 %v2502
    %v3203 = vunpack.c.h.b16 %v2502
    %v3204 = vunpack.c.l.b16 %v2503
    %v3205 = vunpack.c.h.b16 %v2503
    %v3206 = vunpack.c.l.b16 %v2504
    %v3207 = vunpack.c.h.b16 %v2504
    %v3208 = vunpack.c.l.b16 %v2505
    %v3209 = vpack.c.b16 %v2786, %v2777
    %v3210 = vpack.c.b16 %v2787, %v2778
    %v3211 = vpack.c.b16 %v2788, %v2779
    %v3212 = vpack.c.b16 %v2789, %v2780
    %v3213 = vpack.c.b16 %v2790, %v2781
    %v3214 = vpack.c.b16 %v2791, %v2782
    %v3215 = vpack.c.b16 %v2792, %v2783
    %v3216 = vpack.c.b16 %v2793, %v2784
    %v3217 = vpack.c.b16 %v2794, %v2785
    %v3218 = vpack.c.b16 %v2804, %v2795
    %v3219 = vpack.c.b16 %v2805, %v2796
    %v3220 = vpack.c.b16 %v2806, %v2797
    %v3221 = vpack.c.b16 %v2807, %v2798
    %v3222 = vpack.c.b16 %v2808, %v2799
    %v3223 = vpack.c.b16 %v2809, %v2800
    %v3224 = vpack.c.b16 %v2810, %v2801
    %v3225 = vpack.c.b16 %v2811, %v2802
    %v3226 = vpack.c.b16 %v2812, %v2803
    %v3227 = vpack.c.b16 %v2822, %v2813
    %v3228 = vpack.c.b16 %v2823, %v2814
    %v3229 = vpack.c.b16 %v2824, %v2815
    %v3230 = vpack.c.b16 %v2825, %v2816
    %v3231 = vpack.c.b16 %v2826, %v2817
    %v3232 = vpack.c.b16 %v2827, %v2818
    %v3233 = vpack.c.b16 %v2828, %v2819
    %v3234 = vpack.c.b16 %v2829, %v2820
    %v3235 = vpack.c.b16 %v2830, %v2821
    %v3236 = vpack.c.b16 %v2840, %v2831
    %v3237 = vpack.c.b16 %v2841, %v2832
    %v3238 = vpack.c.b16 %v2842, %v2833
    %v3239 = vpack.c.b16 %v2843, %v2834
    %v3240 = vpack.c.b16 %v2844, %v2835
    %v3241 = vpack.c.b16 %v2845, %v2836
    %v3242 = vpack.c.b16 %v2846, %v2837
    %v3243 = vpack.c.b16 %v2847, %v2838
    %v3244 = vpack.c.b16 %v2848, %v2839
    %v3245 = vpack.c.b16 %v2858, %v2849
    %v3246 = vpack.c.b16 %v2859, %v2850
    %v3247 = vpack.c.b16 %v2860, %v2851
    %v3248 = vpack.c.b16 %v2861, %v2852
    %v3249 = vpack.c.b16 %v2862, %v2853
    %v3250 = vpack.c.b16 %v2863, %v2854
    %v3251 = vpack.c.b16 %v2864, %v2855
    %v3252 = vpack.c.b16 %v2865, %v2856
    %v3253 = vpack.c.b16 %v2866, %v2857
    %v3254 = vpack.c.b16 %v2876, %v2867
    %v3255 = vpack.c.b16 %v2877, %v2868
    %v3256 = vpack.c.b16 %v2878, %v2869
    %v3257 = vpack.c.b16 %v2879, %v2870
    %v3258 = vpack.c.b16 %v2880, %v2871
    %v3259 = vpack.c.b16 %v2881, %v2872
    %v3260 = vpack.c.b16 %v2882, %v2873
    %v3261 = vpack.c.b16 %v2883, %v2874
    %v3262 = vpack.c.b16 %v2884, %v2875
    %v3263 = vpack.c.b16 %v2894, %v2885
    %v3264 = vpack.c.b16 %v2895, %v2886
    %v3265 = vpack.c.b16 %v2896, %v2887
    %v3266 = vpack.c.b16 %v2897, %v2888
    %v3267 = vpack.c.b16 %v2898, %v2889
    %v3268 = vpack.c.b16 %v2899, %v2890
    %v3269 = vpack.c.b16 %v2900, %v2891
    %v3270 = vpack.c.b16 %v2901, %v2892
    %v3271 = vpack.c.b16 %v2902, %v2893
    %v3272 = vpack.c.b16 %v2912, %v2903
    %v3273 = vpack.c.b16 %v2913, %v2904
    %v3274 = vpack.c.b16 %v2914, %v2905
    %v3275 = vpack.c.b16 %v2915, %v2906
    %v3276 = vpack.c.b16 %v2916, %v2907
    %v3277 = vpack.c.b16 %v2917, %v2908
    %v3278 = vpack.c.b16 %v2918, %v2909
    %v3279 = vpack.c.b16 %v2919, %v2910
    %v3280 = vpack.c.b16 %v2920, %v2911
    %v3281 = vpack.c.b16 %v2930, %v2921
    %v3282 = vpack.c.b16 %v2931, %v2922
    %v3283 = vpack.c.b16 %v2932, %v2923
    %v3284 = vpack.c.b16 %v2933, %v2924
    %v3285 = vpack.c.b16 %v2934, %v2925
    %v3286 = vpack.c.b16 %v2935, %v2926
    %v3287 = vpack.c.b16 %v2936, %v2927
    %v3288 = vpack.c.b16 %v2937, %v2928
    %v3289 = vpack.c.b16 %v2938, %v2929
    %v3290 = vpack.c.b16 %v2948, %v2939
    %v3291 = vpack.c.b16 %v2949, %v2940
    %v3292 = vpack.c.b16 %v2950, %v2941
    %v3293 = vpack.c.b16 %v2951, %v2942
    %v3294 = vpack.c.b16 %v2952, %v2943
    %v3295 = vpack.c.b16 %v2953, %v2944
    %v3296 = vpack.c.b16 %v2954, %v2945
    %v3297 = vpack.c.b16 %v2955, %v2946
    %v3298 = vpack.c.b16 %v2956, %v2947
    %v3299 = vpack.c.b16 %v2966, %v2957
    %v3300 = vpack.c.b16 %v2967, %v2958
    %v3301 = vpack.c.b16 %v2968, %v2959
    %v3302 = vpack.c.b16 %v2969, %v2960
    %v3303 = vpack.c.b16 %v2970, %v2961
    %v3304 = vpack.c.b16 %v2971, %v2962
    %v3305 = vpack.c.b16 %v2972, %v2963
    %v3306 = vpack.c.b16 %v2973, %v2964
    %v3307 = vpack.c.b16 %v2974, %v2965
    %v3308 = vpack.c.b16 %v2984, %v2975
    %v3309 = vpack.c.b16 %v2985, %v2976
    %v3310 = vpack.c.b16 %v2986, %v2977
    %v3311 = vpack.c.b16 %v2987, %v2978
    %v3312 = vpack.c.b16 %v2988, %v2979
    %v3313 = vpack.c.b16 %v2989, %v2980
    %v3314 = vpack.c.b16 %v2990, %v2981
    %v3315 = vpack.c.b16 %v2991, %v2982
    %v3316 = vpack.c.b16 %v2992, %v2983
    %v3317 = vpack.c.b16 %v3002, %v2993
    %v3318 = vpack.c.b16 %v3003, %v2994
    %v3319 = vpack.c.b16 %v3004, %v2995
    %v3320 = vpack.c.b16 %v3005, %v2996
    %v3321 = vpack.c.b16 %v3006, %v2997
    %v3322 = vpack.c.b16 %v3007, %v2998
    %v3323 = vpack.c.b16 %v3008, %v2999
    %v3324 = vpack.c.b16 %v3009, %v3000
    %v3325 = vpack.c.b16 %v3010, %v3001
    %v3326 = vpack.c.b16 %v3020, %v3011
    %v3327 = vpack.c.b16 %v3021, %v3012
    %v3328 = vpack.c.b16 %v3022, %v3013
    %v3329 = vpack.c.b16 %v3023, %v3014
    %v3330 = vpack.c.b16 %v3024, %v3015
    %v3331 = vpack.c.b16 %v3025, %v3016
    %v3332 = vpack.c.b16 %v3026, %v3017
    %v3333 = vpack.c.b16 %v3027, %v3018
    %v3334 = vpack.c.b16 %v3028, %v3019
    %v3335 = vpack.c.b16 %v3038, %v3029
    %v3336 = vpack.c.b16 %v3039, %v3030
    %v3337 = vpack.c.b16 %v3040, %v3031
    %v3338 = vpack.c.b16 %v3041, %v3032
    %v3339 = vpack.c.b16 %v3042, %v3033
    %v3340 = vpack.c.b16 %v3043, %v3034
    %v3341 = vpack.c.b16 %v3044, %v3035
    %v3342 = vpack.c.b16 %v3045, %v3036
    %v3343 = vpack.c.b16 %v3046, %v3037
    %v3344 = vpack.c.b16 %v3056, %v3047
    %v3345 = vpack.c.b16 %v3057, %v3048
    %v3346 = vpack.c.b16 %v3058, %v3049
    %v3347 = vpack.c.b16 %v3059, %v3050
    %v3348 = vpack.c.b16 %v3060, %v3051
    %v3349 = vpack.c.b16 %v3061, %v3052
    %v3350 = vpack.c.b16 %v3062, %v3053
    %v3351 = vpack.c.b16 %v3063, %v3054
    %v3352 = vpack.c.b16 %v3064, %v3055
    %v3353 = vpack.c.b16 %v3074, %v3065
    %v3354 = vpack.c.b16 %v3075, %v3066
    %v3355 = vpack.c.b16 %v3076, %v3067
    %v3356 = vpack.c.b16 %v3077, %v3068
    %v3357 = vpack.c.b16 %v3078, %v3069
    %v3358 = vpack.c.b16 %v3079, %v3070
    %v3359 = vpack.c.b16 %v3080, %v3071
    %v3360 = vpack.c.b16 %v3081, %v3072
    %v3361 = vpack.c.b16 %v3082, %v3073
    %v3362 = vpack.c.b16 %v3092, %v3083
    %v3363 = vpack.c.b16 %v3093, %v3084
    %v3364 = vpack.c.b16 %v3094, %v3085
    %v3365 = vpack.c.b16 %v3095, %v3086
    %v3366 = vpack.c.b16 %v3096, %v3087
    %v3367 = vpack.c.b16 %v3097, %v3088
    %v3368 = vpack.c.b16 %v3098, %v3089
    %v3369 = vpack.c.b16 %v3099, %v3090
    %v3370 = vpack.c.b16 %v3100, %v3091
    %v3371 = vpack.c.b16 %v3110, %v3101
    %v3372 = vpack.c.b16 %v3111, %v3102
    %v3373 = vpack.c.b16 %v3112, %v3103
    %v3374 = vpack.c.b16 %v3113, %v3104
    %v3375 = vpack.c.b16 %v3114, %v3105
    %v3376 = vpack.c.b16 %v3115, %v3106
    %v3377 = vpack.c.b16 %v3116, %v3107
    %v3378 = vpack.c.b16 %v3117, %v3108
    %v3379 = vpack.c.b16 %v3118, %v3109
    %v3380 = vpack.c.b16 %v3128, %v3119
    %v3381 = vpack.c.b16 %v3129, %v3120
    %v3382 = vpack.c.b16 %v3130, %v3121
    %v3383 = vpack.c.b16 %v3131, %v3122
    %v3384 = vpack.c.b16 %v3132, %v3123
    %v3385 = vpack.c.b16 %v3133, %v3124
    %v3386 = vpack.c.b16 %v3134, %v3125
    %v3387 = vpack.c.b16 %v3135, %v3126
    %v3388 = vpack.c.b16 %v3136, %v3127
    %v3389 = vpack.c.b16 %v3146, %v3137
    %v3390 = vpack.c.b16 %v3147, %v3138
    %v3391 = vpack.c.b16 %v3148, %v3139
    %v3392 = vpack.c.b16 %v3149, %v3140
    %v3393 = vpack.c.b16 %v3150, %v3141
    %v3394 = vpack.c.b16 %v3151, %v3142
    %v3395 = vpack.c.b16 %v3152, %v3143
    %v3396 = vpack.c.b16 %v3153, %v3144
    %v3397 = vpack.c.b16 %v3154, %v3145
    %v3398 = vpack.c.b16 %v3164, %v3155
    %v3399 = vpack.c.b16 %v3165, %v3156
    %v3400 = vpack.c.b16 %v3166, %v3157
    %v3401 = vpack.c.b16 %v3167, %v3158
    %v3402 = vpack.c.b16 %v3168, %v3159
    %v3403 = vpack.c.b16 %v3169, %v3160
    %v3404 = vpack.c.b16 %v3170, %v3161
    %v3405 = vpack.c.b16 %v3171, %v3162
    %v3406 = vpack.c.b16 %v3172, %v3163
    %v3407 = vpack.c.b16 %v3182, %v3173
    %v3408 = vpack.c.b16 %v3183, %v3174
    %v3409 = vpack.c.b16 %v3184, %v3175
    %v3410 = vpack.c.b16 %v3185, %v3176
    %v3411 = vpack.c.b16 %v3186, %v3177
    %v3412 = vpack.c.b16 %v3187, %v3178
    %v3413 = vpack.c.b16 %v3188, %v3179
    %v3414 = vpack.c.b16 %v3189, %v3180
    %v3415 = vpack.c.b16 %v3190, %v3181
    %v3416 = vpack.c.b16 %v3200, %v3191
    %v3417 = vpack.c.b16 %v3201, %v3192
    %v3418 = vpack.c.b16 %v3202, %v3193
    %v3419 = vpack.c.b16 %v3203, %v3194
    %v3420 = vpack.c.b16 %v3204, %v3195
    %v3421 = vpack.c.b16 %v3205, %v3196
    %v3422 = vpack.c.b16 %v3206, %v3197
    %v3423 = vpack.c.b16 %v3207, %v3198
    %v3424 = vpack.c.b16 %v3208, %v3199
    %3641 = vmatpush.bf16.msra.mxu0 %v3272
    %3642 = vmatpush.bf16.msra.mxu0 %v3263
    %3643 = vmatpush.bf16.msra.mxu0 %v3254
    %3644 = vmatpush.bf16.msra.mxu0 %v3245
    %3645 = vmatpush.bf16.msra.mxu0 %v3236
    %3646 = vmatpush.bf16.msra.mxu0 %v3227
    %3647 = vmatpush.bf16.msra.mxu0 %v3218
    %3648 = vmatpush.bf16.msra.mxu0 %v3209
    %3649 = vmatmul.bf16.gmra.mxu0 0
    %v3650 = vpop.f32.mrf.mxu0
    %v3651 = vadd.f32 %v2519, %v3650
    %v3652 = vpop.f32.mrf.mxu0
    %3653 = vdwg.mxu0
    %3654 = vmatpush.bf16.msra.mxu0 %v3344
    %3655 = vmatpush.bf16.msra.mxu0 %v3335
    %3656 = vmatpush.bf16.msra.mxu0 %v3326
    %3657 = vmatpush.bf16.msra.mxu0 %v3317
    %3658 = vmatpush.bf16.msra.mxu0 %v3308
    %3659 = vmatpush.bf16.msra.mxu0 %v3299
    %3660 = vmatpush.bf16.msra.mxu0 %v3290
    %3661 = vmatpush.bf16.msra.mxu0 %v3281
    %3662 = vmatmul.bf16.gmra.mxu0 0
    %v3663 = vpop.f32.mrf.mxu0
    %v3664 = vadd.f32 %v3651, %v3663
    %v3665 = vpop.f32.mrf.mxu0
    %3666 = vdwg.mxu0
    %3667 = vmatpush.bf16.msra.mxu0 %v3416
    %3668 = vmatpush.bf16.msra.mxu0 %v3407
    %3669 = vmatpush.bf16.msra.mxu0 %v3398
    %3670 = vmatpush.bf16.msra.mxu0 %v3389
    %3671 = vmatpush.bf16.msra.mxu0 %v3380
    %3672 = vmatpush.bf16.msra.mxu0 %v3371
    %3673 = vmatpush.bf16.msra.mxu0 %v3362
    %3674 = vmatpush.bf16.msra.mxu0 %v3353
    %3675 = vmatmul.bf16.gmra.mxu0 0
    %v3676 = vpop.f32.mrf.mxu0
    %v3677 = vadd.f32 %v3664, %v3676
    %v3678 = vpop.f32.mrf.mxu0
    %3679 = vdwg.mxu0
    %3680 = vmatpush.bf16.msra.mxu0 %v3273
    %3681 = vmatpush.bf16.msra.mxu0 %v3264
    %3682 = vmatpush.bf16.msra.mxu0 %v3255
    %3683 = vmatpush.bf16.msra.mxu0 %v3246
    %3684 = vmatpush.bf16.msra.mxu0 %v3237
    %3685 = vmatpush.bf16.msra.mxu0 %v3228
    %3686 = vmatpush.bf16.msra.mxu0 %v3219
    %3687 = vmatpush.bf16.msra.mxu0 %v3210
    %3688 = vmatmul.bf16.gmra.mxu0 0
    %v3689 = vpop.f32.mrf.mxu0
    %v3690 = vadd.f32 %v2520, %v3689
    %v3691 = vpop.f32.mrf.mxu0
    %3692 = vdwg.mxu0
    %3693 = vmatpush.bf16.msra.mxu0 %v3345
    %3694 = vmatpush.bf16.msra.mxu0 %v3336
    %3695 = vmatpush.bf16.msra.mxu0 %v3327
    %3696 = vmatpush.bf16.msra.mxu0 %v3318
    %3697 = vmatpush.bf16.msra.mxu0 %v3309
    %3698 = vmatpush.bf16.msra.mxu0 %v3300
    %3699 = vmatpush.bf16.msra.mxu0 %v3291
    %3700 = vmatpush.bf16.msra.mxu0 %v3282
    %3701 = vmatmul.bf16.gmra.mxu0 0
    %v3702 = vpop.f32.mrf.mxu0
    %v3703 = vadd.f32 %v3690, %v3702
    %v3704 = vpop.f32.mrf.mxu0
    %3705 = vdwg.mxu0
    %3706 = vmatpush.bf16.msra.mxu0 %v3417
    %3707 = vmatpush.bf16.msra.mxu0 %v3408
    %3708 = vmatpush.bf16.msra.mxu0 %v3399
    %3709 = vmatpush.bf16.msra.mxu0 %v3390
    %3710 = vmatpush.bf16.msra.mxu0 %v3381
    %3711 = vmatpush.bf16.msra.mxu0 %v3372
    %3712 = vmatpush.bf16.msra.mxu0 %v3363
    %3713 = vmatpush.bf16.msra.mxu0 %v3354
    %3714 = vmatmul.bf16.gmra.mxu0 0
    %v3715 = vpop.f32.mrf.mxu0
    %v3716 = vadd.f32 %v3703, %v3715
    %v3717 = vpop.f32.mrf.mxu0
    %3718 = vdwg.mxu0
    %3719 = vmatpush.bf16.msra.mxu0 %v3274
    %3720 = vmatpush.bf16.msra.mxu0 %v3265
    %3721 = vmatpush.bf16.msra.mxu0 %v3256
    %3722 = vmatpush.bf16.msra.mxu0 %v3247
    %3723 = vmatpush.bf16.msra.mxu0 %v3238
    %3724 = vmatpush.bf16.msra.mxu0 %v3229
    %3725 = vmatpush.bf16.msra.mxu0 %v3220
    %3726 = vmatpush.bf16.msra.mxu0 %v3211
    %3727 = vmatmul.bf16.gmra.mxu0 0
    %v3728 = vpop.f32.mrf.mxu0
    %v3729 = vadd.f32 %v2521, %v3728
    %v3730 = vpop.f32.mrf.mxu0
    %3731 = vdwg.mxu0
    %3732 = vmatpush.bf16.msra.mxu0 %v3346
    %3733 = vmatpush.bf16.msra.mxu0 %v3337
    %3734 = vmatpush.bf16.msra.mxu0 %v3328
    %3735 = vmatpush.bf16.msra.mxu0 %v3319
    %3736 = vmatpush.bf16.msra.mxu0 %v3310
    %3737 = vmatpush.bf16.msra.mxu0 %v3301
    %3738 = vmatpush.bf16.msra.mxu0 %v3292
    %3739 = vmatpush.bf16.msra.mxu0 %v3283
    %3740 = vmatmul.bf16.gmra.mxu0 0
    %v3741 = vpop.f32.mrf.mxu0
    %v3742 = vadd.f32 %v3729, %v3741
    %v3743 = vpop.f32.mrf.mxu0
    %3744 = vdwg.mxu0
    %3745 = vmatpush.bf16.msra.mxu0 %v3418
    %3746 = vmatpush.bf16.msra.mxu0 %v3409
    %3747 = vmatpush.bf16.msra.mxu0 %v3400
    %3748 = vmatpush.bf16.msra.mxu0 %v3391
    %3749 = vmatpush.bf16.msra.mxu0 %v3382
    %3750 = vmatpush.bf16.msra.mxu0 %v3373
    %3751 = vmatpush.bf16.msra.mxu0 %v3364
    %3752 = vmatpush.bf16.msra.mxu0 %v3355
    %3753 = vmatmul.bf16.gmra.mxu0 0
    %v3754 = vpop.f32.mrf.mxu0
    %v3755 = vadd.f32 %v3742, %v3754
    %v3756 = vpop.f32.mrf.mxu0
    %3757 = vdwg.mxu0
    %3758 = vmatpush.bf16.msra.mxu0 %v3275
    %3759 = vmatpush.bf16.msra.mxu0 %v3266
    %3760 = vmatpush.bf16.msra.mxu0 %v3257
    %3761 = vmatpush.bf16.msra.mxu0 %v3248
    %3762 = vmatpush.bf16.msra.mxu0 %v3239
    %3763 = vmatpush.bf16.msra.mxu0 %v3230
    %3764 = vmatpush.bf16.msra.mxu0 %v3221
    %3765 = vmatpush.bf16.msra.mxu0 %v3212
    %3766 = vmatmul.bf16.gmra.mxu0 0
    %v3767 = vpop.f32.mrf.mxu0
    %v3768 = vadd.f32 %v2522, %v3767
    %v3769 = vpop.f32.mrf.mxu0
    %3770 = vdwg.mxu0
    %3771 = vmatpush.bf16.msra.mxu0 %v3347
    %3772 = vmatpush.bf16.msra.mxu0 %v3338
    %3773 = vmatpush.bf16.msra.mxu0 %v3329
    %3774 = vmatpush.bf16.msra.mxu0 %v3320
    %3775 = vmatpush.bf16.msra.mxu0 %v3311
    %3776 = vmatpush.bf16.msra.mxu0 %v3302
    %3777 = vmatpush.bf16.msra.mxu0 %v3293
    %3778 = vmatpush.bf16.msra.mxu0 %v3284
    %3779 = vmatmul.bf16.gmra.mxu0 0
    %v3780 = vpop.f32.mrf.mxu0
    %v3781 = vadd.f32 %v3768, %v3780
    %v3782 = vpop.f32.mrf.mxu0
    %3783 = vdwg.mxu0
    %3784 = vmatpush.bf16.msra.mxu0 %v3419
    %3785 = vmatpush.bf16.msra.mxu0 %v3410
    %3786 = vmatpush.bf16.msra.mxu0 %v3401
    %3787 = vmatpush.bf16.msra.mxu0 %v3392
    %3788 = vmatpush.bf16.msra.mxu0 %v3383
    %3789 = vmatpush.bf16.msra.mxu0 %v3374
    %3790 = vmatpush.bf16.msra.mxu0 %v3365
    %3791 = vmatpush.bf16.msra.mxu0 %v3356
    %3792 = vmatmul.bf16.gmra.mxu0 0
    %v3793 = vpop.f32.mrf.mxu0
    %v3794 = vadd.f32 %v3781, %v3793
    %v3795 = vpop.f32.mrf.mxu0
    %3796 = vdwg.mxu0
    %3797 = vmatpush.bf16.msra.mxu0 %v3276
    %3798 = vmatpush.bf16.msra.mxu0 %v3267
    %3799 = vmatpush.bf16.msra.mxu0 %v3258
    %3800 = vmatpush.bf16.msra.mxu0 %v3249
    %3801 = vmatpush.bf16.msra.mxu0 %v3240
    %3802 = vmatpush.bf16.msra.mxu0 %v3231
    %3803 = vmatpush.bf16.msra.mxu0 %v3222
    %3804 = vmatpush.bf16.msra.mxu0 %v3213
    %3805 = vmatmul.bf16.gmra.mxu0 0
    %v3806 = vpop.f32.mrf.mxu0
    %v3807 = vadd.f32 %v2523, %v3806
    %v3808 = vpop.f32.mrf.mxu0
    %3809 = vdwg.mxu0
    %3810 = vmatpush.bf16.msra.mxu0 %v3348
    %3811 = vmatpush.bf16.msra.mxu0 %v3339
    %3812 = vmatpush.bf16.msra.mxu0 %v3330
    %3813 = vmatpush.bf16.msra.mxu0 %v3321
    %3814 = vmatpush.bf16.msra.mxu0 %v3312
    %3815 = vmatpush.bf16.msra.mxu0 %v3303
    %3816 = vmatpush.bf16.msra.mxu0 %v3294
    %3817 = vmatpush.bf16.msra.mxu0 %v3285
    %3818 = vmatmul.bf16.gmra.mxu0 0
    %v3819 = vpop.f32.mrf.mxu0
    %v3820 = vadd.f32 %v3807, %v3819
    %v3821 = vpop.f32.mrf.mxu0
    %3822 = vdwg.mxu0
    %3823 = vmatpush.bf16.msra.mxu0 %v3420
    %3824 = vmatpush.bf16.msra.mxu0 %v3411
    %3825 = vmatpush.bf16.msra.mxu0 %v3402
    %3826 = vmatpush.bf16.msra.mxu0 %v3393
    %3827 = vmatpush.bf16.msra.mxu0 %v3384
    %3828 = vmatpush.bf16.msra.mxu0 %v3375
    %3829 = vmatpush.bf16.msra.mxu0 %v3366
    %3830 = vmatpush.bf16.msra.mxu0 %v3357
    %3831 = vmatmul.bf16.gmra.mxu0 0
    %v3832 = vpop.f32.mrf.mxu0
    %v3833 = vadd.f32 %v3820, %v3832
    %v3834 = vpop.f32.mrf.mxu0
    %3835 = vdwg.mxu0
    %3836 = vmatpush.bf16.msra.mxu0 %v3277
    %3837 = vmatpush.bf16.msra.mxu0 %v3268
    %3838 = vmatpush.bf16.msra.mxu0 %v3259
    %3839 = vmatpush.bf16.msra.mxu0 %v3250
    %3840 = vmatpush.bf16.msra.mxu0 %v3241
    %3841 = vmatpush.bf16.msra.mxu0 %v3232
    %3842 = vmatpush.bf16.msra.mxu0 %v3223
    %3843 = vmatpush.bf16.msra.mxu0 %v3214
    %3844 = vmatmul.bf16.gmra.mxu0 0
    %v3845 = vpop.f32.mrf.mxu0
    %v3846 = vadd.f32 %v2524, %v3845
    %v3847 = vpop.f32.mrf.mxu0
    %3848 = vdwg.mxu0
    %3849 = vmatpush.bf16.msra.mxu0 %v3349
    %3850 = vmatpush.bf16.msra.mxu0 %v3340
    %3851 = vmatpush.bf16.msra.mxu0 %v3331
    %3852 = vmatpush.bf16.msra.mxu0 %v3322
    %3853 = vmatpush.bf16.msra.mxu0 %v3313
    %3854 = vmatpush.bf16.msra.mxu0 %v3304
    %3855 = vmatpush.bf16.msra.mxu0 %v3295
    %3856 = vmatpush.bf16.msra.mxu0 %v3286
    %3857 = vmatmul.bf16.gmra.mxu0 0
    %v3858 = vpop.f32.mrf.mxu0
    %v3859 = vadd.f32 %v3846, %v3858
    %v3860 = vpop.f32.mrf.mxu0
    %3861 = vdwg.mxu0
    %3862 = vmatpush.bf16.msra.mxu0 %v3421
    %3863 = vmatpush.bf16.msra.mxu0 %v3412
    %3864 = vmatpush.bf16.msra.mxu0 %v3403
    %3865 = vmatpush.bf16.msra.mxu0 %v3394
    %3866 = vmatpush.bf16.msra.mxu0 %v3385
    %3867 = vmatpush.bf16.msra.mxu0 %v3376
    %3868 = vmatpush.bf16.msra.mxu0 %v3367
    %3869 = vmatpush.bf16.msra.mxu0 %v3358
    %3870 = vmatmul.bf16.gmra.mxu0 0
    %v3871 = vpop.f32.mrf.mxu0
    %v3872 = vadd.f32 %v3859, %v3871
    %v3873 = vpop.f32.mrf.mxu0
    %3874 = vdwg.mxu0
    %3875 = vmatpush.bf16.msra.mxu0 %v3278
    %3876 = vmatpush.bf16.msra.mxu0 %v3269
    %3877 = vmatpush.bf16.msra.mxu0 %v3260
    %3878 = vmatpush.bf16.msra.mxu0 %v3251
    %3879 = vmatpush.bf16.msra.mxu0 %v3242
    %3880 = vmatpush.bf16.msra.mxu0 %v3233
    %3881 = vmatpush.bf16.msra.mxu0 %v3224
    %3882 = vmatpush.bf16.msra.mxu0 %v3215
    %3883 = vmatmul.bf16.gmra.mxu0 0
    %v3884 = vpop.f32.mrf.mxu0
    %v3885 = vadd.f32 %v2525, %v3884
    %v3886 = vpop.f32.mrf.mxu0
    %3887 = vdwg.mxu0
    %3888 = vmatpush.bf16.msra.mxu0 %v3350
    %3889 = vmatpush.bf16.msra.mxu0 %v3341
    %3890 = vmatpush.bf16.msra.mxu0 %v3332
    %3891 = vmatpush.bf16.msra.mxu0 %v3323
    %3892 = vmatpush.bf16.msra.mxu0 %v3314
    %3893 = vmatpush.bf16.msra.mxu0 %v3305
    %3894 = vmatpush.bf16.msra.mxu0 %v3296
    %3895 = vmatpush.bf16.msra.mxu0 %v3287
    %3896 = vmatmul.bf16.gmra.mxu0 0
    %v3897 = vpop.f32.mrf.mxu0
    %v3898 = vadd.f32 %v3885, %v3897
    %v3899 = vpop.f32.mrf.mxu0
    %3900 = vdwg.mxu0
    %3901 = vmatpush.bf16.msra.mxu0 %v3422
    %3902 = vmatpush.bf16.msra.mxu0 %v3413
    %3903 = vmatpush.bf16.msra.mxu0 %v3404
    %3904 = vmatpush.bf16.msra.mxu0 %v3395
    %3905 = vmatpush.bf16.msra.mxu0 %v3386
    %3906 = vmatpush.bf16.msra.mxu0 %v3377
    %3907 = vmatpush.bf16.msra.mxu0 %v3368
    %3908 = vmatpush.bf16.msra.mxu0 %v3359
    %3909 = vmatmul.bf16.gmra.mxu0 0
    %v3910 = vpop.f32.mrf.mxu0
    %v3911 = vadd.f32 %v3898, %v3910
    %v3912 = vpop.f32.mrf.mxu0
    %3913 = vdwg.mxu0
    %3914 = vmatpush.bf16.msra.mxu0 %v3279
    %3915 = vmatpush.bf16.msra.mxu0 %v3270
    %3916 = vmatpush.bf16.msra.mxu0 %v3261
    %3917 = vmatpush.bf16.msra.mxu0 %v3252
    %3918 = vmatpush.bf16.msra.mxu0 %v3243
    %3919 = vmatpush.bf16.msra.mxu0 %v3234
    %3920 = vmatpush.bf16.msra.mxu0 %v3225
    %3921 = vmatpush.bf16.msra.mxu0 %v3216
    %3922 = vmatmul.bf16.gmra.mxu0 0
    %v3923 = vpop.f32.mrf.mxu0
    %v3924 = vadd.f32 %v2526, %v3923
    %v3925 = vpop.f32.mrf.mxu0
    %3926 = vdwg.mxu0
    %3927 = vmatpush.bf16.msra.mxu0 %v3351
    %3928 = vmatpush.bf16.msra.mxu0 %v3342
    %3929 = vmatpush.bf16.msra.mxu0 %v3333
    %3930 = vmatpush.bf16.msra.mxu0 %v3324
    %3931 = vmatpush.bf16.msra.mxu0 %v3315
    %3932 = vmatpush.bf16.msra.mxu0 %v3306
    %3933 = vmatpush.bf16.msra.mxu0 %v3297
    %3934 = vmatpush.bf16.msra.mxu0 %v3288
    %3935 = vmatmul.bf16.gmra.mxu0 0
    %v3936 = vpop.f32.mrf.mxu0
    %v3937 = vadd.f32 %v3924, %v3936
    %v3938 = vpop.f32.mrf.mxu0
    %3939 = vdwg.mxu0
    %3940 = vmatpush.bf16.msra.mxu0 %v3423
    %3941 = vmatpush.bf16.msra.mxu0 %v3414
    %3942 = vmatpush.bf16.msra.mxu0 %v3405
    %3943 = vmatpush.bf16.msra.mxu0 %v3396
    %3944 = vmatpush.bf16.msra.mxu0 %v3387
    %3945 = vmatpush.bf16.msra.mxu0 %v3378
    %3946 = vmatpush.bf16.msra.mxu0 %v3369
    %3947 = vmatpush.bf16.msra.mxu0 %v3360
    %3948 = vmatmul.bf16.gmra.mxu0 0
    %v3949 = vpop.f32.mrf.mxu0
    %v3950 = vadd.f32 %v3937, %v3949
    %v3951 = vpop.f32.mrf.mxu0
    %3952 = vdwg.mxu0
    %3953 = vmatpush.bf16.msra.mxu0 %v3280
    %3954 = vmatpush.bf16.msra.mxu0 %v3271
    %3955 = vmatpush.bf16.msra.mxu0 %v3262
    %3956 = vmatpush.bf16.msra.mxu0 %v3253
    %3957 = vmatpush.bf16.msra.mxu0 %v3244
    %3958 = vmatpush.bf16.msra.mxu0 %v3235
    %3959 = vmatpush.bf16.msra.mxu0 %v3226
    %3960 = vmatpush.bf16.msra.mxu0 %v3217
    %3961 = vmatmul.bf16.gmra.mxu0 0
    %v3962 = vpop.f32.mrf.mxu0
    %v3963 = vadd.f32 %v2527, %v3962
    %v3964 = vpop.f32.mrf.mxu0
    %3965 = vdwg.mxu0
    %3966 = vmatpush.bf16.msra.mxu0 %v3352
    %3967 = vmatpush.bf16.msra.mxu0 %v3343
    %3968 = vmatpush.bf16.msra.mxu0 %v3334
    %3969 = vmatpush.bf16.msra.mxu0 %v3325
    %3970 = vmatpush.bf16.msra.mxu0 %v3316
    %3971 = vmatpush.bf16.msra.mxu0 %v3307
    %3972 = vmatpush.bf16.msra.mxu0 %v3298
    %3973 = vmatpush.bf16.msra.mxu0 %v3289
    %3974 = vmatmul.bf16.gmra.mxu0 0
    %v3975 = vpop.f32.mrf.mxu0
    %v3976 = vadd.f32 %v3963, %v3975
    %v3977 = vpop.f32.mrf.mxu0
    %3978 = vdwg.mxu0
    %3979 = vmatpush.bf16.msra.mxu0 %v3424
    %3980 = vmatpush.bf16.msra.mxu0 %v3415
    %3981 = vmatpush.bf16.msra.mxu0 %v3406
    %3982 = vmatpush.bf16.msra.mxu0 %v3397
    %3983 = vmatpush.bf16.msra.mxu0 %v3388
    %3984 = vmatpush.bf16.msra.mxu0 %v3379
    %3985 = vmatpush.bf16.msra.mxu0 %v3370
    %3986 = vmatpush.bf16.msra.mxu0 %v3361
    %3987 = vmatmul.bf16.gmra.mxu0 0
    %v3988 = vpop.f32.mrf.mxu0
    %v3989 = vadd.f32 %v3976, %v3988
    %v3990 = vpop.f32.mrf.mxu0
    %3991 = vdwg.mxu0
    %v3992 = vadd.f32 %v2508, %v3677
    %v3993 = vadd.f32 %v2509, %v3716
    %v3994 = vadd.f32 %v2510, %v3755
    %v3995 = vadd.f32 %v2511, %v3794
    %v3996 = vadd.f32 %v2512, %v3833
    %v3997 = vadd.f32 %v2513, %v3872
    %v3998 = vxor.u32 %v3992, 2147483648
    %v3999 = vxor.u32 %v3993, 2147483648
    %v4000 = vxor.u32 %v3994, 2147483648
    %v4001 = vxor.u32 %v3995, 2147483648
    %v4002 = vxor.u32 %v3996, 2147483648
    %v4003 = vxor.u32 %v3997, 2147483648
    %v4004 = vmul.f32 %v3998, 1.442695
    %v4005 = vpow.pop %v4004
    %v4006 = vmul.f32 %v3999, 1.442695
    %v4007 = vpow.pop %v4006
    %v4008 = vmul.f32 %v4000, 1.442695
    %v4009 = vpow.pop %v4008
    %v4010 = vmul.f32 %v4001, 1.442695
    %v4011 = vpow.pop %v4010
    %v4012 = vmul.f32 %v4002, 1.442695
    %v4013 = vpow.pop %v4012
    %v4014 = vmul.f32 %v4003, 1.442695
    %v4015 = vpow.pop %v4014
    %v4016 = vadd.f32 %v4005, 1.0
    %v4017 = vadd.f32 %v4007, 1.0
    %v4018 = vadd.f32 %v4009, 1.0
    %v4019 = vadd.f32 %v4011, 1.0
    %v4020 = vadd.f32 %v4013, 1.0
    %v4021 = vadd.f32 %v4015, 1.0
    %v4022 = vrcp.pop %v4016
    %v4023 = vmul.f32 %v4016, %v4022
    %v4024 = vsub.f32 1.0, %v4023
    %v4025 = vmul.f32 %v4022, %v4024
    %v4026 = vadd.f32 %v4022, %v4025
    %vm4027 = vweird.f32 %v4016
    %vm4028 = vweird.f32 %v4022
    %vm4029 = vmor %vm4027, %vm4028
    %v4030 = vsel %vm4029, %v4022, %v4026
    %v4031 = vand.u32 2147483647, %v4016
    %vm4032 = vcmp.eq.f32.partialorder %v4031, 8.507059e+37
    %v4033 = vand.u32 %v4016, 2147483648
    %v4034 = vor.u32 1.1754944e-38, %v4033
    %v4035 = vsel %vm4032, %v4034, %v4030
    %v4036 = vmul.f32 1.0, %v4035
    %v4037 = vrcp.pop %v4017
    %v4038 = vmul.f32 %v4017, %v4037
    %v4039 = vsub.f32 1.0, %v4038
    %v4040 = vmul.f32 %v4037, %v4039
    %v4041 = vadd.f32 %v4037, %v4040
    %vm4042 = vweird.f32 %v4017
    %vm4043 = vweird.f32 %v4037
    %vm4044 = vmor %vm4042, %vm4043
    %v4045 = vsel %vm4044, %v4037, %v4041
    %v4046 = vand.u32 2147483647, %v4017
    %vm4047 = vcmp.eq.f32.partialorder %v4046, 8.507059e+37
    %v4048 = vand.u32 %v4017, 2147483648
    %v4049 = vor.u32 1.1754944e-38, %v4048
    %v4050 = vsel %vm4047, %v4049, %v4045
    %v4051 = vmul.f32 1.0, %v4050
    %v4052 = vrcp.pop %v4018
    %v4053 = vmul.f32 %v4018, %v4052
    %v4054 = vsub.f32 1.0, %v4053
    %v4055 = vmul.f32 %v4052, %v4054
    %v4056 = vadd.f32 %v4052, %v4055
    %vm4057 = vweird.f32 %v4018
    %vm4058 = vweird.f32 %v4052
    %vm4059 = vmor %vm4057, %vm4058
    %v4060 = vsel %vm4059, %v4052, %v4056
    %v4061 = vand.u32 2147483647, %v4018
    %vm4062 = vcmp.eq.f32.partialorder %v4061, 8.507059e+37
    %v4063 = vand.u32 %v4018, 2147483648
    %v4064 = vor.u32 1.1754944e-38, %v4063
    %v4065 = vsel %vm4062, %v4064, %v4060
    %v4066 = vmul.f32 1.0, %v4065
    %v4067 = vrcp.pop %v4019
    %v4068 = vmul.f32 %v4019, %v4067
    %v4069 = vsub.f32 1.0, %v4068
    %v4070 = vmul.f32 %v4067, %v4069
    %v4071 = vadd.f32 %v4067, %v4070
    %vm4072 = vweird.f32 %v4019
    %vm4073 = vweird.f32 %v4067
    %vm4074 = vmor %vm4072, %vm4073
    %v4075 = vsel %vm4074, %v4067, %v4071
    %v4076 = vand.u32 2147483647, %v4019
    %vm4077 = vcmp.eq.f32.partialorder %v4076, 8.507059e+37
    %v4078 = vand.u32 %v4019, 2147483648
    %v4079 = vor.u32 1.1754944e-38, %v4078
    %v4080 = vsel %vm4077, %v4079, %v4075
    %v4081 = vmul.f32 1.0, %v4080
    %v4082 = vrcp.pop %v4020
    %v4083 = vmul.f32 %v4020, %v4082
    %v4084 = vsub.f32 1.0, %v4083
    %v4085 = vmul.f32 %v4082, %v4084
    %v4086 = vadd.f32 %v4082, %v4085
    %vm4087 = vweird.f32 %v4020
    %vm4088 = vweird.f32 %v4082
    %vm4089 = vmor %vm4087, %vm4088
    %v4090 = vsel %vm4089, %v4082, %v4086
    %v4091 = vand.u32 2147483647, %v4020
    %vm4092 = vcmp.eq.f32.partialorder %v4091, 8.507059e+37
    %v4093 = vand.u32 %v4020, 2147483648
    %v4094 = vor.u32 1.1754944e-38, %v4093
    %v4095 = vsel %vm4092, %v4094, %v4090
    %v4096 = vmul.f32 1.0, %v4095
    %v4097 = vrcp.pop %v4021
    %v4098 = vmul.f32 %v4021, %v4097
    %v4099 = vsub.f32 1.0, %v4098
    %v4100 = vmul.f32 %v4097, %v4099
    %v4101 = vadd.f32 %v4097, %v4100
    %vm4102 = vweird.f32 %v4021
    %vm4103 = vweird.f32 %v4097
    %vm4104 = vmor %vm4102, %vm4103
    %v4105 = vsel %vm4104, %v4097, %v4101
    %v4106 = vand.u32 2147483647, %v4021
    %vm4107 = vcmp.eq.f32.partialorder %v4106, 8.507059e+37
    %v4108 = vand.u32 %v4021, 2147483648
    %v4109 = vor.u32 1.1754944e-38, %v4108
    %v4110 = vsel %vm4107, %v4109, %v4105
    %v4111 = vmul.f32 1.0, %v4110
    %v4112 = vmul.f32 %v4036, %v3911
    %v4113 = vmul.f32 %v4051, %v3950
    %v4114 = vmul.f32 %v4066, %v3989
    %v4115 = vadd.f32 %v2514, %v4112
    %v4116 = vadd.f32 %v2515, %v4113
    %v4117 = vadd.f32 %v2516, %v4114
    %v4118 = vtanh.pop %v4115
    %v4119 = vtanh.pop %v4116
    %v4120 = vtanh.pop %v4117
    %v4121 = vsub.f32 1.0, %v4081
    %v4122 = vsub.f32 1.0, %v4096
    %v4123 = vsub.f32 1.0, %v4111
    %v4124 = vmul.f32 %v4121, %v4118
    %v4125 = vmul.f32 %v4122, %v4119
    %v4126 = vmul.f32 %v4123, %v4120
    %v4127 = vmul.f32 %v4081, 0.0
    %v4128 = vmul.f32 %v4096, 0.0
    %v4129 = vmul.f32 %v4111, 0.0
    %v4130 = vadd.f32 %v4124, %v4127
    %v4131 = vadd.f32 %v4125, %v4128
    %v4132 = vadd.f32 %v4126, %v4129
    %v4133 = vpack.c.bf16 %v4131, %v4130
    %v4134 = vpack.c.bf16 %v4132, %v4132
    %v4135 = vadd.f32 %v1530, %v2159
    %v4136 = vadd.f32 %v1588, %v2172
    %v4137 = vadd.f32 %v1646, %v2185
    %v4138 = vadd.f32 %v1704, %v2198
    %v4139 = vadd.f32 %v1762, %v2211
    %v4140 = vadd.f32 %v1820, %v2224
    %v4141 = vadd.f32 %v1878, %v2237
    %v4142 = vadd.f32 %v1936, %v2250
    %v4143 = vadd.f32 %v1994, %v2263
    %v4146 = vunpack.c.l.b16 %v4133
    %v4147 = vunpack.c.h.b16 %v4133
    %v4148 = vunpack.c.l.b16 %v4134
    %v4149 = vpack.c.b16 %v4146, %v4146
    %v4150 = vpack.c.b16 %v4147, %v4147
    %v4151 = vpack.c.b16 %v4148, %v4148
    %4155 = vmatpush.bf16.msra.mxu0 %v3272
    %4156 = vmatpush.bf16.msra.mxu0 %v3263
    %4157 = vmatpush.bf16.msra.mxu0 %v3254
    %4158 = vmatpush.bf16.msra.mxu0 %v3245
    %4159 = vmatpush.bf16.msra.mxu0 %v3236
    %4160 = vmatpush.bf16.msra.mxu0 %v3227
    %4161 = vmatpush.bf16.msra.mxu0 %v3218
    %4162 = vmatpush.bf16.msra.mxu0 %v3209
    %4163 = vmatmul.bf16.gmra.mxu0 %v4149
    %v4164 = vpop.f32.mrf.mxu0
    %v4165 = vadd.f32 %v2519, %v4164
    %v4166 = vpop.f32.mrf.mxu0
    %4167 = vdwg.mxu0
    %4168 = vmatpush.bf16.msra.mxu0 %v3344
    %4169 = vmatpush.bf16.msra.mxu0 %v3335
    %4170 = vmatpush.bf16.msra.mxu0 %v3326
    %4171 = vmatpush.bf16.msra.mxu0 %v3317
    %4172 = vmatpush.bf16.msra.mxu0 %v3308
    %4173 = vmatpush.bf16.msra.mxu0 %v3299
    %4174 = vmatpush.bf16.msra.mxu0 %v3290
    %4175 = vmatpush.bf16.msra.mxu0 %v3281
    %4176 = vmatmul.bf16.gmra.mxu0 %v4150
    %v4177 = vpop.f32.mrf.mxu0
    %v4178 = vadd.f32 %v4165, %v4177
    %v4179 = vpop.f32.mrf.mxu0
    %4180 = vdwg.mxu0
    %4181 = vmatpush.bf16.msra.mxu0 %v3416
    %4182 = vmatpush.bf16.msra.mxu0 %v3407
    %4183 = vmatpush.bf16.msra.mxu0 %v3398
    %4184 = vmatpush.bf16.msra.mxu0 %v3389
    %4185 = vmatpush.bf16.msra.mxu0 %v3380
    %4186 = vmatpush.bf16.msra.mxu0 %v3371
    %4187 = vmatpush.bf16.msra.mxu0 %v3362
    %4188 = vmatpush.bf16.msra.mxu0 %v3353
    %4189 = vmatmul.bf16.gmra.mxu0 %v4151
    %v4190 = vpop.f32.mrf.mxu0
    %v4191 = vadd.f32 %v4178, %v4190
    %v4192 = vpop.f32.mrf.mxu0
    %4193 = vdwg.mxu0
    %4194 = vmatpush.bf16.msra.mxu0 %v3273
    %4195 = vmatpush.bf16.msra.mxu0 %v3264
    %4196 = vmatpush.bf16.msra.mxu0 %v3255
    %4197 = vmatpush.bf16.msra.mxu0 %v3246
    %4198 = vmatpush.bf16.msra.mxu0 %v3237
    %4199 = vmatpush.bf16.msra.mxu0 %v3228
    %4200 = vmatpush.bf16.msra.mxu0 %v3219
    %4201 = vmatpush.bf16.msra.mxu0 %v3210
    %4202 = vmatmul.bf16.gmra.mxu0 %v4149
    %v4203 = vpop.f32.mrf.mxu0
    %v4204 = vadd.f32 %v2520, %v4203
    %v4205 = vpop.f32.mrf.mxu0
    %4206 = vdwg.mxu0
    %4207 = vmatpush.bf16.msra.mxu0 %v3345
    %4208 = vmatpush.bf16.msra.mxu0 %v3336
    %4209 = vmatpush.bf16.msra.mxu0 %v3327
    %4210 = vmatpush.bf16.msra.mxu0 %v3318
    %4211 = vmatpush.bf16.msra.mxu0 %v3309
    %4212 = vmatpush.bf16.msra.mxu0 %v3300
    %4213 = vmatpush.bf16.msra.mxu0 %v3291
    %4214 = vmatpush.bf16.msra.mxu0 %v3282
    %4215 = vmatmul.bf16.gmra.mxu0 %v4150
    %v4216 = vpop.f32.mrf.mxu0
    %v4217 = vadd.f32 %v4204, %v4216
    %v4218 = vpop.f32.mrf.mxu0
    %4219 = vdwg.mxu0
    %4220 = vmatpush.bf16.msra.mxu0 %v3417
    %4221 = vmatpush.bf16.msra.mxu0 %v3408
    %4222 = vmatpush.bf16.msra.mxu0 %v3399
    %4223 = vmatpush.bf16.msra.mxu0 %v3390
    %4224 = vmatpush.bf16.msra.mxu0 %v3381
    %4225 = vmatpush.bf16.msra.mxu0 %v3372
    %4226 = vmatpush.bf16.msra.mxu0 %v3363
    %4227 = vmatpush.bf16.msra.mxu0 %v3354
    %4228 = vmatmul.bf16.gmra.mxu0 %v4151
    %v4229 = vpop.f32.mrf.mxu0
    %v4230 = vadd.f32 %v4217, %v4229
    %v4231 = vpop.f32.mrf.mxu0
    %4232 = vdwg.mxu0
    %4233 = vmatpush.bf16.msra.mxu0 %v3274
    %4234 = vmatpush.bf16.msra.mxu0 %v3265
    %4235 = vmatpush.bf16.msra.mxu0 %v3256
    %4236 = vmatpush.bf16.msra.mxu0 %v3247
    %4237 = vmatpush.bf16.msra.mxu0 %v3238
    %4238 = vmatpush.bf16.msra.mxu0 %v3229
    %4239 = vmatpush.bf16.msra.mxu0 %v3220
    %4240 = vmatpush.bf16.msra.mxu0 %v3211
    %4241 = vmatmul.bf16.gmra.mxu0 %v4149
    %v4242 = vpop.f32.mrf.mxu0
    %v4243 = vadd.f32 %v2521, %v4242
    %v4244 = vpop.f32.mrf.mxu0
    %4245 = vdwg.mxu0
    %4246 = vmatpush.bf16.msra.mxu0 %v3346
    %4247 = vmatpush.bf16.msra.mxu0 %v3337
    %4248 = vmatpush.bf16.msra.mxu0 %v3328
    %4249 = vmatpush.bf16.msra.mxu0 %v3319
    %4250 = vmatpush.bf16.msra.mxu0 %v3310
    %4251 = vmatpush.bf16.msra.mxu0 %v3301
    %4252 = vmatpush.bf16.msra.mxu0 %v3292
    %4253 = vmatpush.bf16.msra.mxu0 %v3283
    %4254 = vmatmul.bf16.gmra.mxu0 %v4150
    %v4255 = vpop.f32.mrf.mxu0
    %v4256 = vadd.f32 %v4243, %v4255
    %v4257 = vpop.f32.mrf.mxu0
    %4258 = vdwg.mxu0
    %4259 = vmatpush.bf16.msra.mxu0 %v3418
    %4260 = vmatpush.bf16.msra.mxu0 %v3409
    %4261 = vmatpush.bf16.msra.mxu0 %v3400
    %4262 = vmatpush.bf16.msra.mxu0 %v3391
    %4263 = vmatpush.bf16.msra.mxu0 %v3382
    %4264 = vmatpush.bf16.msra.mxu0 %v3373
    %4265 = vmatpush.bf16.msra.mxu0 %v3364
    %4266 = vmatpush.bf16.msra.mxu0 %v3355
    %4267 = vmatmul.bf16.gmra.mxu0 %v4151
    %v4268 = vpop.f32.mrf.mxu0
    %v4269 = vadd.f32 %v4256, %v4268
    %v4270 = vpop.f32.mrf.mxu0
    %4271 = vdwg.mxu0
    %4272 = vmatpush.bf16.msra.mxu0 %v3275
    %4273 = vmatpush.bf16.msra.mxu0 %v3266
    %4274 = vmatpush.bf16.msra.mxu0 %v3257
    %4275 = vmatpush.bf16.msra.mxu0 %v3248
    %4276 = vmatpush.bf16.msra.mxu0 %v3239
    %4277 = vmatpush.bf16.msra.mxu0 %v3230
    %4278 = vmatpush.bf16.msra.mxu0 %v3221
    %4279 = vmatpush.bf16.msra.mxu0 %v3212
    %4280 = vmatmul.bf16.gmra.mxu0 %v4149
    %v4281 = vpop.f32.mrf.mxu0
    %v4282 = vadd.f32 %v2522, %v4281
    %v4283 = vpop.f32.mrf.mxu0
    %4284 = vdwg.mxu0
    %4285 = vmatpush.bf16.msra.mxu0 %v3347
    %4286 = vmatpush.bf16.msra.mxu0 %v3338
    %4287 = vmatpush.bf16.msra.mxu0 %v3329
    %4288 = vmatpush.bf16.msra.mxu0 %v3320
    %4289 = vmatpush.bf16.msra.mxu0 %v3311
    %4290 = vmatpush.bf16.msra.mxu0 %v3302
    %4291 = vmatpush.bf16.msra.mxu0 %v3293
    %4292 = vmatpush.bf16.msra.mxu0 %v3284
    %4293 = vmatmul.bf16.gmra.mxu0 %v4150
    %v4294 = vpop.f32.mrf.mxu0
    %v4295 = vadd.f32 %v4282, %v4294
    %v4296 = vpop.f32.mrf.mxu0
    %4297 = vdwg.mxu0
    %4298 = vmatpush.bf16.msra.mxu0 %v3419
    %4299 = vmatpush.bf16.msra.mxu0 %v3410
    %4300 = vmatpush.bf16.msra.mxu0 %v3401
    %4301 = vmatpush.bf16.msra.mxu0 %v3392
    %4302 = vmatpush.bf16.msra.mxu0 %v3383
    %4303 = vmatpush.bf16.msra.mxu0 %v3374
    %4304 = vmatpush.bf16.msra.mxu0 %v3365
    %4305 = vmatpush.bf16.msra.mxu0 %v3356
    %4306 = vmatmul.bf16.gmra.mxu0 %v4151
    %v4307 = vpop.f32.mrf.mxu0
    %v4308 = vadd.f32 %v4295, %v4307
    %v4309 = vpop.f32.mrf.mxu0
    %4310 = vdwg.mxu0
    %4311 = vmatpush.bf16.msra.mxu0 %v3276
    %4312 = vmatpush.bf16.msra.mxu0 %v3267
    %4313 = vmatpush.bf16.msra.mxu0 %v3258
    %4314 = vmatpush.bf16.msra.mxu0 %v3249
    %4315 = vmatpush.bf16.msra.mxu0 %v3240
    %4316 = vmatpush.bf16.msra.mxu0 %v3231
    %4317 = vmatpush.bf16.msra.mxu0 %v3222
    %4318 = vmatpush.bf16.msra.mxu0 %v3213
    %4319 = vmatmul.bf16.gmra.mxu0 %v4149
    %v4320 = vpop.f32.mrf.mxu0
    %v4321 = vadd.f32 %v2523, %v4320
    %v4322 = vpop.f32.mrf.mxu0
    %4323 = vdwg.mxu0
    %4324 = vmatpush.bf16.msra.mxu0 %v3348
    %4325 = vmatpush.bf16.msra.mxu0 %v3339
    %4326 = vmatpush.bf16.msra.mxu0 %v3330
    %4327 = vmatpush.bf16.msra.mxu0 %v3321
    %4328 = vmatpush.bf16.msra.mxu0 %v3312
    %4329 = vmatpush.bf16.msra.mxu0 %v3303
    %4330 = vmatpush.bf16.msra.mxu0 %v3294
    %4331 = vmatpush.bf16.msra.mxu0 %v3285
    %4332 = vmatmul.bf16.gmra.mxu0 %v4150
    %v4333 = vpop.f32.mrf.mxu0
    %v4334 = vadd.f32 %v4321, %v4333
    %v4335 = vpop.f32.mrf.mxu0
    %4336 = vdwg.mxu0
    %4337 = vmatpush.bf16.msra.mxu0 %v3420
    %4338 = vmatpush.bf16.msra.mxu0 %v3411
    %4339 = vmatpush.bf16.msra.mxu0 %v3402
    %4340 = vmatpush.bf16.msra.mxu0 %v3393
    %4341 = vmatpush.bf16.msra.mxu0 %v3384
    %4342 = vmatpush.bf16.msra.mxu0 %v3375
    %4343 = vmatpush.bf16.msra.mxu0 %v3366
    %4344 = vmatpush.bf16.msra.mxu0 %v3357
    %4345 = vmatmul.bf16.gmra.mxu0 %v4151
    %v4346 = vpop.f32.mrf.mxu0
    %v4347 = vadd.f32 %v4334, %v4346
    %v4348 = vpop.f32.mrf.mxu0
    %4349 = vdwg.mxu0
    %4350 = vmatpush.bf16.msra.mxu0 %v3277
    %4351 = vmatpush.bf16.msra.mxu0 %v3268
    %4352 = vmatpush.bf16.msra.mxu0 %v3259
    %4353 = vmatpush.bf16.msra.mxu0 %v3250
    %4354 = vmatpush.bf16.msra.mxu0 %v3241
    %4355 = vmatpush.bf16.msra.mxu0 %v3232
    %4356 = vmatpush.bf16.msra.mxu0 %v3223
    %4357 = vmatpush.bf16.msra.mxu0 %v3214
    %4358 = vmatmul.bf16.gmra.mxu0 %v4149
    %v4359 = vpop.f32.mrf.mxu0
    %v4360 = vadd.f32 %v2524, %v4359
    %v4361 = vpop.f32.mrf.mxu0
    %4362 = vdwg.mxu0
    %4363 = vmatpush.bf16.msra.mxu0 %v3349
    %4364 = vmatpush.bf16.msra.mxu0 %v3340
    %4365 = vmatpush.bf16.msra.mxu0 %v3331
    %4366 = vmatpush.bf16.msra.mxu0 %v3322
    %4367 = vmatpush.bf16.msra.mxu0 %v3313
    %4368 = vmatpush.bf16.msra.mxu0 %v3304
    %4369 = vmatpush.bf16.msra.mxu0 %v3295
    %4370 = vmatpush.bf16.msra.mxu0 %v3286
    %4371 = vmatmul.bf16.gmra.mxu0 %v4150
    %v4372 = vpop.f32.mrf.mxu0
    %v4373 = vadd.f32 %v4360, %v4372
    %v4374 = vpop.f32.mrf.mxu0
    %4375 = vdwg.mxu0
    %4376 = vmatpush.bf16.msra.mxu0 %v3421
    %4377 = vmatpush.bf16.msra.mxu0 %v3412
    %4378 = vmatpush.bf16.msra.mxu0 %v3403
    %4379 = vmatpush.bf16.msra.mxu0 %v3394
    %4380 = vmatpush.bf16.msra.mxu0 %v3385
    %4381 = vmatpush.bf16.msra.mxu0 %v3376
    %4382 = vmatpush.bf16.msra.mxu0 %v3367
    %4383 = vmatpush.bf16.msra.mxu0 %v3358
    %4384 = vmatmul.bf16.gmra.mxu0 %v4151
    %v4385 = vpop.f32.mrf.mxu0
    %v4386 = vadd.f32 %v4373, %v4385
    %v4387 = vpop.f32.mrf.mxu0
    %4388 = vdwg.mxu0
    %4389 = vmatpush.bf16.msra.mxu0 %v3278
    %4390 = vmatpush.bf16.msra.mxu0 %v3269
    %4391 = vmatpush.bf16.msra.mxu0 %v3260
    %4392 = vmatpush.bf16.msra.mxu0 %v3251
    %4393 = vmatpush.bf16.msra.mxu0 %v3242
    %4394 = vmatpush.bf16.msra.mxu0 %v3233
    %4395 = vmatpush.bf16.msra.mxu0 %v3224
    %4396 = vmatpush.bf16.msra.mxu0 %v3215
    %4397 = vmatmul.bf16.gmra.mxu0 %v4149
    %v4398 = vpop.f32.mrf.mxu0
    %v4399 = vadd.f32 %v2525, %v4398
    %v4400 = vpop.f32.mrf.mxu0
    %4401 = vdwg.mxu0
    %4402 = vmatpush.bf16.msra.mxu0 %v3350
    %4403 = vmatpush.bf16.msra.mxu0 %v3341
    %4404 = vmatpush.bf16.msra.mxu0 %v3332
    %4405 = vmatpush.bf16.msra.mxu0 %v3323
    %4406 = vmatpush.bf16.msra.mxu0 %v3314
    %4407 = vmatpush.bf16.msra.mxu0 %v3305
    %4408 = vmatpush.bf16.msra.mxu0 %v3296
    %4409 = vmatpush.bf16.msra.mxu0 %v3287
    %4410 = vmatmul.bf16.gmra.mxu0 %v4150
    %v4411 = vpop.f32.mrf.mxu0
    %v4412 = vadd.f32 %v4399, %v4411
    %v4413 = vpop.f32.mrf.mxu0
    %4414 = vdwg.mxu0
    %4415 = vmatpush.bf16.msra.mxu0 %v3422
    %4416 = vmatpush.bf16.msra.mxu0 %v3413
    %4417 = vmatpush.bf16.msra.mxu0 %v3404
    %4418 = vmatpush.bf16.msra.mxu0 %v3395
    %4419 = vmatpush.bf16.msra.mxu0 %v3386
    %4420 = vmatpush.bf16.msra.mxu0 %v3377
    %4421 = vmatpush.bf16.msra.mxu0 %v3368
    %4422 = vmatpush.bf16.msra.mxu0 %v3359
    %4423 = vmatmul.bf16.gmra.mxu0 %v4151
    %v4424 = vpop.f32.mrf.mxu0
    %v4425 = vadd.f32 %v4412, %v4424
    %v4426 = vpop.f32.mrf.mxu0
    %4427 = vdwg.mxu0
    %4428 = vmatpush.bf16.msra.mxu0 %v3279
    %4429 = vmatpush.bf16.msra.mxu0 %v3270
    %4430 = vmatpush.bf16.msra.mxu0 %v3261
    %4431 = vmatpush.bf16.msra.mxu0 %v3252
    %4432 = vmatpush.bf16.msra.mxu0 %v3243
    %4433 = vmatpush.bf16.msra.mxu0 %v3234
    %4434 = vmatpush.bf16.msra.mxu0 %v3225
    %4435 = vmatpush.bf16.msra.mxu0 %v3216
    %4436 = vmatmul.bf16.gmra.mxu0 %v4149
    %v4437 = vpop.f32.mrf.mxu0
    %v4438 = vadd.f32 %v2526, %v4437
    %v4439 = vpop.f32.mrf.mxu0
    %4440 = vdwg.mxu0
    %4441 = vmatpush.bf16.msra.mxu0 %v3351
    %4442 = vmatpush.bf16.msra.mxu0 %v3342
    %4443 = vmatpush.bf16.msra.mxu0 %v3333
    %4444 = vmatpush.bf16.msra.mxu0 %v3324
    %4445 = vmatpush.bf16.msra.mxu0 %v3315
    %4446 = vmatpush.bf16.msra.mxu0 %v3306
    %4447 = vmatpush.bf16.msra.mxu0 %v3297
    %4448 = vmatpush.bf16.msra.mxu0 %v3288
    %4449 = vmatmul.bf16.gmra.mxu0 %v4150
    %v4450 = vpop.f32.mrf.mxu0
    %v4451 = vadd.f32 %v4438, %v4450
    %v4452 = vpop.f32.mrf.mxu0
    %4453 = vdwg.mxu0
    %4454 = vmatpush.bf16.msra.mxu0 %v3423
    %4455 = vmatpush.bf16.msra.mxu0 %v3414
    %4456 = vmatpush.bf16.msra.mxu0 %v3405
    %4457 = vmatpush.bf16.msra.mxu0 %v3396
    %4458 = vmatpush.bf16.msra.mxu0 %v3387
    %4459 = vmatpush.bf16.msra.mxu0 %v3378
    %4460 = vmatpush.bf16.msra.mxu0 %v3369
    %4461 = vmatpush.bf16.msra.mxu0 %v3360
    %4462 = vmatmul.bf16.gmra.mxu0 %v4151
    %v4463 = vpop.f32.mrf.mxu0
    %v4464 = vadd.f32 %v4451, %v4463
    %v4465 = vpop.f32.mrf.mxu0
    %4466 = vdwg.mxu0
    %4467 = vmatpush.bf16.msra.mxu0 %v3280
    %4468 = vmatpush.bf16.msra.mxu0 %v3271
    %4469 = vmatpush.bf16.msra.mxu0 %v3262
    %4470 = vmatpush.bf16.msra.mxu0 %v3253
    %4471 = vmatpush.bf16.msra.mxu0 %v3244
    %4472 = vmatpush.bf16.msra.mxu0 %v3235
    %4473 = vmatpush.bf16.msra.mxu0 %v3226
    %4474 = vmatpush.bf16.msra.mxu0 %v3217
    %4475 = vmatmul.bf16.gmra.mxu0 %v4149
    %v4476 = vpop.f32.mrf.mxu0
    %v4477 = vadd.f32 %v2527, %v4476
    %v4478 = vpop.f32.mrf.mxu0
    %4479 = vdwg.mxu0
    %4480 = vmatpush.bf16.msra.mxu0 %v3352
    %4481 = vmatpush.bf16.msra.mxu0 %v3343
    %4482 = vmatpush.bf16.msra.mxu0 %v3334
    %4483 = vmatpush.bf16.msra.mxu0 %v3325
    %4484 = vmatpush.bf16.msra.mxu0 %v3316
    %4485 = vmatpush.bf16.msra.mxu0 %v3307
    %4486 = vmatpush.bf16.msra.mxu0 %v3298
    %4487 = vmatpush.bf16.msra.mxu0 %v3289
    %4488 = vmatmul.bf16.gmra.mxu0 %v4150
    %v4489 = vpop.f32.mrf.mxu0
    %v4490 = vadd.f32 %v4477, %v4489
    %v4491 = vpop.f32.mrf.mxu0
    %4492 = vdwg.mxu0
    %4493 = vmatpush.bf16.msra.mxu0 %v3424
    %4494 = vmatpush.bf16.msra.mxu0 %v3415
    %4495 = vmatpush.bf16.msra.mxu0 %v3406
    %4496 = vmatpush.bf16.msra.mxu0 %v3397
    %4497 = vmatpush.bf16.msra.mxu0 %v3388
    %4498 = vmatpush.bf16.msra.mxu0 %v3379
    %4499 = vmatpush.bf16.msra.mxu0 %v3370
    %4500 = vmatpush.bf16.msra.mxu0 %v3361
    %4501 = vmatmul.bf16.gmra.mxu0 %v4151
    %v4502 = vpop.f32.mrf.mxu0
    %v4503 = vadd.f32 %v4490, %v4502
    %v4504 = vpop.f32.mrf.mxu0
    %4505 = vdwg.mxu0
    %v4506 = vadd.f32 %v4135, %v4191
    %v4507 = vadd.f32 %v4136, %v4230
    %v4508 = vadd.f32 %v4137, %v4269
    %v4509 = vadd.f32 %v4138, %v4308
    %v4510 = vadd.f32 %v4139, %v4347
    %v4511 = vadd.f32 %v4140, %v4386
    %v4512 = vxor.u32 %v4506, 2147483648
    %v4513 = vxor.u32 %v4507, 2147483648
    %v4514 = vxor.u32 %v4508, 2147483648
    %v4515 = vxor.u32 %v4509, 2147483648
    %v4516 = vxor.u32 %v4510, 2147483648
    %v4517 = vxor.u32 %v4511, 2147483648
    %v4518 = vmul.f32 %v4512, 1.442695
    %v4519 = vpow.pop %v4518
    %v4520 = vmul.f32 %v4513, 1.442695
    %v4521 = vpow.pop %v4520
    %v4522 = vmul.f32 %v4514, 1.442695
    %v4523 = vpow.pop %v4522
    %v4524 = vmul.f32 %v4515, 1.442695
    %v4525 = vpow.pop %v4524
    %v4526 = vmul.f32 %v4516, 1.442695
    %v4527 = vpow.pop %v4526
    %v4528 = vmul.f32 %v4517, 1.442695
    %v4529 = vpow.pop %v4528
    %v4530 = vadd.f32 %v4519, 1.0
    %v4531 = vadd.f32 %v4521, 1.0
    %v4532 = vadd.f32 %v4523, 1.0
    %v4533 = vadd.f32 %v4525, 1.0
    %v4534 = vadd.f32 %v4527, 1.0
    %v4535 = vadd.f32 %v4529, 1.0
    %v4536 = vrcp.pop %v4530
    %v4537 = vmul.f32 %v4530, %v4536
    %v4538 = vsub.f32 1.0, %v4537
    %v4539 = vmul.f32 %v4536, %v4538
    %v4540 = vadd.f32 %v4536, %v4539
    %vm4541 = vweird.f32 %v4530
    %vm4542 = vweird.f32 %v4536
    %vm4543 = vmor %vm4541, %vm4542
    %v4544 = vsel %vm4543, %v4536, %v4540
    %v4545 = vand.u32 2147483647, %v4530
    %vm4546 = vcmp.eq.f32.partialorder %v4545, 8.507059e+37
    %v4547 = vand.u32 %v4530, 2147483648
    %v4548 = vor.u32 1.1754944e-38, %v4547
    %v4549 = vsel %vm4546, %v4548, %v4544
    %v4550 = vmul.f32 1.0, %v4549
    %v4551 = vrcp.pop %v4531
    %v4552 = vmul.f32 %v4531, %v4551
    %v4553 = vsub.f32 1.0, %v4552
    %v4554 = vmul.f32 %v4551, %v4553
    %v4555 = vadd.f32 %v4551, %v4554
    %vm4556 = vweird.f32 %v4531
    %vm4557 = vweird.f32 %v4551
    %vm4558 = vmor %vm4556, %vm4557
    %v4559 = vsel %vm4558, %v4551, %v4555
    %v4560 = vand.u32 2147483647, %v4531
    %vm4561 = vcmp.eq.f32.partialorder %v4560, 8.507059e+37
    %v4562 = vand.u32 %v4531, 2147483648
    %v4563 = vor.u32 1.1754944e-38, %v4562
    %v4564 = vsel %vm4561, %v4563, %v4559
    %v4565 = vmul.f32 1.0, %v4564
    %v4566 = vrcp.pop %v4532
    %v4567 = vmul.f32 %v4532, %v4566
    %v4568 = vsub.f32 1.0, %v4567
    %v4569 = vmul.f32 %v4566, %v4568
    %v4570 = vadd.f32 %v4566, %v4569
    %vm4571 = vweird.f32 %v4532
    %vm4572 = vweird.f32 %v4566
    %vm4573 = vmor %vm4571, %vm4572
    %v4574 = vsel %vm4573, %v4566, %v4570
    %v4575 = vand.u32 2147483647, %v4532
    %vm4576 = vcmp.eq.f32.partialorder %v4575, 8.507059e+37
    %v4577 = vand.u32 %v4532, 2147483648
    %v4578 = vor.u32 1.1754944e-38, %v4577
    %v4579 = vsel %vm4576, %v4578, %v4574
    %v4580 = vmul.f32 1.0, %v4579
    %v4581 = vrcp.pop %v4533
    %v4582 = vmul.f32 %v4533, %v4581
    %v4583 = vsub.f32 1.0, %v4582
    %v4584 = vmul.f32 %v4581, %v4583
    %v4585 = vadd.f32 %v4581, %v4584
    %vm4586 = vweird.f32 %v4533
    %vm4587 = vweird.f32 %v4581
    %vm4588 = vmor %vm4586, %vm4587
    %v4589 = vsel %vm4588, %v4581, %v4585
    %v4590 = vand.u32 2147483647, %v4533
    %vm4591 = vcmp.eq.f32.partialorder %v4590, 8.507059e+37
    %v4592 = vand.u32 %v4533, 2147483648
    %v4593 = vor.u32 1.1754944e-38, %v4592
    %v4594 = vsel %vm4591, %v4593, %v4589
    %v4595 = vmul.f32 1.0, %v4594
    %v4596 = vrcp.pop %v4534
    %v4597 = vmul.f32 %v4534, %v4596
    %v4598 = vsub.f32 1.0, %v4597
    %v4599 = vmul.f32 %v4596, %v4598
    %v4600 = vadd.f32 %v4596, %v4599
    %vm4601 = vweird.f32 %v4534
    %vm4602 = vweird.f32 %v4596
    %vm4603 = vmor %vm4601, %vm4602
    %v4604 = vsel %vm4603, %v4596, %v4600
    %v4605 = vand.u32 2147483647, %v4534
    %vm4606 = vcmp.eq.f32.partialorder %v4605, 8.507059e+37
    %v4607 = vand.u32 %v4534, 2147483648
    %v4608 = vor.u32 1.1754944e-38, %v4607
    %v4609 = vsel %vm4606, %v4608, %v4604
    %v4610 = vmul.f32 1.0, %v4609
    %v4611 = vrcp.pop %v4535
    %v4612 = vmul.f32 %v4535, %v4611
    %v4613 = vsub.f32 1.0, %v4612
    %v4614 = vmul.f32 %v4611, %v4613
    %v4615 = vadd.f32 %v4611, %v4614
    %vm4616 = vweird.f32 %v4535
    %vm4617 = vweird.f32 %v4611
    %vm4618 = vmor %vm4616, %vm4617
    %v4619 = vsel %vm4618, %v4611, %v4615
    %v4620 = vand.u32 2147483647, %v4535
    %vm4621 = vcmp.eq.f32.partialorder %v4620, 8.507059e+37
    %v4622 = vand.u32 %v4535, 2147483648
    %v4623 = vor.u32 1.1754944e-38, %v4622
    %v4624 = vsel %vm4621, %v4623, %v4619
    %v4625 = vmul.f32 1.0, %v4624
    %v4626 = vmul.f32 %v4550, %v4425
    %v4627 = vmul.f32 %v4565, %v4464
    %v4628 = vmul.f32 %v4580, %v4503
    %v4629 = vadd.f32 %v4141, %v4626
    %v4630 = vadd.f32 %v4142, %v4627
    %v4631 = vadd.f32 %v4143, %v4628
    %v4632 = vtanh.pop %v4629
    %v4633 = vtanh.pop %v4630
    %v4634 = vtanh.pop %v4631
    %v4635 = vsub.f32 1.0, %v4595
    %v4636 = vsub.f32 1.0, %v4610
    %v4637 = vsub.f32 1.0, %v4625
    %v4638 = vmul.f32 %v4635, %v4632
    %v4639 = vmul.f32 %v4636, %v4633
    %v4640 = vmul.f32 %v4637, %v4634
    %v4641 = vmul.f32 %v4595, %v4130
    %v4642 = vmul.f32 %v4610, %v4131
    %v4643 = vmul.f32 %v4625, %v4132
    %v4644 = vadd.f32 %v4638, %v4641
    %v4645 = vadd.f32 %v4639, %v4642
    %v4646 = vadd.f32 %v4640, %v4643
    %v4647 = vpack.c.bf16 %v4645, %v4644
    %v4648 = vpack.c.bf16 %v4646, %v4646
    %v4649 = vadd.f32 %v1533, %v2159
    %v4650 = vadd.f32 %v1591, %v2172
    %v4651 = vadd.f32 %v1649, %v2185
    %v4652 = vadd.f32 %v1707, %v2198
    %v4653 = vadd.f32 %v1765, %v2211
    %v4654 = vadd.f32 %v1823, %v2224
    %v4655 = vadd.f32 %v1881, %v2237
    %v4656 = vadd.f32 %v1939, %v2250
    %v4657 = vadd.f32 %v1997, %v2263
    %v4660 = vunpack.c.l.b16 %v4647
    %v4661 = vunpack.c.h.b16 %v4647
    %v4662 = vunpack.c.l.b16 %v4648
    %v4663 = vpack.c.b16 %v4660, %v4660
    %v4664 = vpack.c.b16 %v4661, %v4661
    %v4665 = vpack.c.b16 %v4662, %v4662
    %4669 = vmatpush.bf16.msra.mxu0 %v3272
    %4670 = vmatpush.bf16.msra.mxu0 %v3263
    %4671 = vmatpush.bf16.msra.mxu0 %v3254
    %4672 = vmatpush.bf16.msra.mxu0 %v3245
    %4673 = vmatpush.bf16.msra.mxu0 %v3236
    %4674 = vmatpush.bf16.msra.mxu0 %v3227
    %4675 = vmatpush.bf16.msra.mxu0 %v3218
    %4676 = vmatpush.bf16.msra.mxu0 %v3209
    %4677 = vmatmul.bf16.gmra.mxu0 %v4663
    %v4678 = vpop.f32.mrf.mxu0
    %v4679 = vadd.f32 %v2519, %v4678
    %v4680 = vpop.f32.mrf.mxu0
    %4681 = vdwg.mxu0
    %4682 = vmatpush.bf16.msra.mxu0 %v3344
    %4683 = vmatpush.bf16.msra.mxu0 %v3335
    %4684 = vmatpush.bf16.msra.mxu0 %v3326
    %4685 = vmatpush.bf16.msra.mxu0 %v3317
    %4686 = vmatpush.bf16.msra.mxu0 %v3308
    %4687 = vmatpush.bf16.msra.mxu0 %v3299
    %4688 = vmatpush.bf16.msra.mxu0 %v3290
    %4689 = vmatpush.bf16.msra.mxu0 %v3281
    %4690 = vmatmul.bf16.gmra.mxu0 %v4664
    %v4691 = vpop.f32.mrf.mxu0
    %v4692 = vadd.f32 %v4679, %v4691
    %v4693 = vpop.f32.mrf.mxu0
    %4694 = vdwg.mxu0
    %4695 = vmatpush.bf16.msra.mxu0 %v3416
    %4696 = vmatpush.bf16.msra.mxu0 %v3407
    %4697 = vmatpush.bf16.msra.mxu0 %v3398
    %4698 = vmatpush.bf16.msra.mxu0 %v3389
    %4699 = vmatpush.bf16.msra.mxu0 %v3380
    %4700 = vmatpush.bf16.msra.mxu0 %v3371
    %4701 = vmatpush.bf16.msra.mxu0 %v3362
    %4702 = vmatpush.bf16.msra.mxu0 %v3353
    %4703 = vmatmul.bf16.gmra.mxu0 %v4665
    %v4704 = vpop.f32.mrf.mxu0
    %v4705 = vadd.f32 %v4692, %v4704
    %v4706 = vpop.f32.mrf.mxu0
    %4707 = vdwg.mxu0
    %4708 = vmatpush.bf16.msra.mxu0 %v3273
    %4709 = vmatpush.bf16.msra.mxu0 %v3264
    %4710 = vmatpush.bf16.msra.mxu0 %v3255
    %4711 = vmatpush.bf16.msra.mxu0 %v3246
    %4712 = vmatpush.bf16.msra.mxu0 %v3237
    %4713 = vmatpush.bf16.msra.mxu0 %v3228
    %4714 = vmatpush.bf16.msra.mxu0 %v3219
    %4715 = vmatpush.bf16.msra.mxu0 %v3210
    %4716 = vmatmul.bf16.gmra.mxu0 %v4663
    %v4717 = vpop.f32.mrf.mxu0
    %v4718 = vadd.f32 %v2520, %v4717
    %v4719 = vpop.f32.mrf.mxu0
    %4720 = vdwg.mxu0
    %4721 = vmatpush.bf16.msra.mxu0 %v3345
    %4722 = vmatpush.bf16.msra.mxu0 %v3336
    %4723 = vmatpush.bf16.msra.mxu0 %v3327
    %4724 = vmatpush.bf16.msra.mxu0 %v3318
    %4725 = vmatpush.bf16.msra.mxu0 %v3309
    %4726 = vmatpush.bf16.msra.mxu0 %v3300
    %4727 = vmatpush.bf16.msra.mxu0 %v3291
    %4728 = vmatpush.bf16.msra.mxu0 %v3282
    %4729 = vmatmul.bf16.gmra.mxu0 %v4664
    %v4730 = vpop.f32.mrf.mxu0
    %v4731 = vadd.f32 %v4718, %v4730
    %v4732 = vpop.f32.mrf.mxu0
    %4733 = vdwg.mxu0
    %4734 = vmatpush.bf16.msra.mxu0 %v3417
    %4735 = vmatpush.bf16.msra.mxu0 %v3408
    %4736 = vmatpush.bf16.msra.mxu0 %v3399
    %4737 = vmatpush.bf16.msra.mxu0 %v3390
    %4738 = vmatpush.bf16.msra.mxu0 %v3381
    %4739 = vmatpush.bf16.msra.mxu0 %v3372
    %4740 = vmatpush.bf16.msra.mxu0 %v3363
    %4741 = vmatpush.bf16.msra.mxu0 %v3354
    %4742 = vmatmul.bf16.gmra.mxu0 %v4665
    %v4743 = vpop.f32.mrf.mxu0
    %v4744 = vadd.f32 %v4731, %v4743
    %v4745 = vpop.f32.mrf.mxu0
    %4746 = vdwg.mxu0
    %4747 = vmatpush.bf16.msra.mxu0 %v3274
    %4748 = vmatpush.bf16.msra.mxu0 %v3265
    %4749 = vmatpush.bf16.msra.mxu0 %v3256
    %4750 = vmatpush.bf16.msra.mxu0 %v3247
    %4751 = vmatpush.bf16.msra.mxu0 %v3238
    %4752 = vmatpush.bf16.msra.mxu0 %v3229
    %4753 = vmatpush.bf16.msra.mxu0 %v3220
    %4754 = vmatpush.bf16.msra.mxu0 %v3211
    %4755 = vmatmul.bf16.gmra.mxu0 %v4663
    %v4756 = vpop.f32.mrf.mxu0
    %v4757 = vadd.f32 %v2521, %v4756
    %v4758 = vpop.f32.mrf.mxu0
    %4759 = vdwg.mxu0
    %4760 = vmatpush.bf16.msra.mxu0 %v3346
    %4761 = vmatpush.bf16.msra.mxu0 %v3337
    %4762 = vmatpush.bf16.msra.mxu0 %v3328
    %4763 = vmatpush.bf16.msra.mxu0 %v3319
    %4764 = vmatpush.bf16.msra.mxu0 %v3310
    %4765 = vmatpush.bf16.msra.mxu0 %v3301
    %4766 = vmatpush.bf16.msra.mxu0 %v3292
    %4767 = vmatpush.bf16.msra.mxu0 %v3283
    %4768 = vmatmul.bf16.gmra.mxu0 %v4664
    %v4769 = vpop.f32.mrf.mxu0
    %v4770 = vadd.f32 %v4757, %v4769
    %v4771 = vpop.f32.mrf.mxu0
    %4772 = vdwg.mxu0
    %4773 = vmatpush.bf16.msra.mxu0 %v3418
    %4774 = vmatpush.bf16.msra.mxu0 %v3409
    %4775 = vmatpush.bf16.msra.mxu0 %v3400
    %4776 = vmatpush.bf16.msra.mxu0 %v3391
    %4777 = vmatpush.bf16.msra.mxu0 %v3382
    %4778 = vmatpush.bf16.msra.mxu0 %v3373
    %4779 = vmatpush.bf16.msra.mxu0 %v3364
    %4780 = vmatpush.bf16.msra.mxu0 %v3355
    %4781 = vmatmul.bf16.gmra.mxu0 %v4665
    %v4782 = vpop.f32.mrf.mxu0
    %v4783 = vadd.f32 %v4770, %v4782
    %v4784 = vpop.f32.mrf.mxu0
    %4785 = vdwg.mxu0
    %4786 = vmatpush.bf16.msra.mxu0 %v3275
    %4787 = vmatpush.bf16.msra.mxu0 %v3266
    %4788 = vmatpush.bf16.msra.mxu0 %v3257
    %4789 = vmatpush.bf16.msra.mxu0 %v3248
    %4790 = vmatpush.bf16.msra.mxu0 %v3239
    %4791 = vmatpush.bf16.msra.mxu0 %v3230
    %4792 = vmatpush.bf16.msra.mxu0 %v3221
    %4793 = vmatpush.bf16.msra.mxu0 %v3212
    %4794 = vmatmul.bf16.gmra.mxu0 %v4663
    %v4795 = vpop.f32.mrf.mxu0
    %v4796 = vadd.f32 %v2522, %v4795
    %v4797 = vpop.f32.mrf.mxu0
    %4798 = vdwg.mxu0
    %4799 = vmatpush.bf16.msra.mxu0 %v3347
    %4800 = vmatpush.bf16.msra.mxu0 %v3338
    %4801 = vmatpush.bf16.msra.mxu0 %v3329
    %4802 = vmatpush.bf16.msra.mxu0 %v3320
    %4803 = vmatpush.bf16.msra.mxu0 %v3311
    %4804 = vmatpush.bf16.msra.mxu0 %v3302
    %4805 = vmatpush.bf16.msra.mxu0 %v3293
    %4806 = vmatpush.bf16.msra.mxu0 %v3284
    %4807 = vmatmul.bf16.gmra.mxu0 %v4664
    %v4808 = vpop.f32.mrf.mxu0
    %v4809 = vadd.f32 %v4796, %v4808
    %v4810 = vpop.f32.mrf.mxu0
    %4811 = vdwg.mxu0
    %4812 = vmatpush.bf16.msra.mxu0 %v3419
    %4813 = vmatpush.bf16.msra.mxu0 %v3410
    %4814 = vmatpush.bf16.msra.mxu0 %v3401
    %4815 = vmatpush.bf16.msra.mxu0 %v3392
    %4816 = vmatpush.bf16.msra.mxu0 %v3383
    %4817 = vmatpush.bf16.msra.mxu0 %v3374
    %4818 = vmatpush.bf16.msra.mxu0 %v3365
    %4819 = vmatpush.bf16.msra.mxu0 %v3356
    %4820 = vmatmul.bf16.gmra.mxu0 %v4665
    %v4821 = vpop.f32.mrf.mxu0
    %v4822 = vadd.f32 %v4809, %v4821
    %v4823 = vpop.f32.mrf.mxu0
    %4824 = vdwg.mxu0
    %4825 = vmatpush.bf16.msra.mxu0 %v3276
    %4826 = vmatpush.bf16.msra.mxu0 %v3267
    %4827 = vmatpush.bf16.msra.mxu0 %v3258
    %4828 = vmatpush.bf16.msra.mxu0 %v3249
    %4829 = vmatpush.bf16.msra.mxu0 %v3240
    %4830 = vmatpush.bf16.msra.mxu0 %v3231
    %4831 = vmatpush.bf16.msra.mxu0 %v3222
    %4832 = vmatpush.bf16.msra.mxu0 %v3213
    %4833 = vmatmul.bf16.gmra.mxu0 %v4663
    %v4834 = vpop.f32.mrf.mxu0
    %v4835 = vadd.f32 %v2523, %v4834
    %v4836 = vpop.f32.mrf.mxu0
    %4837 = vdwg.mxu0
    %4838 = vmatpush.bf16.msra.mxu0 %v3348
    %4839 = vmatpush.bf16.msra.mxu0 %v3339
    %4840 = vmatpush.bf16.msra.mxu0 %v3330
    %4841 = vmatpush.bf16.msra.mxu0 %v3321
    %4842 = vmatpush.bf16.msra.mxu0 %v3312
    %4843 = vmatpush.bf16.msra.mxu0 %v3303
    %4844 = vmatpush.bf16.msra.mxu0 %v3294
    %4845 = vmatpush.bf16.msra.mxu0 %v3285
    %4846 = vmatmul.bf16.gmra.mxu0 %v4664
    %v4847 = vpop.f32.mrf.mxu0
    %v4848 = vadd.f32 %v4835, %v4847
    %v4849 = vpop.f32.mrf.mxu0
    %4850 = vdwg.mxu0
    %4851 = vmatpush.bf16.msra.mxu0 %v3420
    %4852 = vmatpush.bf16.msra.mxu0 %v3411
    %4853 = vmatpush.bf16.msra.mxu0 %v3402
    %4854 = vmatpush.bf16.msra.mxu0 %v3393
    %4855 = vmatpush.bf16.msra.mxu0 %v3384
    %4856 = vmatpush.bf16.msra.mxu0 %v3375
    %4857 = vmatpush.bf16.msra.mxu0 %v3366
    %4858 = vmatpush.bf16.msra.mxu0 %v3357
    %4859 = vmatmul.bf16.gmra.mxu0 %v4665
    %v4860 = vpop.f32.mrf.mxu0
    %v4861 = vadd.f32 %v4848, %v4860
    %v4862 = vpop.f32.mrf.mxu0
    %4863 = vdwg.mxu0
    %4864 = vmatpush.bf16.msra.mxu0 %v3277
    %4865 = vmatpush.bf16.msra.mxu0 %v3268
    %4866 = vmatpush.bf16.msra.mxu0 %v3259
    %4867 = vmatpush.bf16.msra.mxu0 %v3250
    %4868 = vmatpush.bf16.msra.mxu0 %v3241
    %4869 = vmatpush.bf16.msra.mxu0 %v3232
    %4870 = vmatpush.bf16.msra.mxu0 %v3223
    %4871 = vmatpush.bf16.msra.mxu0 %v3214
    %4872 = vmatmul.bf16.gmra.mxu0 %v4663
    %v4873 = vpop.f32.mrf.mxu0
    %v4874 = vadd.f32 %v2524, %v4873
    %v4875 = vpop.f32.mrf.mxu0
    %4876 = vdwg.mxu0
    %4877 = vmatpush.bf16.msra.mxu0 %v3349
    %4878 = vmatpush.bf16.msra.mxu0 %v3340
    %4879 = vmatpush.bf16.msra.mxu0 %v3331
    %4880 = vmatpush.bf16.msra.mxu0 %v3322
    %4881 = vmatpush.bf16.msra.mxu0 %v3313
    %4882 = vmatpush.bf16.msra.mxu0 %v3304
    %4883 = vmatpush.bf16.msra.mxu0 %v3295
    %4884 = vmatpush.bf16.msra.mxu0 %v3286
    %4885 = vmatmul.bf16.gmra.mxu0 %v4664
    %v4886 = vpop.f32.mrf.mxu0
    %v4887 = vadd.f32 %v4874, %v4886
    %v4888 = vpop.f32.mrf.mxu0
    %4889 = vdwg.mxu0
    %4890 = vmatpush.bf16.msra.mxu0 %v3421
    %4891 = vmatpush.bf16.msra.mxu0 %v3412
    %4892 = vmatpush.bf16.msra.mxu0 %v3403
    %4893 = vmatpush.bf16.msra.mxu0 %v3394
    %4894 = vmatpush.bf16.msra.mxu0 %v3385
    %4895 = vmatpush.bf16.msra.mxu0 %v3376
    %4896 = vmatpush.bf16.msra.mxu0 %v3367
    %4897 = vmatpush.bf16.msra.mxu0 %v3358
    %4898 = vmatmul.bf16.gmra.mxu0 %v4665
    %v4899 = vpop.f32.mrf.mxu0
    %v4900 = vadd.f32 %v4887, %v4899
    %v4901 = vpop.f32.mrf.mxu0
    %4902 = vdwg.mxu0
    %4903 = vmatpush.bf16.msra.mxu0 %v3278
    %4904 = vmatpush.bf16.msra.mxu0 %v3269
    %4905 = vmatpush.bf16.msra.mxu0 %v3260
    %4906 = vmatpush.bf16.msra.mxu0 %v3251
    %4907 = vmatpush.bf16.msra.mxu0 %v3242
    %4908 = vmatpush.bf16.msra.mxu0 %v3233
    %4909 = vmatpush.bf16.msra.mxu0 %v3224
    %4910 = vmatpush.bf16.msra.mxu0 %v3215
    %4911 = vmatmul.bf16.gmra.mxu0 %v4663
    %v4912 = vpop.f32.mrf.mxu0
    %v4913 = vadd.f32 %v2525, %v4912
    %v4914 = vpop.f32.mrf.mxu0
    %4915 = vdwg.mxu0
    %4916 = vmatpush.bf16.msra.mxu0 %v3350
    %4917 = vmatpush.bf16.msra.mxu0 %v3341
    %4918 = vmatpush.bf16.msra.mxu0 %v3332
    %4919 = vmatpush.bf16.msra.mxu0 %v3323
    %4920 = vmatpush.bf16.msra.mxu0 %v3314
    %4921 = vmatpush.bf16.msra.mxu0 %v3305
    %4922 = vmatpush.bf16.msra.mxu0 %v3296
    %4923 = vmatpush.bf16.msra.mxu0 %v3287
    %4924 = vmatmul.bf16.gmra.mxu0 %v4664
    %v4925 = vpop.f32.mrf.mxu0
    %v4926 = vadd.f32 %v4913, %v4925
    %v4927 = vpop.f32.mrf.mxu0
    %4928 = vdwg.mxu0
    %4929 = vmatpush.bf16.msra.mxu0 %v3422
    %4930 = vmatpush.bf16.msra.mxu0 %v3413
    %4931 = vmatpush.bf16.msra.mxu0 %v3404
    %4932 = vmatpush.bf16.msra.mxu0 %v3395
    %4933 = vmatpush.bf16.msra.mxu0 %v3386
    %4934 = vmatpush.bf16.msra.mxu0 %v3377
    %4935 = vmatpush.bf16.msra.mxu0 %v3368
    %4936 = vmatpush.bf16.msra.mxu0 %v3359
    %4937 = vmatmul.bf16.gmra.mxu0 %v4665
    %v4938 = vpop.f32.mrf.mxu0
    %v4939 = vadd.f32 %v4926, %v4938
    %v4940 = vpop.f32.mrf.mxu0
    %4941 = vdwg.mxu0
    %4942 = vmatpush.bf16.msra.mxu0 %v3279
    %4943 = vmatpush.bf16.msra.mxu0 %v3270
    %4944 = vmatpush.bf16.msra.mxu0 %v3261
    %4945 = vmatpush.bf16.msra.mxu0 %v3252
    %4946 = vmatpush.bf16.msra.mxu0 %v3243
    %4947 = vmatpush.bf16.msra.mxu0 %v3234
    %4948 = vmatpush.bf16.msra.mxu0 %v3225
    %4949 = vmatpush.bf16.msra.mxu0 %v3216
    %4950 = vmatmul.bf16.gmra.mxu0 %v4663
    %v4951 = vpop.f32.mrf.mxu0
    %v4952 = vadd.f32 %v2526, %v4951
    %v4953 = vpop.f32.mrf.mxu0
    %4954 = vdwg.mxu0
    %4955 = vmatpush.bf16.msra.mxu0 %v3351
    %4956 = vmatpush.bf16.msra.mxu0 %v3342
    %4957 = vmatpush.bf16.msra.mxu0 %v3333
    %4958 = vmatpush.bf16.msra.mxu0 %v3324
    %4959 = vmatpush.bf16.msra.mxu0 %v3315
    %4960 = vmatpush.bf16.msra.mxu0 %v3306
    %4961 = vmatpush.bf16.msra.mxu0 %v3297
    %4962 = vmatpush.bf16.msra.mxu0 %v3288
    %4963 = vmatmul.bf16.gmra.mxu0 %v4664
    %v4964 = vpop.f32.mrf.mxu0
    %v4965 = vadd.f32 %v4952, %v4964
    %v4966 = vpop.f32.mrf.mxu0
    %4967 = vdwg.mxu0
    %4968 = vmatpush.bf16.msra.mxu0 %v3423
    %4969 = vmatpush.bf16.msra.mxu0 %v3414
    %4970 = vmatpush.bf16.msra.mxu0 %v3405
    %4971 = vmatpush.bf16.msra.mxu0 %v3396
    %4972 = vmatpush.bf16.msra.mxu0 %v3387
    %4973 = vmatpush.bf16.msra.mxu0 %v3378
    %4974 = vmatpush.bf16.msra.mxu0 %v3369
    %4975 = vmatpush.bf16.msra.mxu0 %v3360
    %4976 = vmatmul.bf16.gmra.mxu0 %v4665
    %v4977 = vpop.f32.mrf.mxu0
    %v4978 = vadd.f32 %v4965, %v4977
    %v4979 = vpop.f32.mrf.mxu0
    %4980 = vdwg.mxu0
    %4981 = vmatpush.bf16.msra.mxu0 %v3280
    %4982 = vmatpush.bf16.msra.mxu0 %v3271
    %4983 = vmatpush.bf16.msra.mxu0 %v3262
    %4984 = vmatpush.bf16.msra.mxu0 %v3253
    %4985 = vmatpush.bf16.msra.mxu0 %v3244
    %4986 = vmatpush.bf16.msra.mxu0 %v3235
    %4987 = vmatpush.bf16.msra.mxu0 %v3226
    %4988 = vmatpush.bf16.msra.mxu0 %v3217
    %4989 = vmatmul.bf16.gmra.mxu0 %v4663
    %v4990 = vpop.f32.mrf.mxu0
    %v4991 = vadd.f32 %v2527, %v4990
    %v4992 = vpop.f32.mrf.mxu0
    %4993 = vdwg.mxu0
    %4994 = vmatpush.bf16.msra.mxu0 %v3352
    %4995 = vmatpush.bf16.msra.mxu0 %v3343
    %4996 = vmatpush.bf16.msra.mxu0 %v3334
    %4997 = vmatpush.bf16.msra.mxu0 %v3325
    %4998 = vmatpush.bf16.msra.mxu0 %v3316
    %4999 = vmatpush.bf16.msra.mxu0 %v3307
    %5000 = vmatpush.bf16.msra.mxu0 %v3298
    %5001 = vmatpush.bf16.msra.mxu0 %v3289
    %5002 = vmatmul.bf16.gmra.mxu0 %v4664
    %v5003 = vpop.f32.mrf.mxu0
    %v5004 = vadd.f32 %v4991, %v5003
    %v5005 = vpop.f32.mrf.mxu0
    %5006 = vdwg.mxu0
    %5007 = vmatpush.bf16.msra.mxu0 %v3424
    %5008 = vmatpush.bf16.msra.mxu0 %v3415
    %5009 = vmatpush.bf16.msra.mxu0 %v3406
    %5010 = vmatpush.bf16.msra.mxu0 %v3397
    %5011 = vmatpush.bf16.msra.mxu0 %v3388
    %5012 = vmatpush.bf16.msra.mxu0 %v3379
    %5013 = vmatpush.bf16.msra.mxu0 %v3370
    %5014 = vmatpush.bf16.msra.mxu0 %v3361
    %5015 = vmatmul.bf16.gmra.mxu0 %v4665
    %v5016 = vpop.f32.mrf.mxu0
    %v5017 = vadd.f32 %v5004, %v5016
    %v5018 = vpop.f32.mrf.mxu0
    %5019 = vdwg.mxu0
    %v5020 = vadd.f32 %v4649, %v4705
    %v5021 = vadd.f32 %v4650, %v4744
    %v5022 = vadd.f32 %v4651, %v4783
    %v5023 = vadd.f32 %v4652, %v4822
    %v5024 = vadd.f32 %v4653, %v4861
    %v5025 = vadd.f32 %v4654, %v4900
    %v5026 = vxor.u32 %v5020, 2147483648
    %v5027 = vxor.u32 %v5021, 2147483648
    %v5028 = vxor.u32 %v5022, 2147483648
    %v5029 = vxor.u32 %v5023, 2147483648
    %v5030 = vxor.u32 %v5024, 2147483648
    %v5031 = vxor.u32 %v5025, 2147483648
    %v5032 = vmul.f32 %v5026, 1.442695
    %v5033 = vpow.pop %v5032
    %v5034 = vmul.f32 %v5027, 1.442695
    %v5035 = vpow.pop %v5034
    %v5036 = vmul.f32 %v5028, 1.442695
    %v5037 = vpow.pop %v5036
    %v5038 = vmul.f32 %v5029, 1.442695
    %v5039 = vpow.pop %v5038
    %v5040 = vmul.f32 %v5030, 1.442695
    %v5041 = vpow.pop %v5040
    %v5042 = vmul.f32 %v5031, 1.442695
    %v5043 = vpow.pop %v5042
    %v5044 = vadd.f32 %v5033, 1.0
    %v5045 = vadd.f32 %v5035, 1.0
    %v5046 = vadd.f32 %v5037, 1.0
    %v5047 = vadd.f32 %v5039, 1.0
    %v5048 = vadd.f32 %v5041, 1.0
    %v5049 = vadd.f32 %v5043, 1.0
    %v5050 = vrcp.pop %v5044
    %v5051 = vmul.f32 %v5044, %v5050
    %v5052 = vsub.f32 1.0, %v5051
    %v5053 = vmul.f32 %v5050, %v5052
    %v5054 = vadd.f32 %v5050, %v5053
    %vm5055 = vweird.f32 %v5044
    %vm5056 = vweird.f32 %v5050
    %vm5057 = vmor %vm5055, %vm5056
    %v5058 = vsel %vm5057, %v5050, %v5054
    %v5059 = vand.u32 2147483647, %v5044
    %vm5060 = vcmp.eq.f32.partialorder %v5059, 8.507059e+37
    %v5061 = vand.u32 %v5044, 2147483648
    %v5062 = vor.u32 1.1754944e-38, %v5061
    %v5063 = vsel %vm5060, %v5062, %v5058
    %v5064 = vmul.f32 1.0, %v5063
    %v5065 = vrcp.pop %v5045
    %v5066 = vmul.f32 %v5045, %v5065
    %v5067 = vsub.f32 1.0, %v5066
    %v5068 = vmul.f32 %v5065, %v5067
    %v5069 = vadd.f32 %v5065, %v5068
    %vm5070 = vweird.f32 %v5045
    %vm5071 = vweird.f32 %v5065
    %vm5072 = vmor %vm5070, %vm5071
    %v5073 = vsel %vm5072, %v5065, %v5069
    %v5074 = vand.u32 2147483647, %v5045
    %vm5075 = vcmp.eq.f32.partialorder %v5074, 8.507059e+37
    %v5076 = vand.u32 %v5045, 2147483648
    %v5077 = vor.u32 1.1754944e-38, %v5076
    %v5078 = vsel %vm5075, %v5077, %v5073
    %v5079 = vmul.f32 1.0, %v5078
    %v5080 = vrcp.pop %v5046
    %v5081 = vmul.f32 %v5046, %v5080
    %v5082 = vsub.f32 1.0, %v5081
    %v5083 = vmul.f32 %v5080, %v5082
    %v5084 = vadd.f32 %v5080, %v5083
    %vm5085 = vweird.f32 %v5046
    %vm5086 = vweird.f32 %v5080
    %vm5087 = vmor %vm5085, %vm5086
    %v5088 = vsel %vm5087, %v5080, %v5084
    %v5089 = vand.u32 2147483647, %v5046
    %vm5090 = vcmp.eq.f32.partialorder %v5089, 8.507059e+37
    %v5091 = vand.u32 %v5046, 2147483648
    %v5092 = vor.u32 1.1754944e-38, %v5091
    %v5093 = vsel %vm5090, %v5092, %v5088
    %v5094 = vmul.f32 1.0, %v5093
    %v5095 = vrcp.pop %v5047
    %v5096 = vmul.f32 %v5047, %v5095
    %v5097 = vsub.f32 1.0, %v5096
    %v5098 = vmul.f32 %v5095, %v5097
    %v5099 = vadd.f32 %v5095, %v5098
    %vm5100 = vweird.f32 %v5047
    %vm5101 = vweird.f32 %v5095
    %vm5102 = vmor %vm5100, %vm5101
    %v5103 = vsel %vm5102, %v5095, %v5099
    %v5104 = vand.u32 2147483647, %v5047
    %vm5105 = vcmp.eq.f32.partialorder %v5104, 8.507059e+37
    %v5106 = vand.u32 %v5047, 2147483648
    %v5107 = vor.u32 1.1754944e-38, %v5106
    %v5108 = vsel %vm5105, %v5107, %v5103
    %v5109 = vmul.f32 1.0, %v5108
    %v5110 = vrcp.pop %v5048
    %v5111 = vmul.f32 %v5048, %v5110
    %v5112 = vsub.f32 1.0, %v5111
    %v5113 = vmul.f32 %v5110, %v5112
    %v5114 = vadd.f32 %v5110, %v5113
    %vm5115 = vweird.f32 %v5048
    %vm5116 = vweird.f32 %v5110
    %vm5117 = vmor %vm5115, %vm5116
    %v5118 = vsel %vm5117, %v5110, %v5114
    %v5119 = vand.u32 2147483647, %v5048
    %vm5120 = vcmp.eq.f32.partialorder %v5119, 8.507059e+37
    %v5121 = vand.u32 %v5048, 2147483648
    %v5122 = vor.u32 1.1754944e-38, %v5121
    %v5123 = vsel %vm5120, %v5122, %v5118
    %v5124 = vmul.f32 1.0, %v5123
    %v5125 = vrcp.pop %v5049
    %v5126 = vmul.f32 %v5049, %v5125
    %v5127 = vsub.f32 1.0, %v5126
    %v5128 = vmul.f32 %v5125, %v5127
    %v5129 = vadd.f32 %v5125, %v5128
    %vm5130 = vweird.f32 %v5049
    %vm5131 = vweird.f32 %v5125
    %vm5132 = vmor %vm5130, %vm5131
    %v5133 = vsel %vm5132, %v5125, %v5129
    %v5134 = vand.u32 2147483647, %v5049
    %vm5135 = vcmp.eq.f32.partialorder %v5134, 8.507059e+37
    %v5136 = vand.u32 %v5049, 2147483648
    %v5137 = vor.u32 1.1754944e-38, %v5136
    %v5138 = vsel %vm5135, %v5137, %v5133
    %v5139 = vmul.f32 1.0, %v5138
    %v5140 = vmul.f32 %v5064, %v4939
    %v5141 = vmul.f32 %v5079, %v4978
    %v5142 = vmul.f32 %v5094, %v5017
    %v5143 = vadd.f32 %v4655, %v5140
    %v5144 = vadd.f32 %v4656, %v5141
    %v5145 = vadd.f32 %v4657, %v5142
    %v5146 = vtanh.pop %v5143
    %v5147 = vtanh.pop %v5144
    %v5148 = vtanh.pop %v5145
    %v5149 = vsub.f32 1.0, %v5109
    %v5150 = vsub.f32 1.0, %v5124
    %v5151 = vsub.f32 1.0, %v5139
    %v5152 = vmul.f32 %v5149, %v5146
    %v5153 = vmul.f32 %v5150, %v5147
    %v5154 = vmul.f32 %v5151, %v5148
    %v5155 = vmul.f32 %v5109, %v4644
    %v5156 = vmul.f32 %v5124, %v4645
    %v5157 = vmul.f32 %v5139, %v4646
    %v5158 = vadd.f32 %v5152, %v5155
    %v5159 = vadd.f32 %v5153, %v5156
    %v5160 = vadd.f32 %v5154, %v5157
    %v5161 = vpack.c.bf16 %v5159, %v5158
    %v5162 = vpack.c.bf16 %v5160, %v5160
    %v5163 = vadd.f32 %v1535, %v2159
    %v5164 = vadd.f32 %v1593, %v2172
    %v5165 = vadd.f32 %v1651, %v2185
    %v5166 = vadd.f32 %v1709, %v2198
    %v5167 = vadd.f32 %v1767, %v2211
    %v5168 = vadd.f32 %v1825, %v2224
    %v5169 = vadd.f32 %v1883, %v2237
    %v5170 = vadd.f32 %v1941, %v2250
    %v5171 = vadd.f32 %v1999, %v2263
    %v5174 = vunpack.c.l.b16 %v5161
    %v5175 = vunpack.c.h.b16 %v5161
    %v5176 = vunpack.c.l.b16 %v5162
    %v5177 = vpack.c.b16 %v5174, %v5174
    %v5178 = vpack.c.b16 %v5175, %v5175
    %v5179 = vpack.c.b16 %v5176, %v5176
    %5183 = vmatpush.bf16.msra.mxu0 %v3272
    %5184 = vmatpush.bf16.msra.mxu0 %v3263
    %5185 = vmatpush.bf16.msra.mxu0 %v3254
    %5186 = vmatpush.bf16.msra.mxu0 %v3245
    %5187 = vmatpush.bf16.msra.mxu0 %v3236
    %5188 = vmatpush.bf16.msra.mxu0 %v3227
    %5189 = vmatpush.bf16.msra.mxu0 %v3218
    %5190 = vmatpush.bf16.msra.mxu0 %v3209
    %5191 = vmatmul.bf16.gmra.mxu0 %v5177
    %v5192 = vpop.f32.mrf.mxu0
    %v5193 = vadd.f32 %v2519, %v5192
    %v5194 = vpop.f32.mrf.mxu0
    %5195 = vdwg.mxu0
    %5196 = vmatpush.bf16.msra.mxu0 %v3344
    %5197 = vmatpush.bf16.msra.mxu0 %v3335
    %5198 = vmatpush.bf16.msra.mxu0 %v3326
    %5199 = vmatpush.bf16.msra.mxu0 %v3317
    %5200 = vmatpush.bf16.msra.mxu0 %v3308
    %5201 = vmatpush.bf16.msra.mxu0 %v3299
    %5202 = vmatpush.bf16.msra.mxu0 %v3290
    %5203 = vmatpush.bf16.msra.mxu0 %v3281
    %5204 = vmatmul.bf16.gmra.mxu0 %v5178
    %v5205 = vpop.f32.mrf.mxu0
    %v5206 = vadd.f32 %v5193, %v5205
    %v5207 = vpop.f32.mrf.mxu0
    %5208 = vdwg.mxu0
    %5209 = vmatpush.bf16.msra.mxu0 %v3416
    %5210 = vmatpush.bf16.msra.mxu0 %v3407
    %5211 = vmatpush.bf16.msra.mxu0 %v3398
    %5212 = vmatpush.bf16.msra.mxu0 %v3389
    %5213 = vmatpush.bf16.msra.mxu0 %v3380
    %5214 = vmatpush.bf16.msra.mxu0 %v3371
    %5215 = vmatpush.bf16.msra.mxu0 %v3362
    %5216 = vmatpush.bf16.msra.mxu0 %v3353
    %5217 = vmatmul.bf16.gmra.mxu0 %v5179
    %v5218 = vpop.f32.mrf.mxu0
    %v5219 = vadd.f32 %v5206, %v5218
    %v5220 = vpop.f32.mrf.mxu0
    %5221 = vdwg.mxu0
    %5222 = vmatpush.bf16.msra.mxu0 %v3273
    %5223 = vmatpush.bf16.msra.mxu0 %v3264
    %5224 = vmatpush.bf16.msra.mxu0 %v3255
    %5225 = vmatpush.bf16.msra.mxu0 %v3246
    %5226 = vmatpush.bf16.msra.mxu0 %v3237
    %5227 = vmatpush.bf16.msra.mxu0 %v3228
    %5228 = vmatpush.bf16.msra.mxu0 %v3219
    %5229 = vmatpush.bf16.msra.mxu0 %v3210
    %5230 = vmatmul.bf16.gmra.mxu0 %v5177
    %v5231 = vpop.f32.mrf.mxu0
    %v5232 = vadd.f32 %v2520, %v5231
    %v5233 = vpop.f32.mrf.mxu0
    %5234 = vdwg.mxu0
    %5235 = vmatpush.bf16.msra.mxu0 %v3345
    %5236 = vmatpush.bf16.msra.mxu0 %v3336
    %5237 = vmatpush.bf16.msra.mxu0 %v3327
    %5238 = vmatpush.bf16.msra.mxu0 %v3318
    %5239 = vmatpush.bf16.msra.mxu0 %v3309
    %5240 = vmatpush.bf16.msra.mxu0 %v3300
    %5241 = vmatpush.bf16.msra.mxu0 %v3291
    %5242 = vmatpush.bf16.msra.mxu0 %v3282
    %5243 = vmatmul.bf16.gmra.mxu0 %v5178
    %v5244 = vpop.f32.mrf.mxu0
    %v5245 = vadd.f32 %v5232, %v5244
    %v5246 = vpop.f32.mrf.mxu0
    %5247 = vdwg.mxu0
    %5248 = vmatpush.bf16.msra.mxu0 %v3417
    %5249 = vmatpush.bf16.msra.mxu0 %v3408
    %5250 = vmatpush.bf16.msra.mxu0 %v3399
    %5251 = vmatpush.bf16.msra.mxu0 %v3390
    %5252 = vmatpush.bf16.msra.mxu0 %v3381
    %5253 = vmatpush.bf16.msra.mxu0 %v3372
    %5254 = vmatpush.bf16.msra.mxu0 %v3363
    %5255 = vmatpush.bf16.msra.mxu0 %v3354
    %5256 = vmatmul.bf16.gmra.mxu0 %v5179
    %v5257 = vpop.f32.mrf.mxu0
    %v5258 = vadd.f32 %v5245, %v5257
    %v5259 = vpop.f32.mrf.mxu0
    %5260 = vdwg.mxu0
    %5261 = vmatpush.bf16.msra.mxu0 %v3274
    %5262 = vmatpush.bf16.msra.mxu0 %v3265
    %5263 = vmatpush.bf16.msra.mxu0 %v3256
    %5264 = vmatpush.bf16.msra.mxu0 %v3247
    %5265 = vmatpush.bf16.msra.mxu0 %v3238
    %5266 = vmatpush.bf16.msra.mxu0 %v3229
    %5267 = vmatpush.bf16.msra.mxu0 %v3220
    %5268 = vmatpush.bf16.msra.mxu0 %v3211
    %5269 = vmatmul.bf16.gmra.mxu0 %v5177
    %v5270 = vpop.f32.mrf.mxu0
    %v5271 = vadd.f32 %v2521, %v5270
    %v5272 = vpop.f32.mrf.mxu0
    %5273 = vdwg.mxu0
    %5274 = vmatpush.bf16.msra.mxu0 %v3346
    %5275 = vmatpush.bf16.msra.mxu0 %v3337
    %5276 = vmatpush.bf16.msra.mxu0 %v3328
    %5277 = vmatpush.bf16.msra.mxu0 %v3319
    %5278 = vmatpush.bf16.msra.mxu0 %v3310
    %5279 = vmatpush.bf16.msra.mxu0 %v3301
    %5280 = vmatpush.bf16.msra.mxu0 %v3292
    %5281 = vmatpush.bf16.msra.mxu0 %v3283
    %5282 = vmatmul.bf16.gmra.mxu0 %v5178
    %v5283 = vpop.f32.mrf.mxu0
    %v5284 = vadd.f32 %v5271, %v5283
    %v5285 = vpop.f32.mrf.mxu0
    %5286 = vdwg.mxu0
    %5287 = vmatpush.bf16.msra.mxu0 %v3418
    %5288 = vmatpush.bf16.msra.mxu0 %v3409
    %5289 = vmatpush.bf16.msra.mxu0 %v3400
    %5290 = vmatpush.bf16.msra.mxu0 %v3391
    %5291 = vmatpush.bf16.msra.mxu0 %v3382
    %5292 = vmatpush.bf16.msra.mxu0 %v3373
    %5293 = vmatpush.bf16.msra.mxu0 %v3364
    %5294 = vmatpush.bf16.msra.mxu0 %v3355
    %5295 = vmatmul.bf16.gmra.mxu0 %v5179
    %v5296 = vpop.f32.mrf.mxu0
    %v5297 = vadd.f32 %v5284, %v5296
    %v5298 = vpop.f32.mrf.mxu0
    %5299 = vdwg.mxu0
    %5300 = vmatpush.bf16.msra.mxu0 %v3275
    %5301 = vmatpush.bf16.msra.mxu0 %v3266
    %5302 = vmatpush.bf16.msra.mxu0 %v3257
    %5303 = vmatpush.bf16.msra.mxu0 %v3248
    %5304 = vmatpush.bf16.msra.mxu0 %v3239
    %5305 = vmatpush.bf16.msra.mxu0 %v3230
    %5306 = vmatpush.bf16.msra.mxu0 %v3221
    %5307 = vmatpush.bf16.msra.mxu0 %v3212
    %5308 = vmatmul.bf16.gmra.mxu0 %v5177
    %v5309 = vpop.f32.mrf.mxu0
    %v5310 = vadd.f32 %v2522, %v5309
    %v5311 = vpop.f32.mrf.mxu0
    %5312 = vdwg.mxu0
    %5313 = vmatpush.bf16.msra.mxu0 %v3347
    %5314 = vmatpush.bf16.msra.mxu0 %v3338
    %5315 = vmatpush.bf16.msra.mxu0 %v3329
    %5316 = vmatpush.bf16.msra.mxu0 %v3320
    %5317 = vmatpush.bf16.msra.mxu0 %v3311
    %5318 = vmatpush.bf16.msra.mxu0 %v3302
    %5319 = vmatpush.bf16.msra.mxu0 %v3293
    %5320 = vmatpush.bf16.msra.mxu0 %v3284
    %5321 = vmatmul.bf16.gmra.mxu0 %v5178
    %v5322 = vpop.f32.mrf.mxu0
    %v5323 = vadd.f32 %v5310, %v5322
    %v5324 = vpop.f32.mrf.mxu0
    %5325 = vdwg.mxu0
    %5326 = vmatpush.bf16.msra.mxu0 %v3419
    %5327 = vmatpush.bf16.msra.mxu0 %v3410
    %5328 = vmatpush.bf16.msra.mxu0 %v3401
    %5329 = vmatpush.bf16.msra.mxu0 %v3392
    %5330 = vmatpush.bf16.msra.mxu0 %v3383
    %5331 = vmatpush.bf16.msra.mxu0 %v3374
    %5332 = vmatpush.bf16.msra.mxu0 %v3365
    %5333 = vmatpush.bf16.msra.mxu0 %v3356
    %5334 = vmatmul.bf16.gmra.mxu0 %v5179
    %v5335 = vpop.f32.mrf.mxu0
    %v5336 = vadd.f32 %v5323, %v5335
    %v5337 = vpop.f32.mrf.mxu0
    %5338 = vdwg.mxu0
    %5339 = vmatpush.bf16.msra.mxu0 %v3276
    %5340 = vmatpush.bf16.msra.mxu0 %v3267
    %5341 = vmatpush.bf16.msra.mxu0 %v3258
    %5342 = vmatpush.bf16.msra.mxu0 %v3249
    %5343 = vmatpush.bf16.msra.mxu0 %v3240
    %5344 = vmatpush.bf16.msra.mxu0 %v3231
    %5345 = vmatpush.bf16.msra.mxu0 %v3222
    %5346 = vmatpush.bf16.msra.mxu0 %v3213
    %5347 = vmatmul.bf16.gmra.mxu0 %v5177
    %v5348 = vpop.f32.mrf.mxu0
    %v5349 = vadd.f32 %v2523, %v5348
    %v5350 = vpop.f32.mrf.mxu0
    %5351 = vdwg.mxu0
    %5352 = vmatpush.bf16.msra.mxu0 %v3348
    %5353 = vmatpush.bf16.msra.mxu0 %v3339
    %5354 = vmatpush.bf16.msra.mxu0 %v3330
    %5355 = vmatpush.bf16.msra.mxu0 %v3321
    %5356 = vmatpush.bf16.msra.mxu0 %v3312
    %5357 = vmatpush.bf16.msra.mxu0 %v3303
    %5358 = vmatpush.bf16.msra.mxu0 %v3294
    %5359 = vmatpush.bf16.msra.mxu0 %v3285
    %5360 = vmatmul.bf16.gmra.mxu0 %v5178
    %v5361 = vpop.f32.mrf.mxu0
    %v5362 = vadd.f32 %v5349, %v5361
    %v5363 = vpop.f32.mrf.mxu0
    %5364 = vdwg.mxu0
    %5365 = vmatpush.bf16.msra.mxu0 %v3420
    %5366 = vmatpush.bf16.msra.mxu0 %v3411
    %5367 = vmatpush.bf16.msra.mxu0 %v3402
    %5368 = vmatpush.bf16.msra.mxu0 %v3393
    %5369 = vmatpush.bf16.msra.mxu0 %v3384
    %5370 = vmatpush.bf16.msra.mxu0 %v3375
    %5371 = vmatpush.bf16.msra.mxu0 %v3366
    %5372 = vmatpush.bf16.msra.mxu0 %v3357
    %5373 = vmatmul.bf16.gmra.mxu0 %v5179
    %v5374 = vpop.f32.mrf.mxu0
    %v5375 = vadd.f32 %v5362, %v5374
    %v5376 = vpop.f32.mrf.mxu0
    %5377 = vdwg.mxu0
    %5378 = vmatpush.bf16.msra.mxu0 %v3277
    %5379 = vmatpush.bf16.msra.mxu0 %v3268
    %5380 = vmatpush.bf16.msra.mxu0 %v3259
    %5381 = vmatpush.bf16.msra.mxu0 %v3250
    %5382 = vmatpush.bf16.msra.mxu0 %v3241
    %5383 = vmatpush.bf16.msra.mxu0 %v3232
    %5384 = vmatpush.bf16.msra.mxu0 %v3223
    %5385 = vmatpush.bf16.msra.mxu0 %v3214
    %5386 = vmatmul.bf16.gmra.mxu0 %v5177
    %v5387 = vpop.f32.mrf.mxu0
    %v5388 = vadd.f32 %v2524, %v5387
    %v5389 = vpop.f32.mrf.mxu0
    %5390 = vdwg.mxu0
    %5391 = vmatpush.bf16.msra.mxu0 %v3349
    %5392 = vmatpush.bf16.msra.mxu0 %v3340
    %5393 = vmatpush.bf16.msra.mxu0 %v3331
    %5394 = vmatpush.bf16.msra.mxu0 %v3322
    %5395 = vmatpush.bf16.msra.mxu0 %v3313
    %5396 = vmatpush.bf16.msra.mxu0 %v3304
    %5397 = vmatpush.bf16.msra.mxu0 %v3295
    %5398 = vmatpush.bf16.msra.mxu0 %v3286
    %5399 = vmatmul.bf16.gmra.mxu0 %v5178
    %v5400 = vpop.f32.mrf.mxu0
    %v5401 = vadd.f32 %v5388, %v5400
    %v5402 = vpop.f32.mrf.mxu0
    %5403 = vdwg.mxu0
    %5404 = vmatpush.bf16.msra.mxu0 %v3421
    %5405 = vmatpush.bf16.msra.mxu0 %v3412
    %5406 = vmatpush.bf16.msra.mxu0 %v3403
    %5407 = vmatpush.bf16.msra.mxu0 %v3394
    %5408 = vmatpush.bf16.msra.mxu0 %v3385
    %5409 = vmatpush.bf16.msra.mxu0 %v3376
    %5410 = vmatpush.bf16.msra.mxu0 %v3367
    %5411 = vmatpush.bf16.msra.mxu0 %v3358
    %5412 = vmatmul.bf16.gmra.mxu0 %v5179
    %v5413 = vpop.f32.mrf.mxu0
    %v5414 = vadd.f32 %v5401, %v5413
    %v5415 = vpop.f32.mrf.mxu0
    %5416 = vdwg.mxu0
    %5417 = vmatpush.bf16.msra.mxu0 %v3278
    %5418 = vmatpush.bf16.msra.mxu0 %v3269
    %5419 = vmatpush.bf16.msra.mxu0 %v3260
    %5420 = vmatpush.bf16.msra.mxu0 %v3251
    %5421 = vmatpush.bf16.msra.mxu0 %v3242
    %5422 = vmatpush.bf16.msra.mxu0 %v3233
    %5423 = vmatpush.bf16.msra.mxu0 %v3224
    %5424 = vmatpush.bf16.msra.mxu0 %v3215
    %5425 = vmatmul.bf16.gmra.mxu0 %v5177
    %v5426 = vpop.f32.mrf.mxu0
    %v5427 = vadd.f32 %v2525, %v5426
    %v5428 = vpop.f32.mrf.mxu0
    %5429 = vdwg.mxu0
    %5430 = vmatpush.bf16.msra.mxu0 %v3350
    %5431 = vmatpush.bf16.msra.mxu0 %v3341
    %5432 = vmatpush.bf16.msra.mxu0 %v3332
    %5433 = vmatpush.bf16.msra.mxu0 %v3323
    %5434 = vmatpush.bf16.msra.mxu0 %v3314
    %5435 = vmatpush.bf16.msra.mxu0 %v3305
    %5436 = vmatpush.bf16.msra.mxu0 %v3296
    %5437 = vmatpush.bf16.msra.mxu0 %v3287
    %5438 = vmatmul.bf16.gmra.mxu0 %v5178
    %v5439 = vpop.f32.mrf.mxu0
    %v5440 = vadd.f32 %v5427, %v5439
    %v5441 = vpop.f32.mrf.mxu0
    %5442 = vdwg.mxu0
    %5443 = vmatpush.bf16.msra.mxu0 %v3422
    %5444 = vmatpush.bf16.msra.mxu0 %v3413
    %5445 = vmatpush.bf16.msra.mxu0 %v3404
    %5446 = vmatpush.bf16.msra.mxu0 %v3395
    %5447 = vmatpush.bf16.msra.mxu0 %v3386
    %5448 = vmatpush.bf16.msra.mxu0 %v3377
    %5449 = vmatpush.bf16.msra.mxu0 %v3368
    %5450 = vmatpush.bf16.msra.mxu0 %v3359
    %5451 = vmatmul.bf16.gmra.mxu0 %v5179
    %v5452 = vpop.f32.mrf.mxu0
    %v5453 = vadd.f32 %v5440, %v5452
    %v5454 = vpop.f32.mrf.mxu0
    %5455 = vdwg.mxu0
    %5456 = vmatpush.bf16.msra.mxu0 %v3279
    %5457 = vmatpush.bf16.msra.mxu0 %v3270
    %5458 = vmatpush.bf16.msra.mxu0 %v3261
    %5459 = vmatpush.bf16.msra.mxu0 %v3252
    %5460 = vmatpush.bf16.msra.mxu0 %v3243
    %5461 = vmatpush.bf16.msra.mxu0 %v3234
    %5462 = vmatpush.bf16.msra.mxu0 %v3225
    %5463 = vmatpush.bf16.msra.mxu0 %v3216
    %5464 = vmatmul.bf16.gmra.mxu0 %v5177
    %v5465 = vpop.f32.mrf.mxu0
    %v5466 = vadd.f32 %v2526, %v5465
    %v5467 = vpop.f32.mrf.mxu0
    %5468 = vdwg.mxu0
    %5469 = vmatpush.bf16.msra.mxu0 %v3351
    %5470 = vmatpush.bf16.msra.mxu0 %v3342
    %5471 = vmatpush.bf16.msra.mxu0 %v3333
    %5472 = vmatpush.bf16.msra.mxu0 %v3324
    %5473 = vmatpush.bf16.msra.mxu0 %v3315
    %5474 = vmatpush.bf16.msra.mxu0 %v3306
    %5475 = vmatpush.bf16.msra.mxu0 %v3297
    %5476 = vmatpush.bf16.msra.mxu0 %v3288
    %5477 = vmatmul.bf16.gmra.mxu0 %v5178
    %v5478 = vpop.f32.mrf.mxu0
    %v5479 = vadd.f32 %v5466, %v5478
    %v5480 = vpop.f32.mrf.mxu0
    %5481 = vdwg.mxu0
    %5482 = vmatpush.bf16.msra.mxu0 %v3423
    %5483 = vmatpush.bf16.msra.mxu0 %v3414
    %5484 = vmatpush.bf16.msra.mxu0 %v3405
    %5485 = vmatpush.bf16.msra.mxu0 %v3396
    %5486 = vmatpush.bf16.msra.mxu0 %v3387
    %5487 = vmatpush.bf16.msra.mxu0 %v3378
    %5488 = vmatpush.bf16.msra.mxu0 %v3369
    %5489 = vmatpush.bf16.msra.mxu0 %v3360
    %5490 = vmatmul.bf16.gmra.mxu0 %v5179
    %v5491 = vpop.f32.mrf.mxu0
    %v5492 = vadd.f32 %v5479, %v5491
    %v5493 = vpop.f32.mrf.mxu0
    %5494 = vdwg.mxu0
    %5495 = vmatpush.bf16.msra.mxu0 %v3280
    %5496 = vmatpush.bf16.msra.mxu0 %v3271
    %5497 = vmatpush.bf16.msra.mxu0 %v3262
    %5498 = vmatpush.bf16.msra.mxu0 %v3253
    %5499 = vmatpush.bf16.msra.mxu0 %v3244
    %5500 = vmatpush.bf16.msra.mxu0 %v3235
    %5501 = vmatpush.bf16.msra.mxu0 %v3226
    %5502 = vmatpush.bf16.msra.mxu0 %v3217
    %5503 = vmatmul.bf16.gmra.mxu0 %v5177
    %v5504 = vpop.f32.mrf.mxu0
    %v5505 = vadd.f32 %v2527, %v5504
    %v5506 = vpop.f32.mrf.mxu0
    %5507 = vdwg.mxu0
    %5508 = vmatpush.bf16.msra.mxu0 %v3352
    %5509 = vmatpush.bf16.msra.mxu0 %v3343
    %5510 = vmatpush.bf16.msra.mxu0 %v3334
    %5511 = vmatpush.bf16.msra.mxu0 %v3325
    %5512 = vmatpush.bf16.msra.mxu0 %v3316
    %5513 = vmatpush.bf16.msra.mxu0 %v3307
    %5514 = vmatpush.bf16.msra.mxu0 %v3298
    %5515 = vmatpush.bf16.msra.mxu0 %v3289
    %5516 = vmatmul.bf16.gmra.mxu0 %v5178
    %v5517 = vpop.f32.mrf.mxu0
    %v5518 = vadd.f32 %v5505, %v5517
    %v5519 = vpop.f32.mrf.mxu0
    %5520 = vdwg.mxu0
    %5521 = vmatpush.bf16.msra.mxu0 %v3424
    %5522 = vmatpush.bf16.msra.mxu0 %v3415
    %5523 = vmatpush.bf16.msra.mxu0 %v3406
    %5524 = vmatpush.bf16.msra.mxu0 %v3397
    %5525 = vmatpush.bf16.msra.mxu0 %v3388
    %5526 = vmatpush.bf16.msra.mxu0 %v3379
    %5527 = vmatpush.bf16.msra.mxu0 %v3370
    %5528 = vmatpush.bf16.msra.mxu0 %v3361
    %5529 = vmatmul.bf16.gmra.mxu0 %v5179
    %v5530 = vpop.f32.mrf.mxu0
    %v5531 = vadd.f32 %v5518, %v5530
    %v5532 = vpop.f32.mrf.mxu0
    %5533 = vdwg.mxu0
    %v5534 = vadd.f32 %v5163, %v5219
    %v5535 = vadd.f32 %v5164, %v5258
    %v5536 = vadd.f32 %v5165, %v5297
    %v5537 = vadd.f32 %v5166, %v5336
    %v5538 = vadd.f32 %v5167, %v5375
    %v5539 = vadd.f32 %v5168, %v5414
    %v5540 = vxor.u32 %v5534, 2147483648
    %v5541 = vxor.u32 %v5535, 2147483648
    %v5542 = vxor.u32 %v5536, 2147483648
    %v5543 = vxor.u32 %v5537, 2147483648
    %v5544 = vxor.u32 %v5538, 2147483648
    %v5545 = vxor.u32 %v5539, 2147483648
    %v5546 = vmul.f32 %v5540, 1.442695
    %v5547 = vpow.pop %v5546
    %v5548 = vmul.f32 %v5541, 1.442695
    %v5549 = vpow.pop %v5548
    %v5550 = vmul.f32 %v5542, 1.442695
    %v5551 = vpow.pop %v5550
    %v5552 = vmul.f32 %v5543, 1.442695
    %v5553 = vpow.pop %v5552
    %v5554 = vmul.f32 %v5544, 1.442695
    %v5555 = vpow.pop %v5554
    %v5556 = vmul.f32 %v5545, 1.442695
    %v5557 = vpow.pop %v5556
    %v5558 = vadd.f32 %v5547, 1.0
    %v5559 = vadd.f32 %v5549, 1.0
    %v5560 = vadd.f32 %v5551, 1.0
    %v5561 = vadd.f32 %v5553, 1.0
    %v5562 = vadd.f32 %v5555, 1.0
    %v5563 = vadd.f32 %v5557, 1.0
    %v5564 = vrcp.pop %v5558
    %v5565 = vmul.f32 %v5558, %v5564
    %v5566 = vsub.f32 1.0, %v5565
    %v5567 = vmul.f32 %v5564, %v5566
    %v5568 = vadd.f32 %v5564, %v5567
    %vm5569 = vweird.f32 %v5558
    %vm5570 = vweird.f32 %v5564
    %vm5571 = vmor %vm5569, %vm5570
    %v5572 = vsel %vm5571, %v5564, %v5568
    %v5573 = vand.u32 2147483647, %v5558
    %vm5574 = vcmp.eq.f32.partialorder %v5573, 8.507059e+37
    %v5575 = vand.u32 %v5558, 2147483648
    %v5576 = vor.u32 1.1754944e-38, %v5575
    %v5577 = vsel %vm5574, %v5576, %v5572
    %v5578 = vmul.f32 1.0, %v5577
    %v5579 = vrcp.pop %v5559
    %v5580 = vmul.f32 %v5559, %v5579
    %v5581 = vsub.f32 1.0, %v5580
    %v5582 = vmul.f32 %v5579, %v5581
    %v5583 = vadd.f32 %v5579, %v5582
    %vm5584 = vweird.f32 %v5559
    %vm5585 = vweird.f32 %v5579
    %vm5586 = vmor %vm5584, %vm5585
    %v5587 = vsel %vm5586, %v5579, %v5583
    %v5588 = vand.u32 2147483647, %v5559
    %vm5589 = vcmp.eq.f32.partialorder %v5588, 8.507059e+37
    %v5590 = vand.u32 %v5559, 2147483648
    %v5591 = vor.u32 1.1754944e-38, %v5590
    %v5592 = vsel %vm5589, %v5591, %v5587
    %v5593 = vmul.f32 1.0, %v5592
    %v5594 = vrcp.pop %v5560
    %v5595 = vmul.f32 %v5560, %v5594
    %v5596 = vsub.f32 1.0, %v5595
    %v5597 = vmul.f32 %v5594, %v5596
    %v5598 = vadd.f32 %v5594, %v5597
    %vm5599 = vweird.f32 %v5560
    %vm5600 = vweird.f32 %v5594
    %vm5601 = vmor %vm5599, %vm5600
    %v5602 = vsel %vm5601, %v5594, %v5598
    %v5603 = vand.u32 2147483647, %v5560
    %vm5604 = vcmp.eq.f32.partialorder %v5603, 8.507059e+37
    %v5605 = vand.u32 %v5560, 2147483648
    %v5606 = vor.u32 1.1754944e-38, %v5605
    %v5607 = vsel %vm5604, %v5606, %v5602
    %v5608 = vmul.f32 1.0, %v5607
    %v5609 = vrcp.pop %v5561
    %v5610 = vmul.f32 %v5561, %v5609
    %v5611 = vsub.f32 1.0, %v5610
    %v5612 = vmul.f32 %v5609, %v5611
    %v5613 = vadd.f32 %v5609, %v5612
    %vm5614 = vweird.f32 %v5561
    %vm5615 = vweird.f32 %v5609
    %vm5616 = vmor %vm5614, %vm5615
    %v5617 = vsel %vm5616, %v5609, %v5613
    %v5618 = vand.u32 2147483647, %v5561
    %vm5619 = vcmp.eq.f32.partialorder %v5618, 8.507059e+37
    %v5620 = vand.u32 %v5561, 2147483648
    %v5621 = vor.u32 1.1754944e-38, %v5620
    %v5622 = vsel %vm5619, %v5621, %v5617
    %v5623 = vmul.f32 1.0, %v5622
    %v5624 = vrcp.pop %v5562
    %v5625 = vmul.f32 %v5562, %v5624
    %v5626 = vsub.f32 1.0, %v5625
    %v5627 = vmul.f32 %v5624, %v5626
    %v5628 = vadd.f32 %v5624, %v5627
    %vm5629 = vweird.f32 %v5562
    %vm5630 = vweird.f32 %v5624
    %vm5631 = vmor %vm5629, %vm5630
    %v5632 = vsel %vm5631, %v5624, %v5628
    %v5633 = vand.u32 2147483647, %v5562
    %vm5634 = vcmp.eq.f32.partialorder %v5633, 8.507059e+37
    %v5635 = vand.u32 %v5562, 2147483648
    %v5636 = vor.u32 1.1754944e-38, %v5635
    %v5637 = vsel %vm5634, %v5636, %v5632
    %v5638 = vmul.f32 1.0, %v5637
    %v5639 = vrcp.pop %v5563
    %v5640 = vmul.f32 %v5563, %v5639
    %v5641 = vsub.f32 1.0, %v5640
    %v5642 = vmul.f32 %v5639, %v5641
    %v5643 = vadd.f32 %v5639, %v5642
    %vm5644 = vweird.f32 %v5563
    %vm5645 = vweird.f32 %v5639
    %vm5646 = vmor %vm5644, %vm5645
    %v5647 = vsel %vm5646, %v5639, %v5643
    %v5648 = vand.u32 2147483647, %v5563
    %vm5649 = vcmp.eq.f32.partialorder %v5648, 8.507059e+37
    %v5650 = vand.u32 %v5563, 2147483648
    %v5651 = vor.u32 1.1754944e-38, %v5650
    %v5652 = vsel %vm5649, %v5651, %v5647
    %v5653 = vmul.f32 1.0, %v5652
    %v5654 = vmul.f32 %v5578, %v5453
    %v5655 = vmul.f32 %v5593, %v5492
    %v5656 = vmul.f32 %v5608, %v5531
    %v5657 = vadd.f32 %v5169, %v5654
    %v5658 = vadd.f32 %v5170, %v5655
    %v5659 = vadd.f32 %v5171, %v5656
    %v5660 = vtanh.pop %v5657
    %v5661 = vtanh.pop %v5658
    %v5662 = vtanh.pop %v5659
    %v5663 = vsub.f32 1.0, %v5623
    %v5664 = vsub.f32 1.0, %v5638
    %v5665 = vsub.f32 1.0, %v5653
    %v5666 = vmul.f32 %v5663, %v5660
    %v5667 = vmul.f32 %v5664, %v5661
    %v5668 = vmul.f32 %v5665, %v5662
    %v5669 = vmul.f32 %v5623, %v5158
    %v5670 = vmul.f32 %v5638, %v5159
    %v5671 = vmul.f32 %v5653, %v5160
    %v5672 = vadd.f32 %v5666, %v5669
    %v5673 = vadd.f32 %v5667, %v5670
    %v5674 = vadd.f32 %v5668, %v5671
    %v5675 = vpack.c.bf16 %v5673, %v5672
    %v5676 = vpack.c.bf16 %v5674, %v5674
    %v5677 = vadd.f32 %v1538, %v2159
    %v5678 = vadd.f32 %v1596, %v2172
    %v5679 = vadd.f32 %v1654, %v2185
    %v5680 = vadd.f32 %v1712, %v2198
    %v5681 = vadd.f32 %v1770, %v2211
    %v5682 = vadd.f32 %v1828, %v2224
    %v5683 = vadd.f32 %v1886, %v2237
    %v5684 = vadd.f32 %v1944, %v2250
    %v5685 = vadd.f32 %v2002, %v2263
    %v5688 = vunpack.c.l.b16 %v5675
    %v5689 = vunpack.c.h.b16 %v5675
    %v5690 = vunpack.c.l.b16 %v5676
    %v5691 = vpack.c.b16 %v5688, %v5688
    %v5692 = vpack.c.b16 %v5689, %v5689
    %v5693 = vpack.c.b16 %v5690, %v5690
    %5697 = vmatpush.bf16.msra.mxu0 %v3272
    %5698 = vmatpush.bf16.msra.mxu0 %v3263
    %5699 = vmatpush.bf16.msra.mxu0 %v3254
    %5700 = vmatpush.bf16.msra.mxu0 %v3245
    %5701 = vmatpush.bf16.msra.mxu0 %v3236
    %5702 = vmatpush.bf16.msra.mxu0 %v3227
    %5703 = vmatpush.bf16.msra.mxu0 %v3218
    %5704 = vmatpush.bf16.msra.mxu0 %v3209
    %5705 = vmatmul.bf16.gmra.mxu0 %v5691
    %v5706 = vpop.f32.mrf.mxu0
    %v5707 = vadd.f32 %v2519, %v5706
    %v5708 = vpop.f32.mrf.mxu0
    %5709 = vdwg.mxu0
    %5710 = vmatpush.bf16.msra.mxu0 %v3344
    %5711 = vmatpush.bf16.msra.mxu0 %v3335
    %5712 = vmatpush.bf16.msra.mxu0 %v3326
    %5713 = vmatpush.bf16.msra.mxu0 %v3317
    %5714 = vmatpush.bf16.msra.mxu0 %v3308
    %5715 = vmatpush.bf16.msra.mxu0 %v3299
    %5716 = vmatpush.bf16.msra.mxu0 %v3290
    %5717 = vmatpush.bf16.msra.mxu0 %v3281
    %5718 = vmatmul.bf16.gmra.mxu0 %v5692
    %v5719 = vpop.f32.mrf.mxu0
    %v5720 = vadd.f32 %v5707, %v5719
    %v5721 = vpop.f32.mrf.mxu0
    %5722 = vdwg.mxu0
    %5723 = vmatpush.bf16.msra.mxu0 %v3416
    %5724 = vmatpush.bf16.msra.mxu0 %v3407
    %5725 = vmatpush.bf16.msra.mxu0 %v3398
    %5726 = vmatpush.bf16.msra.mxu0 %v3389
    %5727 = vmatpush.bf16.msra.mxu0 %v3380
    %5728 = vmatpush.bf16.msra.mxu0 %v3371
    %5729 = vmatpush.bf16.msra.mxu0 %v3362
    %5730 = vmatpush.bf16.msra.mxu0 %v3353
    %5731 = vmatmul.bf16.gmra.mxu0 %v5693
    %v5732 = vpop.f32.mrf.mxu0
    %v5733 = vadd.f32 %v5720, %v5732
    %v5734 = vpop.f32.mrf.mxu0
    %5735 = vdwg.mxu0
    %5736 = vmatpush.bf16.msra.mxu0 %v3273
    %5737 = vmatpush.bf16.msra.mxu0 %v3264
    %5738 = vmatpush.bf16.msra.mxu0 %v3255
    %5739 = vmatpush.bf16.msra.mxu0 %v3246
    %5740 = vmatpush.bf16.msra.mxu0 %v3237
    %5741 = vmatpush.bf16.msra.mxu0 %v3228
    %5742 = vmatpush.bf16.msra.mxu0 %v3219
    %5743 = vmatpush.bf16.msra.mxu0 %v3210
    %5744 = vmatmul.bf16.gmra.mxu0 %v5691
    %v5745 = vpop.f32.mrf.mxu0
    %v5746 = vadd.f32 %v2520, %v5745
    %v5747 = vpop.f32.mrf.mxu0
    %5748 = vdwg.mxu0
    %5749 = vmatpush.bf16.msra.mxu0 %v3345
    %5750 = vmatpush.bf16.msra.mxu0 %v3336
    %5751 = vmatpush.bf16.msra.mxu0 %v3327
    %5752 = vmatpush.bf16.msra.mxu0 %v3318
    %5753 = vmatpush.bf16.msra.mxu0 %v3309
    %5754 = vmatpush.bf16.msra.mxu0 %v3300
    %5755 = vmatpush.bf16.msra.mxu0 %v3291
    %5756 = vmatpush.bf16.msra.mxu0 %v3282
    %5757 = vmatmul.bf16.gmra.mxu0 %v5692
    %v5758 = vpop.f32.mrf.mxu0
    %v5759 = vadd.f32 %v5746, %v5758
    %v5760 = vpop.f32.mrf.mxu0
    %5761 = vdwg.mxu0
    %5762 = vmatpush.bf16.msra.mxu0 %v3417
    %5763 = vmatpush.bf16.msra.mxu0 %v3408
    %5764 = vmatpush.bf16.msra.mxu0 %v3399
    %5765 = vmatpush.bf16.msra.mxu0 %v3390
    %5766 = vmatpush.bf16.msra.mxu0 %v3381
    %5767 = vmatpush.bf16.msra.mxu0 %v3372
    %5768 = vmatpush.bf16.msra.mxu0 %v3363
    %5769 = vmatpush.bf16.msra.mxu0 %v3354
    %5770 = vmatmul.bf16.gmra.mxu0 %v5693
    %v5771 = vpop.f32.mrf.mxu0
    %v5772 = vadd.f32 %v5759, %v5771
    %v5773 = vpop.f32.mrf.mxu0
    %5774 = vdwg.mxu0
    %5775 = vmatpush.bf16.msra.mxu0 %v3274
    %5776 = vmatpush.bf16.msra.mxu0 %v3265
    %5777 = vmatpush.bf16.msra.mxu0 %v3256
    %5778 = vmatpush.bf16.msra.mxu0 %v3247
    %5779 = vmatpush.bf16.msra.mxu0 %v3238
    %5780 = vmatpush.bf16.msra.mxu0 %v3229
    %5781 = vmatpush.bf16.msra.mxu0 %v3220
    %5782 = vmatpush.bf16.msra.mxu0 %v3211
    %5783 = vmatmul.bf16.gmra.mxu0 %v5691
    %v5784 = vpop.f32.mrf.mxu0
    %v5785 = vadd.f32 %v2521, %v5784
    %v5786 = vpop.f32.mrf.mxu0
    %5787 = vdwg.mxu0
    %5788 = vmatpush.bf16.msra.mxu0 %v3346
    %5789 = vmatpush.bf16.msra.mxu0 %v3337
    %5790 = vmatpush.bf16.msra.mxu0 %v3328
    %5791 = vmatpush.bf16.msra.mxu0 %v3319
    %5792 = vmatpush.bf16.msra.mxu0 %v3310
    %5793 = vmatpush.bf16.msra.mxu0 %v3301
    %5794 = vmatpush.bf16.msra.mxu0 %v3292
    %5795 = vmatpush.bf16.msra.mxu0 %v3283
    %5796 = vmatmul.bf16.gmra.mxu0 %v5692
    %v5797 = vpop.f32.mrf.mxu0
    %v5798 = vadd.f32 %v5785, %v5797
    %v5799 = vpop.f32.mrf.mxu0
    %5800 = vdwg.mxu0
    %5801 = vmatpush.bf16.msra.mxu0 %v3418
    %5802 = vmatpush.bf16.msra.mxu0 %v3409
    %5803 = vmatpush.bf16.msra.mxu0 %v3400
    %5804 = vmatpush.bf16.msra.mxu0 %v3391
    %5805 = vmatpush.bf16.msra.mxu0 %v3382
    %5806 = vmatpush.bf16.msra.mxu0 %v3373
    %5807 = vmatpush.bf16.msra.mxu0 %v3364
    %5808 = vmatpush.bf16.msra.mxu0 %v3355
    %5809 = vmatmul.bf16.gmra.mxu0 %v5693
    %v5810 = vpop.f32.mrf.mxu0
    %v5811 = vadd.f32 %v5798, %v5810
    %v5812 = vpop.f32.mrf.mxu0
    %5813 = vdwg.mxu0
    %5814 = vmatpush.bf16.msra.mxu0 %v3275
    %5815 = vmatpush.bf16.msra.mxu0 %v3266
    %5816 = vmatpush.bf16.msra.mxu0 %v3257
    %5817 = vmatpush.bf16.msra.mxu0 %v3248
    %5818 = vmatpush.bf16.msra.mxu0 %v3239
    %5819 = vmatpush.bf16.msra.mxu0 %v3230
    %5820 = vmatpush.bf16.msra.mxu0 %v3221
    %5821 = vmatpush.bf16.msra.mxu0 %v3212
    %5822 = vmatmul.bf16.gmra.mxu0 %v5691
    %v5823 = vpop.f32.mrf.mxu0
    %v5824 = vadd.f32 %v2522, %v5823
    %v5825 = vpop.f32.mrf.mxu0
    %5826 = vdwg.mxu0
    %5827 = vmatpush.bf16.msra.mxu0 %v3347
    %5828 = vmatpush.bf16.msra.mxu0 %v3338
    %5829 = vmatpush.bf16.msra.mxu0 %v3329
    %5830 = vmatpush.bf16.msra.mxu0 %v3320
    %5831 = vmatpush.bf16.msra.mxu0 %v3311
    %5832 = vmatpush.bf16.msra.mxu0 %v3302
    %5833 = vmatpush.bf16.msra.mxu0 %v3293
    %5834 = vmatpush.bf16.msra.mxu0 %v3284
    %5835 = vmatmul.bf16.gmra.mxu0 %v5692
    %v5836 = vpop.f32.mrf.mxu0
    %v5837 = vadd.f32 %v5824, %v5836
    %v5838 = vpop.f32.mrf.mxu0
    %5839 = vdwg.mxu0
    %5840 = vmatpush.bf16.msra.mxu0 %v3419
    %5841 = vmatpush.bf16.msra.mxu0 %v3410
    %5842 = vmatpush.bf16.msra.mxu0 %v3401
    %5843 = vmatpush.bf16.msra.mxu0 %v3392
    %5844 = vmatpush.bf16.msra.mxu0 %v3383
    %5845 = vmatpush.bf16.msra.mxu0 %v3374
    %5846 = vmatpush.bf16.msra.mxu0 %v3365
    %5847 = vmatpush.bf16.msra.mxu0 %v3356
    %5848 = vmatmul.bf16.gmra.mxu0 %v5693
    %v5849 = vpop.f32.mrf.mxu0
    %v5850 = vadd.f32 %v5837, %v5849
    %v5851 = vpop.f32.mrf.mxu0
    %5852 = vdwg.mxu0
    %5853 = vmatpush.bf16.msra.mxu0 %v3276
    %5854 = vmatpush.bf16.msra.mxu0 %v3267
    %5855 = vmatpush.bf16.msra.mxu0 %v3258
    %5856 = vmatpush.bf16.msra.mxu0 %v3249
    %5857 = vmatpush.bf16.msra.mxu0 %v3240
    %5858 = vmatpush.bf16.msra.mxu0 %v3231
    %5859 = vmatpush.bf16.msra.mxu0 %v3222
    %5860 = vmatpush.bf16.msra.mxu0 %v3213
    %5861 = vmatmul.bf16.gmra.mxu0 %v5691
    %v5862 = vpop.f32.mrf.mxu0
    %v5863 = vadd.f32 %v2523, %v5862
    %v5864 = vpop.f32.mrf.mxu0
    %5865 = vdwg.mxu0
    %5866 = vmatpush.bf16.msra.mxu0 %v3348
    %5867 = vmatpush.bf16.msra.mxu0 %v3339
    %5868 = vmatpush.bf16.msra.mxu0 %v3330
    %5869 = vmatpush.bf16.msra.mxu0 %v3321
    %5870 = vmatpush.bf16.msra.mxu0 %v3312
    %5871 = vmatpush.bf16.msra.mxu0 %v3303
    %5872 = vmatpush.bf16.msra.mxu0 %v3294
    %5873 = vmatpush.bf16.msra.mxu0 %v3285
    %5874 = vmatmul.bf16.gmra.mxu0 %v5692
    %v5875 = vpop.f32.mrf.mxu0
    %v5876 = vadd.f32 %v5863, %v5875
    %v5877 = vpop.f32.mrf.mxu0
    %5878 = vdwg.mxu0
    %5879 = vmatpush.bf16.msra.mxu0 %v3420
    %5880 = vmatpush.bf16.msra.mxu0 %v3411
    %5881 = vmatpush.bf16.msra.mxu0 %v3402
    %5882 = vmatpush.bf16.msra.mxu0 %v3393
    %5883 = vmatpush.bf16.msra.mxu0 %v3384
    %5884 = vmatpush.bf16.msra.mxu0 %v3375
    %5885 = vmatpush.bf16.msra.mxu0 %v3366
    %5886 = vmatpush.bf16.msra.mxu0 %v3357
    %5887 = vmatmul.bf16.gmra.mxu0 %v5693
    %v5888 = vpop.f32.mrf.mxu0
    %v5889 = vadd.f32 %v5876, %v5888
    %v5890 = vpop.f32.mrf.mxu0
    %5891 = vdwg.mxu0
    %5892 = vmatpush.bf16.msra.mxu0 %v3277
    %5893 = vmatpush.bf16.msra.mxu0 %v3268
    %5894 = vmatpush.bf16.msra.mxu0 %v3259
    %5895 = vmatpush.bf16.msra.mxu0 %v3250
    %5896 = vmatpush.bf16.msra.mxu0 %v3241
    %5897 = vmatpush.bf16.msra.mxu0 %v3232
    %5898 = vmatpush.bf16.msra.mxu0 %v3223
    %5899 = vmatpush.bf16.msra.mxu0 %v3214
    %5900 = vmatmul.bf16.gmra.mxu0 %v5691
    %v5901 = vpop.f32.mrf.mxu0
    %v5902 = vadd.f32 %v2524, %v5901
    %v5903 = vpop.f32.mrf.mxu0
    %5904 = vdwg.mxu0
    %5905 = vmatpush.bf16.msra.mxu0 %v3349
    %5906 = vmatpush.bf16.msra.mxu0 %v3340
    %5907 = vmatpush.bf16.msra.mxu0 %v3331
    %5908 = vmatpush.bf16.msra.mxu0 %v3322
    %5909 = vmatpush.bf16.msra.mxu0 %v3313
    %5910 = vmatpush.bf16.msra.mxu0 %v3304
    %5911 = vmatpush.bf16.msra.mxu0 %v3295
    %5912 = vmatpush.bf16.msra.mxu0 %v3286
    %5913 = vmatmul.bf16.gmra.mxu0 %v5692
    %v5914 = vpop.f32.mrf.mxu0
    %v5915 = vadd.f32 %v5902, %v5914
    %v5916 = vpop.f32.mrf.mxu0
    %5917 = vdwg.mxu0
    %5918 = vmatpush.bf16.msra.mxu0 %v3421
    %5919 = vmatpush.bf16.msra.mxu0 %v3412
    %5920 = vmatpush.bf16.msra.mxu0 %v3403
    %5921 = vmatpush.bf16.msra.mxu0 %v3394
    %5922 = vmatpush.bf16.msra.mxu0 %v3385
    %5923 = vmatpush.bf16.msra.mxu0 %v3376
    %5924 = vmatpush.bf16.msra.mxu0 %v3367
    %5925 = vmatpush.bf16.msra.mxu0 %v3358
    %5926 = vmatmul.bf16.gmra.mxu0 %v5693
    %v5927 = vpop.f32.mrf.mxu0
    %v5928 = vadd.f32 %v5915, %v5927
    %v5929 = vpop.f32.mrf.mxu0
    %5930 = vdwg.mxu0
    %5931 = vmatpush.bf16.msra.mxu0 %v3278
    %5932 = vmatpush.bf16.msra.mxu0 %v3269
    %5933 = vmatpush.bf16.msra.mxu0 %v3260
    %5934 = vmatpush.bf16.msra.mxu0 %v3251
    %5935 = vmatpush.bf16.msra.mxu0 %v3242
    %5936 = vmatpush.bf16.msra.mxu0 %v3233
    %5937 = vmatpush.bf16.msra.mxu0 %v3224
    %5938 = vmatpush.bf16.msra.mxu0 %v3215
    %5939 = vmatmul.bf16.gmra.mxu0 %v5691
    %v5940 = vpop.f32.mrf.mxu0
    %v5941 = vadd.f32 %v2525, %v5940
    %v5942 = vpop.f32.mrf.mxu0
    %5943 = vdwg.mxu0
    %5944 = vmatpush.bf16.msra.mxu0 %v3350
    %5945 = vmatpush.bf16.msra.mxu0 %v3341
    %5946 = vmatpush.bf16.msra.mxu0 %v3332
    %5947 = vmatpush.bf16.msra.mxu0 %v3323
    %5948 = vmatpush.bf16.msra.mxu0 %v3314
    %5949 = vmatpush.bf16.msra.mxu0 %v3305
    %5950 = vmatpush.bf16.msra.mxu0 %v3296
    %5951 = vmatpush.bf16.msra.mxu0 %v3287
    %5952 = vmatmul.bf16.gmra.mxu0 %v5692
    %v5953 = vpop.f32.mrf.mxu0
    %v5954 = vadd.f32 %v5941, %v5953
    %v5955 = vpop.f32.mrf.mxu0
    %5956 = vdwg.mxu0
    %5957 = vmatpush.bf16.msra.mxu0 %v3422
    %5958 = vmatpush.bf16.msra.mxu0 %v3413
    %5959 = vmatpush.bf16.msra.mxu0 %v3404
    %5960 = vmatpush.bf16.msra.mxu0 %v3395
    %5961 = vmatpush.bf16.msra.mxu0 %v3386
    %5962 = vmatpush.bf16.msra.mxu0 %v3377
    %5963 = vmatpush.bf16.msra.mxu0 %v3368
    %5964 = vmatpush.bf16.msra.mxu0 %v3359
    %5965 = vmatmul.bf16.gmra.mxu0 %v5693
    %v5966 = vpop.f32.mrf.mxu0
    %v5967 = vadd.f32 %v5954, %v5966
    %v5968 = vpop.f32.mrf.mxu0
    %5969 = vdwg.mxu0
    %5970 = vmatpush.bf16.msra.mxu0 %v3279
    %5971 = vmatpush.bf16.msra.mxu0 %v3270
    %5972 = vmatpush.bf16.msra.mxu0 %v3261
    %5973 = vmatpush.bf16.msra.mxu0 %v3252
    %5974 = vmatpush.bf16.msra.mxu0 %v3243
    %5975 = vmatpush.bf16.msra.mxu0 %v3234
    %5976 = vmatpush.bf16.msra.mxu0 %v3225
    %5977 = vmatpush.bf16.msra.mxu0 %v3216
    %5978 = vmatmul.bf16.gmra.mxu0 %v5691
    %v5979 = vpop.f32.mrf.mxu0
    %v5980 = vadd.f32 %v2526, %v5979
    %v5981 = vpop.f32.mrf.mxu0
    %5982 = vdwg.mxu0
    %5983 = vmatpush.bf16.msra.mxu0 %v3351
    %5984 = vmatpush.bf16.msra.mxu0 %v3342
    %5985 = vmatpush.bf16.msra.mxu0 %v3333
    %5986 = vmatpush.bf16.msra.mxu0 %v3324
    %5987 = vmatpush.bf16.msra.mxu0 %v3315
    %5988 = vmatpush.bf16.msra.mxu0 %v3306
    %5989 = vmatpush.bf16.msra.mxu0 %v3297
    %5990 = vmatpush.bf16.msra.mxu0 %v3288
    %5991 = vmatmul.bf16.gmra.mxu0 %v5692
    %v5992 = vpop.f32.mrf.mxu0
    %v5993 = vadd.f32 %v5980, %v5992
    %v5994 = vpop.f32.mrf.mxu0
    %5995 = vdwg.mxu0
    %5996 = vmatpush.bf16.msra.mxu0 %v3423
    %5997 = vmatpush.bf16.msra.mxu0 %v3414
    %5998 = vmatpush.bf16.msra.mxu0 %v3405
    %5999 = vmatpush.bf16.msra.mxu0 %v3396
    %6000 = vmatpush.bf16.msra.mxu0 %v3387
    %6001 = vmatpush.bf16.msra.mxu0 %v3378
    %6002 = vmatpush.bf16.msra.mxu0 %v3369
    %6003 = vmatpush.bf16.msra.mxu0 %v3360
    %6004 = vmatmul.bf16.gmra.mxu0 %v5693
    %v6005 = vpop.f32.mrf.mxu0
    %v6006 = vadd.f32 %v5993, %v6005
    %v6007 = vpop.f32.mrf.mxu0
    %6008 = vdwg.mxu0
    %6009 = vmatpush.bf16.msra.mxu0 %v3280
    %6010 = vmatpush.bf16.msra.mxu0 %v3271
    %6011 = vmatpush.bf16.msra.mxu0 %v3262
    %6012 = vmatpush.bf16.msra.mxu0 %v3253
    %6013 = vmatpush.bf16.msra.mxu0 %v3244
    %6014 = vmatpush.bf16.msra.mxu0 %v3235
    %6015 = vmatpush.bf16.msra.mxu0 %v3226
    %6016 = vmatpush.bf16.msra.mxu0 %v3217
    %6017 = vmatmul.bf16.gmra.mxu0 %v5691
    %v6018 = vpop.f32.mrf.mxu0
    %v6019 = vadd.f32 %v2527, %v6018
    %v6020 = vpop.f32.mrf.mxu0
    %6021 = vdwg.mxu0
    %6022 = vmatpush.bf16.msra.mxu0 %v3352
    %6023 = vmatpush.bf16.msra.mxu0 %v3343
    %6024 = vmatpush.bf16.msra.mxu0 %v3334
    %6025 = vmatpush.bf16.msra.mxu0 %v3325
    %6026 = vmatpush.bf16.msra.mxu0 %v3316
    %6027 = vmatpush.bf16.msra.mxu0 %v3307
    %6028 = vmatpush.bf16.msra.mxu0 %v3298
    %6029 = vmatpush.bf16.msra.mxu0 %v3289
    %6030 = vmatmul.bf16.gmra.mxu0 %v5692
    %v6031 = vpop.f32.mrf.mxu0
    %v6032 = vadd.f32 %v6019, %v6031
    %v6033 = vpop.f32.mrf.mxu0
    %6034 = vdwg.mxu0
    %6035 = vmatpush.bf16.msra.mxu0 %v3424
    %6036 = vmatpush.bf16.msra.mxu0 %v3415
    %6037 = vmatpush.bf16.msra.mxu0 %v3406
    %6038 = vmatpush.bf16.msra.mxu0 %v3397
    %6039 = vmatpush.bf16.msra.mxu0 %v3388
    %6040 = vmatpush.bf16.msra.mxu0 %v3379
    %6041 = vmatpush.bf16.msra.mxu0 %v3370
    %6042 = vmatpush.bf16.msra.mxu0 %v3361
    %6043 = vmatmul.bf16.gmra.mxu0 %v5693
    %v6044 = vpop.f32.mrf.mxu0
    %v6045 = vadd.f32 %v6032, %v6044
    %v6046 = vpop.f32.mrf.mxu0
    %6047 = vdwg.mxu0
    %v6048 = vadd.f32 %v5677, %v5733
    %v6049 = vadd.f32 %v5678, %v5772
    %v6050 = vadd.f32 %v5679, %v5811
    %v6051 = vadd.f32 %v5680, %v5850
    %v6052 = vadd.f32 %v5681, %v5889
    %v6053 = vadd.f32 %v5682, %v5928
    %v6054 = vxor.u32 %v6048, 2147483648
    %v6055 = vxor.u32 %v6049, 2147483648
    %v6056 = vxor.u32 %v6050, 2147483648
    %v6057 = vxor.u32 %v6051, 2147483648
    %v6058 = vxor.u32 %v6052, 2147483648
    %v6059 = vxor.u32 %v6053, 2147483648
    %v6060 = vmul.f32 %v6054, 1.442695
    %v6061 = vpow.pop %v6060
    %v6062 = vmul.f32 %v6055, 1.442695
    %v6063 = vpow.pop %v6062
    %v6064 = vmul.f32 %v6056, 1.442695
    %v6065 = vpow.pop %v6064
    %v6066 = vmul.f32 %v6057, 1.442695
    %v6067 = vpow.pop %v6066
    %v6068 = vmul.f32 %v6058, 1.442695
    %v6069 = vpow.pop %v6068
    %v6070 = vmul.f32 %v6059, 1.442695
    %v6071 = vpow.pop %v6070
    %v6072 = vadd.f32 %v6061, 1.0
    %v6073 = vadd.f32 %v6063, 1.0
    %v6074 = vadd.f32 %v6065, 1.0
    %v6075 = vadd.f32 %v6067, 1.0
    %v6076 = vadd.f32 %v6069, 1.0
    %v6077 = vadd.f32 %v6071, 1.0
    %v6078 = vrcp.pop %v6072
    %v6079 = vmul.f32 %v6072, %v6078
    %v6080 = vsub.f32 1.0, %v6079
    %v6081 = vmul.f32 %v6078, %v6080
    %v6082 = vadd.f32 %v6078, %v6081
    %vm6083 = vweird.f32 %v6072
    %vm6084 = vweird.f32 %v6078
    %vm6085 = vmor %vm6083, %vm6084
    %v6086 = vsel %vm6085, %v6078, %v6082
    %v6087 = vand.u32 2147483647, %v6072
    %vm6088 = vcmp.eq.f32.partialorder %v6087, 8.507059e+37
    %v6089 = vand.u32 %v6072, 2147483648
    %v6090 = vor.u32 1.1754944e-38, %v6089
    %v6091 = vsel %vm6088, %v6090, %v6086
    %v6092 = vmul.f32 1.0, %v6091
    %v6093 = vrcp.pop %v6073
    %v6094 = vmul.f32 %v6073, %v6093
    %v6095 = vsub.f32 1.0, %v6094
    %v6096 = vmul.f32 %v6093, %v6095
    %v6097 = vadd.f32 %v6093, %v6096
    %vm6098 = vweird.f32 %v6073
    %vm6099 = vweird.f32 %v6093
    %vm6100 = vmor %vm6098, %vm6099
    %v6101 = vsel %vm6100, %v6093, %v6097
    %v6102 = vand.u32 2147483647, %v6073
    %vm6103 = vcmp.eq.f32.partialorder %v6102, 8.507059e+37
    %v6104 = vand.u32 %v6073, 2147483648
    %v6105 = vor.u32 1.1754944e-38, %v6104
    %v6106 = vsel %vm6103, %v6105, %v6101
    %v6107 = vmul.f32 1.0, %v6106
    %v6108 = vrcp.pop %v6074
    %v6109 = vmul.f32 %v6074, %v6108
    %v6110 = vsub.f32 1.0, %v6109
    %v6111 = vmul.f32 %v6108, %v6110
    %v6112 = vadd.f32 %v6108, %v6111
    %vm6113 = vweird.f32 %v6074
    %vm6114 = vweird.f32 %v6108
    %vm6115 = vmor %vm6113, %vm6114
    %v6116 = vsel %vm6115, %v6108, %v6112
    %v6117 = vand.u32 2147483647, %v6074
    %vm6118 = vcmp.eq.f32.partialorder %v6117, 8.507059e+37
    %v6119 = vand.u32 %v6074, 2147483648
    %v6120 = vor.u32 1.1754944e-38, %v6119
    %v6121 = vsel %vm6118, %v6120, %v6116
    %v6122 = vmul.f32 1.0, %v6121
    %v6123 = vrcp.pop %v6075
    %v6124 = vmul.f32 %v6075, %v6123
    %v6125 = vsub.f32 1.0, %v6124
    %v6126 = vmul.f32 %v6123, %v6125
    %v6127 = vadd.f32 %v6123, %v6126
    %vm6128 = vweird.f32 %v6075
    %vm6129 = vweird.f32 %v6123
    %vm6130 = vmor %vm6128, %vm6129
    %v6131 = vsel %vm6130, %v6123, %v6127
    %v6132 = vand.u32 2147483647, %v6075
    %vm6133 = vcmp.eq.f32.partialorder %v6132, 8.507059e+37
    %v6134 = vand.u32 %v6075, 2147483648
    %v6135 = vor.u32 1.1754944e-38, %v6134
    %v6136 = vsel %vm6133, %v6135, %v6131
    %v6137 = vmul.f32 1.0, %v6136
    %v6138 = vrcp.pop %v6076
    %v6139 = vmul.f32 %v6076, %v6138
    %v6140 = vsub.f32 1.0, %v6139
    %v6141 = vmul.f32 %v6138, %v6140
    %v6142 = vadd.f32 %v6138, %v6141
    %vm6143 = vweird.f32 %v6076
    %vm6144 = vweird.f32 %v6138
    %vm6145 = vmor %vm6143, %vm6144
    %v6146 = vsel %vm6145, %v6138, %v6142
    %v6147 = vand.u32 2147483647, %v6076
    %vm6148 = vcmp.eq.f32.partialorder %v6147, 8.507059e+37
    %v6149 = vand.u32 %v6076, 2147483648
    %v6150 = vor.u32 1.1754944e-38, %v6149
    %v6151 = vsel %vm6148, %v6150, %v6146
    %v6152 = vmul.f32 1.0, %v6151
    %v6153 = vrcp.pop %v6077
    %v6154 = vmul.f32 %v6077, %v6153
    %v6155 = vsub.f32 1.0, %v6154
    %v6156 = vmul.f32 %v6153, %v6155
    %v6157 = vadd.f32 %v6153, %v6156
    %vm6158 = vweird.f32 %v6077
    %vm6159 = vweird.f32 %v6153
    %vm6160 = vmor %vm6158, %vm6159
    %v6161 = vsel %vm6160, %v6153, %v6157
    %v6162 = vand.u32 2147483647, %v6077
    %vm6163 = vcmp.eq.f32.partialorder %v6162, 8.507059e+37
    %v6164 = vand.u32 %v6077, 2147483648
    %v6165 = vor.u32 1.1754944e-38, %v6164
    %v6166 = vsel %vm6163, %v6165, %v6161
    %v6167 = vmul.f32 1.0, %v6166
    %v6168 = vmul.f32 %v6092, %v5967
    %v6169 = vmul.f32 %v6107, %v6006
    %v6170 = vmul.f32 %v6122, %v6045
    %v6171 = vadd.f32 %v5683, %v6168
    %v6172 = vadd.f32 %v5684, %v6169
    %v6173 = vadd.f32 %v5685, %v6170
    %v6174 = vtanh.pop %v6171
    %v6175 = vtanh.pop %v6172
    %v6176 = vtanh.pop %v6173
    %v6177 = vsub.f32 1.0, %v6137
    %v6178 = vsub.f32 1.0, %v6152
    %v6179 = vsub.f32 1.0, %v6167
    %v6180 = vmul.f32 %v6177, %v6174
    %v6181 = vmul.f32 %v6178, %v6175
    %v6182 = vmul.f32 %v6179, %v6176
    %v6183 = vmul.f32 %v6137, %v5672
    %v6184 = vmul.f32 %v6152, %v5673
    %v6185 = vmul.f32 %v6167, %v5674
    %v6186 = vadd.f32 %v6180, %v6183
    %v6187 = vadd.f32 %v6181, %v6184
    %v6188 = vadd.f32 %v6182, %v6185
    %v6189 = vpack.c.bf16 %v6187, %v6186
    %v6190 = vpack.c.bf16 %v6188, %v6188
    %v6191 = vadd.f32 %v1540, %v2159
    %v6192 = vadd.f32 %v1598, %v2172
    %v6193 = vadd.f32 %v1656, %v2185
    %v6194 = vadd.f32 %v1714, %v2198
    %v6195 = vadd.f32 %v1772, %v2211
    %v6196 = vadd.f32 %v1830, %v2224
    %v6197 = vadd.f32 %v1888, %v2237
    %v6198 = vadd.f32 %v1946, %v2250
    %v6199 = vadd.f32 %v2004, %v2263
    %v6202 = vunpack.c.l.b16 %v6189
    %v6203 = vunpack.c.h.b16 %v6189
    %v6204 = vunpack.c.l.b16 %v6190
    %v6205 = vpack.c.b16 %v6202, %v6202
    %v6206 = vpack.c.b16 %v6203, %v6203
    %v6207 = vpack.c.b16 %v6204, %v6204
    %6211 = vmatpush.bf16.msra.mxu0 %v3272
    %6212 = vmatpush.bf16.msra.mxu0 %v3263
    %6213 = vmatpush.bf16.msra.mxu0 %v3254
    %6214 = vmatpush.bf16.msra.mxu0 %v3245
    %6215 = vmatpush.bf16.msra.mxu0 %v3236
    %6216 = vmatpush.bf16.msra.mxu0 %v3227
    %6217 = vmatpush.bf16.msra.mxu0 %v3218
    %6218 = vmatpush.bf16.msra.mxu0 %v3209
    %6219 = vmatmul.bf16.gmra.mxu0 %v6205
    %v6220 = vpop.f32.mrf.mxu0
    %v6221 = vadd.f32 %v2519, %v6220
    %v6222 = vpop.f32.mrf.mxu0
    %6223 = vdwg.mxu0
    %6224 = vmatpush.bf16.msra.mxu0 %v3344
    %6225 = vmatpush.bf16.msra.mxu0 %v3335
    %6226 = vmatpush.bf16.msra.mxu0 %v3326
    %6227 = vmatpush.bf16.msra.mxu0 %v3317
    %6228 = vmatpush.bf16.msra.mxu0 %v3308
    %6229 = vmatpush.bf16.msra.mxu0 %v3299
    %6230 = vmatpush.bf16.msra.mxu0 %v3290
    %6231 = vmatpush.bf16.msra.mxu0 %v3281
    %6232 = vmatmul.bf16.gmra.mxu0 %v6206
    %v6233 = vpop.f32.mrf.mxu0
    %v6234 = vadd.f32 %v6221, %v6233
    %v6235 = vpop.f32.mrf.mxu0
    %6236 = vdwg.mxu0
    %6237 = vmatpush.bf16.msra.mxu0 %v3416
    %6238 = vmatpush.bf16.msra.mxu0 %v3407
    %6239 = vmatpush.bf16.msra.mxu0 %v3398
    %6240 = vmatpush.bf16.msra.mxu0 %v3389
    %6241 = vmatpush.bf16.msra.mxu0 %v3380
    %6242 = vmatpush.bf16.msra.mxu0 %v3371
    %6243 = vmatpush.bf16.msra.mxu0 %v3362
    %6244 = vmatpush.bf16.msra.mxu0 %v3353
    %6245 = vmatmul.bf16.gmra.mxu0 %v6207
    %v6246 = vpop.f32.mrf.mxu0
    %v6247 = vadd.f32 %v6234, %v6246
    %v6248 = vpop.f32.mrf.mxu0
    %6249 = vdwg.mxu0
    %6250 = vmatpush.bf16.msra.mxu0 %v3273
    %6251 = vmatpush.bf16.msra.mxu0 %v3264
    %6252 = vmatpush.bf16.msra.mxu0 %v3255
    %6253 = vmatpush.bf16.msra.mxu0 %v3246
    %6254 = vmatpush.bf16.msra.mxu0 %v3237
    %6255 = vmatpush.bf16.msra.mxu0 %v3228
    %6256 = vmatpush.bf16.msra.mxu0 %v3219
    %6257 = vmatpush.bf16.msra.mxu0 %v3210
    %6258 = vmatmul.bf16.gmra.mxu0 %v6205
    %v6259 = vpop.f32.mrf.mxu0
    %v6260 = vadd.f32 %v2520, %v6259
    %v6261 = vpop.f32.mrf.mxu0
    %6262 = vdwg.mxu0
    %6263 = vmatpush.bf16.msra.mxu0 %v3345
    %6264 = vmatpush.bf16.msra.mxu0 %v3336
    %6265 = vmatpush.bf16.msra.mxu0 %v3327
    %6266 = vmatpush.bf16.msra.mxu0 %v3318
    %6267 = vmatpush.bf16.msra.mxu0 %v3309
    %6268 = vmatpush.bf16.msra.mxu0 %v3300
    %6269 = vmatpush.bf16.msra.mxu0 %v3291
    %6270 = vmatpush.bf16.msra.mxu0 %v3282
    %6271 = vmatmul.bf16.gmra.mxu0 %v6206
    %v6272 = vpop.f32.mrf.mxu0
    %v6273 = vadd.f32 %v6260, %v6272
    %v6274 = vpop.f32.mrf.mxu0
    %6275 = vdwg.mxu0
    %6276 = vmatpush.bf16.msra.mxu0 %v3417
    %6277 = vmatpush.bf16.msra.mxu0 %v3408
    %6278 = vmatpush.bf16.msra.mxu0 %v3399
    %6279 = vmatpush.bf16.msra.mxu0 %v3390
    %6280 = vmatpush.bf16.msra.mxu0 %v3381
    %6281 = vmatpush.bf16.msra.mxu0 %v3372
    %6282 = vmatpush.bf16.msra.mxu0 %v3363
    %6283 = vmatpush.bf16.msra.mxu0 %v3354
    %6284 = vmatmul.bf16.gmra.mxu0 %v6207
    %v6285 = vpop.f32.mrf.mxu0
    %v6286 = vadd.f32 %v6273, %v6285
    %v6287 = vpop.f32.mrf.mxu0
    %6288 = vdwg.mxu0
    %6289 = vmatpush.bf16.msra.mxu0 %v3274
    %6290 = vmatpush.bf16.msra.mxu0 %v3265
    %6291 = vmatpush.bf16.msra.mxu0 %v3256
    %6292 = vmatpush.bf16.msra.mxu0 %v3247
    %6293 = vmatpush.bf16.msra.mxu0 %v3238
    %6294 = vmatpush.bf16.msra.mxu0 %v3229
    %6295 = vmatpush.bf16.msra.mxu0 %v3220
    %6296 = vmatpush.bf16.msra.mxu0 %v3211
    %6297 = vmatmul.bf16.gmra.mxu0 %v6205
    %v6298 = vpop.f32.mrf.mxu0
    %v6299 = vadd.f32 %v2521, %v6298
    %v6300 = vpop.f32.mrf.mxu0
    %6301 = vdwg.mxu0
    %6302 = vmatpush.bf16.msra.mxu0 %v3346
    %6303 = vmatpush.bf16.msra.mxu0 %v3337
    %6304 = vmatpush.bf16.msra.mxu0 %v3328
    %6305 = vmatpush.bf16.msra.mxu0 %v3319
    %6306 = vmatpush.bf16.msra.mxu0 %v3310
    %6307 = vmatpush.bf16.msra.mxu0 %v3301
    %6308 = vmatpush.bf16.msra.mxu0 %v3292
    %6309 = vmatpush.bf16.msra.mxu0 %v3283
    %6310 = vmatmul.bf16.gmra.mxu0 %v6206
    %v6311 = vpop.f32.mrf.mxu0
    %v6312 = vadd.f32 %v6299, %v6311
    %v6313 = vpop.f32.mrf.mxu0
    %6314 = vdwg.mxu0
    %6315 = vmatpush.bf16.msra.mxu0 %v3418
    %6316 = vmatpush.bf16.msra.mxu0 %v3409
    %6317 = vmatpush.bf16.msra.mxu0 %v3400
    %6318 = vmatpush.bf16.msra.mxu0 %v3391
    %6319 = vmatpush.bf16.msra.mxu0 %v3382
    %6320 = vmatpush.bf16.msra.mxu0 %v3373
    %6321 = vmatpush.bf16.msra.mxu0 %v3364
    %6322 = vmatpush.bf16.msra.mxu0 %v3355
    %6323 = vmatmul.bf16.gmra.mxu0 %v6207
    %v6324 = vpop.f32.mrf.mxu0
    %v6325 = vadd.f32 %v6312, %v6324
    %v6326 = vpop.f32.mrf.mxu0
    %6327 = vdwg.mxu0
    %6328 = vmatpush.bf16.msra.mxu0 %v3275
    %6329 = vmatpush.bf16.msra.mxu0 %v3266
    %6330 = vmatpush.bf16.msra.mxu0 %v3257
    %6331 = vmatpush.bf16.msra.mxu0 %v3248
    %6332 = vmatpush.bf16.msra.mxu0 %v3239
    %6333 = vmatpush.bf16.msra.mxu0 %v3230
    %6334 = vmatpush.bf16.msra.mxu0 %v3221
    %6335 = vmatpush.bf16.msra.mxu0 %v3212
    %6336 = vmatmul.bf16.gmra.mxu0 %v6205
    %v6337 = vpop.f32.mrf.mxu0
    %v6338 = vadd.f32 %v2522, %v6337
    %v6339 = vpop.f32.mrf.mxu0
    %6340 = vdwg.mxu0
    %6341 = vmatpush.bf16.msra.mxu0 %v3347
    %6342 = vmatpush.bf16.msra.mxu0 %v3338
    %6343 = vmatpush.bf16.msra.mxu0 %v3329
    %6344 = vmatpush.bf16.msra.mxu0 %v3320
    %6345 = vmatpush.bf16.msra.mxu0 %v3311
    %6346 = vmatpush.bf16.msra.mxu0 %v3302
    %6347 = vmatpush.bf16.msra.mxu0 %v3293
    %6348 = vmatpush.bf16.msra.mxu0 %v3284
    %6349 = vmatmul.bf16.gmra.mxu0 %v6206
    %v6350 = vpop.f32.mrf.mxu0
    %v6351 = vadd.f32 %v6338, %v6350
    %v6352 = vpop.f32.mrf.mxu0
    %6353 = vdwg.mxu0
    %6354 = vmatpush.bf16.msra.mxu0 %v3419
    %6355 = vmatpush.bf16.msra.mxu0 %v3410
    %6356 = vmatpush.bf16.msra.mxu0 %v3401
    %6357 = vmatpush.bf16.msra.mxu0 %v3392
    %6358 = vmatpush.bf16.msra.mxu0 %v3383
    %6359 = vmatpush.bf16.msra.mxu0 %v3374
    %6360 = vmatpush.bf16.msra.mxu0 %v3365
    %6361 = vmatpush.bf16.msra.mxu0 %v3356
    %6362 = vmatmul.bf16.gmra.mxu0 %v6207
    %v6363 = vpop.f32.mrf.mxu0
    %v6364 = vadd.f32 %v6351, %v6363
    %v6365 = vpop.f32.mrf.mxu0
    %6366 = vdwg.mxu0
    %6367 = vmatpush.bf16.msra.mxu0 %v3276
    %6368 = vmatpush.bf16.msra.mxu0 %v3267
    %6369 = vmatpush.bf16.msra.mxu0 %v3258
    %6370 = vmatpush.bf16.msra.mxu0 %v3249
    %6371 = vmatpush.bf16.msra.mxu0 %v3240
    %6372 = vmatpush.bf16.msra.mxu0 %v3231
    %6373 = vmatpush.bf16.msra.mxu0 %v3222
    %6374 = vmatpush.bf16.msra.mxu0 %v3213
    %6375 = vmatmul.bf16.gmra.mxu0 %v6205
    %v6376 = vpop.f32.mrf.mxu0
    %v6377 = vadd.f32 %v2523, %v6376
    %v6378 = vpop.f32.mrf.mxu0
    %6379 = vdwg.mxu0
    %6380 = vmatpush.bf16.msra.mxu0 %v3348
    %6381 = vmatpush.bf16.msra.mxu0 %v3339
    %6382 = vmatpush.bf16.msra.mxu0 %v3330
    %6383 = vmatpush.bf16.msra.mxu0 %v3321
    %6384 = vmatpush.bf16.msra.mxu0 %v3312
    %6385 = vmatpush.bf16.msra.mxu0 %v3303
    %6386 = vmatpush.bf16.msra.mxu0 %v3294
    %6387 = vmatpush.bf16.msra.mxu0 %v3285
    %6388 = vmatmul.bf16.gmra.mxu0 %v6206
    %v6389 = vpop.f32.mrf.mxu0
    %v6390 = vadd.f32 %v6377, %v6389
    %v6391 = vpop.f32.mrf.mxu0
    %6392 = vdwg.mxu0
    %6393 = vmatpush.bf16.msra.mxu0 %v3420
    %6394 = vmatpush.bf16.msra.mxu0 %v3411
    %6395 = vmatpush.bf16.msra.mxu0 %v3402
    %6396 = vmatpush.bf16.msra.mxu0 %v3393
    %6397 = vmatpush.bf16.msra.mxu0 %v3384
    %6398 = vmatpush.bf16.msra.mxu0 %v3375
    %6399 = vmatpush.bf16.msra.mxu0 %v3366
    %6400 = vmatpush.bf16.msra.mxu0 %v3357
    %6401 = vmatmul.bf16.gmra.mxu0 %v6207
    %v6402 = vpop.f32.mrf.mxu0
    %v6403 = vadd.f32 %v6390, %v6402
    %v6404 = vpop.f32.mrf.mxu0
    %6405 = vdwg.mxu0
    %6406 = vmatpush.bf16.msra.mxu0 %v3277
    %6407 = vmatpush.bf16.msra.mxu0 %v3268
    %6408 = vmatpush.bf16.msra.mxu0 %v3259
    %6409 = vmatpush.bf16.msra.mxu0 %v3250
    %6410 = vmatpush.bf16.msra.mxu0 %v3241
    %6411 = vmatpush.bf16.msra.mxu0 %v3232
    %6412 = vmatpush.bf16.msra.mxu0 %v3223
    %6413 = vmatpush.bf16.msra.mxu0 %v3214
    %6414 = vmatmul.bf16.gmra.mxu0 %v6205
    %v6415 = vpop.f32.mrf.mxu0
    %v6416 = vadd.f32 %v2524, %v6415
    %v6417 = vpop.f32.mrf.mxu0
    %6418 = vdwg.mxu0
    %6419 = vmatpush.bf16.msra.mxu0 %v3349
    %6420 = vmatpush.bf16.msra.mxu0 %v3340
    %6421 = vmatpush.bf16.msra.mxu0 %v3331
    %6422 = vmatpush.bf16.msra.mxu0 %v3322
    %6423 = vmatpush.bf16.msra.mxu0 %v3313
    %6424 = vmatpush.bf16.msra.mxu0 %v3304
    %6425 = vmatpush.bf16.msra.mxu0 %v3295
    %6426 = vmatpush.bf16.msra.mxu0 %v3286
    %6427 = vmatmul.bf16.gmra.mxu0 %v6206
    %v6428 = vpop.f32.mrf.mxu0
    %v6429 = vadd.f32 %v6416, %v6428
    %v6430 = vpop.f32.mrf.mxu0
    %6431 = vdwg.mxu0
    %6432 = vmatpush.bf16.msra.mxu0 %v3421
    %6433 = vmatpush.bf16.msra.mxu0 %v3412
    %6434 = vmatpush.bf16.msra.mxu0 %v3403
    %6435 = vmatpush.bf16.msra.mxu0 %v3394
    %6436 = vmatpush.bf16.msra.mxu0 %v3385
    %6437 = vmatpush.bf16.msra.mxu0 %v3376
    %6438 = vmatpush.bf16.msra.mxu0 %v3367
    %6439 = vmatpush.bf16.msra.mxu0 %v3358
    %6440 = vmatmul.bf16.gmra.mxu0 %v6207
    %v6441 = vpop.f32.mrf.mxu0
    %v6442 = vadd.f32 %v6429, %v6441
    %v6443 = vpop.f32.mrf.mxu0
    %6444 = vdwg.mxu0
    %6445 = vmatpush.bf16.msra.mxu0 %v3278
    %6446 = vmatpush.bf16.msra.mxu0 %v3269
    %6447 = vmatpush.bf16.msra.mxu0 %v3260
    %6448 = vmatpush.bf16.msra.mxu0 %v3251
    %6449 = vmatpush.bf16.msra.mxu0 %v3242
    %6450 = vmatpush.bf16.msra.mxu0 %v3233
    %6451 = vmatpush.bf16.msra.mxu0 %v3224
    %6452 = vmatpush.bf16.msra.mxu0 %v3215
    %6453 = vmatmul.bf16.gmra.mxu0 %v6205
    %v6454 = vpop.f32.mrf.mxu0
    %v6455 = vadd.f32 %v2525, %v6454
    %v6456 = vpop.f32.mrf.mxu0
    %6457 = vdwg.mxu0
    %6458 = vmatpush.bf16.msra.mxu0 %v3350
    %6459 = vmatpush.bf16.msra.mxu0 %v3341
    %6460 = vmatpush.bf16.msra.mxu0 %v3332
    %6461 = vmatpush.bf16.msra.mxu0 %v3323
    %6462 = vmatpush.bf16.msra.mxu0 %v3314
    %6463 = vmatpush.bf16.msra.mxu0 %v3305
    %6464 = vmatpush.bf16.msra.mxu0 %v3296
    %6465 = vmatpush.bf16.msra.mxu0 %v3287
    %6466 = vmatmul.bf16.gmra.mxu0 %v6206
    %v6467 = vpop.f32.mrf.mxu0
    %v6468 = vadd.f32 %v6455, %v6467
    %v6469 = vpop.f32.mrf.mxu0
    %6470 = vdwg.mxu0
    %6471 = vmatpush.bf16.msra.mxu0 %v3422
    %6472 = vmatpush.bf16.msra.mxu0 %v3413
    %6473 = vmatpush.bf16.msra.mxu0 %v3404
    %6474 = vmatpush.bf16.msra.mxu0 %v3395
    %6475 = vmatpush.bf16.msra.mxu0 %v3386
    %6476 = vmatpush.bf16.msra.mxu0 %v3377
    %6477 = vmatpush.bf16.msra.mxu0 %v3368
    %6478 = vmatpush.bf16.msra.mxu0 %v3359
    %6479 = vmatmul.bf16.gmra.mxu0 %v6207
    %v6480 = vpop.f32.mrf.mxu0
    %v6481 = vadd.f32 %v6468, %v6480
    %v6482 = vpop.f32.mrf.mxu0
    %6483 = vdwg.mxu0
    %6484 = vmatpush.bf16.msra.mxu0 %v3279
    %6485 = vmatpush.bf16.msra.mxu0 %v3270
    %6486 = vmatpush.bf16.msra.mxu0 %v3261
    %6487 = vmatpush.bf16.msra.mxu0 %v3252
    %6488 = vmatpush.bf16.msra.mxu0 %v3243
    %6489 = vmatpush.bf16.msra.mxu0 %v3234
    %6490 = vmatpush.bf16.msra.mxu0 %v3225
    %6491 = vmatpush.bf16.msra.mxu0 %v3216
    %6492 = vmatmul.bf16.gmra.mxu0 %v6205
    %v6493 = vpop.f32.mrf.mxu0
    %v6494 = vadd.f32 %v2526, %v6493
    %v6495 = vpop.f32.mrf.mxu0
    %6496 = vdwg.mxu0
    %6497 = vmatpush.bf16.msra.mxu0 %v3351
    %6498 = vmatpush.bf16.msra.mxu0 %v3342
    %6499 = vmatpush.bf16.msra.mxu0 %v3333
    %6500 = vmatpush.bf16.msra.mxu0 %v3324
    %6501 = vmatpush.bf16.msra.mxu0 %v3315
    %6502 = vmatpush.bf16.msra.mxu0 %v3306
    %6503 = vmatpush.bf16.msra.mxu0 %v3297
    %6504 = vmatpush.bf16.msra.mxu0 %v3288
    %6505 = vmatmul.bf16.gmra.mxu0 %v6206
    %v6506 = vpop.f32.mrf.mxu0
    %v6507 = vadd.f32 %v6494, %v6506
    %v6508 = vpop.f32.mrf.mxu0
    %6509 = vdwg.mxu0
    %6510 = vmatpush.bf16.msra.mxu0 %v3423
    %6511 = vmatpush.bf16.msra.mxu0 %v3414
    %6512 = vmatpush.bf16.msra.mxu0 %v3405
    %6513 = vmatpush.bf16.msra.mxu0 %v3396
    %6514 = vmatpush.bf16.msra.mxu0 %v3387
    %6515 = vmatpush.bf16.msra.mxu0 %v3378
    %6516 = vmatpush.bf16.msra.mxu0 %v3369
    %6517 = vmatpush.bf16.msra.mxu0 %v3360
    %6518 = vmatmul.bf16.gmra.mxu0 %v6207
    %v6519 = vpop.f32.mrf.mxu0
    %v6520 = vadd.f32 %v6507, %v6519
    %v6521 = vpop.f32.mrf.mxu0
    %6522 = vdwg.mxu0
    %6523 = vmatpush.bf16.msra.mxu0 %v3280
    %6524 = vmatpush.bf16.msra.mxu0 %v3271
    %6525 = vmatpush.bf16.msra.mxu0 %v3262
    %6526 = vmatpush.bf16.msra.mxu0 %v3253
    %6527 = vmatpush.bf16.msra.mxu0 %v3244
    %6528 = vmatpush.bf16.msra.mxu0 %v3235
    %6529 = vmatpush.bf16.msra.mxu0 %v3226
    %6530 = vmatpush.bf16.msra.mxu0 %v3217
    %6531 = vmatmul.bf16.gmra.mxu0 %v6205
    %v6532 = vpop.f32.mrf.mxu0
    %v6533 = vadd.f32 %v2527, %v6532
    %v6534 = vpop.f32.mrf.mxu0
    %6535 = vdwg.mxu0
    %6536 = vmatpush.bf16.msra.mxu0 %v3352
    %6537 = vmatpush.bf16.msra.mxu0 %v3343
    %6538 = vmatpush.bf16.msra.mxu0 %v3334
    %6539 = vmatpush.bf16.msra.mxu0 %v3325
    %6540 = vmatpush.bf16.msra.mxu0 %v3316
    %6541 = vmatpush.bf16.msra.mxu0 %v3307
    %6542 = vmatpush.bf16.msra.mxu0 %v3298
    %6543 = vmatpush.bf16.msra.mxu0 %v3289
    %6544 = vmatmul.bf16.gmra.mxu0 %v6206
    %v6545 = vpop.f32.mrf.mxu0
    %v6546 = vadd.f32 %v6533, %v6545
    %v6547 = vpop.f32.mrf.mxu0
    %6548 = vdwg.mxu0
    %6549 = vmatpush.bf16.msra.mxu0 %v3424
    %6550 = vmatpush.bf16.msra.mxu0 %v3415
    %6551 = vmatpush.bf16.msra.mxu0 %v3406
    %6552 = vmatpush.bf16.msra.mxu0 %v3397
    %6553 = vmatpush.bf16.msra.mxu0 %v3388
    %6554 = vmatpush.bf16.msra.mxu0 %v3379
    %6555 = vmatpush.bf16.msra.mxu0 %v3370
    %6556 = vmatpush.bf16.msra.mxu0 %v3361
    %6557 = vmatmul.bf16.gmra.mxu0 %v6207
    %v6558 = vpop.f32.mrf.mxu0
    %v6559 = vadd.f32 %v6546, %v6558
    %v6560 = vpop.f32.mrf.mxu0
    %6561 = vdwg.mxu0
    %v6562 = vadd.f32 %v6191, %v6247
    %v6563 = vadd.f32 %v6192, %v6286
    %v6564 = vadd.f32 %v6193, %v6325
    %v6565 = vadd.f32 %v6194, %v6364
    %v6566 = vadd.f32 %v6195, %v6403
    %v6567 = vadd.f32 %v6196, %v6442
    %v6568 = vxor.u32 %v6562, 2147483648
    %v6569 = vxor.u32 %v6563, 2147483648
    %v6570 = vxor.u32 %v6564, 2147483648
    %v6571 = vxor.u32 %v6565, 2147483648
    %v6572 = vxor.u32 %v6566, 2147483648
    %v6573 = vxor.u32 %v6567, 2147483648
    %v6574 = vmul.f32 %v6568, 1.442695
    %v6575 = vpow.pop %v6574
    %v6576 = vmul.f32 %v6569, 1.442695
    %v6577 = vpow.pop %v6576
    %v6578 = vmul.f32 %v6570, 1.442695
    %v6579 = vpow.pop %v6578
    %v6580 = vmul.f32 %v6571, 1.442695
    %v6581 = vpow.pop %v6580
    %v6582 = vmul.f32 %v6572, 1.442695
    %v6583 = vpow.pop %v6582
    %v6584 = vmul.f32 %v6573, 1.442695
    %v6585 = vpow.pop %v6584
    %v6586 = vadd.f32 %v6575, 1.0
    %v6587 = vadd.f32 %v6577, 1.0
    %v6588 = vadd.f32 %v6579, 1.0
    %v6589 = vadd.f32 %v6581, 1.0
    %v6590 = vadd.f32 %v6583, 1.0
    %v6591 = vadd.f32 %v6585, 1.0
    %v6592 = vrcp.pop %v6586
    %v6593 = vmul.f32 %v6586, %v6592
    %v6594 = vsub.f32 1.0, %v6593
    %v6595 = vmul.f32 %v6592, %v6594
    %v6596 = vadd.f32 %v6592, %v6595
    %vm6597 = vweird.f32 %v6586
    %vm6598 = vweird.f32 %v6592
    %vm6599 = vmor %vm6597, %vm6598
    %v6600 = vsel %vm6599, %v6592, %v6596
    %v6601 = vand.u32 2147483647, %v6586
    %vm6602 = vcmp.eq.f32.partialorder %v6601, 8.507059e+37
    %v6603 = vand.u32 %v6586, 2147483648
    %v6604 = vor.u32 1.1754944e-38, %v6603
    %v6605 = vsel %vm6602, %v6604, %v6600
    %v6606 = vmul.f32 1.0, %v6605
    %v6607 = vrcp.pop %v6587
    %v6608 = vmul.f32 %v6587, %v6607
    %v6609 = vsub.f32 1.0, %v6608
    %v6610 = vmul.f32 %v6607, %v6609
    %v6611 = vadd.f32 %v6607, %v6610
    %vm6612 = vweird.f32 %v6587
    %vm6613 = vweird.f32 %v6607
    %vm6614 = vmor %vm6612, %vm6613
    %v6615 = vsel %vm6614, %v6607, %v6611
    %v6616 = vand.u32 2147483647, %v6587
    %vm6617 = vcmp.eq.f32.partialorder %v6616, 8.507059e+37
    %v6618 = vand.u32 %v6587, 2147483648
    %v6619 = vor.u32 1.1754944e-38, %v6618
    %v6620 = vsel %vm6617, %v6619, %v6615
    %v6621 = vmul.f32 1.0, %v6620
    %v6622 = vrcp.pop %v6588
    %v6623 = vmul.f32 %v6588, %v6622
    %v6624 = vsub.f32 1.0, %v6623
    %v6625 = vmul.f32 %v6622, %v6624
    %v6626 = vadd.f32 %v6622, %v6625
    %vm6627 = vweird.f32 %v6588
    %vm6628 = vweird.f32 %v6622
    %vm6629 = vmor %vm6627, %vm6628
    %v6630 = vsel %vm6629, %v6622, %v6626
    %v6631 = vand.u32 2147483647, %v6588
    %vm6632 = vcmp.eq.f32.partialorder %v6631, 8.507059e+37
    %v6633 = vand.u32 %v6588, 2147483648
    %v6634 = vor.u32 1.1754944e-38, %v6633
    %v6635 = vsel %vm6632, %v6634, %v6630
    %v6636 = vmul.f32 1.0, %v6635
    %v6637 = vrcp.pop %v6589
    %v6638 = vmul.f32 %v6589, %v6637
    %v6639 = vsub.f32 1.0, %v6638
    %v6640 = vmul.f32 %v6637, %v6639
    %v6641 = vadd.f32 %v6637, %v6640
    %vm6642 = vweird.f32 %v6589
    %vm6643 = vweird.f32 %v6637
    %vm6644 = vmor %vm6642, %vm6643
    %v6645 = vsel %vm6644, %v6637, %v6641
    %v6646 = vand.u32 2147483647, %v6589
    %vm6647 = vcmp.eq.f32.partialorder %v6646, 8.507059e+37
    %v6648 = vand.u32 %v6589, 2147483648
    %v6649 = vor.u32 1.1754944e-38, %v6648
    %v6650 = vsel %vm6647, %v6649, %v6645
    %v6651 = vmul.f32 1.0, %v6650
    %v6652 = vrcp.pop %v6590
    %v6653 = vmul.f32 %v6590, %v6652
    %v6654 = vsub.f32 1.0, %v6653
    %v6655 = vmul.f32 %v6652, %v6654
    %v6656 = vadd.f32 %v6652, %v6655
    %vm6657 = vweird.f32 %v6590
    %vm6658 = vweird.f32 %v6652
    %vm6659 = vmor %vm6657, %vm6658
    %v6660 = vsel %vm6659, %v6652, %v6656
    %v6661 = vand.u32 2147483647, %v6590
    %vm6662 = vcmp.eq.f32.partialorder %v6661, 8.507059e+37
    %v6663 = vand.u32 %v6590, 2147483648
    %v6664 = vor.u32 1.1754944e-38, %v6663
    %v6665 = vsel %vm6662, %v6664, %v6660
    %v6666 = vmul.f32 1.0, %v6665
    %v6667 = vrcp.pop %v6591
    %v6668 = vmul.f32 %v6591, %v6667
    %v6669 = vsub.f32 1.0, %v6668
    %v6670 = vmul.f32 %v6667, %v6669
    %v6671 = vadd.f32 %v6667, %v6670
    %vm6672 = vweird.f32 %v6591
    %vm6673 = vweird.f32 %v6667
    %vm6674 = vmor %vm6672, %vm6673
    %v6675 = vsel %vm6674, %v6667, %v6671
    %v6676 = vand.u32 2147483647, %v6591
    %vm6677 = vcmp.eq.f32.partialorder %v6676, 8.507059e+37
    %v6678 = vand.u32 %v6591, 2147483648
    %v6679 = vor.u32 1.1754944e-38, %v6678
    %v6680 = vsel %vm6677, %v6679, %v6675
    %v6681 = vmul.f32 1.0, %v6680
    %v6682 = vmul.f32 %v6606, %v6481
    %v6683 = vmul.f32 %v6621, %v6520
    %v6684 = vmul.f32 %v6636, %v6559
    %v6685 = vadd.f32 %v6197, %v6682
    %v6686 = vadd.f32 %v6198, %v6683
    %v6687 = vadd.f32 %v6199, %v6684
    %v6688 = vtanh.pop %v6685
    %v6689 = vtanh.pop %v6686
    %v6690 = vtanh.pop %v6687
    %v6691 = vsub.f32 1.0, %v6651
    %v6692 = vsub.f32 1.0, %v6666
    %v6693 = vsub.f32 1.0, %v6681
    %v6694 = vmul.f32 %v6691, %v6688
    %v6695 = vmul.f32 %v6692, %v6689
    %v6696 = vmul.f32 %v6693, %v6690
    %v6697 = vmul.f32 %v6651, %v6186
    %v6698 = vmul.f32 %v6666, %v6187
    %v6699 = vmul.f32 %v6681, %v6188
    %v6700 = vadd.f32 %v6694, %v6697
    %v6701 = vadd.f32 %v6695, %v6698
    %v6702 = vadd.f32 %v6696, %v6699
    %v6703 = vpack.c.bf16 %v6701, %v6700
    %v6704 = vpack.c.bf16 %v6702, %v6702
    %v6705 = vadd.f32 %v1543, %v2159
    %v6706 = vadd.f32 %v1601, %v2172
    %v6707 = vadd.f32 %v1659, %v2185
    %v6708 = vadd.f32 %v1717, %v2198
    %v6709 = vadd.f32 %v1775, %v2211
    %v6710 = vadd.f32 %v1833, %v2224
    %v6711 = vadd.f32 %v1891, %v2237
    %v6712 = vadd.f32 %v1949, %v2250
    %v6713 = vadd.f32 %v2007, %v2263
    %v6716 = vunpack.c.l.b16 %v6703
    %v6717 = vunpack.c.h.b16 %v6703
    %v6718 = vunpack.c.l.b16 %v6704
    %v6719 = vpack.c.b16 %v6716, %v6716
    %v6720 = vpack.c.b16 %v6717, %v6717
    %v6721 = vpack.c.b16 %v6718, %v6718
    %6725 = vmatpush.bf16.msra.mxu0 %v3272
    %6726 = vmatpush.bf16.msra.mxu0 %v3263
    %6727 = vmatpush.bf16.msra.mxu0 %v3254
    %6728 = vmatpush.bf16.msra.mxu0 %v3245
    %6729 = vmatpush.bf16.msra.mxu0 %v3236
    %6730 = vmatpush.bf16.msra.mxu0 %v3227
    %6731 = vmatpush.bf16.msra.mxu0 %v3218
    %6732 = vmatpush.bf16.msra.mxu0 %v3209
    %6733 = vmatmul.bf16.gmra.mxu0 %v6719
    %v6734 = vpop.f32.mrf.mxu0
    %v6735 = vadd.f32 %v2519, %v6734
    %v6736 = vpop.f32.mrf.mxu0
    %6737 = vdwg.mxu0
    %6738 = vmatpush.bf16.msra.mxu0 %v3344
    %6739 = vmatpush.bf16.msra.mxu0 %v3335
    %6740 = vmatpush.bf16.msra.mxu0 %v3326
    %6741 = vmatpush.bf16.msra.mxu0 %v3317
    %6742 = vmatpush.bf16.msra.mxu0 %v3308
    %6743 = vmatpush.bf16.msra.mxu0 %v3299
    %6744 = vmatpush.bf16.msra.mxu0 %v3290
    %6745 = vmatpush.bf16.msra.mxu0 %v3281
    %6746 = vmatmul.bf16.gmra.mxu0 %v6720
    %v6747 = vpop.f32.mrf.mxu0
    %v6748 = vadd.f32 %v6735, %v6747
    %v6749 = vpop.f32.mrf.mxu0
    %6750 = vdwg.mxu0
    %6751 = vmatpush.bf16.msra.mxu0 %v3416
    %6752 = vmatpush.bf16.msra.mxu0 %v3407
    %6753 = vmatpush.bf16.msra.mxu0 %v3398
    %6754 = vmatpush.bf16.msra.mxu0 %v3389
    %6755 = vmatpush.bf16.msra.mxu0 %v3380
    %6756 = vmatpush.bf16.msra.mxu0 %v3371
    %6757 = vmatpush.bf16.msra.mxu0 %v3362
    %6758 = vmatpush.bf16.msra.mxu0 %v3353
    %6759 = vmatmul.bf16.gmra.mxu0 %v6721
    %v6760 = vpop.f32.mrf.mxu0
    %v6761 = vadd.f32 %v6748, %v6760
    %v6762 = vpop.f32.mrf.mxu0
    %6763 = vdwg.mxu0
    %6764 = vmatpush.bf16.msra.mxu0 %v3273
    %6765 = vmatpush.bf16.msra.mxu0 %v3264
    %6766 = vmatpush.bf16.msra.mxu0 %v3255
    %6767 = vmatpush.bf16.msra.mxu0 %v3246
    %6768 = vmatpush.bf16.msra.mxu0 %v3237
    %6769 = vmatpush.bf16.msra.mxu0 %v3228
    %6770 = vmatpush.bf16.msra.mxu0 %v3219
    %6771 = vmatpush.bf16.msra.mxu0 %v3210
    %6772 = vmatmul.bf16.gmra.mxu0 %v6719
    %v6773 = vpop.f32.mrf.mxu0
    %v6774 = vadd.f32 %v2520, %v6773
    %v6775 = vpop.f32.mrf.mxu0
    %6776 = vdwg.mxu0
    %6777 = vmatpush.bf16.msra.mxu0 %v3345
    %6778 = vmatpush.bf16.msra.mxu0 %v3336
    %6779 = vmatpush.bf16.msra.mxu0 %v3327
    %6780 = vmatpush.bf16.msra.mxu0 %v3318
    %6781 = vmatpush.bf16.msra.mxu0 %v3309
    %6782 = vmatpush.bf16.msra.mxu0 %v3300
    %6783 = vmatpush.bf16.msra.mxu0 %v3291
    %6784 = vmatpush.bf16.msra.mxu0 %v3282
    %6785 = vmatmul.bf16.gmra.mxu0 %v6720
    %v6786 = vpop.f32.mrf.mxu0
    %v6787 = vadd.f32 %v6774, %v6786
    %v6788 = vpop.f32.mrf.mxu0
    %6789 = vdwg.mxu0
    %6790 = vmatpush.bf16.msra.mxu0 %v3417
    %6791 = vmatpush.bf16.msra.mxu0 %v3408
    %6792 = vmatpush.bf16.msra.mxu0 %v3399
    %6793 = vmatpush.bf16.msra.mxu0 %v3390
    %6794 = vmatpush.bf16.msra.mxu0 %v3381
    %6795 = vmatpush.bf16.msra.mxu0 %v3372
    %6796 = vmatpush.bf16.msra.mxu0 %v3363
    %6797 = vmatpush.bf16.msra.mxu0 %v3354
    %6798 = vmatmul.bf16.gmra.mxu0 %v6721
    %v6799 = vpop.f32.mrf.mxu0
    %v6800 = vadd.f32 %v6787, %v6799
    %v6801 = vpop.f32.mrf.mxu0
    %6802 = vdwg.mxu0
    %6803 = vmatpush.bf16.msra.mxu0 %v3274
    %6804 = vmatpush.bf16.msra.mxu0 %v3265
    %6805 = vmatpush.bf16.msra.mxu0 %v3256
    %6806 = vmatpush.bf16.msra.mxu0 %v3247
    %6807 = vmatpush.bf16.msra.mxu0 %v3238
    %6808 = vmatpush.bf16.msra.mxu0 %v3229
    %6809 = vmatpush.bf16.msra.mxu0 %v3220
    %6810 = vmatpush.bf16.msra.mxu0 %v3211
    %6811 = vmatmul.bf16.gmra.mxu0 %v6719
    %v6812 = vpop.f32.mrf.mxu0
    %v6813 = vadd.f32 %v2521, %v6812
    %v6814 = vpop.f32.mrf.mxu0
    %6815 = vdwg.mxu0
    %6816 = vmatpush.bf16.msra.mxu0 %v3346
    %6817 = vmatpush.bf16.msra.mxu0 %v3337
    %6818 = vmatpush.bf16.msra.mxu0 %v3328
    %6819 = vmatpush.bf16.msra.mxu0 %v3319
    %6820 = vmatpush.bf16.msra.mxu0 %v3310
    %6821 = vmatpush.bf16.msra.mxu0 %v3301
    %6822 = vmatpush.bf16.msra.mxu0 %v3292
    %6823 = vmatpush.bf16.msra.mxu0 %v3283
    %6824 = vmatmul.bf16.gmra.mxu0 %v6720
    %v6825 = vpop.f32.mrf.mxu0
    %v6826 = vadd.f32 %v6813, %v6825
    %v6827 = vpop.f32.mrf.mxu0
    %6828 = vdwg.mxu0
    %6829 = vmatpush.bf16.msra.mxu0 %v3418
    %6830 = vmatpush.bf16.msra.mxu0 %v3409
    %6831 = vmatpush.bf16.msra.mxu0 %v3400
    %6832 = vmatpush.bf16.msra.mxu0 %v3391
    %6833 = vmatpush.bf16.msra.mxu0 %v3382
    %6834 = vmatpush.bf16.msra.mxu0 %v3373
    %6835 = vmatpush.bf16.msra.mxu0 %v3364
    %6836 = vmatpush.bf16.msra.mxu0 %v3355
    %6837 = vmatmul.bf16.gmra.mxu0 %v6721
    %v6838 = vpop.f32.mrf.mxu0
    %v6839 = vadd.f32 %v6826, %v6838
    %v6840 = vpop.f32.mrf.mxu0
    %6841 = vdwg.mxu0
    %6842 = vmatpush.bf16.msra.mxu0 %v3275
    %6843 = vmatpush.bf16.msra.mxu0 %v3266
    %6844 = vmatpush.bf16.msra.mxu0 %v3257
    %6845 = vmatpush.bf16.msra.mxu0 %v3248
    %6846 = vmatpush.bf16.msra.mxu0 %v3239
    %6847 = vmatpush.bf16.msra.mxu0 %v3230
    %6848 = vmatpush.bf16.msra.mxu0 %v3221
    %6849 = vmatpush.bf16.msra.mxu0 %v3212
    %6850 = vmatmul.bf16.gmra.mxu0 %v6719
    %v6851 = vpop.f32.mrf.mxu0
    %v6852 = vadd.f32 %v2522, %v6851
    %v6853 = vpop.f32.mrf.mxu0
    %6854 = vdwg.mxu0
    %6855 = vmatpush.bf16.msra.mxu0 %v3347
    %6856 = vmatpush.bf16.msra.mxu0 %v3338
    %6857 = vmatpush.bf16.msra.mxu0 %v3329
    %6858 = vmatpush.bf16.msra.mxu0 %v3320
    %6859 = vmatpush.bf16.msra.mxu0 %v3311
    %6860 = vmatpush.bf16.msra.mxu0 %v3302
    %6861 = vmatpush.bf16.msra.mxu0 %v3293
    %6862 = vmatpush.bf16.msra.mxu0 %v3284
    %6863 = vmatmul.bf16.gmra.mxu0 %v6720
    %v6864 = vpop.f32.mrf.mxu0
    %v6865 = vadd.f32 %v6852, %v6864
    %v6866 = vpop.f32.mrf.mxu0
    %6867 = vdwg.mxu0
    %6868 = vmatpush.bf16.msra.mxu0 %v3419
    %6869 = vmatpush.bf16.msra.mxu0 %v3410
    %6870 = vmatpush.bf16.msra.mxu0 %v3401
    %6871 = vmatpush.bf16.msra.mxu0 %v3392
    %6872 = vmatpush.bf16.msra.mxu0 %v3383
    %6873 = vmatpush.bf16.msra.mxu0 %v3374
    %6874 = vmatpush.bf16.msra.mxu0 %v3365
    %6875 = vmatpush.bf16.msra.mxu0 %v3356
    %6876 = vmatmul.bf16.gmra.mxu0 %v6721
    %v6877 = vpop.f32.mrf.mxu0
    %v6878 = vadd.f32 %v6865, %v6877
    %v6879 = vpop.f32.mrf.mxu0
    %6880 = vdwg.mxu0
    %6881 = vmatpush.bf16.msra.mxu0 %v3276
    %6882 = vmatpush.bf16.msra.mxu0 %v3267
    %6883 = vmatpush.bf16.msra.mxu0 %v3258
    %6884 = vmatpush.bf16.msra.mxu0 %v3249
    %6885 = vmatpush.bf16.msra.mxu0 %v3240
    %6886 = vmatpush.bf16.msra.mxu0 %v3231
    %6887 = vmatpush.bf16.msra.mxu0 %v3222
    %6888 = vmatpush.bf16.msra.mxu0 %v3213
    %6889 = vmatmul.bf16.gmra.mxu0 %v6719
    %v6890 = vpop.f32.mrf.mxu0
    %v6891 = vadd.f32 %v2523, %v6890
    %v6892 = vpop.f32.mrf.mxu0
    %6893 = vdwg.mxu0
    %6894 = vmatpush.bf16.msra.mxu0 %v3348
    %6895 = vmatpush.bf16.msra.mxu0 %v3339
    %6896 = vmatpush.bf16.msra.mxu0 %v3330
    %6897 = vmatpush.bf16.msra.mxu0 %v3321
    %6898 = vmatpush.bf16.msra.mxu0 %v3312
    %6899 = vmatpush.bf16.msra.mxu0 %v3303
    %6900 = vmatpush.bf16.msra.mxu0 %v3294
    %6901 = vmatpush.bf16.msra.mxu0 %v3285
    %6902 = vmatmul.bf16.gmra.mxu0 %v6720
    %v6903 = vpop.f32.mrf.mxu0
    %v6904 = vadd.f32 %v6891, %v6903
    %v6905 = vpop.f32.mrf.mxu0
    %6906 = vdwg.mxu0
    %6907 = vmatpush.bf16.msra.mxu0 %v3420
    %6908 = vmatpush.bf16.msra.mxu0 %v3411
    %6909 = vmatpush.bf16.msra.mxu0 %v3402
    %6910 = vmatpush.bf16.msra.mxu0 %v3393
    %6911 = vmatpush.bf16.msra.mxu0 %v3384
    %6912 = vmatpush.bf16.msra.mxu0 %v3375
    %6913 = vmatpush.bf16.msra.mxu0 %v3366
    %6914 = vmatpush.bf16.msra.mxu0 %v3357
    %6915 = vmatmul.bf16.gmra.mxu0 %v6721
    %v6916 = vpop.f32.mrf.mxu0
    %v6917 = vadd.f32 %v6904, %v6916
    %v6918 = vpop.f32.mrf.mxu0
    %6919 = vdwg.mxu0
    %6920 = vmatpush.bf16.msra.mxu0 %v3277
    %6921 = vmatpush.bf16.msra.mxu0 %v3268
    %6922 = vmatpush.bf16.msra.mxu0 %v3259
    %6923 = vmatpush.bf16.msra.mxu0 %v3250
    %6924 = vmatpush.bf16.msra.mxu0 %v3241
    %6925 = vmatpush.bf16.msra.mxu0 %v3232
    %6926 = vmatpush.bf16.msra.mxu0 %v3223
    %6927 = vmatpush.bf16.msra.mxu0 %v3214
    %6928 = vmatmul.bf16.gmra.mxu0 %v6719
    %v6929 = vpop.f32.mrf.mxu0
    %v6930 = vadd.f32 %v2524, %v6929
    %v6931 = vpop.f32.mrf.mxu0
    %6932 = vdwg.mxu0
    %6933 = vmatpush.bf16.msra.mxu0 %v3349
    %6934 = vmatpush.bf16.msra.mxu0 %v3340
    %6935 = vmatpush.bf16.msra.mxu0 %v3331
    %6936 = vmatpush.bf16.msra.mxu0 %v3322
    %6937 = vmatpush.bf16.msra.mxu0 %v3313
    %6938 = vmatpush.bf16.msra.mxu0 %v3304
    %6939 = vmatpush.bf16.msra.mxu0 %v3295
    %6940 = vmatpush.bf16.msra.mxu0 %v3286
    %6941 = vmatmul.bf16.gmra.mxu0 %v6720
    %v6942 = vpop.f32.mrf.mxu0
    %v6943 = vadd.f32 %v6930, %v6942
    %v6944 = vpop.f32.mrf.mxu0
    %6945 = vdwg.mxu0
    %6946 = vmatpush.bf16.msra.mxu0 %v3421
    %6947 = vmatpush.bf16.msra.mxu0 %v3412
    %6948 = vmatpush.bf16.msra.mxu0 %v3403
    %6949 = vmatpush.bf16.msra.mxu0 %v3394
    %6950 = vmatpush.bf16.msra.mxu0 %v3385
    %6951 = vmatpush.bf16.msra.mxu0 %v3376
    %6952 = vmatpush.bf16.msra.mxu0 %v3367
    %6953 = vmatpush.bf16.msra.mxu0 %v3358
    %6954 = vmatmul.bf16.gmra.mxu0 %v6721
    %v6955 = vpop.f32.mrf.mxu0
    %v6956 = vadd.f32 %v6943, %v6955
    %v6957 = vpop.f32.mrf.mxu0
    %6958 = vdwg.mxu0
    %6959 = vmatpush.bf16.msra.mxu0 %v3278
    %6960 = vmatpush.bf16.msra.mxu0 %v3269
    %6961 = vmatpush.bf16.msra.mxu0 %v3260
    %6962 = vmatpush.bf16.msra.mxu0 %v3251
    %6963 = vmatpush.bf16.msra.mxu0 %v3242
    %6964 = vmatpush.bf16.msra.mxu0 %v3233
    %6965 = vmatpush.bf16.msra.mxu0 %v3224
    %6966 = vmatpush.bf16.msra.mxu0 %v3215
    %6967 = vmatmul.bf16.gmra.mxu0 %v6719
    %v6968 = vpop.f32.mrf.mxu0
    %v6969 = vadd.f32 %v2525, %v6968
    %v6970 = vpop.f32.mrf.mxu0
    %6971 = vdwg.mxu0
    %6972 = vmatpush.bf16.msra.mxu0 %v3350
    %6973 = vmatpush.bf16.msra.mxu0 %v3341
    %6974 = vmatpush.bf16.msra.mxu0 %v3332
    %6975 = vmatpush.bf16.msra.mxu0 %v3323
    %6976 = vmatpush.bf16.msra.mxu0 %v3314
    %6977 = vmatpush.bf16.msra.mxu0 %v3305
    %6978 = vmatpush.bf16.msra.mxu0 %v3296
    %6979 = vmatpush.bf16.msra.mxu0 %v3287
    %6980 = vmatmul.bf16.gmra.mxu0 %v6720
    %v6981 = vpop.f32.mrf.mxu0
    %v6982 = vadd.f32 %v6969, %v6981
    %v6983 = vpop.f32.mrf.mxu0
    %6984 = vdwg.mxu0
    %6985 = vmatpush.bf16.msra.mxu0 %v3422
    %6986 = vmatpush.bf16.msra.mxu0 %v3413
    %6987 = vmatpush.bf16.msra.mxu0 %v3404
    %6988 = vmatpush.bf16.msra.mxu0 %v3395
    %6989 = vmatpush.bf16.msra.mxu0 %v3386
    %6990 = vmatpush.bf16.msra.mxu0 %v3377
    %6991 = vmatpush.bf16.msra.mxu0 %v3368
    %6992 = vmatpush.bf16.msra.mxu0 %v3359
    %6993 = vmatmul.bf16.gmra.mxu0 %v6721
    %v6994 = vpop.f32.mrf.mxu0
    %v6995 = vadd.f32 %v6982, %v6994
    %v6996 = vpop.f32.mrf.mxu0
    %6997 = vdwg.mxu0
    %6998 = vmatpush.bf16.msra.mxu0 %v3279
    %6999 = vmatpush.bf16.msra.mxu0 %v3270
    %7000 = vmatpush.bf16.msra.mxu0 %v3261
    %7001 = vmatpush.bf16.msra.mxu0 %v3252
    %7002 = vmatpush.bf16.msra.mxu0 %v3243
    %7003 = vmatpush.bf16.msra.mxu0 %v3234
    %7004 = vmatpush.bf16.msra.mxu0 %v3225
    %7005 = vmatpush.bf16.msra.mxu0 %v3216
    %7006 = vmatmul.bf16.gmra.mxu0 %v6719
    %v7007 = vpop.f32.mrf.mxu0
    %v7008 = vadd.f32 %v2526, %v7007
    %v7009 = vpop.f32.mrf.mxu0
    %7010 = vdwg.mxu0
    %7011 = vmatpush.bf16.msra.mxu0 %v3351
    %7012 = vmatpush.bf16.msra.mxu0 %v3342
    %7013 = vmatpush.bf16.msra.mxu0 %v3333
    %7014 = vmatpush.bf16.msra.mxu0 %v3324
    %7015 = vmatpush.bf16.msra.mxu0 %v3315
    %7016 = vmatpush.bf16.msra.mxu0 %v3306
    %7017 = vmatpush.bf16.msra.mxu0 %v3297
    %7018 = vmatpush.bf16.msra.mxu0 %v3288
    %7019 = vmatmul.bf16.gmra.mxu0 %v6720
    %v7020 = vpop.f32.mrf.mxu0
    %v7021 = vadd.f32 %v7008, %v7020
    %v7022 = vpop.f32.mrf.mxu0
    %7023 = vdwg.mxu0
    %7024 = vmatpush.bf16.msra.mxu0 %v3423
    %7025 = vmatpush.bf16.msra.mxu0 %v3414
    %7026 = vmatpush.bf16.msra.mxu0 %v3405
    %7027 = vmatpush.bf16.msra.mxu0 %v3396
    %7028 = vmatpush.bf16.msra.mxu0 %v3387
    %7029 = vmatpush.bf16.msra.mxu0 %v3378
    %7030 = vmatpush.bf16.msra.mxu0 %v3369
    %7031 = vmatpush.bf16.msra.mxu0 %v3360
    %7032 = vmatmul.bf16.gmra.mxu0 %v6721
    %v7033 = vpop.f32.mrf.mxu0
    %v7034 = vadd.f32 %v7021, %v7033
    %v7035 = vpop.f32.mrf.mxu0
    %7036 = vdwg.mxu0
    %7037 = vmatpush.bf16.msra.mxu0 %v3280
    %7038 = vmatpush.bf16.msra.mxu0 %v3271
    %7039 = vmatpush.bf16.msra.mxu0 %v3262
    %7040 = vmatpush.bf16.msra.mxu0 %v3253
    %7041 = vmatpush.bf16.msra.mxu0 %v3244
    %7042 = vmatpush.bf16.msra.mxu0 %v3235
    %7043 = vmatpush.bf16.msra.mxu0 %v3226
    %7044 = vmatpush.bf16.msra.mxu0 %v3217
    %7045 = vmatmul.bf16.gmra.mxu0 %v6719
    %v7046 = vpop.f32.mrf.mxu0
    %v7047 = vadd.f32 %v2527, %v7046
    %v7048 = vpop.f32.mrf.mxu0
    %7049 = vdwg.mxu0
    %7050 = vmatpush.bf16.msra.mxu0 %v3352
    %7051 = vmatpush.bf16.msra.mxu0 %v3343
    %7052 = vmatpush.bf16.msra.mxu0 %v3334
    %7053 = vmatpush.bf16.msra.mxu0 %v3325
    %7054 = vmatpush.bf16.msra.mxu0 %v3316
    %7055 = vmatpush.bf16.msra.mxu0 %v3307
    %7056 = vmatpush.bf16.msra.mxu0 %v3298
    %7057 = vmatpush.bf16.msra.mxu0 %v3289
    %7058 = vmatmul.bf16.gmra.mxu0 %v6720
    %v7059 = vpop.f32.mrf.mxu0
    %v7060 = vadd.f32 %v7047, %v7059
    %v7061 = vpop.f32.mrf.mxu0
    %7062 = vdwg.mxu0
    %7063 = vmatpush.bf16.msra.mxu0 %v3424
    %7064 = vmatpush.bf16.msra.mxu0 %v3415
    %7065 = vmatpush.bf16.msra.mxu0 %v3406
    %7066 = vmatpush.bf16.msra.mxu0 %v3397
    %7067 = vmatpush.bf16.msra.mxu0 %v3388
    %7068 = vmatpush.bf16.msra.mxu0 %v3379
    %7069 = vmatpush.bf16.msra.mxu0 %v3370
    %7070 = vmatpush.bf16.msra.mxu0 %v3361
    %7071 = vmatmul.bf16.gmra.mxu0 %v6721
    %v7072 = vpop.f32.mrf.mxu0
    %v7073 = vadd.f32 %v7060, %v7072
    %v7074 = vpop.f32.mrf.mxu0
    %7075 = vdwg.mxu0
    %v7076 = vadd.f32 %v6705, %v6761
    %v7077 = vadd.f32 %v6706, %v6800
    %v7078 = vadd.f32 %v6707, %v6839
    %v7079 = vadd.f32 %v6708, %v6878
    %v7080 = vadd.f32 %v6709, %v6917
    %v7081 = vadd.f32 %v6710, %v6956
    %v7082 = vxor.u32 %v7076, 2147483648
    %v7083 = vxor.u32 %v7077, 2147483648
    %v7084 = vxor.u32 %v7078, 2147483648
    %v7085 = vxor.u32 %v7079, 2147483648
    %v7086 = vxor.u32 %v7080, 2147483648
    %v7087 = vxor.u32 %v7081, 2147483648
    %v7088 = vmul.f32 %v7082, 1.442695
    %v7089 = vpow.pop %v7088
    %v7090 = vmul.f32 %v7083, 1.442695
    %v7091 = vpow.pop %v7090
    %v7092 = vmul.f32 %v7084, 1.442695
    %v7093 = vpow.pop %v7092
    %v7094 = vmul.f32 %v7085, 1.442695
    %v7095 = vpow.pop %v7094
    %v7096 = vmul.f32 %v7086, 1.442695
    %v7097 = vpow.pop %v7096
    %v7098 = vmul.f32 %v7087, 1.442695
    %v7099 = vpow.pop %v7098
    %v7100 = vadd.f32 %v7089, 1.0
    %v7101 = vadd.f32 %v7091, 1.0
    %v7102 = vadd.f32 %v7093, 1.0
    %v7103 = vadd.f32 %v7095, 1.0
    %v7104 = vadd.f32 %v7097, 1.0
    %v7105 = vadd.f32 %v7099, 1.0
    %v7106 = vrcp.pop %v7100
    %v7107 = vmul.f32 %v7100, %v7106
    %v7108 = vsub.f32 1.0, %v7107
    %v7109 = vmul.f32 %v7106, %v7108
    %v7110 = vadd.f32 %v7106, %v7109
    %vm7111 = vweird.f32 %v7100
    %vm7112 = vweird.f32 %v7106
    %vm7113 = vmor %vm7111, %vm7112
    %v7114 = vsel %vm7113, %v7106, %v7110
    %v7115 = vand.u32 2147483647, %v7100
    %vm7116 = vcmp.eq.f32.partialorder %v7115, 8.507059e+37
    %v7117 = vand.u32 %v7100, 2147483648
    %v7118 = vor.u32 1.1754944e-38, %v7117
    %v7119 = vsel %vm7116, %v7118, %v7114
    %v7120 = vmul.f32 1.0, %v7119
    %v7121 = vrcp.pop %v7101
    %v7122 = vmul.f32 %v7101, %v7121
    %v7123 = vsub.f32 1.0, %v7122
    %v7124 = vmul.f32 %v7121, %v7123
    %v7125 = vadd.f32 %v7121, %v7124
    %vm7126 = vweird.f32 %v7101
    %vm7127 = vweird.f32 %v7121
    %vm7128 = vmor %vm7126, %vm7127
    %v7129 = vsel %vm7128, %v7121, %v7125
    %v7130 = vand.u32 2147483647, %v7101
    %vm7131 = vcmp.eq.f32.partialorder %v7130, 8.507059e+37
    %v7132 = vand.u32 %v7101, 2147483648
    %v7133 = vor.u32 1.1754944e-38, %v7132
    %v7134 = vsel %vm7131, %v7133, %v7129
    %v7135 = vmul.f32 1.0, %v7134
    %v7136 = vrcp.pop %v7102
    %v7137 = vmul.f32 %v7102, %v7136
    %v7138 = vsub.f32 1.0, %v7137
    %v7139 = vmul.f32 %v7136, %v7138
    %v7140 = vadd.f32 %v7136, %v7139
    %vm7141 = vweird.f32 %v7102
    %vm7142 = vweird.f32 %v7136
    %vm7143 = vmor %vm7141, %vm7142
    %v7144 = vsel %vm7143, %v7136, %v7140
    %v7145 = vand.u32 2147483647, %v7102
    %vm7146 = vcmp.eq.f32.partialorder %v7145, 8.507059e+37
    %v7147 = vand.u32 %v7102, 2147483648
    %v7148 = vor.u32 1.1754944e-38, %v7147
    %v7149 = vsel %vm7146, %v7148, %v7144
    %v7150 = vmul.f32 1.0, %v7149
    %v7151 = vrcp.pop %v7103
    %v7152 = vmul.f32 %v7103, %v7151
    %v7153 = vsub.f32 1.0, %v7152
    %v7154 = vmul.f32 %v7151, %v7153
    %v7155 = vadd.f32 %v7151, %v7154
    %vm7156 = vweird.f32 %v7103
    %vm7157 = vweird.f32 %v7151
    %vm7158 = vmor %vm7156, %vm7157
    %v7159 = vsel %vm7158, %v7151, %v7155
    %v7160 = vand.u32 2147483647, %v7103
    %vm7161 = vcmp.eq.f32.partialorder %v7160, 8.507059e+37
    %v7162 = vand.u32 %v7103, 2147483648
    %v7163 = vor.u32 1.1754944e-38, %v7162
    %v7164 = vsel %vm7161, %v7163, %v7159
    %v7165 = vmul.f32 1.0, %v7164
    %v7166 = vrcp.pop %v7104
    %v7167 = vmul.f32 %v7104, %v7166
    %v7168 = vsub.f32 1.0, %v7167
    %v7169 = vmul.f32 %v7166, %v7168
    %v7170 = vadd.f32 %v7166, %v7169
    %vm7171 = vweird.f32 %v7104
    %vm7172 = vweird.f32 %v7166
    %vm7173 = vmor %vm7171, %vm7172
    %v7174 = vsel %vm7173, %v7166, %v7170
    %v7175 = vand.u32 2147483647, %v7104
    %vm7176 = vcmp.eq.f32.partialorder %v7175, 8.507059e+37
    %v7177 = vand.u32 %v7104, 2147483648
    %v7178 = vor.u32 1.1754944e-38, %v7177
    %v7179 = vsel %vm7176, %v7178, %v7174
    %v7180 = vmul.f32 1.0, %v7179
    %v7181 = vrcp.pop %v7105
    %v7182 = vmul.f32 %v7105, %v7181
    %v7183 = vsub.f32 1.0, %v7182
    %v7184 = vmul.f32 %v7181, %v7183
    %v7185 = vadd.f32 %v7181, %v7184
    %vm7186 = vweird.f32 %v7105
    %vm7187 = vweird.f32 %v7181
    %vm7188 = vmor %vm7186, %vm7187
    %v7189 = vsel %vm7188, %v7181, %v7185
    %v7190 = vand.u32 2147483647, %v7105
    %vm7191 = vcmp.eq.f32.partialorder %v7190, 8.507059e+37
    %v7192 = vand.u32 %v7105, 2147483648
    %v7193 = vor.u32 1.1754944e-38, %v7192
    %v7194 = vsel %vm7191, %v7193, %v7189
    %v7195 = vmul.f32 1.0, %v7194
    %v7196 = vmul.f32 %v7120, %v6995
    %v7197 = vmul.f32 %v7135, %v7034
    %v7198 = vmul.f32 %v7150, %v7073
    %v7199 = vadd.f32 %v6711, %v7196
    %v7200 = vadd.f32 %v6712, %v7197
    %v7201 = vadd.f32 %v6713, %v7198
    %v7202 = vtanh.pop %v7199
    %v7203 = vtanh.pop %v7200
    %v7204 = vtanh.pop %v7201
    %v7205 = vsub.f32 1.0, %v7165
    %v7206 = vsub.f32 1.0, %v7180
    %v7207 = vsub.f32 1.0, %v7195
    %v7208 = vmul.f32 %v7205, %v7202
    %v7209 = vmul.f32 %v7206, %v7203
    %v7210 = vmul.f32 %v7207, %v7204
    %v7211 = vmul.f32 %v7165, %v6700
    %v7212 = vmul.f32 %v7180, %v6701
    %v7213 = vmul.f32 %v7195, %v6702
    %v7214 = vadd.f32 %v7208, %v7211
    %v7215 = vadd.f32 %v7209, %v7212
    %v7216 = vadd.f32 %v7210, %v7213
    %v7217 = vpack.c.bf16 %v7215, %v7214
    %v7218 = vpack.c.bf16 %v7216, %v7216
    %v7219 = vadd.f32 %v1545, %v2159
    %v7220 = vadd.f32 %v1603, %v2172
    %v7221 = vadd.f32 %v1661, %v2185
    %v7222 = vadd.f32 %v1719, %v2198
    %v7223 = vadd.f32 %v1777, %v2211
    %v7224 = vadd.f32 %v1835, %v2224
    %v7225 = vadd.f32 %v1893, %v2237
    %v7226 = vadd.f32 %v1951, %v2250
    %v7227 = vadd.f32 %v2009, %v2263
    %v7230 = vunpack.c.l.b16 %v7217
    %v7231 = vunpack.c.h.b16 %v7217
    %v7232 = vunpack.c.l.b16 %v7218
    %v7233 = vpack.c.b16 %v7230, %v7230
    %v7234 = vpack.c.b16 %v7231, %v7231
    %v7235 = vpack.c.b16 %v7232, %v7232
    %7239 = vmatpush.bf16.msra.mxu0 %v3272
    %7240 = vmatpush.bf16.msra.mxu0 %v3263
    %7241 = vmatpush.bf16.msra.mxu0 %v3254
    %7242 = vmatpush.bf16.msra.mxu0 %v3245
    %7243 = vmatpush.bf16.msra.mxu0 %v3236
    %7244 = vmatpush.bf16.msra.mxu0 %v3227
    %7245 = vmatpush.bf16.msra.mxu0 %v3218
    %7246 = vmatpush.bf16.msra.mxu0 %v3209
    %7247 = vmatmul.bf16.gmra.mxu0 %v7233
    %v7248 = vpop.f32.mrf.mxu0
    %v7249 = vadd.f32 %v2519, %v7248
    %v7250 = vpop.f32.mrf.mxu0
    %7251 = vdwg.mxu0
    %7252 = vmatpush.bf16.msra.mxu0 %v3344
    %7253 = vmatpush.bf16.msra.mxu0 %v3335
    %7254 = vmatpush.bf16.msra.mxu0 %v3326
    %7255 = vmatpush.bf16.msra.mxu0 %v3317
    %7256 = vmatpush.bf16.msra.mxu0 %v3308
    %7257 = vmatpush.bf16.msra.mxu0 %v3299
    %7258 = vmatpush.bf16.msra.mxu0 %v3290
    %7259 = vmatpush.bf16.msra.mxu0 %v3281
    %7260 = vmatmul.bf16.gmra.mxu0 %v7234
    %v7261 = vpop.f32.mrf.mxu0
    %v7262 = vadd.f32 %v7249, %v7261
    %v7263 = vpop.f32.mrf.mxu0
    %7264 = vdwg.mxu0
    %7265 = vmatpush.bf16.msra.mxu0 %v3416
    %7266 = vmatpush.bf16.msra.mxu0 %v3407
    %7267 = vmatpush.bf16.msra.mxu0 %v3398
    %7268 = vmatpush.bf16.msra.mxu0 %v3389
    %7269 = vmatpush.bf16.msra.mxu0 %v3380
    %7270 = vmatpush.bf16.msra.mxu0 %v3371
    %7271 = vmatpush.bf16.msra.mxu0 %v3362
    %7272 = vmatpush.bf16.msra.mxu0 %v3353
    %7273 = vmatmul.bf16.gmra.mxu0 %v7235
    %v7274 = vpop.f32.mrf.mxu0
    %v7275 = vadd.f32 %v7262, %v7274
    %v7276 = vpop.f32.mrf.mxu0
    %7277 = vdwg.mxu0
    %7278 = vmatpush.bf16.msra.mxu0 %v3273
    %7279 = vmatpush.bf16.msra.mxu0 %v3264
    %7280 = vmatpush.bf16.msra.mxu0 %v3255
    %7281 = vmatpush.bf16.msra.mxu0 %v3246
    %7282 = vmatpush.bf16.msra.mxu0 %v3237
    %7283 = vmatpush.bf16.msra.mxu0 %v3228
    %7284 = vmatpush.bf16.msra.mxu0 %v3219
    %7285 = vmatpush.bf16.msra.mxu0 %v3210
    %7286 = vmatmul.bf16.gmra.mxu0 %v7233
    %v7287 = vpop.f32.mrf.mxu0
    %v7288 = vadd.f32 %v2520, %v7287
    %v7289 = vpop.f32.mrf.mxu0
    %7290 = vdwg.mxu0
    %7291 = vmatpush.bf16.msra.mxu0 %v3345
    %7292 = vmatpush.bf16.msra.mxu0 %v3336
    %7293 = vmatpush.bf16.msra.mxu0 %v3327
    %7294 = vmatpush.bf16.msra.mxu0 %v3318
    %7295 = vmatpush.bf16.msra.mxu0 %v3309
    %7296 = vmatpush.bf16.msra.mxu0 %v3300
    %7297 = vmatpush.bf16.msra.mxu0 %v3291
    %7298 = vmatpush.bf16.msra.mxu0 %v3282
    %7299 = vmatmul.bf16.gmra.mxu0 %v7234
    %v7300 = vpop.f32.mrf.mxu0
    %v7301 = vadd.f32 %v7288, %v7300
    %v7302 = vpop.f32.mrf.mxu0
    %7303 = vdwg.mxu0
    %7304 = vmatpush.bf16.msra.mxu0 %v3417
    %7305 = vmatpush.bf16.msra.mxu0 %v3408
    %7306 = vmatpush.bf16.msra.mxu0 %v3399
    %7307 = vmatpush.bf16.msra.mxu0 %v3390
    %7308 = vmatpush.bf16.msra.mxu0 %v3381
    %7309 = vmatpush.bf16.msra.mxu0 %v3372
    %7310 = vmatpush.bf16.msra.mxu0 %v3363
    %7311 = vmatpush.bf16.msra.mxu0 %v3354
    %7312 = vmatmul.bf16.gmra.mxu0 %v7235
    %v7313 = vpop.f32.mrf.mxu0
    %v7314 = vadd.f32 %v7301, %v7313
    %v7315 = vpop.f32.mrf.mxu0
    %7316 = vdwg.mxu0
    %7317 = vmatpush.bf16.msra.mxu0 %v3274
    %7318 = vmatpush.bf16.msra.mxu0 %v3265
    %7319 = vmatpush.bf16.msra.mxu0 %v3256
    %7320 = vmatpush.bf16.msra.mxu0 %v3247
    %7321 = vmatpush.bf16.msra.mxu0 %v3238
    %7322 = vmatpush.bf16.msra.mxu0 %v3229
    %7323 = vmatpush.bf16.msra.mxu0 %v3220
    %7324 = vmatpush.bf16.msra.mxu0 %v3211
    %7325 = vmatmul.bf16.gmra.mxu0 %v7233
    %v7326 = vpop.f32.mrf.mxu0
    %v7327 = vadd.f32 %v2521, %v7326
    %v7328 = vpop.f32.mrf.mxu0
    %7329 = vdwg.mxu0
    %7330 = vmatpush.bf16.msra.mxu0 %v3346
    %7331 = vmatpush.bf16.msra.mxu0 %v3337
    %7332 = vmatpush.bf16.msra.mxu0 %v3328
    %7333 = vmatpush.bf16.msra.mxu0 %v3319
    %7334 = vmatpush.bf16.msra.mxu0 %v3310
    %7335 = vmatpush.bf16.msra.mxu0 %v3301
    %7336 = vmatpush.bf16.msra.mxu0 %v3292
    %7337 = vmatpush.bf16.msra.mxu0 %v3283
    %7338 = vmatmul.bf16.gmra.mxu0 %v7234
    %v7339 = vpop.f32.mrf.mxu0
    %v7340 = vadd.f32 %v7327, %v7339
    %v7341 = vpop.f32.mrf.mxu0
    %7342 = vdwg.mxu0
    %7343 = vmatpush.bf16.msra.mxu0 %v3418
    %7344 = vmatpush.bf16.msra.mxu0 %v3409
    %7345 = vmatpush.bf16.msra.mxu0 %v3400
    %7346 = vmatpush.bf16.msra.mxu0 %v3391
    %7347 = vmatpush.bf16.msra.mxu0 %v3382
    %7348 = vmatpush.bf16.msra.mxu0 %v3373
    %7349 = vmatpush.bf16.msra.mxu0 %v3364
    %7350 = vmatpush.bf16.msra.mxu0 %v3355
    %7351 = vmatmul.bf16.gmra.mxu0 %v7235
    %v7352 = vpop.f32.mrf.mxu0
    %v7353 = vadd.f32 %v7340, %v7352
    %v7354 = vpop.f32.mrf.mxu0
    %7355 = vdwg.mxu0
    %7356 = vmatpush.bf16.msra.mxu0 %v3275
    %7357 = vmatpush.bf16.msra.mxu0 %v3266
    %7358 = vmatpush.bf16.msra.mxu0 %v3257
    %7359 = vmatpush.bf16.msra.mxu0 %v3248
    %7360 = vmatpush.bf16.msra.mxu0 %v3239
    %7361 = vmatpush.bf16.msra.mxu0 %v3230
    %7362 = vmatpush.bf16.msra.mxu0 %v3221
    %7363 = vmatpush.bf16.msra.mxu0 %v3212
    %7364 = vmatmul.bf16.gmra.mxu0 %v7233
    %v7365 = vpop.f32.mrf.mxu0
    %v7366 = vadd.f32 %v2522, %v7365
    %v7367 = vpop.f32.mrf.mxu0
    %7368 = vdwg.mxu0
    %7369 = vmatpush.bf16.msra.mxu0 %v3347
    %7370 = vmatpush.bf16.msra.mxu0 %v3338
    %7371 = vmatpush.bf16.msra.mxu0 %v3329
    %7372 = vmatpush.bf16.msra.mxu0 %v3320
    %7373 = vmatpush.bf16.msra.mxu0 %v3311
    %7374 = vmatpush.bf16.msra.mxu0 %v3302
    %7375 = vmatpush.bf16.msra.mxu0 %v3293
    %7376 = vmatpush.bf16.msra.mxu0 %v3284
    %7377 = vmatmul.bf16.gmra.mxu0 %v7234
    %v7378 = vpop.f32.mrf.mxu0
    %v7379 = vadd.f32 %v7366, %v7378
    %v7380 = vpop.f32.mrf.mxu0
    %7381 = vdwg.mxu0
    %7382 = vmatpush.bf16.msra.mxu0 %v3419
    %7383 = vmatpush.bf16.msra.mxu0 %v3410
    %7384 = vmatpush.bf16.msra.mxu0 %v3401
    %7385 = vmatpush.bf16.msra.mxu0 %v3392
    %7386 = vmatpush.bf16.msra.mxu0 %v3383
    %7387 = vmatpush.bf16.msra.mxu0 %v3374
    %7388 = vmatpush.bf16.msra.mxu0 %v3365
    %7389 = vmatpush.bf16.msra.mxu0 %v3356
    %7390 = vmatmul.bf16.gmra.mxu0 %v7235
    %v7391 = vpop.f32.mrf.mxu0
    %v7392 = vadd.f32 %v7379, %v7391
    %v7393 = vpop.f32.mrf.mxu0
    %7394 = vdwg.mxu0
    %7395 = vmatpush.bf16.msra.mxu0 %v3276
    %7396 = vmatpush.bf16.msra.mxu0 %v3267
    %7397 = vmatpush.bf16.msra.mxu0 %v3258
    %7398 = vmatpush.bf16.msra.mxu0 %v3249
    %7399 = vmatpush.bf16.msra.mxu0 %v3240
    %7400 = vmatpush.bf16.msra.mxu0 %v3231
    %7401 = vmatpush.bf16.msra.mxu0 %v3222
    %7402 = vmatpush.bf16.msra.mxu0 %v3213
    %7403 = vmatmul.bf16.gmra.mxu0 %v7233
    %v7404 = vpop.f32.mrf.mxu0
    %v7405 = vadd.f32 %v2523, %v7404
    %v7406 = vpop.f32.mrf.mxu0
    %7407 = vdwg.mxu0
    %7408 = vmatpush.bf16.msra.mxu0 %v3348
    %7409 = vmatpush.bf16.msra.mxu0 %v3339
    %7410 = vmatpush.bf16.msra.mxu0 %v3330
    %7411 = vmatpush.bf16.msra.mxu0 %v3321
    %7412 = vmatpush.bf16.msra.mxu0 %v3312
    %7413 = vmatpush.bf16.msra.mxu0 %v3303
    %7414 = vmatpush.bf16.msra.mxu0 %v3294
    %7415 = vmatpush.bf16.msra.mxu0 %v3285
    %7416 = vmatmul.bf16.gmra.mxu0 %v7234
    %v7417 = vpop.f32.mrf.mxu0
    %v7418 = vadd.f32 %v7405, %v7417
    %v7419 = vpop.f32.mrf.mxu0
    %7420 = vdwg.mxu0
    %7421 = vmatpush.bf16.msra.mxu0 %v3420
    %7422 = vmatpush.bf16.msra.mxu0 %v3411
    %7423 = vmatpush.bf16.msra.mxu0 %v3402
    %7424 = vmatpush.bf16.msra.mxu0 %v3393
    %7425 = vmatpush.bf16.msra.mxu0 %v3384
    %7426 = vmatpush.bf16.msra.mxu0 %v3375
    %7427 = vmatpush.bf16.msra.mxu0 %v3366
    %7428 = vmatpush.bf16.msra.mxu0 %v3357
    %7429 = vmatmul.bf16.gmra.mxu0 %v7235
    %v7430 = vpop.f32.mrf.mxu0
    %v7431 = vadd.f32 %v7418, %v7430
    %v7432 = vpop.f32.mrf.mxu0
    %7433 = vdwg.mxu0
    %7434 = vmatpush.bf16.msra.mxu0 %v3277
    %7435 = vmatpush.bf16.msra.mxu0 %v3268
    %7436 = vmatpush.bf16.msra.mxu0 %v3259
    %7437 = vmatpush.bf16.msra.mxu0 %v3250
    %7438 = vmatpush.bf16.msra.mxu0 %v3241
    %7439 = vmatpush.bf16.msra.mxu0 %v3232
    %7440 = vmatpush.bf16.msra.mxu0 %v3223
    %7441 = vmatpush.bf16.msra.mxu0 %v3214
    %7442 = vmatmul.bf16.gmra.mxu0 %v7233
    %v7443 = vpop.f32.mrf.mxu0
    %v7444 = vadd.f32 %v2524, %v7443
    %v7445 = vpop.f32.mrf.mxu0
    %7446 = vdwg.mxu0
    %7447 = vmatpush.bf16.msra.mxu0 %v3349
    %7448 = vmatpush.bf16.msra.mxu0 %v3340
    %7449 = vmatpush.bf16.msra.mxu0 %v3331
    %7450 = vmatpush.bf16.msra.mxu0 %v3322
    %7451 = vmatpush.bf16.msra.mxu0 %v3313
    %7452 = vmatpush.bf16.msra.mxu0 %v3304
    %7453 = vmatpush.bf16.msra.mxu0 %v3295
    %7454 = vmatpush.bf16.msra.mxu0 %v3286
    %7455 = vmatmul.bf16.gmra.mxu0 %v7234
    %v7456 = vpop.f32.mrf.mxu0
    %v7457 = vadd.f32 %v7444, %v7456
    %v7458 = vpop.f32.mrf.mxu0
    %7459 = vdwg.mxu0
    %7460 = vmatpush.bf16.msra.mxu0 %v3421
    %7461 = vmatpush.bf16.msra.mxu0 %v3412
    %7462 = vmatpush.bf16.msra.mxu0 %v3403
    %7463 = vmatpush.bf16.msra.mxu0 %v3394
    %7464 = vmatpush.bf16.msra.mxu0 %v3385
    %7465 = vmatpush.bf16.msra.mxu0 %v3376
    %7466 = vmatpush.bf16.msra.mxu0 %v3367
    %7467 = vmatpush.bf16.msra.mxu0 %v3358
    %7468 = vmatmul.bf16.gmra.mxu0 %v7235
    %v7469 = vpop.f32.mrf.mxu0
    %v7470 = vadd.f32 %v7457, %v7469
    %v7471 = vpop.f32.mrf.mxu0
    %7472 = vdwg.mxu0
    %7473 = vmatpush.bf16.msra.mxu0 %v3278
    %7474 = vmatpush.bf16.msra.mxu0 %v3269
    %7475 = vmatpush.bf16.msra.mxu0 %v3260
    %7476 = vmatpush.bf16.msra.mxu0 %v3251
    %7477 = vmatpush.bf16.msra.mxu0 %v3242
    %7478 = vmatpush.bf16.msra.mxu0 %v3233
    %7479 = vmatpush.bf16.msra.mxu0 %v3224
    %7480 = vmatpush.bf16.msra.mxu0 %v3215
    %7481 = vmatmul.bf16.gmra.mxu0 %v7233
    %v7482 = vpop.f32.mrf.mxu0
    %v7483 = vadd.f32 %v2525, %v7482
    %v7484 = vpop.f32.mrf.mxu0
    %7485 = vdwg.mxu0
    %7486 = vmatpush.bf16.msra.mxu0 %v3350
    %7487 = vmatpush.bf16.msra.mxu0 %v3341
    %7488 = vmatpush.bf16.msra.mxu0 %v3332
    %7489 = vmatpush.bf16.msra.mxu0 %v3323
    %7490 = vmatpush.bf16.msra.mxu0 %v3314
    %7491 = vmatpush.bf16.msra.mxu0 %v3305
    %7492 = vmatpush.bf16.msra.mxu0 %v3296
    %7493 = vmatpush.bf16.msra.mxu0 %v3287
    %7494 = vmatmul.bf16.gmra.mxu0 %v7234
    %v7495 = vpop.f32.mrf.mxu0
    %v7496 = vadd.f32 %v7483, %v7495
    %v7497 = vpop.f32.mrf.mxu0
    %7498 = vdwg.mxu0
    %7499 = vmatpush.bf16.msra.mxu0 %v3422
    %7500 = vmatpush.bf16.msra.mxu0 %v3413
    %7501 = vmatpush.bf16.msra.mxu0 %v3404
    %7502 = vmatpush.bf16.msra.mxu0 %v3395
    %7503 = vmatpush.bf16.msra.mxu0 %v3386
    %7504 = vmatpush.bf16.msra.mxu0 %v3377
    %7505 = vmatpush.bf16.msra.mxu0 %v3368
    %7506 = vmatpush.bf16.msra.mxu0 %v3359
    %7507 = vmatmul.bf16.gmra.mxu0 %v7235
    %v7508 = vpop.f32.mrf.mxu0
    %v7509 = vadd.f32 %v7496, %v7508
    %v7510 = vpop.f32.mrf.mxu0
    %7511 = vdwg.mxu0
    %7512 = vmatpush.bf16.msra.mxu0 %v3279
    %7513 = vmatpush.bf16.msra.mxu0 %v3270
    %7514 = vmatpush.bf16.msra.mxu0 %v3261
    %7515 = vmatpush.bf16.msra.mxu0 %v3252
    %7516 = vmatpush.bf16.msra.mxu0 %v3243
    %7517 = vmatpush.bf16.msra.mxu0 %v3234
    %7518 = vmatpush.bf16.msra.mxu0 %v3225
    %7519 = vmatpush.bf16.msra.mxu0 %v3216
    %7520 = vmatmul.bf16.gmra.mxu0 %v7233
    %v7521 = vpop.f32.mrf.mxu0
    %v7522 = vadd.f32 %v2526, %v7521
    %v7523 = vpop.f32.mrf.mxu0
    %7524 = vdwg.mxu0
    %7525 = vmatpush.bf16.msra.mxu0 %v3351
    %7526 = vmatpush.bf16.msra.mxu0 %v3342
    %7527 = vmatpush.bf16.msra.mxu0 %v3333
    %7528 = vmatpush.bf16.msra.mxu0 %v3324
    %7529 = vmatpush.bf16.msra.mxu0 %v3315
    %7530 = vmatpush.bf16.msra.mxu0 %v3306
    %7531 = vmatpush.bf16.msra.mxu0 %v3297
    %7532 = vmatpush.bf16.msra.mxu0 %v3288
    %7533 = vmatmul.bf16.gmra.mxu0 %v7234
    %v7534 = vpop.f32.mrf.mxu0
    %v7535 = vadd.f32 %v7522, %v7534
    %v7536 = vpop.f32.mrf.mxu0
    %7537 = vdwg.mxu0
    %7538 = vmatpush.bf16.msra.mxu0 %v3423
    %7539 = vmatpush.bf16.msra.mxu0 %v3414
    %7540 = vmatpush.bf16.msra.mxu0 %v3405
    %7541 = vmatpush.bf16.msra.mxu0 %v3396
    %7542 = vmatpush.bf16.msra.mxu0 %v3387
    %7543 = vmatpush.bf16.msra.mxu0 %v3378
    %7544 = vmatpush.bf16.msra.mxu0 %v3369
    %7545 = vmatpush.bf16.msra.mxu0 %v3360
    %7546 = vmatmul.bf16.gmra.mxu0 %v7235
    %v7547 = vpop.f32.mrf.mxu0
    %v7548 = vadd.f32 %v7535, %v7547
    %v7549 = vpop.f32.mrf.mxu0
    %7550 = vdwg.mxu0
    %7551 = vmatpush.bf16.msra.mxu0 %v3280
    %7552 = vmatpush.bf16.msra.mxu0 %v3271
    %7553 = vmatpush.bf16.msra.mxu0 %v3262
    %7554 = vmatpush.bf16.msra.mxu0 %v3253
    %7555 = vmatpush.bf16.msra.mxu0 %v3244
    %7556 = vmatpush.bf16.msra.mxu0 %v3235
    %7557 = vmatpush.bf16.msra.mxu0 %v3226
    %7558 = vmatpush.bf16.msra.mxu0 %v3217
    %7559 = vmatmul.bf16.gmra.mxu0 %v7233
    %v7560 = vpop.f32.mrf.mxu0
    %v7561 = vadd.f32 %v2527, %v7560
    %v7562 = vpop.f32.mrf.mxu0
    %7563 = vdwg.mxu0
    %7564 = vmatpush.bf16.msra.mxu0 %v3352
    %7565 = vmatpush.bf16.msra.mxu0 %v3343
    %7566 = vmatpush.bf16.msra.mxu0 %v3334
    %7567 = vmatpush.bf16.msra.mxu0 %v3325
    %7568 = vmatpush.bf16.msra.mxu0 %v3316
    %7569 = vmatpush.bf16.msra.mxu0 %v3307
    %7570 = vmatpush.bf16.msra.mxu0 %v3298
    %7571 = vmatpush.bf16.msra.mxu0 %v3289
    %7572 = vmatmul.bf16.gmra.mxu0 %v7234
    %v7573 = vpop.f32.mrf.mxu0
    %v7574 = vadd.f32 %v7561, %v7573
    %v7575 = vpop.f32.mrf.mxu0
    %7576 = vdwg.mxu0
    %7577 = vmatpush.bf16.msra.mxu0 %v3424
    %7578 = vmatpush.bf16.msra.mxu0 %v3415
    %7579 = vmatpush.bf16.msra.mxu0 %v3406
    %7580 = vmatpush.bf16.msra.mxu0 %v3397
    %7581 = vmatpush.bf16.msra.mxu0 %v3388
    %7582 = vmatpush.bf16.msra.mxu0 %v3379
    %7583 = vmatpush.bf16.msra.mxu0 %v3370
    %7584 = vmatpush.bf16.msra.mxu0 %v3361
    %7585 = vmatmul.bf16.gmra.mxu0 %v7235
    %v7586 = vpop.f32.mrf.mxu0
    %v7587 = vadd.f32 %v7574, %v7586
    %v7588 = vpop.f32.mrf.mxu0
    %7589 = vdwg.mxu0
    %v7590 = vadd.f32 %v7219, %v7275
    %v7591 = vadd.f32 %v7220, %v7314
    %v7592 = vadd.f32 %v7221, %v7353
    %v7593 = vadd.f32 %v7222, %v7392
    %v7594 = vadd.f32 %v7223, %v7431
    %v7595 = vadd.f32 %v7224, %v7470
    %v7596 = vxor.u32 %v7590, 2147483648
    %v7597 = vxor.u32 %v7591, 2147483648
    %v7598 = vxor.u32 %v7592, 2147483648
    %v7599 = vxor.u32 %v7593, 2147483648
    %v7600 = vxor.u32 %v7594, 2147483648
    %v7601 = vxor.u32 %v7595, 2147483648
    %v7602 = vmul.f32 %v7596, 1.442695
    %v7603 = vpow.pop %v7602
    %v7604 = vmul.f32 %v7597, 1.442695
    %v7605 = vpow.pop %v7604
    %v7606 = vmul.f32 %v7598, 1.442695
    %v7607 = vpow.pop %v7606
    %v7608 = vmul.f32 %v7599, 1.442695
    %v7609 = vpow.pop %v7608
    %v7610 = vmul.f32 %v7600, 1.442695
    %v7611 = vpow.pop %v7610
    %v7612 = vmul.f32 %v7601, 1.442695
    %v7613 = vpow.pop %v7612
    %v7614 = vadd.f32 %v7603, 1.0
    %v7615 = vadd.f32 %v7605, 1.0
    %v7616 = vadd.f32 %v7607, 1.0
    %v7617 = vadd.f32 %v7609, 1.0
    %v7618 = vadd.f32 %v7611, 1.0
    %v7619 = vadd.f32 %v7613, 1.0
    %v7620 = vrcp.pop %v7614
    %v7621 = vmul.f32 %v7614, %v7620
    %v7622 = vsub.f32 1.0, %v7621
    %v7623 = vmul.f32 %v7620, %v7622
    %v7624 = vadd.f32 %v7620, %v7623
    %vm7625 = vweird.f32 %v7614
    %vm7626 = vweird.f32 %v7620
    %vm7627 = vmor %vm7625, %vm7626
    %v7628 = vsel %vm7627, %v7620, %v7624
    %v7629 = vand.u32 2147483647, %v7614
    %vm7630 = vcmp.eq.f32.partialorder %v7629, 8.507059e+37
    %v7631 = vand.u32 %v7614, 2147483648
    %v7632 = vor.u32 1.1754944e-38, %v7631
    %v7633 = vsel %vm7630, %v7632, %v7628
    %v7634 = vmul.f32 1.0, %v7633
    %v7635 = vrcp.pop %v7615
    %v7636 = vmul.f32 %v7615, %v7635
    %v7637 = vsub.f32 1.0, %v7636
    %v7638 = vmul.f32 %v7635, %v7637
    %v7639 = vadd.f32 %v7635, %v7638
    %vm7640 = vweird.f32 %v7615
    %vm7641 = vweird.f32 %v7635
    %vm7642 = vmor %vm7640, %vm7641
    %v7643 = vsel %vm7642, %v7635, %v7639
    %v7644 = vand.u32 2147483647, %v7615
    %vm7645 = vcmp.eq.f32.partialorder %v7644, 8.507059e+37
    %v7646 = vand.u32 %v7615, 2147483648
    %v7647 = vor.u32 1.1754944e-38, %v7646
    %v7648 = vsel %vm7645, %v7647, %v7643
    %v7649 = vmul.f32 1.0, %v7648
    %v7650 = vrcp.pop %v7616
    %v7651 = vmul.f32 %v7616, %v7650
    %v7652 = vsub.f32 1.0, %v7651
    %v7653 = vmul.f32 %v7650, %v7652
    %v7654 = vadd.f32 %v7650, %v7653
    %vm7655 = vweird.f32 %v7616
    %vm7656 = vweird.f32 %v7650
    %vm7657 = vmor %vm7655, %vm7656
    %v7658 = vsel %vm7657, %v7650, %v7654
    %v7659 = vand.u32 2147483647, %v7616
    %vm7660 = vcmp.eq.f32.partialorder %v7659, 8.507059e+37
    %v7661 = vand.u32 %v7616, 2147483648
    %v7662 = vor.u32 1.1754944e-38, %v7661
    %v7663 = vsel %vm7660, %v7662, %v7658
    %v7664 = vmul.f32 1.0, %v7663
    %v7665 = vrcp.pop %v7617
    %v7666 = vmul.f32 %v7617, %v7665
    %v7667 = vsub.f32 1.0, %v7666
    %v7668 = vmul.f32 %v7665, %v7667
    %v7669 = vadd.f32 %v7665, %v7668
    %vm7670 = vweird.f32 %v7617
    %vm7671 = vweird.f32 %v7665
    %vm7672 = vmor %vm7670, %vm7671
    %v7673 = vsel %vm7672, %v7665, %v7669
    %v7674 = vand.u32 2147483647, %v7617
    %vm7675 = vcmp.eq.f32.partialorder %v7674, 8.507059e+37
    %v7676 = vand.u32 %v7617, 2147483648
    %v7677 = vor.u32 1.1754944e-38, %v7676
    %v7678 = vsel %vm7675, %v7677, %v7673
    %v7679 = vmul.f32 1.0, %v7678
    %v7680 = vrcp.pop %v7618
    %v7681 = vmul.f32 %v7618, %v7680
    %v7682 = vsub.f32 1.0, %v7681
    %v7683 = vmul.f32 %v7680, %v7682
    %v7684 = vadd.f32 %v7680, %v7683
    %vm7685 = vweird.f32 %v7618
    %vm7686 = vweird.f32 %v7680
    %vm7687 = vmor %vm7685, %vm7686
    %v7688 = vsel %vm7687, %v7680, %v7684
    %v7689 = vand.u32 2147483647, %v7618
    %vm7690 = vcmp.eq.f32.partialorder %v7689, 8.507059e+37
    %v7691 = vand.u32 %v7618, 2147483648
    %v7692 = vor.u32 1.1754944e-38, %v7691
    %v7693 = vsel %vm7690, %v7692, %v7688
    %v7694 = vmul.f32 1.0, %v7693
    %v7695 = vrcp.pop %v7619
    %v7696 = vmul.f32 %v7619, %v7695
    %v7697 = vsub.f32 1.0, %v7696
    %v7698 = vmul.f32 %v7695, %v7697
    %v7699 = vadd.f32 %v7695, %v7698
    %vm7700 = vweird.f32 %v7619
    %vm7701 = vweird.f32 %v7695
    %vm7702 = vmor %vm7700, %vm7701
    %v7703 = vsel %vm7702, %v7695, %v7699
    %v7704 = vand.u32 2147483647, %v7619
    %vm7705 = vcmp.eq.f32.partialorder %v7704, 8.507059e+37
    %v7706 = vand.u32 %v7619, 2147483648
    %v7707 = vor.u32 1.1754944e-38, %v7706
    %v7708 = vsel %vm7705, %v7707, %v7703
    %v7709 = vmul.f32 1.0, %v7708
    %v7710 = vmul.f32 %v7634, %v7509
    %v7711 = vmul.f32 %v7649, %v7548
    %v7712 = vmul.f32 %v7664, %v7587
    %v7713 = vadd.f32 %v7225, %v7710
    %v7714 = vadd.f32 %v7226, %v7711
    %v7715 = vadd.f32 %v7227, %v7712
    %v7716 = vtanh.pop %v7713
    %v7717 = vtanh.pop %v7714
    %v7718 = vtanh.pop %v7715
    %v7719 = vsub.f32 1.0, %v7679
    %v7720 = vsub.f32 1.0, %v7694
    %v7721 = vsub.f32 1.0, %v7709
    %v7722 = vmul.f32 %v7719, %v7716
    %v7723 = vmul.f32 %v7720, %v7717
    %v7724 = vmul.f32 %v7721, %v7718
    %v7725 = vmul.f32 %v7679, %v7214
    %v7726 = vmul.f32 %v7694, %v7215
    %v7727 = vmul.f32 %v7709, %v7216
    %v7728 = vadd.f32 %v7722, %v7725
    %v7729 = vadd.f32 %v7723, %v7726
    %v7730 = vadd.f32 %v7724, %v7727
    %v7731 = vpack.c.bf16 %v7729, %v7728
    %v7732 = vpack.c.bf16 %v7730, %v7730
    %v7735 = vunpack.c.l.b16 %v7731
    %v7736 = vunpack.c.h.b16 %v7731
    %v7737 = vunpack.c.l.b16 %v7732
    %v7738 = vpack.c.b16 %v7735, %v7735
    %v7739 = vpack.c.b16 %v7736, %v7736
    %v7740 = vpack.c.b16 %v7737, %v7737
    %v7744 = vld [vmem:[%s15] sm:$0xf]
    %v7745 = vld [vmem:[%s15 + $0x4] sm:$0xf]
    %v7746 = vld [vmem:[%s15 + $0x8] sm:$0xf]
    %v7747 = vld [vmem:[%s15 + $0xc] sm:$0xf]
    %v7748 = vld [vmem:[%s15 + $0x10] sm:$0xf]
    %v7749 = vld [vmem:[%s15 + $0x14] sm:$0xf]
    %v7750 = vld [vmem:[%s15 + $0x18] sm:$0xf]
    %v7751 = vld [vmem:[%s15 + $0x1c] sm:$0xf]
    %v7752 = vld [vmem:[%s15 + $0x20] sm:$0xf]
    %v7753 = vld [vmem:[%s15 + $0x24] sm:$0xf]
    %v7754 = vld [vmem:[%s15 + $0x28] sm:$0xf]
    %v7755 = vld [vmem:[%s15 + $0x2c] sm:$0xf]
    %v7756 = vld [vmem:[%s15 + $0x30] sm:$0xf]
    %v7757 = vld [vmem:[%s15 + $0x34] sm:$0xf]
    %v7758 = vld [vmem:[%s15 + $0x38] sm:$0xf]
    %v7759 = vld [vmem:[%s15 + $0x3c] sm:$0xf]
    %v7760 = vld [vmem:[%s15 + $0x40] sm:$0xf]
    %v7761 = vld [vmem:[%s15 + $0x44] sm:$0xf]
    %v7762 = vld [vmem:[%s15 + $0x48] sm:$0xf]
    %v7763 = vld [vmem:[%s15 + $0x4c] sm:$0xf]
    %v7764 = vld [vmem:[%s15 + $0x50] sm:$0xf]
    %v7765 = vld [vmem:[%s15 + $0x54] sm:$0xf]
    %v7766 = vld [vmem:[%s15 + $0x58] sm:$0xf]
    %v7767 = vld [vmem:[%s15 + $0x5c] sm:$0xf]
    %v7768 = vld [vmem:[%s15 + $0x60] sm:$0xf]
    %v7769 = vld [vmem:[%s15 + $0x64] sm:$0xf]
    %v7770 = vld [vmem:[%s15 + $0x68] sm:$0xf]
    %v7771 = vld [vmem:[%s15 + $0x6c] sm:$0xf]
    %v7772 = vld [vmem:[%s15 + $0x70] sm:$0xf]
    %v7773 = vld [vmem:[%s15 + $0x74] sm:$0xf]
    %v7774 = vld [vmem:[%s15 + $0x78] sm:$0xf]
    %v7775 = vld [vmem:[%s15 + $0x7c] sm:$0xf]
    %v7776 = vld [vmem:[%s15 + $0x80] sm:$0xf]
    %v7777 = vld [vmem:[%s15 + $0x84] sm:$0xf]
    %v7778 = vld [vmem:[%s15 + $0x88] sm:$0xf]
    %v7779 = vld [vmem:[%s15 + $0x8c] sm:$0xf]
    %v7780 = vld [vmem:[%s15 + $0x90] sm:$0xf]
    %v7781 = vld [vmem:[%s15 + $0x94] sm:$0xf]
    %v7782 = vld [vmem:[%s15 + $0x98] sm:$0xf]
    %v7783 = vld [vmem:[%s15 + $0x9c] sm:$0xf]
    %v7784 = vld [vmem:[%s15 + $0xa0] sm:$0xf]
    %v7785 = vld [vmem:[%s15 + $0xa4] sm:$0xf]
    %v7786 = vld [vmem:[%s15 + $0xa8] sm:$0xf]
    %v7787 = vld [vmem:[%s15 + $0xac] sm:$0xf]
    %v7788 = vld [vmem:[%s15 + $0xb0] sm:$0xf]
    %v7789 = vld [vmem:[%s15 + $0xb4] sm:$0xf]
    %v7790 = vld [vmem:[%s15 + $0xb8] sm:$0xf]
    %v7791 = vld [vmem:[%s15 + $0xbc] sm:$0xf]
    %v7792 = vld [vmem:[%s15 + $0xc0] sm:$0xf]
    %v7793 = vld [vmem:[%s15 + $0xc4] sm:$0xf]
    %v7794 = vld [vmem:[%s15 + $0xc8] sm:$0xf]
    %v7795 = vld [vmem:[%s15 + $0xcc] sm:$0xf]
    %v7796 = vld [vmem:[%s15 + $0xd0] sm:$0xf]
    %v7797 = vld [vmem:[%s15 + $0xd4] sm:$0xf]
    %v7798 = vld [vmem:[%s15 + $0xd8] sm:$0xf]
    %v7799 = vld [vmem:[%s15 + $0xdc] sm:$0xf]
    %v7800 = vld [vmem:[%s15 + $0xe0] sm:$0xf]
    %v7801 = vld [vmem:[%s15 + $0xe4] sm:$0xf]
    %v7802 = vld [vmem:[%s15 + $0xe8] sm:$0xf]
    %v7803 = vld [vmem:[%s15 + $0xec] sm:$0xf]
    %v7804 = vld [vmem:[%s15 + $0xf0] sm:$0xf]
    %v7805 = vld [vmem:[%s15 + $0xf4] sm:$0xf]
    %v7806 = vld [vmem:[%s15 + $0xf8] sm:$0xf]
    %v7807 = vld [vmem:[%s15 + $0xfc] sm:$0xf]
    %v7808 = vld [vmem:[%s15 + $0x100] sm:$0xf]
    %v7809 = vld [vmem:[%s15 + $0x104] sm:$0xf]
    %v7810 = vld [vmem:[%s15 + $0x108] sm:$0xf]
    %v7811 = vld [vmem:[%s15 + $0x10c] sm:$0xf]
    %v7812 = vld [vmem:[%s15 + $0x110] sm:$0xf]
    %v7813 = vld [vmem:[%s15 + $0x114] sm:$0xf]
    %v7814 = vld [vmem:[%s15 + $0x118] sm:$0xf]
    %v7815 = vld [vmem:[%s15 + $0x11c] sm:$0xf]
    %v7816 = vld [vmem:[%s15 + $0x120] sm:$0xf]
    %v7817 = vld [vmem:[%s15 + $0x124] sm:$0xf]
    %v7818 = vld [vmem:[%s15 + $0x128] sm:$0xf]
    %v7819 = vld [vmem:[%s15 + $0x12c] sm:$0xf]
    %v7820 = vld [vmem:[%s15 + $0x130] sm:$0xf]
    %v7821 = vld [vmem:[%s15 + $0x134] sm:$0xf]
    %v7822 = vld [vmem:[%s15 + $0x138] sm:$0xf]
    %v7823 = vld [vmem:[%s15 + $0x13c] sm:$0xf]
    %v7824 = vld [vmem:[%s15 + $0x140] sm:$0xf]
    %v7825 = vld [vmem:[%s15 + $0x144] sm:$0xf]
    %v7826 = vld [vmem:[%s15 + $0x148] sm:$0xf]
    %v7827 = vld [vmem:[%s15 + $0x14c] sm:$0xf]
    %v7828 = vld [vmem:[%s15 + $0x150] sm:$0xf]
    %v7829 = vld [vmem:[%s15 + $0x154] sm:$0xf]
    %v7830 = vld [vmem:[%s15 + $0x158] sm:$0xf]
    %v7831 = vld [vmem:[%s15 + $0x15c] sm:$0xf]
    %v7832 = vld [vmem:[%s15 + $0x160] sm:$0xf]
    %v7833 = vld [vmem:[%s15 + $0x164] sm:$0xf]
    %v7834 = vld [vmem:[%s15 + $0x168] sm:$0xf]
    %v7835 = vld [vmem:[%s15 + $0x16c] sm:$0xf]
    %v7836 = vld [vmem:[%s15 + $0x170] sm:$0xf]
    %v7837 = vld [vmem:[%s15 + $0x174] sm:$0xf]
    %v7838 = vld [vmem:[%s15 + $0x178] sm:$0xf]
    %v7839 = vld [vmem:[%s15 + $0x17c] sm:$0xf]
    %v7840 = vld [vmem:[%s15 + $0x180] sm:$0xf]
    %v7841 = vld [vmem:[%s15 + $0x184] sm:$0xf]
    %v7842 = vld [vmem:[%s15 + $0x188] sm:$0xf]
    %v7843 = vld [vmem:[%s15 + $0x18c] sm:$0xf]
    %v7844 = vld [vmem:[%s15 + $0x190] sm:$0xf]
    %v7845 = vld [vmem:[%s15 + $0x194] sm:$0xf]
    %v7846 = vld [vmem:[%s15 + $0x198] sm:$0xf]
    %v7847 = vld [vmem:[%s15 + $0x19c] sm:$0xf]
    %v7848 = vld [vmem:[%s15 + $0x1a0] sm:$0xf]
    %v7849 = vld [vmem:[%s15 + $0x1a4] sm:$0xf]
    %v7850 = vld [vmem:[%s15 + $0x1a8] sm:$0xf]
    %v7851 = vld [vmem:[%s15 + $0x1ac] sm:$0xf]
    %v7852 = vld [vmem:[%s15 + $0x1b0] sm:$0xf]
    %v7853 = vld [vmem:[%s15 + $0x1b4] sm:$0xf]
    %v7854 = vld [vmem:[%s15 + $0x1b8] sm:$0xf]
    %v7855 = vld [vmem:[%s15 + $0x1bc] sm:$0xf]
    %v7856 = vld [vmem:[%s15 + $0x1c0] sm:$0xf]
    %v7857 = vld [vmem:[%s15 + $0x1c4] sm:$0xf]
    %v7858 = vld [vmem:[%s15 + $0x1c8] sm:$0xf]
    %v7859 = vld [vmem:[%s15 + $0x1cc] sm:$0xf]
    %v7860 = vld [vmem:[%s15 + $0x1d0] sm:$0xf]
    %v7861 = vld [vmem:[%s15 + $0x1d4] sm:$0xf]
    %v7862 = vld [vmem:[%s15 + $0x1d8] sm:$0xf]
    %v7863 = vld [vmem:[%s15 + $0x1dc] sm:$0xf]
    %v7864 = vld [vmem:[%s15 + $0x1e0] sm:$0xf]
    %v7865 = vld [vmem:[%s15 + $0x1e4] sm:$0xf]
    %v7866 = vld [vmem:[%s15 + $0x1e8] sm:$0xf]
    %v7867 = vld [vmem:[%s15 + $0x1ec] sm:$0xf]
    %v7868 = vld [vmem:[%s15 + $0x1f0] sm:$0xf]
    %v7869 = vld [vmem:[%s15 + $0x1f4] sm:$0xf]
    %v7870 = vld [vmem:[%s15 + $0x1f8] sm:$0xf]
    %v7871 = vld [vmem:[%s15 + $0x1fc] sm:$0xf]
    %v7872 = vld [vmem:[%s15 + $0x200] sm:$0xf]
    %v7873 = vld [vmem:[%s15 + $0x204] sm:$0xf]
    %v7874 = vld [vmem:[%s15 + $0x208] sm:$0xf]
    %v7875 = vld [vmem:[%s15 + $0x20c] sm:$0xf]
    %v7876 = vld [vmem:[%s15 + $0x210] sm:$0xf]
    %v7877 = vld [vmem:[%s15 + $0x214] sm:$0xf]
    %v7878 = vld [vmem:[%s15 + $0x218] sm:$0xf]
    %v7879 = vld [vmem:[%s15 + $0x21c] sm:$0xf]
    %v7880 = vld [vmem:[%s15 + $0x220] sm:$0xf]
    %v7881 = vld [vmem:[%s15 + $0x224] sm:$0xf]
    %v7882 = vld [vmem:[%s15 + $0x228] sm:$0xf]
    %v7883 = vld [vmem:[%s15 + $0x22c] sm:$0xf]
    %v7884 = vld [vmem:[%s15 + $0x230] sm:$0xf]
    %v7885 = vld [vmem:[%s15 + $0x234] sm:$0xf]
    %v7886 = vld [vmem:[%s15 + $0x238] sm:$0xf]
    %v7887 = vld [vmem:[%s15 + $0x23c] sm:$0xf]
    %v7888 = vld [vmem:[%s15 + $0x240] sm:$0xf]
    %v7889 = vld [vmem:[%s15 + $0x244] sm:$0xf]
    %v7890 = vld [vmem:[%s15 + $0x248] sm:$0xf]
    %v7891 = vld [vmem:[%s15 + $0x24c] sm:$0xf]
    %v7892 = vld [vmem:[%s15 + $0x250] sm:$0xf]
    %v7893 = vld [vmem:[%s15 + $0x254] sm:$0xf]
    %v7894 = vld [vmem:[%s15 + $0x258] sm:$0xf]
    %v7895 = vld [vmem:[%s15 + $0x25c] sm:$0xf]
    %v7896 = vld [vmem:[%s15 + $0x260] sm:$0xf]
    %v7897 = vld [vmem:[%s15 + $0x264] sm:$0xf]
    %v7898 = vld [vmem:[%s15 + $0x268] sm:$0xf]
    %v7899 = vld [vmem:[%s15 + $0x26c] sm:$0xf]
    %v7900 = vld [vmem:[%s15 + $0x270] sm:$0xf]
    %v7901 = vld [vmem:[%s15 + $0x274] sm:$0xf]
    %v7902 = vld [vmem:[%s15 + $0x278] sm:$0xf]
    %v7903 = vld [vmem:[%s15 + $0x27c] sm:$0xf]
    %v7904 = vld [vmem:[%s15 + $0x280] sm:$0xf]
    %v7905 = vld [vmem:[%s15 + $0x284] sm:$0xf]
    %v7906 = vld [vmem:[%s15 + $0x288] sm:$0xf]
    %v7907 = vld [vmem:[%s15 + $0x28c] sm:$0xf]
    %v7908 = vld [vmem:[%s15 + $0x290] sm:$0xf]
    %v7909 = vld [vmem:[%s15 + $0x294] sm:$0xf]
    %v7910 = vld [vmem:[%s15 + $0x298] sm:$0xf]
    %v7911 = vld [vmem:[%s15 + $0x29c] sm:$0xf]
    %v7912 = vld [vmem:[%s15 + $0x2a0] sm:$0xf]
    %v7913 = vld [vmem:[%s15 + $0x2a4] sm:$0xf]
    %v7914 = vld [vmem:[%s15 + $0x2a8] sm:$0xf]
    %v7915 = vld [vmem:[%s15 + $0x2ac] sm:$0xf]
    %v7916 = vld [vmem:[%s15 + $0x2b0] sm:$0xf]
    %v7917 = vld [vmem:[%s15 + $0x2b4] sm:$0xf]
    %v7918 = vld [vmem:[%s15 + $0x2b8] sm:$0xf]
    %v7919 = vld [vmem:[%s15 + $0x2bc] sm:$0xf]
    %v7920 = vld [vmem:[%s15 + $0x2c0] sm:$0xf]
    %v7921 = vld [vmem:[%s15 + $0x2c4] sm:$0xf]
    %v7922 = vld [vmem:[%s15 + $0x2c8] sm:$0xf]
    %v7923 = vld [vmem:[%s15 + $0x2cc] sm:$0xf]
    %v7924 = vld [vmem:[%s15 + $0x2d0] sm:$0xf]
    %v7925 = vld [vmem:[%s15 + $0x2d4] sm:$0xf]
    %v7926 = vld [vmem:[%s15 + $0x2d8] sm:$0xf]
    %v7927 = vld [vmem:[%s15 + $0x2dc] sm:$0xf]
    %v7928 = vld [vmem:[%s15 + $0x2e0] sm:$0xf]
    %v7929 = vld [vmem:[%s15 + $0x2e4] sm:$0xf]
    %v7930 = vld [vmem:[%s15 + $0x2e8] sm:$0xf]
    %v7931 = vld [vmem:[%s15 + $0x2ec] sm:$0xf]
    %v7932 = vld [vmem:[%s15 + $0x2f0] sm:$0xf]
    %v7933 = vld [vmem:[%s15 + $0x2f4] sm:$0xf]
    %v7934 = vld [vmem:[%s15 + $0x2f8] sm:$0xf]
    %v7935 = vld [vmem:[%s15 + $0x2fc] sm:$0xf]
    %v7936 = vld [vmem:[%s15 + $0x300] sm:$0xf]
    %v7937 = vld [vmem:[%s15 + $0x304] sm:$0xf]
    %v7938 = vld [vmem:[%s15 + $0x308] sm:$0xf]
    %v7939 = vld [vmem:[%s15 + $0x30c] sm:$0xf]
    %v7940 = vld [vmem:[%s15 + $0x310] sm:$0xf]
    %v7941 = vld [vmem:[%s15 + $0x314] sm:$0xf]
    %v7942 = vld [vmem:[%s15 + $0x318] sm:$0xf]
    %v7943 = vld [vmem:[%s15 + $0x31c] sm:$0xf]
    %v7944 = vld [vmem:[%s15 + $0x320] sm:$0xf]
    %v7945 = vld [vmem:[%s15 + $0x324] sm:$0xf]
    %v7946 = vld [vmem:[%s15 + $0x328] sm:$0xf]
    %v7947 = vld [vmem:[%s15 + $0x32c] sm:$0xf]
    %v7948 = vld [vmem:[%s15 + $0x330] sm:$0xf]
    %v7949 = vld [vmem:[%s15 + $0x334] sm:$0xf]
    %v7950 = vld [vmem:[%s15 + $0x338] sm:$0xf]
    %v7951 = vld [vmem:[%s15 + $0x33c] sm:$0xf]
    %v7952 = vld [vmem:[%s15 + $0x340] sm:$0xf]
    %v7953 = vld [vmem:[%s15 + $0x344] sm:$0xf]
    %v7954 = vld [vmem:[%s15 + $0x348] sm:$0xf]
    %v7955 = vld [vmem:[%s15 + $0x34c] sm:$0xf]
    %v7956 = vld [vmem:[%s15 + $0x350] sm:$0xf]
    %v7957 = vld [vmem:[%s15 + $0x354] sm:$0xf]
    %v7958 = vld [vmem:[%s15 + $0x358] sm:$0xf]
    %v7959 = vld [vmem:[%s15 + $0x35c] sm:$0xf]
    %v7960 = vld [vmem:[%s15 + $0x360] sm:$0xf]
    %v7961 = vld [vmem:[%s15 + $0x364] sm:$0xf]
    %v7962 = vld [vmem:[%s15 + $0x368] sm:$0xf]
    %v7963 = vld [vmem:[%s15 + $0x36c] sm:$0xf]
    %v7964 = vld [vmem:[%s15 + $0x370] sm:$0xf]
    %v7965 = vld [vmem:[%s15 + $0x374] sm:$0xf]
    %v7966 = vld [vmem:[%s15 + $0x378] sm:$0xf]
    %v7967 = vld [vmem:[%s15 + $0x37c] sm:$0xf]
    %v7968 = vld [vmem:[%s15 + $0x380] sm:$0xf]
    %v7969 = vld [vmem:[%s15 + $0x384] sm:$0xf]
    %v7970 = vld [vmem:[%s15 + $0x388] sm:$0xf]
    %v7971 = vld [vmem:[%s15 + $0x38c] sm:$0xf]
    %v7972 = vld [vmem:[%s15 + $0x390] sm:$0xf]
    %v7973 = vld [vmem:[%s15 + $0x394] sm:$0xf]
    %v7974 = vld [vmem:[%s15 + $0x398] sm:$0xf]
    %v7975 = vld [vmem:[%s15 + $0x39c] sm:$0xf]
    %v7976 = vld [vmem:[%s15 + $0x3a0] sm:$0xf]
    %v7977 = vld [vmem:[%s15 + $0x3a4] sm:$0xf]
    %v7978 = vld [vmem:[%s15 + $0x3a8] sm:$0xf]
    %v7979 = vld [vmem:[%s15 + $0x3ac] sm:$0xf]
    %v7980 = vld [vmem:[%s15 + $0x3b0] sm:$0xf]
    %v7981 = vld [vmem:[%s15 + $0x3b4] sm:$0xf]
    %v7982 = vld [vmem:[%s15 + $0x3b8] sm:$0xf]
    %v7983 = vld [vmem:[%s15 + $0x3bc] sm:$0xf]
    %v7984 = vld [vmem:[%s15 + $0x3c0] sm:$0xf]
    %v7985 = vld [vmem:[%s15 + $0x3c4] sm:$0xf]
    %v7986 = vld [vmem:[%s15 + $0x3c8] sm:$0xf]
    %v7987 = vld [vmem:[%s15 + $0x3cc] sm:$0xf]
    %v7988 = vld [vmem:[%s15 + $0x3d0] sm:$0xf]
    %v7989 = vld [vmem:[%s15 + $0x3d4] sm:$0xf]
    %v7990 = vld [vmem:[%s15 + $0x3d8] sm:$0xf]
    %v7991 = vld [vmem:[%s15 + $0x3dc] sm:$0xf]
    %v7992 = vld [vmem:[%s15 + $0x3e0] sm:$0xf]
    %v7993 = vld [vmem:[%s15 + $0x3e4] sm:$0xf]
    %v7994 = vld [vmem:[%s15 + $0x3e8] sm:$0xf]
    %v7995 = vld [vmem:[%s15 + $0x3ec] sm:$0xf]
    %v7996 = vld [vmem:[%s15 + $0x3f0] sm:$0xf]
    %v7997 = vld [vmem:[%s15 + $0x3f4] sm:$0xf]
    %v7998 = vld [vmem:[%s15 + $0x3f8] sm:$0xf]
    %v7999 = vld [vmem:[%s15 + $0x3fc] sm:$0xf]
    %v8000 = vld [vmem:[%s15 + $0x400] sm:$0xf]
    %v8001 = vld [vmem:[%s15 + $0x404] sm:$0xf]
    %v8002 = vld [vmem:[%s15 + $0x408] sm:$0xf]
    %v8003 = vld [vmem:[%s15 + $0x40c] sm:$0xf]
    %v8004 = vld [vmem:[%s15 + $0x410] sm:$0xf]
    %v8005 = vld [vmem:[%s15 + $0x414] sm:$0xf]
    %v8006 = vld [vmem:[%s15 + $0x418] sm:$0xf]
    %v8007 = vld [vmem:[%s15 + $0x41c] sm:$0xf]
    %v8008 = vld [vmem:[%s15 + $0x420] sm:$0xf]
    %v8009 = vld [vmem:[%s15 + $0x424] sm:$0xf]
    %v8010 = vld [vmem:[%s15 + $0x428] sm:$0xf]
    %v8011 = vld [vmem:[%s15 + $0x42c] sm:$0xf]
    %v8012 = vld [vmem:[%s15 + $0x430] sm:$0xf]
    %v8013 = vld [vmem:[%s15 + $0x434] sm:$0xf]
    %v8014 = vld [vmem:[%s15 + $0x438] sm:$0xf]
    %v8015 = vld [vmem:[%s15 + $0x43c] sm:$0xf]
    %v8016 = vld [vmem:[%s15 + $0x440] sm:$0xf]
    %v8017 = vld [vmem:[%s15 + $0x444] sm:$0xf]
    %v8018 = vld [vmem:[%s15 + $0x448] sm:$0xf]
    %v8019 = vld [vmem:[%s15 + $0x44c] sm:$0xf]
    %v8020 = vld [vmem:[%s15 + $0x450] sm:$0xf]
    %v8021 = vld [vmem:[%s15 + $0x454] sm:$0xf]
    %v8022 = vld [vmem:[%s15 + $0x458] sm:$0xf]
    %v8023 = vld [vmem:[%s15 + $0x45c] sm:$0xf]
    %v8024 = vld [vmem:[%s15 + $0x460] sm:$0xf]
    %v8025 = vld [vmem:[%s15 + $0x464] sm:$0xf]
    %v8026 = vld [vmem:[%s15 + $0x468] sm:$0xf]
    %v8027 = vld [vmem:[%s15 + $0x46c] sm:$0xf]
    %v8028 = vld [vmem:[%s15 + $0x470] sm:$0xf]
    %v8029 = vld [vmem:[%s15 + $0x474] sm:$0xf]
    %v8030 = vld [vmem:[%s15 + $0x478] sm:$0xf]
    %v8031 = vld [vmem:[%s15 + $0x47c] sm:$0xf]
    %v8032 = vld [vmem:[%s15 + $0x480] sm:$0xf]
    %v8033 = vld [vmem:[%s15 + $0x484] sm:$0xf]
    %v8034 = vld [vmem:[%s15 + $0x488] sm:$0xf]
    %v8035 = vld [vmem:[%s15 + $0x48c] sm:$0xf]
    %v8036 = vld [vmem:[%s15 + $0x490] sm:$0xf]
    %v8037 = vld [vmem:[%s15 + $0x494] sm:$0xf]
    %v8038 = vld [vmem:[%s15 + $0x498] sm:$0xf]
    %v8039 = vld [vmem:[%s15 + $0x49c] sm:$0xf]
    %v8040 = vld [vmem:[%s15 + $0x4a0] sm:$0xf]
    %v8041 = vld [vmem:[%s15 + $0x4a4] sm:$0xf]
    %v8042 = vld [vmem:[%s15 + $0x4a8] sm:$0xf]
    %v8043 = vld [vmem:[%s15 + $0x4ac] sm:$0xf]
    %v8044 = vld [vmem:[%s15 + $0x4b0] sm:$0xf]
    %v8045 = vld [vmem:[%s15 + $0x4b4] sm:$0xf]
    %v8046 = vld [vmem:[%s15 + $0x4b8] sm:$0xf]
    %v8047 = vld [vmem:[%s15 + $0x4bc] sm:$0xf]
    %v8048 = vld [vmem:[%s15 + $0x4c0] sm:$0xf]
    %v8049 = vld [vmem:[%s15 + $0x4c4] sm:$0xf]
    %v8050 = vld [vmem:[%s15 + $0x4c8] sm:$0xf]
    %v8051 = vld [vmem:[%s15 + $0x4cc] sm:$0xf]
    %v8052 = vld [vmem:[%s15 + $0x4d0] sm:$0xf]
    %v8053 = vld [vmem:[%s15 + $0x4d4] sm:$0xf]
    %v8054 = vld [vmem:[%s15 + $0x4d8] sm:$0xf]
    %v8055 = vld [vmem:[%s15 + $0x4dc] sm:$0xf]
    %v8056 = vld [vmem:[%s15 + $0x4e0] sm:$0xf]
    %v8057 = vld [vmem:[%s15 + $0x4e4] sm:$0xf]
    %v8058 = vld [vmem:[%s15 + $0x4e8] sm:$0xf]
    %v8059 = vld [vmem:[%s15 + $0x4ec] sm:$0xf]
    %v8060 = vld [vmem:[%s15 + $0x4f0] sm:$0xf]
    %v8061 = vld [vmem:[%s15 + $0x4f4] sm:$0xf]
    %v8062 = vld [vmem:[%s15 + $0x4f8] sm:$0xf]
    %v8063 = vld [vmem:[%s15 + $0x4fc] sm:$0xf]
    %v8064 = vld [vmem:[%s15 + $0x500] sm:$0xf]
    %v8065 = vld [vmem:[%s15 + $0x504] sm:$0xf]
    %v8066 = vld [vmem:[%s15 + $0x508] sm:$0xf]
    %v8067 = vld [vmem:[%s15 + $0x50c] sm:$0xf]
    %v8068 = vld [vmem:[%s15 + $0x510] sm:$0xf]
    %v8069 = vld [vmem:[%s15 + $0x514] sm:$0xf]
    %v8070 = vld [vmem:[%s15 + $0x518] sm:$0xf]
    %v8071 = vld [vmem:[%s15 + $0x51c] sm:$0xf]
    %v8072 = vld [vmem:[%s15 + $0x520] sm:$0xf]
    %v8073 = vld [vmem:[%s15 + $0x524] sm:$0xf]
    %v8074 = vld [vmem:[%s15 + $0x528] sm:$0xf]
    %v8075 = vld [vmem:[%s15 + $0x52c] sm:$0xf]
    %v8076 = vld [vmem:[%s15 + $0x530] sm:$0xf]
    %v8077 = vld [vmem:[%s15 + $0x534] sm:$0xf]
    %v8078 = vld [vmem:[%s15 + $0x538] sm:$0xf]
    %v8079 = vld [vmem:[%s15 + $0x53c] sm:$0xf]
    %v8080 = vld [vmem:[%s15 + $0x540] sm:$0xf]
    %v8081 = vld [vmem:[%s15 + $0x544] sm:$0xf]
    %v8082 = vld [vmem:[%s15 + $0x548] sm:$0xf]
    %v8083 = vld [vmem:[%s15 + $0x54c] sm:$0xf]
    %v8084 = vld [vmem:[%s15 + $0x550] sm:$0xf]
    %v8085 = vld [vmem:[%s15 + $0x554] sm:$0xf]
    %v8086 = vld [vmem:[%s15 + $0x558] sm:$0xf]
    %v8087 = vld [vmem:[%s15 + $0x55c] sm:$0xf]
    %v8088 = vld [vmem:[%s15 + $0x560] sm:$0xf]
    %v8089 = vld [vmem:[%s15 + $0x564] sm:$0xf]
    %v8090 = vld [vmem:[%s15 + $0x568] sm:$0xf]
    %v8091 = vld [vmem:[%s15 + $0x56c] sm:$0xf]
    %v8092 = vld [vmem:[%s15 + $0x570] sm:$0xf]
    %v8093 = vld [vmem:[%s15 + $0x574] sm:$0xf]
    %v8094 = vld [vmem:[%s15 + $0x578] sm:$0xf]
    %v8095 = vld [vmem:[%s15 + $0x57c] sm:$0xf]
    %v8096 = vld [vmem:[%s15 + $0x580] sm:$0xf]
    %v8097 = vld [vmem:[%s15 + $0x584] sm:$0xf]
    %v8098 = vld [vmem:[%s15 + $0x588] sm:$0xf]
    %v8099 = vld [vmem:[%s15 + $0x58c] sm:$0xf]
    %v8100 = vld [vmem:[%s15 + $0x590] sm:$0xf]
    %v8101 = vld [vmem:[%s15 + $0x594] sm:$0xf]
    %v8102 = vld [vmem:[%s15 + $0x598] sm:$0xf]
    %v8103 = vld [vmem:[%s15 + $0x59c] sm:$0xf]
    %v8104 = vld [vmem:[%s15 + $0x5a0] sm:$0xf]
    %v8105 = vld [vmem:[%s15 + $0x5a4] sm:$0xf]
    %v8106 = vld [vmem:[%s15 + $0x5a8] sm:$0xf]
    %v8107 = vld [vmem:[%s15 + $0x5ac] sm:$0xf]
    %v8108 = vld [vmem:[%s15 + $0x5b0] sm:$0xf]
    %v8109 = vld [vmem:[%s15 + $0x5b4] sm:$0xf]
    %v8110 = vld [vmem:[%s15 + $0x5b8] sm:$0xf]
    %v8111 = vld [vmem:[%s15 + $0x5bc] sm:$0xf]
    %v8112 = vld [vmem:[%s15 + $0x5c0] sm:$0xf]
    %v8113 = vld [vmem:[%s15 + $0x5c4] sm:$0xf]
    %v8114 = vld [vmem:[%s15 + $0x5c8] sm:$0xf]
    %v8115 = vld [vmem:[%s15 + $0x5cc] sm:$0xf]
    %v8116 = vld [vmem:[%s15 + $0x5d0] sm:$0xf]
    %v8117 = vld [vmem:[%s15 + $0x5d4] sm:$0xf]
    %v8118 = vld [vmem:[%s15 + $0x5d8] sm:$0xf]
    %v8119 = vld [vmem:[%s15 + $0x5dc] sm:$0xf]
    %v8120 = vld [vmem:[%s15 + $0x5e0] sm:$0xf]
    %v8121 = vld [vmem:[%s15 + $0x5e4] sm:$0xf]
    %v8122 = vld [vmem:[%s15 + $0x5e8] sm:$0xf]
    %v8123 = vld [vmem:[%s15 + $0x5ec] sm:$0xf]
    %v8124 = vld [vmem:[%s15 + $0x5f0] sm:$0xf]
    %v8125 = vld [vmem:[%s15 + $0x5f4] sm:$0xf]
    %v8126 = vld [vmem:[%s15 + $0x5f8] sm:$0xf]
    %v8127 = vld [vmem:[%s15 + $0x5fc] sm:$0xf]
    %v8128 = vld [vmem:[%s16] sm:$0x1]
    %v8130 = vperm.slane %v8128, 0
    %v8516 = vunpack.c.l.b16 %v7744
    %v8517 = vunpack.c.l.b16 %v7745
    %v8518 = vunpack.c.l.b16 %v7746
    %v8519 = vunpack.c.l.b16 %v7747
    %v8520 = vunpack.c.l.b16 %v7748
    %v8521 = vunpack.c.l.b16 %v7749
    %v8522 = vunpack.c.l.b16 %v7750
    %v8523 = vunpack.c.l.b16 %v7751
    %v8524 = vunpack.c.l.b16 %v7752
    %v8525 = vunpack.c.l.b16 %v7753
    %v8526 = vunpack.c.l.b16 %v7754
    %v8527 = vunpack.c.l.b16 %v7755
    %v8528 = vunpack.c.l.b16 %v7756
    %v8529 = vunpack.c.l.b16 %v7757
    %v8530 = vunpack.c.l.b16 %v7758
    %v8531 = vunpack.c.l.b16 %v7759
    %v8532 = vunpack.c.l.b16 %v7760
    %v8533 = vunpack.c.l.b16 %v7761
    %v8534 = vunpack.c.l.b16 %v7762
    %v8535 = vunpack.c.l.b16 %v7763
    %v8536 = vunpack.c.l.b16 %v7764
    %v8537 = vunpack.c.l.b16 %v7765
    %v8538 = vunpack.c.l.b16 %v7766
    %v8539 = vunpack.c.l.b16 %v7767
    %v8540 = vunpack.c.l.b16 %v7768
    %v8541 = vunpack.c.l.b16 %v7769
    %v8542 = vunpack.c.l.b16 %v7770
    %v8543 = vunpack.c.l.b16 %v7771
    %v8544 = vunpack.c.l.b16 %v7772
    %v8545 = vunpack.c.l.b16 %v7773
    %v8546 = vunpack.c.l.b16 %v7774
    %v8547 = vunpack.c.l.b16 %v7775
    %v8548 = vunpack.c.l.b16 %v7776
    %v8549 = vunpack.c.l.b16 %v7777
    %v8550 = vunpack.c.l.b16 %v7778
    %v8551 = vunpack.c.l.b16 %v7779
    %v8552 = vunpack.c.l.b16 %v7780
    %v8553 = vunpack.c.l.b16 %v7781
    %v8554 = vunpack.c.l.b16 %v7782
    %v8555 = vunpack.c.l.b16 %v7783
    %v8556 = vunpack.c.l.b16 %v7784
    %v8557 = vunpack.c.l.b16 %v7785
    %v8558 = vunpack.c.l.b16 %v7786
    %v8559 = vunpack.c.l.b16 %v7787
    %v8560 = vunpack.c.l.b16 %v7788
    %v8561 = vunpack.c.l.b16 %v7789
    %v8562 = vunpack.c.l.b16 %v7790
    %v8563 = vunpack.c.l.b16 %v7791
    %v8564 = vunpack.c.l.b16 %v7792
    %v8565 = vunpack.c.l.b16 %v7793
    %v8566 = vunpack.c.l.b16 %v7794
    %v8567 = vunpack.c.l.b16 %v7795
    %v8568 = vunpack.c.l.b16 %v7796
    %v8569 = vunpack.c.l.b16 %v7797
    %v8570 = vunpack.c.l.b16 %v7798
    %v8571 = vunpack.c.l.b16 %v7799
    %v8572 = vunpack.c.l.b16 %v7800
    %v8573 = vunpack.c.l.b16 %v7801
    %v8574 = vunpack.c.l.b16 %v7802
    %v8575 = vunpack.c.l.b16 %v7803
    %v8576 = vunpack.c.l.b16 %v7804
    %v8577 = vunpack.c.l.b16 %v7805
    %v8578 = vunpack.c.l.b16 %v7806
    %v8579 = vunpack.c.l.b16 %v7807
    %v8580 = vunpack.c.l.b16 %v7808
    %v8581 = vunpack.c.l.b16 %v7809
    %v8582 = vunpack.c.l.b16 %v7810
    %v8583 = vunpack.c.l.b16 %v7811
    %v8584 = vunpack.c.l.b16 %v7812
    %v8585 = vunpack.c.l.b16 %v7813
    %v8586 = vunpack.c.l.b16 %v7814
    %v8587 = vunpack.c.l.b16 %v7815
    %v8588 = vunpack.c.l.b16 %v7816
    %v8589 = vunpack.c.l.b16 %v7817
    %v8590 = vunpack.c.l.b16 %v7818
    %v8591 = vunpack.c.l.b16 %v7819
    %v8592 = vunpack.c.l.b16 %v7820
    %v8593 = vunpack.c.l.b16 %v7821
    %v8594 = vunpack.c.l.b16 %v7822
    %v8595 = vunpack.c.l.b16 %v7823
    %v8596 = vunpack.c.l.b16 %v7824
    %v8597 = vunpack.c.l.b16 %v7825
    %v8598 = vunpack.c.l.b16 %v7826
    %v8599 = vunpack.c.l.b16 %v7827
    %v8600 = vunpack.c.l.b16 %v7828
    %v8601 = vunpack.c.l.b16 %v7829
    %v8602 = vunpack.c.l.b16 %v7830
    %v8603 = vunpack.c.l.b16 %v7831
    %v8604 = vunpack.c.l.b16 %v7832
    %v8605 = vunpack.c.l.b16 %v7833
    %v8606 = vunpack.c.l.b16 %v7834
    %v8607 = vunpack.c.l.b16 %v7835
    %v8608 = vunpack.c.l.b16 %v7836
    %v8609 = vunpack.c.l.b16 %v7837
    %v8610 = vunpack.c.l.b16 %v7838
    %v8611 = vunpack.c.l.b16 %v7839
    %v8612 = vunpack.c.l.b16 %v7840
    %v8613 = vunpack.c.l.b16 %v7841
    %v8614 = vunpack.c.l.b16 %v7842
    %v8615 = vunpack.c.l.b16 %v7843
    %v8616 = vunpack.c.l.b16 %v7844
    %v8617 = vunpack.c.l.b16 %v7845
    %v8618 = vunpack.c.l.b16 %v7846
    %v8619 = vunpack.c.l.b16 %v7847
    %v8620 = vunpack.c.l.b16 %v7848
    %v8621 = vunpack.c.l.b16 %v7849
    %v8622 = vunpack.c.l.b16 %v7850
    %v8623 = vunpack.c.l.b16 %v7851
    %v8624 = vunpack.c.l.b16 %v7852
    %v8625 = vunpack.c.l.b16 %v7853
    %v8626 = vunpack.c.l.b16 %v7854
    %v8627 = vunpack.c.l.b16 %v7855
    %v8628 = vunpack.c.l.b16 %v7856
    %v8629 = vunpack.c.l.b16 %v7857
    %v8630 = vunpack.c.l.b16 %v7858
    %v8631 = vunpack.c.l.b16 %v7859
    %v8632 = vunpack.c.l.b16 %v7860
    %v8633 = vunpack.c.l.b16 %v7861
    %v8634 = vunpack.c.l.b16 %v7862
    %v8635 = vunpack.c.l.b16 %v7863
    %v8636 = vunpack.c.l.b16 %v7864
    %v8637 = vunpack.c.l.b16 %v7865
    %v8638 = vunpack.c.l.b16 %v7866
    %v8639 = vunpack.c.l.b16 %v7867
    %v8640 = vunpack.c.l.b16 %v7868
    %v8641 = vunpack.c.l.b16 %v7869
    %v8642 = vunpack.c.l.b16 %v7870
    %v8643 = vunpack.c.l.b16 %v7871
    %v8644 = vunpack.c.l.b16 %v7872
    %v8645 = vunpack.c.l.b16 %v7873
    %v8646 = vunpack.c.l.b16 %v7874
    %v8647 = vunpack.c.l.b16 %v7875
    %v8648 = vunpack.c.l.b16 %v7876
    %v8649 = vunpack.c.l.b16 %v7877
    %v8650 = vunpack.c.l.b16 %v7878
    %v8651 = vunpack.c.l.b16 %v7879
    %v8652 = vunpack.c.l.b16 %v7880
    %v8653 = vunpack.c.l.b16 %v7881
    %v8654 = vunpack.c.l.b16 %v7882
    %v8655 = vunpack.c.l.b16 %v7883
    %v8656 = vunpack.c.l.b16 %v7884
    %v8657 = vunpack.c.l.b16 %v7885
    %v8658 = vunpack.c.l.b16 %v7886
    %v8659 = vunpack.c.l.b16 %v7887
    %v8660 = vunpack.c.l.b16 %v7888
    %v8661 = vunpack.c.l.b16 %v7889
    %v8662 = vunpack.c.l.b16 %v7890
    %v8663 = vunpack.c.l.b16 %v7891
    %v8664 = vunpack.c.l.b16 %v7892
    %v8665 = vunpack.c.l.b16 %v7893
    %v8666 = vunpack.c.l.b16 %v7894
    %v8667 = vunpack.c.l.b16 %v7895
    %v8668 = vunpack.c.l.b16 %v7896
    %v8669 = vunpack.c.l.b16 %v7897
    %v8670 = vunpack.c.l.b16 %v7898
    %v8671 = vunpack.c.l.b16 %v7899
    %v8672 = vunpack.c.l.b16 %v7900
    %v8673 = vunpack.c.l.b16 %v7901
    %v8674 = vunpack.c.l.b16 %v7902
    %v8675 = vunpack.c.l.b16 %v7903
    %v8676 = vunpack.c.l.b16 %v7904
    %v8677 = vunpack.c.l.b16 %v7905
    %v8678 = vunpack.c.l.b16 %v7906
    %v8679 = vunpack.c.l.b16 %v7907
    %v8680 = vunpack.c.l.b16 %v7908
    %v8681 = vunpack.c.l.b16 %v7909
    %v8682 = vunpack.c.l.b16 %v7910
    %v8683 = vunpack.c.l.b16 %v7911
    %v8684 = vunpack.c.l.b16 %v7912
    %v8685 = vunpack.c.l.b16 %v7913
    %v8686 = vunpack.c.l.b16 %v7914
    %v8687 = vunpack.c.l.b16 %v7915
    %v8688 = vunpack.c.l.b16 %v7916
    %v8689 = vunpack.c.l.b16 %v7917
    %v8690 = vunpack.c.l.b16 %v7918
    %v8691 = vunpack.c.l.b16 %v7919
    %v8692 = vunpack.c.l.b16 %v7920
    %v8693 = vunpack.c.l.b16 %v7921
    %v8694 = vunpack.c.l.b16 %v7922
    %v8695 = vunpack.c.l.b16 %v7923
    %v8696 = vunpack.c.l.b16 %v7924
    %v8697 = vunpack.c.l.b16 %v7925
    %v8698 = vunpack.c.l.b16 %v7926
    %v8699 = vunpack.c.l.b16 %v7927
    %v8700 = vunpack.c.l.b16 %v7928
    %v8701 = vunpack.c.l.b16 %v7929
    %v8702 = vunpack.c.l.b16 %v7930
    %v8703 = vunpack.c.l.b16 %v7931
    %v8704 = vunpack.c.l.b16 %v7932
    %v8705 = vunpack.c.l.b16 %v7933
    %v8706 = vunpack.c.l.b16 %v7934
    %v8707 = vunpack.c.l.b16 %v7935
    %v8708 = vunpack.c.l.b16 %v7936
    %v8709 = vunpack.c.l.b16 %v7937
    %v8710 = vunpack.c.l.b16 %v7938
    %v8711 = vunpack.c.l.b16 %v7939
    %v8712 = vunpack.c.l.b16 %v7940
    %v8713 = vunpack.c.l.b16 %v7941
    %v8714 = vunpack.c.l.b16 %v7942
    %v8715 = vunpack.c.l.b16 %v7943
    %v8716 = vunpack.c.l.b16 %v7944
    %v8717 = vunpack.c.l.b16 %v7945
    %v8718 = vunpack.c.l.b16 %v7946
    %v8719 = vunpack.c.l.b16 %v7947
    %v8720 = vunpack.c.l.b16 %v7948
    %v8721 = vunpack.c.l.b16 %v7949
    %v8722 = vunpack.c.l.b16 %v7950
    %v8723 = vunpack.c.l.b16 %v7951
    %v8724 = vunpack.c.l.b16 %v7952
    %v8725 = vunpack.c.l.b16 %v7953
    %v8726 = vunpack.c.l.b16 %v7954
    %v8727 = vunpack.c.l.b16 %v7955
    %v8728 = vunpack.c.l.b16 %v7956
    %v8729 = vunpack.c.l.b16 %v7957
    %v8730 = vunpack.c.l.b16 %v7958
    %v8731 = vunpack.c.l.b16 %v7959
    %v8732 = vunpack.c.l.b16 %v7960
    %v8733 = vunpack.c.l.b16 %v7961
    %v8734 = vunpack.c.l.b16 %v7962
    %v8735 = vunpack.c.l.b16 %v7963
    %v8736 = vunpack.c.l.b16 %v7964
    %v8737 = vunpack.c.l.b16 %v7965
    %v8738 = vunpack.c.l.b16 %v7966
    %v8739 = vunpack.c.l.b16 %v7967
    %v8740 = vunpack.c.l.b16 %v7968
    %v8741 = vunpack.c.l.b16 %v7969
    %v8742 = vunpack.c.l.b16 %v7970
    %v8743 = vunpack.c.l.b16 %v7971
    %v8744 = vunpack.c.l.b16 %v7972
    %v8745 = vunpack.c.l.b16 %v7973
    %v8746 = vunpack.c.l.b16 %v7974
    %v8747 = vunpack.c.l.b16 %v7975
    %v8748 = vunpack.c.l.b16 %v7976
    %v8749 = vunpack.c.l.b16 %v7977
    %v8750 = vunpack.c.l.b16 %v7978
    %v8751 = vunpack.c.l.b16 %v7979
    %v8752 = vunpack.c.l.b16 %v7980
    %v8753 = vunpack.c.l.b16 %v7981
    %v8754 = vunpack.c.l.b16 %v7982
    %v8755 = vunpack.c.l.b16 %v7983
    %v8756 = vunpack.c.l.b16 %v7984
    %v8757 = vunpack.c.l.b16 %v7985
    %v8758 = vunpack.c.l.b16 %v7986
    %v8759 = vunpack.c.l.b16 %v7987
    %v8760 = vunpack.c.l.b16 %v7988
    %v8761 = vunpack.c.l.b16 %v7989
    %v8762 = vunpack.c.l.b16 %v7990
    %v8763 = vunpack.c.l.b16 %v7991
    %v8764 = vunpack.c.l.b16 %v7992
    %v8765 = vunpack.c.l.b16 %v7993
    %v8766 = vunpack.c.l.b16 %v7994
    %v8767 = vunpack.c.l.b16 %v7995
    %v8768 = vunpack.c.l.b16 %v7996
    %v8769 = vunpack.c.l.b16 %v7997
    %v8770 = vunpack.c.l.b16 %v7998
    %v8771 = vunpack.c.l.b16 %v7999
    %v8772 = vunpack.c.l.b16 %v8000
    %v8773 = vunpack.c.l.b16 %v8001
    %v8774 = vunpack.c.l.b16 %v8002
    %v8775 = vunpack.c.l.b16 %v8003
    %v8776 = vunpack.c.l.b16 %v8004
    %v8777 = vunpack.c.l.b16 %v8005
    %v8778 = vunpack.c.l.b16 %v8006
    %v8779 = vunpack.c.l.b16 %v8007
    %v8780 = vunpack.c.l.b16 %v8008
    %v8781 = vunpack.c.l.b16 %v8009
    %v8782 = vunpack.c.l.b16 %v8010
    %v8783 = vunpack.c.l.b16 %v8011
    %v8784 = vunpack.c.l.b16 %v8012
    %v8785 = vunpack.c.l.b16 %v8013
    %v8786 = vunpack.c.l.b16 %v8014
    %v8787 = vunpack.c.l.b16 %v8015
    %v8788 = vunpack.c.l.b16 %v8016
    %v8789 = vunpack.c.l.b16 %v8017
    %v8790 = vunpack.c.l.b16 %v8018
    %v8791 = vunpack.c.l.b16 %v8019
    %v8792 = vunpack.c.l.b16 %v8020
    %v8793 = vunpack.c.l.b16 %v8021
    %v8794 = vunpack.c.l.b16 %v8022
    %v8795 = vunpack.c.l.b16 %v8023
    %v8796 = vunpack.c.l.b16 %v8024
    %v8797 = vunpack.c.l.b16 %v8025
    %v8798 = vunpack.c.l.b16 %v8026
    %v8799 = vunpack.c.l.b16 %v8027
    %v8800 = vunpack.c.l.b16 %v8028
    %v8801 = vunpack.c.l.b16 %v8029
    %v8802 = vunpack.c.l.b16 %v8030
    %v8803 = vunpack.c.l.b16 %v8031
    %v8804 = vunpack.c.l.b16 %v8032
    %v8805 = vunpack.c.l.b16 %v8033
    %v8806 = vunpack.c.l.b16 %v8034
    %v8807 = vunpack.c.l.b16 %v8035
    %v8808 = vunpack.c.l.b16 %v8036
    %v8809 = vunpack.c.l.b16 %v8037
    %v8810 = vunpack.c.l.b16 %v8038
    %v8811 = vunpack.c.l.b16 %v8039
    %v8812 = vunpack.c.l.b16 %v8040
    %v8813 = vunpack.c.l.b16 %v8041
    %v8814 = vunpack.c.l.b16 %v8042
    %v8815 = vunpack.c.l.b16 %v8043
    %v8816 = vunpack.c.l.b16 %v8044
    %v8817 = vunpack.c.l.b16 %v8045
    %v8818 = vunpack.c.l.b16 %v8046
    %v8819 = vunpack.c.l.b16 %v8047
    %v8820 = vunpack.c.l.b16 %v8048
    %v8821 = vunpack.c.l.b16 %v8049
    %v8822 = vunpack.c.l.b16 %v8050
    %v8823 = vunpack.c.l.b16 %v8051
    %v8824 = vunpack.c.l.b16 %v8052
    %v8825 = vunpack.c.l.b16 %v8053
    %v8826 = vunpack.c.l.b16 %v8054
    %v8827 = vunpack.c.l.b16 %v8055
    %v8828 = vunpack.c.l.b16 %v8056
    %v8829 = vunpack.c.l.b16 %v8057
    %v8830 = vunpack.c.l.b16 %v8058
    %v8831 = vunpack.c.l.b16 %v8059
    %v8832 = vunpack.c.l.b16 %v8060
    %v8833 = vunpack.c.l.b16 %v8061
    %v8834 = vunpack.c.l.b16 %v8062
    %v8835 = vunpack.c.l.b16 %v8063
    %v8836 = vunpack.c.l.b16 %v8064
    %v8837 = vunpack.c.l.b16 %v8065
    %v8838 = vunpack.c.l.b16 %v8066
    %v8839 = vunpack.c.l.b16 %v8067
    %v8840 = vunpack.c.l.b16 %v8068
    %v8841 = vunpack.c.l.b16 %v8069
    %v8842 = vunpack.c.l.b16 %v8070
    %v8843 = vunpack.c.l.b16 %v8071
    %v8844 = vunpack.c.l.b16 %v8072
    %v8845 = vunpack.c.l.b16 %v8073
    %v8846 = vunpack.c.l.b16 %v8074
    %v8847 = vunpack.c.l.b16 %v8075
    %v8848 = vunpack.c.l.b16 %v8076
    %v8849 = vunpack.c.l.b16 %v8077
    %v8850 = vunpack.c.l.b16 %v8078
    %v8851 = vunpack.c.l.b16 %v8079
    %v8852 = vunpack.c.l.b16 %v8080
    %v8853 = vunpack.c.l.b16 %v8081
    %v8854 = vunpack.c.l.b16 %v8082
    %v8855 = vunpack.c.l.b16 %v8083
    %v8856 = vunpack.c.l.b16 %v8084
    %v8857 = vunpack.c.l.b16 %v8085
    %v8858 = vunpack.c.l.b16 %v8086
    %v8859 = vunpack.c.l.b16 %v8087
    %v8860 = vunpack.c.l.b16 %v8088
    %v8861 = vunpack.c.l.b16 %v8089
    %v8862 = vunpack.c.l.b16 %v8090
    %v8863 = vunpack.c.l.b16 %v8091
    %v8864 = vunpack.c.l.b16 %v8092
    %v8865 = vunpack.c.l.b16 %v8093
    %v8866 = vunpack.c.l.b16 %v8094
    %v8867 = vunpack.c.l.b16 %v8095
    %v8868 = vunpack.c.l.b16 %v8096
    %v8869 = vunpack.c.l.b16 %v8097
    %v8870 = vunpack.c.l.b16 %v8098
    %v8871 = vunpack.c.l.b16 %v8099
    %v8872 = vunpack.c.l.b16 %v8100
    %v8873 = vunpack.c.l.b16 %v8101
    %v8874 = vunpack.c.l.b16 %v8102
    %v8875 = vunpack.c.l.b16 %v8103
    %v8876 = vunpack.c.l.b16 %v8104
    %v8877 = vunpack.c.l.b16 %v8105
    %v8878 = vunpack.c.l.b16 %v8106
    %v8879 = vunpack.c.l.b16 %v8107
    %v8880 = vunpack.c.l.b16 %v8108
    %v8881 = vunpack.c.l.b16 %v8109
    %v8882 = vunpack.c.l.b16 %v8110
    %v8883 = vunpack.c.l.b16 %v8111
    %v8884 = vunpack.c.l.b16 %v8112
    %v8885 = vunpack.c.l.b16 %v8113
    %v8886 = vunpack.c.l.b16 %v8114
    %v8887 = vunpack.c.l.b16 %v8115
    %v8888 = vunpack.c.l.b16 %v8116
    %v8889 = vunpack.c.l.b16 %v8117
    %v8890 = vunpack.c.l.b16 %v8118
    %v8891 = vunpack.c.l.b16 %v8119
    %v8892 = vunpack.c.l.b16 %v8120
    %v8893 = vunpack.c.l.b16 %v8121
    %v8894 = vunpack.c.l.b16 %v8122
    %v8895 = vunpack.c.l.b16 %v8123
    %v8896 = vunpack.c.l.b16 %v8124
    %v8897 = vunpack.c.l.b16 %v8125
    %v8898 = vunpack.c.l.b16 %v8126
    %v8899 = vunpack.c.l.b16 %v8127
    %v8900 = vpack.c.b16 %v8517, %v8516
    %v8901 = vpack.c.b16 %v8519, %v8518
    %v8902 = vpack.c.b16 %v8521, %v8520
    %v8903 = vpack.c.b16 %v8523, %v8522
    %v8904 = vpack.c.b16 %v8525, %v8524
    %v8905 = vpack.c.b16 %v8527, %v8526
    %v8906 = vpack.c.b16 %v8529, %v8528
    %v8907 = vpack.c.b16 %v8531, %v8530
    %v8908 = vpack.c.b16 %v8533, %v8532
    %v8909 = vpack.c.b16 %v8535, %v8534
    %v8910 = vpack.c.b16 %v8537, %v8536
    %v8911 = vpack.c.b16 %v8539, %v8538
    %v8912 = vpack.c.b16 %v8541, %v8540
    %v8913 = vpack.c.b16 %v8543, %v8542
    %v8914 = vpack.c.b16 %v8545, %v8544
    %v8915 = vpack.c.b16 %v8547, %v8546
    %v8916 = vpack.c.b16 %v8549, %v8548
    %v8917 = vpack.c.b16 %v8551, %v8550
    %v8918 = vpack.c.b16 %v8553, %v8552
    %v8919 = vpack.c.b16 %v8555, %v8554
    %v8920 = vpack.c.b16 %v8557, %v8556
    %v8921 = vpack.c.b16 %v8559, %v8558
    %v8922 = vpack.c.b16 %v8561, %v8560
    %v8923 = vpack.c.b16 %v8563, %v8562
    %v8924 = vpack.c.b16 %v8565, %v8564
    %v8925 = vpack.c.b16 %v8567, %v8566
    %v8926 = vpack.c.b16 %v8569, %v8568
    %v8927 = vpack.c.b16 %v8571, %v8570
    %v8928 = vpack.c.b16 %v8573, %v8572
    %v8929 = vpack.c.b16 %v8575, %v8574
    %v8930 = vpack.c.b16 %v8577, %v8576
    %v8931 = vpack.c.b16 %v8579, %v8578
    %v8932 = vpack.c.b16 %v8581, %v8580
    %v8933 = vpack.c.b16 %v8583, %v8582
    %v8934 = vpack.c.b16 %v8585, %v8584
    %v8935 = vpack.c.b16 %v8587, %v8586
    %v8936 = vpack.c.b16 %v8589, %v8588
    %v8937 = vpack.c.b16 %v8591, %v8590
    %v8938 = vpack.c.b16 %v8593, %v8592
    %v8939 = vpack.c.b16 %v8595, %v8594
    %v8940 = vpack.c.b16 %v8597, %v8596
    %v8941 = vpack.c.b16 %v8599, %v8598
    %v8942 = vpack.c.b16 %v8601, %v8600
    %v8943 = vpack.c.b16 %v8603, %v8602
    %v8944 = vpack.c.b16 %v8605, %v8604
    %v8945 = vpack.c.b16 %v8607, %v8606
    %v8946 = vpack.c.b16 %v8609, %v8608
    %v8947 = vpack.c.b16 %v8611, %v8610
    %v8948 = vpack.c.b16 %v8613, %v8612
    %v8949 = vpack.c.b16 %v8615, %v8614
    %v8950 = vpack.c.b16 %v8617, %v8616
    %v8951 = vpack.c.b16 %v8619, %v8618
    %v8952 = vpack.c.b16 %v8621, %v8620
    %v8953 = vpack.c.b16 %v8623, %v8622
    %v8954 = vpack.c.b16 %v8625, %v8624
    %v8955 = vpack.c.b16 %v8627, %v8626
    %v8956 = vpack.c.b16 %v8629, %v8628
    %v8957 = vpack.c.b16 %v8631, %v8630
    %v8958 = vpack.c.b16 %v8633, %v8632
    %v8959 = vpack.c.b16 %v8635, %v8634
    %v8960 = vpack.c.b16 %v8637, %v8636
    %v8961 = vpack.c.b16 %v8639, %v8638
    %v8962 = vpack.c.b16 %v8641, %v8640
    %v8963 = vpack.c.b16 %v8643, %v8642
    %v8964 = vpack.c.b16 %v8645, %v8644
    %v8965 = vpack.c.b16 %v8647, %v8646
    %v8966 = vpack.c.b16 %v8649, %v8648
    %v8967 = vpack.c.b16 %v8651, %v8650
    %v8968 = vpack.c.b16 %v8653, %v8652
    %v8969 = vpack.c.b16 %v8655, %v8654
    %v8970 = vpack.c.b16 %v8657, %v8656
    %v8971 = vpack.c.b16 %v8659, %v8658
    %v8972 = vpack.c.b16 %v8661, %v8660
    %v8973 = vpack.c.b16 %v8663, %v8662
    %v8974 = vpack.c.b16 %v8665, %v8664
    %v8975 = vpack.c.b16 %v8667, %v8666
    %v8976 = vpack.c.b16 %v8669, %v8668
    %v8977 = vpack.c.b16 %v8671, %v8670
    %v8978 = vpack.c.b16 %v8673, %v8672
    %v8979 = vpack.c.b16 %v8675, %v8674
    %v8980 = vpack.c.b16 %v8677, %v8676
    %v8981 = vpack.c.b16 %v8679, %v8678
    %v8982 = vpack.c.b16 %v8681, %v8680
    %v8983 = vpack.c.b16 %v8683, %v8682
    %v8984 = vpack.c.b16 %v8685, %v8684
    %v8985 = vpack.c.b16 %v8687, %v8686
    %v8986 = vpack.c.b16 %v8689, %v8688
    %v8987 = vpack.c.b16 %v8691, %v8690
    %v8988 = vpack.c.b16 %v8693, %v8692
    %v8989 = vpack.c.b16 %v8695, %v8694
    %v8990 = vpack.c.b16 %v8697, %v8696
    %v8991 = vpack.c.b16 %v8699, %v8698
    %v8992 = vpack.c.b16 %v8701, %v8700
    %v8993 = vpack.c.b16 %v8703, %v8702
    %v8994 = vpack.c.b16 %v8705, %v8704
    %v8995 = vpack.c.b16 %v8707, %v8706
    %v8996 = vpack.c.b16 %v8709, %v8708
    %v8997 = vpack.c.b16 %v8711, %v8710
    %v8998 = vpack.c.b16 %v8713, %v8712
    %v8999 = vpack.c.b16 %v8715, %v8714
    %v9000 = vpack.c.b16 %v8717, %v8716
    %v9001 = vpack.c.b16 %v8719, %v8718
    %v9002 = vpack.c.b16 %v8721, %v8720
    %v9003 = vpack.c.b16 %v8723, %v8722
    %v9004 = vpack.c.b16 %v8725, %v8724
    %v9005 = vpack.c.b16 %v8727, %v8726
    %v9006 = vpack.c.b16 %v8729, %v8728
    %v9007 = vpack.c.b16 %v8731, %v8730
    %v9008 = vpack.c.b16 %v8733, %v8732
    %v9009 = vpack.c.b16 %v8735, %v8734
    %v9010 = vpack.c.b16 %v8737, %v8736
    %v9011 = vpack.c.b16 %v8739, %v8738
    %v9012 = vpack.c.b16 %v8741, %v8740
    %v9013 = vpack.c.b16 %v8743, %v8742
    %v9014 = vpack.c.b16 %v8745, %v8744
    %v9015 = vpack.c.b16 %v8747, %v8746
    %v9016 = vpack.c.b16 %v8749, %v8748
    %v9017 = vpack.c.b16 %v8751, %v8750
    %v9018 = vpack.c.b16 %v8753, %v8752
    %v9019 = vpack.c.b16 %v8755, %v8754
    %v9020 = vpack.c.b16 %v8757, %v8756
    %v9021 = vpack.c.b16 %v8759, %v8758
    %v9022 = vpack.c.b16 %v8761, %v8760
    %v9023 = vpack.c.b16 %v8763, %v8762
    %v9024 = vpack.c.b16 %v8765, %v8764
    %v9025 = vpack.c.b16 %v8767, %v8766
    %v9026 = vpack.c.b16 %v8769, %v8768
    %v9027 = vpack.c.b16 %v8771, %v8770
    %v9028 = vpack.c.b16 %v8773, %v8772
    %v9029 = vpack.c.b16 %v8775, %v8774
    %v9030 = vpack.c.b16 %v8777, %v8776
    %v9031 = vpack.c.b16 %v8779, %v8778
    %v9032 = vpack.c.b16 %v8781, %v8780
    %v9033 = vpack.c.b16 %v8783, %v8782
    %v9034 = vpack.c.b16 %v8785, %v8784
    %v9035 = vpack.c.b16 %v8787, %v8786
    %v9036 = vpack.c.b16 %v8789, %v8788
    %v9037 = vpack.c.b16 %v8791, %v8790
    %v9038 = vpack.c.b16 %v8793, %v8792
    %v9039 = vpack.c.b16 %v8795, %v8794
    %v9040 = vpack.c.b16 %v8797, %v8796
    %v9041 = vpack.c.b16 %v8799, %v8798
    %v9042 = vpack.c.b16 %v8801, %v8800
    %v9043 = vpack.c.b16 %v8803, %v8802
    %v9044 = vpack.c.b16 %v8805, %v8804
    %v9045 = vpack.c.b16 %v8807, %v8806
    %v9046 = vpack.c.b16 %v8809, %v8808
    %v9047 = vpack.c.b16 %v8811, %v8810
    %v9048 = vpack.c.b16 %v8813, %v8812
    %v9049 = vpack.c.b16 %v8815, %v8814
    %v9050 = vpack.c.b16 %v8817, %v8816
    %v9051 = vpack.c.b16 %v8819, %v8818
    %v9052 = vpack.c.b16 %v8821, %v8820
    %v9053 = vpack.c.b16 %v8823, %v8822
    %v9054 = vpack.c.b16 %v8825, %v8824
    %v9055 = vpack.c.b16 %v8827, %v8826
    %v9056 = vpack.c.b16 %v8829, %v8828
    %v9057 = vpack.c.b16 %v8831, %v8830
    %v9058 = vpack.c.b16 %v8833, %v8832
    %v9059 = vpack.c.b16 %v8835, %v8834
    %v9060 = vpack.c.b16 %v8837, %v8836
    %v9061 = vpack.c.b16 %v8839, %v8838
    %v9062 = vpack.c.b16 %v8841, %v8840
    %v9063 = vpack.c.b16 %v8843, %v8842
    %v9064 = vpack.c.b16 %v8845, %v8844
    %v9065 = vpack.c.b16 %v8847, %v8846
    %v9066 = vpack.c.b16 %v8849, %v8848
    %v9067 = vpack.c.b16 %v8851, %v8850
    %v9068 = vpack.c.b16 %v8853, %v8852
    %v9069 = vpack.c.b16 %v8855, %v8854
    %v9070 = vpack.c.b16 %v8857, %v8856
    %v9071 = vpack.c.b16 %v8859, %v8858
    %v9072 = vpack.c.b16 %v8861, %v8860
    %v9073 = vpack.c.b16 %v8863, %v8862
    %v9074 = vpack.c.b16 %v8865, %v8864
    %v9075 = vpack.c.b16 %v8867, %v8866
    %v9076 = vpack.c.b16 %v8869, %v8868
    %v9077 = vpack.c.b16 %v8871, %v8870
    %v9078 = vpack.c.b16 %v8873, %v8872
    %v9079 = vpack.c.b16 %v8875, %v8874
    %v9080 = vpack.c.b16 %v8877, %v8876
    %v9081 = vpack.c.b16 %v8879, %v8878
    %v9082 = vpack.c.b16 %v8881, %v8880
    %v9083 = vpack.c.b16 %v8883, %v8882
    %v9084 = vpack.c.b16 %v8885, %v8884
    %v9085 = vpack.c.b16 %v8887, %v8886
    %v9086 = vpack.c.b16 %v8889, %v8888
    %v9087 = vpack.c.b16 %v8891, %v8890
    %v9088 = vpack.c.b16 %v8893, %v8892
    %v9089 = vpack.c.b16 %v8895, %v8894
    %v9090 = vpack.c.b16 %v8897, %v8896
    %v9091 = vpack.c.b16 %v8899, %v8898
    %9284 = vmatpush.bf16.msra.mxu0 %v8907
    %9285 = vmatpush.bf16.msra.mxu0 %v8906
    %9286 = vmatpush.bf16.msra.mxu0 %v8905
    %9287 = vmatpush.bf16.msra.mxu0 %v8904
    %9288 = vmatpush.bf16.msra.mxu0 %v8903
    %9289 = vmatpush.bf16.msra.mxu0 %v8902
    %9290 = vmatpush.bf16.msra.mxu0 %v8901
    %9291 = vmatpush.bf16.msra.mxu0 %v8900
    %9292 = vmatmul.bf16.gmra.mxu0 %v4149
    %v9293 = vpop.f32.mrf.mxu0
    %v9294 = vadd.f32 %v8130, %v9293
    %v9295 = vpop.f32.mrf.mxu0
    %9296 = vdwg.mxu0
    %9297 = vmatpush.bf16.msra.mxu0 %v8915
    %9298 = vmatpush.bf16.msra.mxu0 %v8914
    %9299 = vmatpush.bf16.msra.mxu0 %v8913
    %9300 = vmatpush.bf16.msra.mxu0 %v8912
    %9301 = vmatpush.bf16.msra.mxu0 %v8911
    %9302 = vmatpush.bf16.msra.mxu0 %v8910
    %9303 = vmatpush.bf16.msra.mxu0 %v8909
    %9304 = vmatpush.bf16.msra.mxu0 %v8908
    %9305 = vmatmul.bf16.gmra.mxu0 %v4150
    %v9306 = vpop.f32.mrf.mxu0
    %v9307 = vadd.f32 %v9294, %v9306
    %v9308 = vpop.f32.mrf.mxu0
    %9309 = vdwg.mxu0
    %9310 = vmatpush.bf16.msra.mxu0 %v8923
    %9311 = vmatpush.bf16.msra.mxu0 %v8922
    %9312 = vmatpush.bf16.msra.mxu0 %v8921
    %9313 = vmatpush.bf16.msra.mxu0 %v8920
    %9314 = vmatpush.bf16.msra.mxu0 %v8919
    %9315 = vmatpush.bf16.msra.mxu0 %v8918
    %9316 = vmatpush.bf16.msra.mxu0 %v8917
    %9317 = vmatpush.bf16.msra.mxu0 %v8916
    %9318 = vmatmul.bf16.gmra.mxu0 %v4151
    %v9319 = vpop.f32.mrf.mxu0
    %v9320 = vadd.f32 %v9307, %v9319
    %v9321 = vpop.f32.mrf.mxu0
    %9322 = vdwg.mxu0
    %9323 = vmatpush.bf16.msra.mxu0 %v8931
    %9324 = vmatpush.bf16.msra.mxu0 %v8930
    %9325 = vmatpush.bf16.msra.mxu0 %v8929
    %9326 = vmatpush.bf16.msra.mxu0 %v8928
    %9327 = vmatpush.bf16.msra.mxu0 %v8927
    %9328 = vmatpush.bf16.msra.mxu0 %v8926
    %9329 = vmatpush.bf16.msra.mxu0 %v8925
    %9330 = vmatpush.bf16.msra.mxu0 %v8924
    %9331 = vmatmul.bf16.gmra.mxu0 %v4663
    %v9332 = vpop.f32.mrf.mxu0
    %v9333 = vadd.f32 %v9320, %v9332
    %v9334 = vpop.f32.mrf.mxu0
    %9335 = vdwg.mxu0
    %9336 = vmatpush.bf16.msra.mxu0 %v8939
    %9337 = vmatpush.bf16.msra.mxu0 %v8938
    %9338 = vmatpush.bf16.msra.mxu0 %v8937
    %9339 = vmatpush.bf16.msra.mxu0 %v8936
    %9340 = vmatpush.bf16.msra.mxu0 %v8935
    %9341 = vmatpush.bf16.msra.mxu0 %v8934
    %9342 = vmatpush.bf16.msra.mxu0 %v8933
    %9343 = vmatpush.bf16.msra.mxu0 %v8932
    %9344 = vmatmul.bf16.gmra.mxu0 %v4664
    %v9345 = vpop.f32.mrf.mxu0
    %v9346 = vadd.f32 %v9333, %v9345
    %v9347 = vpop.f32.mrf.mxu0
    %9348 = vdwg.mxu0
    %9349 = vmatpush.bf16.msra.mxu0 %v8947
    %9350 = vmatpush.bf16.msra.mxu0 %v8946
    %9351 = vmatpush.bf16.msra.mxu0 %v8945
    %9352 = vmatpush.bf16.msra.mxu0 %v8944
    %9353 = vmatpush.bf16.msra.mxu0 %v8943
    %9354 = vmatpush.bf16.msra.mxu0 %v8942
    %9355 = vmatpush.bf16.msra.mxu0 %v8941
    %9356 = vmatpush.bf16.msra.mxu0 %v8940
    %9357 = vmatmul.bf16.gmra.mxu0 %v4665
    %v9358 = vpop.f32.mrf.mxu0
    %v9359 = vadd.f32 %v9346, %v9358
    %v9360 = vpop.f32.mrf.mxu0
    %9361 = vdwg.mxu0
    %9362 = vmatpush.bf16.msra.mxu0 %v8955
    %9363 = vmatpush.bf16.msra.mxu0 %v8954
    %9364 = vmatpush.bf16.msra.mxu0 %v8953
    %9365 = vmatpush.bf16.msra.mxu0 %v8952
    %9366 = vmatpush.bf16.msra.mxu0 %v8951
    %9367 = vmatpush.bf16.msra.mxu0 %v8950
    %9368 = vmatpush.bf16.msra.mxu0 %v8949
    %9369 = vmatpush.bf16.msra.mxu0 %v8948
    %9370 = vmatmul.bf16.gmra.mxu0 %v5177
    %v9371 = vpop.f32.mrf.mxu0
    %v9372 = vadd.f32 %v9359, %v9371
    %v9373 = vpop.f32.mrf.mxu0
    %9374 = vdwg.mxu0
    %9375 = vmatpush.bf16.msra.mxu0 %v8963
    %9376 = vmatpush.bf16.msra.mxu0 %v8962
    %9377 = vmatpush.bf16.msra.mxu0 %v8961
    %9378 = vmatpush.bf16.msra.mxu0 %v8960
    %9379 = vmatpush.bf16.msra.mxu0 %v8959
    %9380 = vmatpush.bf16.msra.mxu0 %v8958
    %9381 = vmatpush.bf16.msra.mxu0 %v8957
    %9382 = vmatpush.bf16.msra.mxu0 %v8956
    %9383 = vmatmul.bf16.gmra.mxu0 %v5178
    %v9384 = vpop.f32.mrf.mxu0
    %v9385 = vadd.f32 %v9372, %v9384
    %v9386 = vpop.f32.mrf.mxu0
    %9387 = vdwg.mxu0
    %9388 = vmatpush.bf16.msra.mxu0 %v8971
    %9389 = vmatpush.bf16.msra.mxu0 %v8970
    %9390 = vmatpush.bf16.msra.mxu0 %v8969
    %9391 = vmatpush.bf16.msra.mxu0 %v8968
    %9392 = vmatpush.bf16.msra.mxu0 %v8967
    %9393 = vmatpush.bf16.msra.mxu0 %v8966
    %9394 = vmatpush.bf16.msra.mxu0 %v8965
    %9395 = vmatpush.bf16.msra.mxu0 %v8964
    %9396 = vmatmul.bf16.gmra.mxu0 %v5179
    %v9397 = vpop.f32.mrf.mxu0
    %v9398 = vadd.f32 %v9385, %v9397
    %v9399 = vpop.f32.mrf.mxu0
    %9400 = vdwg.mxu0
    %9401 = vmatpush.bf16.msra.mxu0 %v8979
    %9402 = vmatpush.bf16.msra.mxu0 %v8978
    %9403 = vmatpush.bf16.msra.mxu0 %v8977
    %9404 = vmatpush.bf16.msra.mxu0 %v8976
    %9405 = vmatpush.bf16.msra.mxu0 %v8975
    %9406 = vmatpush.bf16.msra.mxu0 %v8974
    %9407 = vmatpush.bf16.msra.mxu0 %v8973
    %9408 = vmatpush.bf16.msra.mxu0 %v8972
    %9409 = vmatmul.bf16.gmra.mxu0 %v5691
    %v9410 = vpop.f32.mrf.mxu0
    %v9411 = vadd.f32 %v9398, %v9410
    %v9412 = vpop.f32.mrf.mxu0
    %9413 = vdwg.mxu0
    %9414 = vmatpush.bf16.msra.mxu0 %v8987
    %9415 = vmatpush.bf16.msra.mxu0 %v8986
    %9416 = vmatpush.bf16.msra.mxu0 %v8985
    %9417 = vmatpush.bf16.msra.mxu0 %v8984
    %9418 = vmatpush.bf16.msra.mxu0 %v8983
    %9419 = vmatpush.bf16.msra.mxu0 %v8982
    %9420 = vmatpush.bf16.msra.mxu0 %v8981
    %9421 = vmatpush.bf16.msra.mxu0 %v8980
    %9422 = vmatmul.bf16.gmra.mxu0 %v5692
    %v9423 = vpop.f32.mrf.mxu0
    %v9424 = vadd.f32 %v9411, %v9423
    %v9425 = vpop.f32.mrf.mxu0
    %9426 = vdwg.mxu0
    %9427 = vmatpush.bf16.msra.mxu0 %v8995
    %9428 = vmatpush.bf16.msra.mxu0 %v8994
    %9429 = vmatpush.bf16.msra.mxu0 %v8993
    %9430 = vmatpush.bf16.msra.mxu0 %v8992
    %9431 = vmatpush.bf16.msra.mxu0 %v8991
    %9432 = vmatpush.bf16.msra.mxu0 %v8990
    %9433 = vmatpush.bf16.msra.mxu0 %v8989
    %9434 = vmatpush.bf16.msra.mxu0 %v8988
    %9435 = vmatmul.bf16.gmra.mxu0 %v5693
    %v9436 = vpop.f32.mrf.mxu0
    %v9437 = vadd.f32 %v9424, %v9436
    %v9438 = vpop.f32.mrf.mxu0
    %9439 = vdwg.mxu0
    %9440 = vmatpush.bf16.msra.mxu0 %v9003
    %9441 = vmatpush.bf16.msra.mxu0 %v9002
    %9442 = vmatpush.bf16.msra.mxu0 %v9001
    %9443 = vmatpush.bf16.msra.mxu0 %v9000
    %9444 = vmatpush.bf16.msra.mxu0 %v8999
    %9445 = vmatpush.bf16.msra.mxu0 %v8998
    %9446 = vmatpush.bf16.msra.mxu0 %v8997
    %9447 = vmatpush.bf16.msra.mxu0 %v8996
    %9448 = vmatmul.bf16.gmra.mxu0 %v6205
    %v9449 = vpop.f32.mrf.mxu0
    %v9450 = vadd.f32 %v9437, %v9449
    %v9451 = vpop.f32.mrf.mxu0
    %9452 = vdwg.mxu0
    %9453 = vmatpush.bf16.msra.mxu0 %v9011
    %9454 = vmatpush.bf16.msra.mxu0 %v9010
    %9455 = vmatpush.bf16.msra.mxu0 %v9009
    %9456 = vmatpush.bf16.msra.mxu0 %v9008
    %9457 = vmatpush.bf16.msra.mxu0 %v9007
    %9458 = vmatpush.bf16.msra.mxu0 %v9006
    %9459 = vmatpush.bf16.msra.mxu0 %v9005
    %9460 = vmatpush.bf16.msra.mxu0 %v9004
    %9461 = vmatmul.bf16.gmra.mxu0 %v6206
    %v9462 = vpop.f32.mrf.mxu0
    %v9463 = vadd.f32 %v9450, %v9462
    %v9464 = vpop.f32.mrf.mxu0
    %9465 = vdwg.mxu0
    %9466 = vmatpush.bf16.msra.mxu0 %v9019
    %9467 = vmatpush.bf16.msra.mxu0 %v9018
    %9468 = vmatpush.bf16.msra.mxu0 %v9017
    %9469 = vmatpush.bf16.msra.mxu0 %v9016
    %9470 = vmatpush.bf16.msra.mxu0 %v9015
    %9471 = vmatpush.bf16.msra.mxu0 %v9014
    %9472 = vmatpush.bf16.msra.mxu0 %v9013
    %9473 = vmatpush.bf16.msra.mxu0 %v9012
    %9474 = vmatmul.bf16.gmra.mxu0 %v6207
    %v9475 = vpop.f32.mrf.mxu0
    %v9476 = vadd.f32 %v9463, %v9475
    %v9477 = vpop.f32.mrf.mxu0
    %9478 = vdwg.mxu0
    %9479 = vmatpush.bf16.msra.mxu0 %v9027
    %9480 = vmatpush.bf16.msra.mxu0 %v9026
    %9481 = vmatpush.bf16.msra.mxu0 %v9025
    %9482 = vmatpush.bf16.msra.mxu0 %v9024
    %9483 = vmatpush.bf16.msra.mxu0 %v9023
    %9484 = vmatpush.bf16.msra.mxu0 %v9022
    %9485 = vmatpush.bf16.msra.mxu0 %v9021
    %9486 = vmatpush.bf16.msra.mxu0 %v9020
    %9487 = vmatmul.bf16.gmra.mxu0 %v6719
    %v9488 = vpop.f32.mrf.mxu0
    %v9489 = vadd.f32 %v9476, %v9488
    %v9490 = vpop.f32.mrf.mxu0
    %9491 = vdwg.mxu0
    %9492 = vmatpush.bf16.msra.mxu0 %v9035
    %9493 = vmatpush.bf16.msra.mxu0 %v9034
    %9494 = vmatpush.bf16.msra.mxu0 %v9033
    %9495 = vmatpush.bf16.msra.mxu0 %v9032
    %9496 = vmatpush.bf16.msra.mxu0 %v9031
    %9497 = vmatpush.bf16.msra.mxu0 %v9030
    %9498 = vmatpush.bf16.msra.mxu0 %v9029
    %9499 = vmatpush.bf16.msra.mxu0 %v9028
    %9500 = vmatmul.bf16.gmra.mxu0 %v6720
    %v9501 = vpop.f32.mrf.mxu0
    %v9502 = vadd.f32 %v9489, %v9501
    %v9503 = vpop.f32.mrf.mxu0
    %9504 = vdwg.mxu0
    %9505 = vmatpush.bf16.msra.mxu0 %v9043
    %9506 = vmatpush.bf16.msra.mxu0 %v9042
    %9507 = vmatpush.bf16.msra.mxu0 %v9041
    %9508 = vmatpush.bf16.msra.mxu0 %v9040
    %9509 = vmatpush.bf16.msra.mxu0 %v9039
    %9510 = vmatpush.bf16.msra.mxu0 %v9038
    %9511 = vmatpush.bf16.msra.mxu0 %v9037
    %9512 = vmatpush.bf16.msra.mxu0 %v9036
    %9513 = vmatmul.bf16.gmra.mxu0 %v6721
    %v9514 = vpop.f32.mrf.mxu0
    %v9515 = vadd.f32 %v9502, %v9514
    %v9516 = vpop.f32.mrf.mxu0
    %9517 = vdwg.mxu0
    %9518 = vmatpush.bf16.msra.mxu0 %v9051
    %9519 = vmatpush.bf16.msra.mxu0 %v9050
    %9520 = vmatpush.bf16.msra.mxu0 %v9049
    %9521 = vmatpush.bf16.msra.mxu0 %v9048
    %9522 = vmatpush.bf16.msra.mxu0 %v9047
    %9523 = vmatpush.bf16.msra.mxu0 %v9046
    %9524 = vmatpush.bf16.msra.mxu0 %v9045
    %9525 = vmatpush.bf16.msra.mxu0 %v9044
    %9526 = vmatmul.bf16.gmra.mxu0 %v7233
    %v9527 = vpop.f32.mrf.mxu0
    %v9528 = vadd.f32 %v9515, %v9527
    %v9529 = vpop.f32.mrf.mxu0
    %9530 = vdwg.mxu0
    %9531 = vmatpush.bf16.msra.mxu0 %v9059
    %9532 = vmatpush.bf16.msra.mxu0 %v9058
    %9533 = vmatpush.bf16.msra.mxu0 %v9057
    %9534 = vmatpush.bf16.msra.mxu0 %v9056
    %9535 = vmatpush.bf16.msra.mxu0 %v9055
    %9536 = vmatpush.bf16.msra.mxu0 %v9054
    %9537 = vmatpush.bf16.msra.mxu0 %v9053
    %9538 = vmatpush.bf16.msra.mxu0 %v9052
    %9539 = vmatmul.bf16.gmra.mxu0 %v7234
    %v9540 = vpop.f32.mrf.mxu0
    %v9541 = vadd.f32 %v9528, %v9540
    %v9542 = vpop.f32.mrf.mxu0
    %9543 = vdwg.mxu0
    %9544 = vmatpush.bf16.msra.mxu0 %v9067
    %9545 = vmatpush.bf16.msra.mxu0 %v9066
    %9546 = vmatpush.bf16.msra.mxu0 %v9065
    %9547 = vmatpush.bf16.msra.mxu0 %v9064
    %9548 = vmatpush.bf16.msra.mxu0 %v9063
    %9549 = vmatpush.bf16.msra.mxu0 %v9062
    %9550 = vmatpush.bf16.msra.mxu0 %v9061
    %9551 = vmatpush.bf16.msra.mxu0 %v9060
    %9552 = vmatmul.bf16.gmra.mxu0 %v7235
    %v9553 = vpop.f32.mrf.mxu0
    %v9554 = vadd.f32 %v9541, %v9553
    %v9555 = vpop.f32.mrf.mxu0
    %9556 = vdwg.mxu0
    %9557 = vmatpush.bf16.msra.mxu0 %v9075
    %9558 = vmatpush.bf16.msra.mxu0 %v9074
    %9559 = vmatpush.bf16.msra.mxu0 %v9073
    %9560 = vmatpush.bf16.msra.mxu0 %v9072
    %9561 = vmatpush.bf16.msra.mxu0 %v9071
    %9562 = vmatpush.bf16.msra.mxu0 %v9070
    %9563 = vmatpush.bf16.msra.mxu0 %v9069
    %9564 = vmatpush.bf16.msra.mxu0 %v9068
    %9565 = vmatmul.bf16.gmra.mxu0 %v7738
    %v9566 = vpop.f32.mrf.mxu0
    %v9567 = vadd.f32 %v9554, %v9566
    %v9568 = vpop.f32.mrf.mxu0
    %9569 = vdwg.mxu0
    %9570 = vmatpush.bf16.msra.mxu0 %v9083
    %9571 = vmatpush.bf16.msra.mxu0 %v9082
    %9572 = vmatpush.bf16.msra.mxu0 %v9081
    %9573 = vmatpush.bf16.msra.mxu0 %v9080
    %9574 = vmatpush.bf16.msra.mxu0 %v9079
    %9575 = vmatpush.bf16.msra.mxu0 %v9078
    %9576 = vmatpush.bf16.msra.mxu0 %v9077
    %9577 = vmatpush.bf16.msra.mxu0 %v9076
    %9578 = vmatmul.bf16.gmra.mxu0 %v7739
    %v9579 = vpop.f32.mrf.mxu0
    %v9580 = vadd.f32 %v9567, %v9579
    %v9581 = vpop.f32.mrf.mxu0
    %9582 = vdwg.mxu0
    %9583 = vmatpush.bf16.msra.mxu0 %v9091
    %9584 = vmatpush.bf16.msra.mxu0 %v9090
    %9585 = vmatpush.bf16.msra.mxu0 %v9089
    %9586 = vmatpush.bf16.msra.mxu0 %v9088
    %9587 = vmatpush.bf16.msra.mxu0 %v9087
    %9588 = vmatpush.bf16.msra.mxu0 %v9086
    %9589 = vmatpush.bf16.msra.mxu0 %v9085
    %9590 = vmatpush.bf16.msra.mxu0 %v9084
    %9591 = vmatmul.bf16.gmra.mxu0 %v7740
    %v9592 = vpop.f32.mrf.mxu0
    %v9593 = vadd.f32 %v9580, %v9592
    %v9594 = vpop.f32.mrf.mxu0
    %9595 = vdwg.mxu0
    %vm9596 = vcmp.ge.f32.partialorder %v9593, 0.0
    %v9597 = vmul.f32 %v9593, 0.1
    %v9598 = vsel %vm9596, %v9593, %v9597
    %v9599 = vpack.c.bf16 %v9598, %v9598
    %v9600 = vld [vmem:[%s17] sm:$0xf]
    %v9601 = vld [vmem:[%s17 + $0x4] sm:$0xf]
    %v9602 = vld [vmem:[%s17 + $0x8] sm:$0xf]
    %v9603 = vld [vmem:[%s17 + $0xc] sm:$0xf]
    %v9604 = vld [vmem:[%s17 + $0x10] sm:$0xf]
    %v9605 = vld [vmem:[%s17 + $0x14] sm:$0xf]
    %v9606 = vld [vmem:[%s17 + $0x18] sm:$0xf]
    %v9607 = vld [vmem:[%s17 + $0x1c] sm:$0xf]
    %v9608 = vld [vmem:[%s18] sm:$0x1]
    %v9610 = vperm.slane %v9608, 0
    %v9620 = vunpack.c.l.b16 %v9600
    %v9621 = vunpack.c.l.b16 %v9601
    %v9622 = vunpack.c.l.b16 %v9602
    %v9623 = vunpack.c.l.b16 %v9603
    %v9624 = vunpack.c.l.b16 %v9604
    %v9625 = vunpack.c.l.b16 %v9605
    %v9626 = vunpack.c.l.b16 %v9606
    %v9627 = vunpack.c.l.b16 %v9607
    %v9628 = vpack.c.b16 %v9621, %v9620
    %v9629 = vpack.c.b16 %v9623, %v9622
    %v9630 = vpack.c.b16 %v9625, %v9624
    %v9631 = vpack.c.b16 %v9627, %v9626
    %vm9636 = vcmask 523264
    %v9638 = vsel %vm9636, %v9599, 0
    %9640 = vmatpush.bf16.msra.mxu0 0
    %9641 = vmatpush.bf16.msra.mxu0 0
    %9642 = vmatpush.bf16.msra.mxu0 0
    %9643 = vmatpush.bf16.msra.mxu0 0
    %9644 = vmatpush.bf16.msra.mxu0 %v9631
    %9645 = vmatpush.bf16.msra.mxu0 %v9630
    %9646 = vmatpush.bf16.msra.mxu0 %v9629
    %9647 = vmatpush.bf16.msra.mxu0 %v9628
    %9648 = vmatmul.bf16.gmra.mxu0 %v9638
    %v9649 = vpop.f32.mrf.mxu0
    %v9650 = vadd.f32 %v9610, %v9649
    %v9651 = vpop.f32.mrf.mxu0
    %9652 = vdwg.mxu0
    %vm9653 = vcmask 48128
    %9654 = vst.msk [vmem:[%s19] sm:$0xff] %vm9653, %v9650
    // Predicated region
    $region82: #{my_model_forward.1} parent=1 // pred_check
      _
    $region83: #{my_model_forward.1} parent=1 // pred_check_branch
      %9656 = sbr.rel (0) target = $region85
    $region84: #{my_model_forward.1} parent=1 // pred_region
      _
    $region85: #{my_model_forward.1} parent=1 // pred_fallthru
      _
    // Predicated region
    $region86: #{my_model_forward.1} parent=1 // pred_check
      _
    $region87: #{my_model_forward.1} parent=1 // pred_check_branch
      %9658 = sbr.rel (0) target = $region89
    $region88: #{my_model_forward.1} parent=1 // pred_region
      _
    $region89: #{my_model_forward.1} parent=1 // pred_fallthru
      _
    %9659 = vsyncpa [#allocation3], 1

</llo_original>
